<compile_context>
chip_gen: v5e
topology: v5e:2x2
jax: 0.10.0
libtpu: 0.0.40
codegen_flags: <defaults>
</compile_context>

<pallas_src>
import functools

import jax
import jax.numpy as jnp
from jax.experimental import pallas as pl
from jax.experimental.pallas import tpu as pltpu


def _round_up(x, m):
    return (x + m - 1) // m * m


# ---------------------------------------------------------------------------
# Static layout constants (fixed by the 84x84x4 input the dense head implies).
# All conv stages work on flat rows r = h*WF + w of an 11-wide grid; the extra
# columns/rows are finite garbage that never reaches the output (the kernel
# compacts the valid 7x7 window before storing).
# ---------------------------------------------------------------------------
WF = 11            # flat width of the stride-2 grid (10 valid cols + 1 garbage)
R2 = 112           # conv1(+sd2) rows computed per image   (valid 10x10 inside)
R3 = 97            # conv2 rows computed per image         (valid 9x9 inside)
R4 = 73            # conv3 rows computed per image         (valid 7x7 inside)
NB_DEFAULT = 8     # images per conv grid step
HEAD_K = 49 * 64   # 3136 — only the valid conv3 positions (dead K pruned)
N_HIDDEN = 512
N_OUT_PAD = 128    # action logits padded to one full lane tile


# ---------------------------------------------------------------------------
# Kernel 1: fused conv1 + conv2 + conv3 (+ReLUs), NB images per grid step.
#   conv1 (8x8 s4)  -> one K=768  GEMM over 6 shifted 128-lane slices of the
#                      parity-split frame; emits the (h%2,w%2,c) interleaved
#                      layout conv2 consumes (space-to-depth(2) folded in).
#   conv2 (4x4 s2)  -> one K=512  GEMM (4 taps merged); output channel dim is
#                      zero-padded to 128 lanes so conv3's concat stays aligned.
#   conv3 (3x3 s1)  -> one K=1152 GEMM (9 taps merged).
#   The valid 7x7 window is compacted in-kernel to a [49, 64] output per image.
# ---------------------------------------------------------------------------
def _conv_kernel(x_ref, w1_ref, b1_ref, w2_ref, b2_ref, w3_ref, b3_ref,
                 o_ref, x2_ref, a3_ref, a4_ref):
    nb = o_ref.shape[0]
    b1 = b1_ref[...]
    b2 = b2_ref[...]
    b3 = b3_ref[...]
    for n in range(nb):
        # conv1 fused with the stride-2 space-to-depth of its output.
        pieces = []
        for alpha in range(3):            # vertical offset 0..2 on the sd4 grid
            for dw in range(2):           # horizontal offset pair (covers 0..3)
                off = (alpha // 2) * WF + dw
                pieces.append(x_ref[n, alpha % 2, off:off + R2, :])
        lhs1 = jnp.concatenate(pieces, axis=1)                          # [112, 768]
        h1 = jnp.dot(lhs1, w1_ref[...], preferred_element_type=jnp.float32)
        x2_ref[...] = jnp.maximum(h1 + b1, 0.0).astype(jnp.bfloat16)    # [112, 128]

        # conv2: 4 taps K-merged (output cols 64..127 are zero padding).
        lhs2 = jnp.concatenate(
            [x2_ref[t:t + R3, :] for t in (0, 1, WF, WF + 1)], axis=1)  # [97, 512]
        h2 = jnp.dot(lhs2, w2_ref[...], preferred_element_type=jnp.float32)
        a3_ref[0:R3, :] = jnp.maximum(h2 + b2, 0.0).astype(jnp.bfloat16)

        # conv3: 9 taps K-merged.
        lhs3 = jnp.concatenate(
            [a3_ref[th * WF + tw:th * WF + tw + R4, :]
             for th in range(3) for tw in range(3)], axis=1)            # [73, 1152]
        h3 = jnp.dot(lhs3, w3_ref[...], preferred_element_type=jnp.float32)
        a4_ref[0:R4, :] = jnp.maximum(h3 + b3, 0.0).astype(jnp.bfloat16)

        # Compact the valid 7x7 window (drop flat-layout garbage rows/cols).
        for h in range(7):
            o_ref[n, h * 7:(h + 1) * 7, :] = a4_ref[h * WF:h * WF + 7, :]


def conv_pallas(x_par, w1, b1, w2, b2, w3, b3, nb):
    Bp = x_par.shape[0]
    flops = int(2 * Bp * (R2 * 768 * 128 + R3 * 512 * 128 + R4 * 1152 * 64))
    bytes_acc = int(Bp * (2 * 128 * 128 + 49 * 64) * 2
                    + (w1.size + w2.size + w3.size) * 2
                    + (b1.size + b2.size + b3.size) * 4)
    return pl.pallas_call(
        _conv_kernel,
        out_shape=jax.ShapeDtypeStruct((Bp, 49, 64), jnp.bfloat16),
        grid_spec=pltpu.PrefetchScalarGridSpec(
            num_scalar_prefetch=0,
            grid=(Bp // nb,),
            in_specs=[
                pl.BlockSpec((nb, 2, 128, 128), lambda i: (i, 0, 0, 0)),
                pl.BlockSpec((768, 128), lambda i: (0, 0)),
                pl.BlockSpec((1, 128), lambda i: (0, 0)),
                pl.BlockSpec((512, 128), lambda i: (0, 0)),
                pl.BlockSpec((1, 128), lambda i: (0, 0)),
                pl.BlockSpec((1152, 64), lambda i: (0, 0)),
                pl.BlockSpec((1, 64), lambda i: (0, 0)),
            ],
            out_specs=pl.BlockSpec((nb, 49, 64), lambda i: (i, 0, 0)),
            scratch_shapes=[
                pltpu.VMEM((R2, 128), jnp.bfloat16),    # conv1/sd2 activation
                pltpu.VMEM((104, 128), jnp.bfloat16),   # conv2 activation
                pltpu.VMEM((80, 64), jnp.bfloat16),     # conv3 activation
            ],
        ),
        compiler_params=pltpu.CompilerParams(dimension_semantics=("parallel",)),
        cost_estimate=pl.CostEstimate(flops=flops, transcendentals=0,
                                      bytes_accessed=bytes_acc),
    )(x_par, w1, b1, w2, b2, w3, b3)


# ---------------------------------------------------------------------------
# Kernel 2: dense head, fc1 + ReLU + fc2 fused.  Lane-dense (128) f32 output.
# ---------------------------------------------------------------------------
def _head_kernel(x_ref, w1_ref, b1_ref, w2_ref, b2_ref, o_ref):
    h = jnp.dot(x_ref[...], w1_ref[...], preferred_element_type=jnp.float32)
    h = jnp.maximum(h + b1_ref[...], 0.0).astype(jnp.bfloat16)
    q = jnp.dot(h, w2_ref[...], preferred_element_type=jnp.float32)
    o_ref[...] = (q + b2_ref[...]).astype(o_ref.dtype)


def head_pallas(x, w1, b1, w2, b2):
    B, K = x.shape
    N1, N2 = w1.shape[1], w2.shape[1]
    if B <= 128:
        tm = B                         # single full-extent block
    else:
        best = None
        for cand in (128, 256, 512):   # minimize padded rows, prefer larger tile
            if cand > B:
                continue
            key = ((-B) % cand, -cand)
            if best is None or key < best[0]:
                best = (key, cand)
        tm = best[1]
    grid_m = pl.cdiv(B, tm)
    flops = int(2 * B * (K * N1 + N1 * N2))
    bytes_acc = int(B * K * 2 + (K * N1 + N1 * N2) * 2 + B * N2 * 4 + (N1 + N2) * 4)
    return pl.pallas_call(
        _head_kernel,
        out_shape=jax.ShapeDtypeStruct((B, N2), jnp.float32),
        grid_spec=pltpu.PrefetchScalarGridSpec(
            num_scalar_prefetch=0,
            grid=(grid_m,),
            in_specs=[
                pl.BlockSpec((tm, K), lambda i: (i, 0)),
                pl.BlockSpec((K, N1), lambda i: (0, 0)),
                pl.BlockSpec((1, N1), lambda i: (0, 0)),
                pl.BlockSpec((N1, N2), lambda i: (0, 0)),
                pl.BlockSpec((1, N2), lambda i: (0, 0)),
            ],
            out_specs=pl.BlockSpec((tm, N2), lambda i: (i, 0)),
        ),
        compiler_params=pltpu.CompilerParams(
            dimension_semantics=("parallel",),
            vmem_limit_bytes=32 * 1024 * 1024),
        cost_estimate=pl.CostEstimate(flops=flops, transcendentals=0,
                                      bytes_accessed=bytes_acc),
    )(x, w1, b1, w2, b2)


# ---------------------------------------------------------------------------
# Parameter init (PyTorch layout / semantics) and one-time kernel-layout prep.
# ---------------------------------------------------------------------------
def init_params(key, action_size=3):
    def uinit(k, shape, fan_in):
        bound = 1.0 / float(fan_in) ** 0.5
        return jax.random.uniform(k, shape, jnp.float32, -bound, bound)

    ks = jax.random.split(key, 10)
    return {
        "conv1_w": uinit(ks[0], (32, 4, 8, 8), 4 * 8 * 8),
        "conv1_b": uinit(ks[1], (32,), 4 * 8 * 8),
        "conv2_w": uinit(ks[2], (64, 32, 4, 4), 32 * 4 * 4),
        "conv2_b": uinit(ks[3], (64,), 32 * 4 * 4),
        "conv3_w": uinit(ks[4], (64, 64, 3, 3), 64 * 3 * 3),
        "conv3_b": uinit(ks[5], (64,), 64 * 3 * 3),
        "fc1_w": uinit(ks[6], (64 * 7 * 7, 512), 64 * 7 * 7),   # stored [in, out]
        "fc1_b": uinit(ks[7], (512,), 64 * 7 * 7),
        "fc2_w": uinit(ks[8], (512, action_size), 512),
        "fc2_b": uinit(ks[9], (action_size,), 512),
    }


def prepare_params(params):
    """One-time conversion to kernel layout (all K-merged, bf16 operands)."""
    bf = lambda a: a.astype(jnp.bfloat16)
    f32 = jnp.float32

    # conv1 per-tap weight: [qh, qw, (ph4,pw4,ci)=64, co=32]  (kh=4qh+ph4, kw=4qw+pw4)
    w1t = params["conv1_w"].reshape(32, 4, 2, 4, 2, 4)            # co,ci,qh,ph4,qw,pw4
    w1t = jnp.transpose(w1t, (2, 4, 3, 5, 1, 0)).reshape(2, 2, 64, 32)

    # conv1 + space-to-depth(2) merged weight [768, 128]:
    # rows = (g=(alpha,dw), ew, s),  cols = (ph, pw, co);  zero where the tap is
    # outside conv1's 2x2 window on the sd4 grid.
    w1big = jnp.zeros((3, 2, 2, 64, 2, 2, 32), f32)
    for alpha in range(3):
        for dw in range(2):
            for ew in range(2):
                beta = 2 * dw + ew
                for ph in range(2):
                    for pw in range(2):
                        qh, qw = alpha - ph, beta - pw
                        if 0 <= qh <= 1 and 0 <= qw <= 1:
                            w1big = w1big.at[alpha, dw, ew, :, ph, pw, :].set(w1t[qh, qw])
    w1big = w1big.reshape(768, 128)
    b1t = jnp.tile(params["conv1_b"], 4).reshape(1, 128)

    # conv2 tap-merged weight [512, 128] (output columns 64..127 zero-padded).
    w2t = params["conv2_w"].reshape(64, 32, 2, 2, 2, 2)           # co,ci,sh,ph,sw,pw
    w2t = jnp.transpose(w2t, (2, 4, 3, 5, 1, 0)).reshape(512, 64)
    w2k = jnp.concatenate([w2t, jnp.zeros((512, 64), f32)], axis=1)
    b2p = jnp.concatenate([params["conv2_b"], jnp.zeros((64,), f32)]).reshape(1, 128)

    # conv3 tap-merged weight [1152, 64] (rows hitting the zero-pad lanes = 0).
    w3t = jnp.transpose(params["conv3_w"], (2, 3, 1, 0)).reshape(9, 64, 64)
    w3k = jnp.concatenate([w3t, jnp.zeros((9, 64, 64), f32)], axis=1).reshape(1152, 64)
    b3 = params["conv3_b"].reshape(1, 64)

    # fc1: rows reordered from PyTorch NCHW flatten (c,h,w) to the kernel's (h,w,c).
    fc1 = params["fc1_w"].reshape(64, 7, 7, N_HIDDEN)
    fc1 = jnp.transpose(fc1, (1, 2, 0, 3)).reshape(HEAD_K, N_HIDDEN)

    fc2 = params["fc2_w"]
    n_act = fc2.shape[1]
    fc2p = jnp.pad(fc2, ((0, 0), (0, N_OUT_PAD - n_act)))
    fc2b = jnp.pad(params["fc2_b"], (0, N_OUT_PAD - n_act)).reshape(1, N_OUT_PAD)

    return {
        "w1": bf(w1big), "b1": b1t.astype(f32),
        "w2": bf(w2k), "b2": b2p.astype(f32),
        "w3": bf(w3k), "b3": b3.astype(f32),
        "fc1_w": bf(fc1), "fc1_b": params["fc1_b"].reshape(1, N_HIDDEN).astype(f32),
        "fc2_w": bf(fc2p), "fc2_b": fc2b.astype(f32),
    }


# ---------------------------------------------------------------------------
# Full forward (matches Network.forward semantics; bf16 operands, f32 MXU acc)
# ---------------------------------------------------------------------------
@functools.partial(jax.jit, static_argnames=("action_size",))
def network_forward(prep, frame_nchw, action_size=3):
    # frame: [B, 4, 84, 84] NCHW f32 (like the PyTorch module) -> [B, action_size] f32.
    B = frame_nchw.shape[0]
    nb = NB_DEFAULT if B >= NB_DEFAULT else B
    Bp = _round_up(B, nb)

    # Parity-split space-to-depth input: [B, 2(eh), 121 (h*11+w), 128 (ew,ph4,pw4,c)]
    x = frame_nchw.astype(jnp.bfloat16)
    x = jnp.pad(x, ((0, 0), (0, 0), (0, 4), (0, 4)))              # 84 -> 88
    x = x.reshape(B, 4, 11, 2, 4, 11, 2, 4)                       # b c h eh ph4 w ew pw4
    x = jnp.transpose(x, (0, 3, 2, 5, 6, 4, 7, 1))                # b eh h w ew ph4 pw4 c
    x = x.reshape(B, 2, 121, 128)
    x = jnp.pad(x, ((0, Bp - B), (0, 0), (0, 7), (0, 0)))         # rows->128, batch->Bp

    y = conv_pallas(x, prep["w1"], prep["b1"], prep["w2"], prep["b2"],
                    prep["w3"], prep["b3"], nb)                   # [Bp, 49, 64] bf16

    q = head_pallas(y.reshape(Bp, HEAD_K), prep["fc1_w"], prep["fc1_b"],
                    prep["fc2_w"], prep["fc2_b"])                 # [Bp, 128] f32
    return q[:B, :action_size]


if __name__ == "__main__":
    key = jax.random.PRNGKey(0)
    k_param, k_in = jax.random.split(key)

    # The dense head (64*7*7 = 3136 inputs) fixes the spatial size to 84x84.
    frame = jax.random.uniform(k_in, (2, 4, 84, 84), jnp.float32)

    params = init_params(k_param, action_size=3)
    prep = prepare_params(params)              # one-time layout / bf16 conversion
    out = network_forward(prep, frame, action_size=3)
    jax.block_until_ready(out)

    assert out.shape == (2, 3), out.shape
    assert out.dtype == jnp.float32
    print("KERNEL_OK")
</pallas_src>

<mosaic_0001>
module attributes {stable_mosaic.version = 11 : i64} {
  func.func @_conv_kernel(%arg0: i32, %arg1: memref<2x2x128x128xbf16, #tpu.memory_space<vmem>>, %arg2: memref<768x128xbf16, #tpu.memory_space<vmem>>, %arg3: memref<1x128xf32, #tpu.memory_space<vmem>>, %arg4: memref<512x128xbf16, #tpu.memory_space<vmem>>, %arg5: memref<1x128xf32, #tpu.memory_space<vmem>>, %arg6: memref<1152x64xbf16, #tpu.memory_space<vmem>>, %arg7: memref<1x64xf32, #tpu.memory_space<vmem>>, %arg8: memref<2x49x64xbf16, #tpu.memory_space<vmem>>, %arg9: memref<112x128xbf16, #tpu.memory_space<vmem>>, %arg10: memref<104x128xbf16, #tpu.memory_space<vmem>>, %arg11: memref<80x64xbf16, #tpu.memory_space<vmem>>) attributes {dimension_semantics = [#tpu.dimension_semantics<parallel>], iteration_bounds = array<i64: 1>, scalar_prefetch = 0 : i64, scratch_operands = 3 : i64, tpu.core_type = #tpu.core_type<tc>, window_params = [{transform_indices = @transform_0, window_bounds = array<i64: 2, 2, 128, 128>}, {pipeline_mode = #tpu.pipeline_mode<synchronous>, transform_indices = @transform_1, window_bounds = array<i64: 768, 128>}, {pipeline_mode = #tpu.pipeline_mode<synchronous>, transform_indices = @transform_2, window_bounds = array<i64: 1, 128>}, {pipeline_mode = #tpu.pipeline_mode<synchronous>, transform_indices = @transform_3, window_bounds = array<i64: 512, 128>}, {pipeline_mode = #tpu.pipeline_mode<synchronous>, transform_indices = @transform_4, window_bounds = array<i64: 1, 128>}, {pipeline_mode = #tpu.pipeline_mode<synchronous>, transform_indices = @transform_5, window_bounds = array<i64: 1152, 64>}, {pipeline_mode = #tpu.pipeline_mode<synchronous>, transform_indices = @transform_6, window_bounds = array<i64: 1, 64>}, {transform_indices = @transform_7, window_bounds = array<i64: 2, 49, 64>}]} {
    %c0 = arith.constant 0 : index
    %c0_0 = arith.constant 0 : index
    %0 = vector.load %arg3[%c0, %c0_0] : memref<1x128xf32, #tpu.memory_space<vmem>>, vector<1x128xf32>
    %c0_1 = arith.constant 0 : index
    %c0_2 = arith.constant 0 : index
    %1 = vector.load %arg5[%c0_1, %c0_2] : memref<1x128xf32, #tpu.memory_space<vmem>>, vector<1x128xf32>
    %c0_3 = arith.constant 0 : index
    %c0_4 = arith.constant 0 : index
    %2 = vector.load %arg7[%c0_3, %c0_4] : memref<1x64xf32, #tpu.memory_space<vmem>>, vector<1x64xf32>
    %c0_5 = arith.constant 0 : index
    %c0_6 = arith.constant 0 : index
    %c0_7 = arith.constant 0 : index
    %c0_8 = arith.constant 0 : index
    %3 = vector.load %arg1[%c0_5, %c0_6, %c0_7, %c0_8] : memref<2x2x128x128xbf16, #tpu.memory_space<vmem>>, vector<1x1x112x128xbf16>
    %4 = vector.shape_cast %3 : vector<1x1x112x128xbf16> to vector<112x128xbf16>
    %c0_9 = arith.constant 0 : index
    %c0_10 = arith.constant 0 : index
    %c1 = arith.constant 1 : index
    %c0_11 = arith.constant 0 : index
    %5 = vector.load %arg1[%c0_9, %c0_10, %c1, %c0_11] : memref<2x2x128x128xbf16, #tpu.memory_space<vmem>>, vector<1x1x112x128xbf16>
    %6 = vector.shape_cast %5 : vector<1x1x112x128xbf16> to vector<112x128xbf16>
    %c0_12 = arith.constant 0 : index
    %c1_13 = arith.constant 1 : index
    %c0_14 = arith.constant 0 : index
    %c0_15 = arith.constant 0 : index
    %7 = vector.load %arg1[%c0_12, %c1_13, %c0_14, %c0_15] : memref<2x2x128x128xbf16, #tpu.memory_space<vmem>>, vector<1x1x112x128xbf16>
    %8 = vector.shape_cast %7 : vector<1x1x112x128xbf16> to vector<112x128xbf16>
    %c0_16 = arith.constant 0 : index
    %c1_17 = arith.constant 1 : index
    %c1_18 = arith.constant 1 : index
    %c0_19 = arith.constant 0 : index
    %9 = vector.load %arg1[%c0_16, %c1_17, %c1_18, %c0_19] : memref<2x2x128x128xbf16, #tpu.memory_space<vmem>>, vector<1x1x112x128xbf16>
    %10 = vector.shape_cast %9 : vector<1x1x112x128xbf16> to vector<112x128xbf16>
    %c0_20 = arith.constant 0 : index
    %c0_21 = arith.constant 0 : index
    %c11 = arith.constant 11 : index
    %c0_22 = arith.constant 0 : index
    %11 = vector.load %arg1[%c0_20, %c0_21, %c11, %c0_22] : memref<2x2x128x128xbf16, #tpu.memory_space<vmem>>, vector<1x1x112x128xbf16>
    %12 = vector.shape_cast %11 : vector<1x1x112x128xbf16> to vector<112x128xbf16>
    %c0_23 = arith.constant 0 : index
    %c0_24 = arith.constant 0 : index
    %c12 = arith.constant 12 : index
    %c0_25 = arith.constant 0 : index
    %13 = vector.load %arg1[%c0_23, %c0_24, %c12, %c0_25] : memref<2x2x128x128xbf16, #tpu.memory_space<vmem>>, vector<1x1x112x128xbf16>
    %14 = vector.shape_cast %13 : vector<1x1x112x128xbf16> to vector<112x128xbf16>
    %15 = tpu.concatenate %4, %6, %8, %10, %12, %14 in 1 : vector<112x128xbf16>, vector<112x128xbf16>, vector<112x128xbf16>, vector<112x128xbf16>, vector<112x128xbf16>, vector<112x128xbf16> -> vector<112x768xbf16>
    %c0_26 = arith.constant 0 : index
    %c0_27 = arith.constant 0 : index
    %16 = vector.load %arg2[%c0_26, %c0_27] : memref<768x128xbf16, #tpu.memory_space<vmem>>, vector<768x128xbf16>
    %cst = arith.constant dense<0.000000e+00> : vector<112x128xf32>
    %17 = tpu.matmul %15, %16, %cst {dimension_numbers = #tpu.dot_dimension_numbers<[1], [0], [0], [1], [0, 0, 1, 1], [], []>} : vector<112x768xbf16>, vector<768x128xbf16>, vector<112x128xf32> -> vector<112x128xf32>
    %18 = vector.broadcast %0 : vector<1x128xf32> to vector<112x128xf32>
    %19 = arith.addf %17, %18 : vector<112x128xf32>
    %cst_28 = arith.constant 0.000000e+00 : f32
    %20 = vector.broadcast %cst_28 : f32 to vector<112x128xf32>
    %21 = arith.maximumf %19, %20 : vector<112x128xf32>
    %22 = arith.truncf %21 : vector<112x128xf32> to vector<112x128xbf16>
    %c0_29 = arith.constant 0 : index
    %c0_30 = arith.constant 0 : index
    %23 = vector.load %arg9[%c0_29, %c0_30] : memref<112x128xbf16, #tpu.memory_space<vmem>>, vector<112x128xbf16>
    tpu.vector_store %arg9[%c0_29, %c0_30], %22 {strides = array<i32>} : memref<112x128xbf16, #tpu.memory_space<vmem>>, vector<112x128xbf16>,
    %c0_31 = arith.constant 0 : index
    %c0_32 = arith.constant 0 : index
    %24 = vector.load %arg9[%c0_31, %c0_32] : memref<112x128xbf16, #tpu.memory_space<vmem>>, vector<97x128xbf16>
    %c1_33 = arith.constant 1 : index
    %c0_34 = arith.constant 0 : index
    %25 = vector.load %arg9[%c1_33, %c0_34] : memref<112x128xbf16, #tpu.memory_space<vmem>>, vector<97x128xbf16>
    %c11_35 = arith.constant 11 : index
    %c0_36 = arith.constant 0 : index
    %26 = vector.load %arg9[%c11_35, %c0_36] : memref<112x128xbf16, #tpu.memory_space<vmem>>, vector<97x128xbf16>
    %c12_37 = arith.constant 12 : index
    %c0_38 = arith.constant 0 : index
    %27 = vector.load %arg9[%c12_37, %c0_38] : memref<112x128xbf16, #tpu.memory_space<vmem>>, vector<97x128xbf16>
    %28 = tpu.concatenate %24, %25, %26, %27 in 1 : vector<97x128xbf16>, vector<97x128xbf16>, vector<97x128xbf16>, vector<97x128xbf16> -> vector<97x512xbf16>
    %c0_39 = arith.constant 0 : index
    %c0_40 = arith.constant 0 : index
    %29 = vector.load %arg4[%c0_39, %c0_40] : memref<512x128xbf16, #tpu.memory_space<vmem>>, vector<512x128xbf16>
    %cst_41 = arith.constant dense<0.000000e+00> : vector<97x128xf32>
    %30 = tpu.matmul %28, %29, %cst_41 {dimension_numbers = #tpu.dot_dimension_numbers<[1], [0], [0], [1], [0, 0, 1, 1], [], []>} : vector<97x512xbf16>, vector<512x128xbf16>, vector<97x128xf32> -> vector<97x128xf32>
    %31 = vector.broadcast %1 : vector<1x128xf32> to vector<97x128xf32>
    %32 = arith.addf %30, %31 : vector<97x128xf32>
    %cst_42 = arith.constant 0.000000e+00 : f32
    %33 = vector.broadcast %cst_42 : f32 to vector<97x128xf32>
    %34 = arith.maximumf %32, %33 : vector<97x128xf32>
    %35 = arith.truncf %34 : vector<97x128xf32> to vector<97x128xbf16>
    %c0_43 = arith.constant 0 : index
    %c0_44 = arith.constant 0 : index
    %36 = vector.load %arg10[%c0_43, %c0_44] : memref<104x128xbf16, #tpu.memory_space<vmem>>, vector<97x128xbf16>
    tpu.vector_store %arg10[%c0_43, %c0_44], %35 {strides = array<i32>} : memref<104x128xbf16, #tpu.memory_space<vmem>>, vector<97x128xbf16>,
    %c0_45 = arith.constant 0 : index
    %c0_46 = arith.constant 0 : index
    %37 = vector.load %arg10[%c0_45, %c0_46] : memref<104x128xbf16, #tpu.memory_space<vmem>>, vector<73x128xbf16>
    %c1_47 = arith.constant 1 : index
    %c0_48 = arith.constant 0 : index
    %38 = vector.load %arg10[%c1_47, %c0_48] : memref<104x128xbf16, #tpu.memory_space<vmem>>, vector<73x128xbf16>
    %c2 = arith.constant 2 : index
    %c0_49 = arith.constant 0 : index
    %39 = vector.load %arg10[%c2, %c0_49] : memref<104x128xbf16, #tpu.memory_space<vmem>>, vector<73x128xbf16>
    %c11_50 = arith.constant 11 : index
    %c0_51 = arith.constant 0 : index
    %40 = vector.load %arg10[%c11_50, %c0_51] : memref<104x128xbf16, #tpu.memory_space<vmem>>, vector<73x128xbf16>
    %c12_52 = arith.constant 12 : index
    %c0_53 = arith.constant 0 : index
    %41 = vector.load %arg10[%c12_52, %c0_53] : memref<104x128xbf16, #tpu.memory_space<vmem>>, vector<73x128xbf16>
    %c13 = arith.constant 13 : index
    %c0_54 = arith.constant 0 : index
    %42 = vector.load %arg10[%c13, %c0_54] : memref<104x128xbf16, #tpu.memory_space<vmem>>, vector<73x128xbf16>
    %c22 = arith.constant 22 : index
    %c0_55 = arith.constant 0 : index
    %43 = vector.load %arg10[%c22, %c0_55] : memref<104x128xbf16, #tpu.memory_space<vmem>>, vector<73x128xbf16>
    %c23 = arith.constant 23 : index
    %c0_56 = arith.constant 0 : index
    %44 = vector.load %arg10[%c23, %c0_56] : memref<104x128xbf16, #tpu.memory_space<vmem>>, vector<73x128xbf16>
    %c24 = arith.constant 24 : index
    %c0_57 = arith.constant 0 : index
    %45 = vector.load %arg10[%c24, %c0_57] : memref<104x128xbf16, #tpu.memory_space<vmem>>, vector<73x128xbf16>
    %46 = tpu.concatenate %37, %38, %39, %40, %41, %42, %43, %44, %45 in 1 : vector<73x128xbf16>, vector<73x128xbf16>, vector<73x128xbf16>, vector<73x128xbf16>, vector<73x128xbf16>, vector<73x128xbf16>, vector<73x128xbf16>, vector<73x128xbf16>, vector<73x128xbf16> -> vector<73x1152xbf16>
    %c0_58 = arith.constant 0 : index
    %c0_59 = arith.constant 0 : index
    %47 = vector.load %arg6[%c0_58, %c0_59] : memref<1152x64xbf16, #tpu.memory_space<vmem>>, vector<1152x64xbf16>
    %cst_60 = arith.constant dense<0.000000e+00> : vector<73x64xf32>
    %48 = tpu.matmul %46, %47, %cst_60 {dimension_numbers = #tpu.dot_dimension_numbers<[1], [0], [0], [1], [0, 0, 1, 1], [], []>} : vector<73x1152xbf16>, vector<1152x64xbf16>, vector<73x64xf32> -> vector<73x64xf32>
    %49 = vector.broadcast %2 : vector<1x64xf32> to vector<73x64xf32>
    %50 = arith.addf %48, %49 : vector<73x64xf32>
    %cst_61 = arith.constant 0.000000e+00 : f32
    %51 = vector.broadcast %cst_61 : f32 to vector<73x64xf32>
    %52 = arith.maximumf %50, %51 : vector<73x64xf32>
    %53 = arith.truncf %52 : vector<73x64xf32> to vector<73x64xbf16>
    %c0_62 = arith.constant 0 : index
    %c0_63 = arith.constant 0 : index
    %54 = vector.load %arg11[%c0_62, %c0_63] : memref<80x64xbf16, #tpu.memory_space<vmem>>, vector<73x64xbf16>
    tpu.vector_store %arg11[%c0_62, %c0_63], %53 {strides = array<i32>} : memref<80x64xbf16, #tpu.memory_space<vmem>>, vector<73x64xbf16>,
    %c0_64 = arith.constant 0 : index
    %c0_65 = arith.constant 0 : index
    %55 = vector.load %arg11[%c0_64, %c0_65] : memref<80x64xbf16, #tpu.memory_space<vmem>>, vector<7x64xbf16>
    %c0_66 = arith.constant 0 : index
    %c0_67 = arith.constant 0 : index
    %c0_68 = arith.constant 0 : index
    %56 = vector.load %arg8[%c0_66, %c0_67, %c0_68] : memref<2x49x64xbf16, #tpu.memory_space<vmem>>, vector<1x7x64xbf16>
    %57 = vector.shape_cast %56 : vector<1x7x64xbf16> to vector<7x64xbf16>
    %58 = vector.shape_cast %55 : vector<7x64xbf16> to vector<1x7x64xbf16>
    tpu.vector_store %arg8[%c0_66, %c0_67, %c0_68], %58 {strides = array<i32>} : memref<2x49x64xbf16, #tpu.memory_space<vmem>>, vector<1x7x64xbf16>,
    %c11_69 = arith.constant 11 : index
    %c0_70 = arith.constant 0 : index
    %59 = vector.load %arg11[%c11_69, %c0_70] : memref<80x64xbf16, #tpu.memory_space<vmem>>, vector<7x64xbf16>
    %c0_71 = arith.constant 0 : index
    %c7 = arith.constant 7 : index
    %c0_72 = arith.constant 0 : index
    %60 = vector.load %arg8[%c0_71, %c7, %c0_72] : memref<2x49x64xbf16, #tpu.memory_space<vmem>>, vector<1x7x64xbf16>
    %61 = vector.shape_cast %60 : vector<1x7x64xbf16> to vector<7x64xbf16>
    %62 = vector.shape_cast %59 : vector<7x64xbf16> to vector<1x7x64xbf16>
    tpu.vector_store %arg8[%c0_71, %c7, %c0_72], %62 {strides = array<i32>} : memref<2x49x64xbf16, #tpu.memory_space<vmem>>, vector<1x7x64xbf16>,
    %c22_73 = arith.constant 22 : index
    %c0_74 = arith.constant 0 : index
    %63 = vector.load %arg11[%c22_73, %c0_74] : memref<80x64xbf16, #tpu.memory_space<vmem>>, vector<7x64xbf16>
    %c0_75 = arith.constant 0 : index
    %c14 = arith.constant 14 : index
    %c0_76 = arith.constant 0 : index
    %64 = vector.load %arg8[%c0_75, %c14, %c0_76] : memref<2x49x64xbf16, #tpu.memory_space<vmem>>, vector<1x7x64xbf16>
    %65 = vector.shape_cast %64 : vector<1x7x64xbf16> to vector<7x64xbf16>
    %66 = vector.shape_cast %63 : vector<7x64xbf16> to vector<1x7x64xbf16>
    tpu.vector_store %arg8[%c0_75, %c14, %c0_76], %66 {strides = array<i32>} : memref<2x49x64xbf16, #tpu.memory_space<vmem>>, vector<1x7x64xbf16>,
    %c33 = arith.constant 33 : index
    %c0_77 = arith.constant 0 : index
    %67 = vector.load %arg11[%c33, %c0_77] : memref<80x64xbf16, #tpu.memory_space<vmem>>, vector<7x64xbf16>
    %c0_78 = arith.constant 0 : index
    %c21 = arith.constant 21 : index
    %c0_79 = arith.constant 0 : index
    %68 = vector.load %arg8[%c0_78, %c21, %c0_79] : memref<2x49x64xbf16, #tpu.memory_space<vmem>>, vector<1x7x64xbf16>
    %69 = vector.shape_cast %68 : vector<1x7x64xbf16> to vector<7x64xbf16>
    %70 = vector.shape_cast %67 : vector<7x64xbf16> to vector<1x7x64xbf16>
    tpu.vector_store %arg8[%c0_78, %c21, %c0_79], %70 {strides = array<i32>} : memref<2x49x64xbf16, #tpu.memory_space<vmem>>, vector<1x7x64xbf16>,
    %c44 = arith.constant 44 : index
    %c0_80 = arith.constant 0 : index
    %71 = vector.load %arg11[%c44, %c0_80] : memref<80x64xbf16, #tpu.memory_space<vmem>>, vector<7x64xbf16>
    %c0_81 = arith.constant 0 : index
    %c28 = arith.constant 28 : index
    %c0_82 = arith.constant 0 : index
    %72 = vector.load %arg8[%c0_81, %c28, %c0_82] : memref<2x49x64xbf16, #tpu.memory_space<vmem>>, vector<1x7x64xbf16>
    %73 = vector.shape_cast %72 : vector<1x7x64xbf16> to vector<7x64xbf16>
    %74 = vector.shape_cast %71 : vector<7x64xbf16> to vector<1x7x64xbf16>
    tpu.vector_store %arg8[%c0_81, %c28, %c0_82], %74 {strides = array<i32>} : memref<2x49x64xbf16, #tpu.memory_space<vmem>>, vector<1x7x64xbf16>,
    %c55 = arith.constant 55 : index
    %c0_83 = arith.constant 0 : index
    %75 = vector.load %arg11[%c55, %c0_83] : memref<80x64xbf16, #tpu.memory_space<vmem>>, vector<7x64xbf16>
    %c0_84 = arith.constant 0 : index
    %c35 = arith.constant 35 : index
    %c0_85 = arith.constant 0 : index
    %76 = vector.load %arg8[%c0_84, %c35, %c0_85] : memref<2x49x64xbf16, #tpu.memory_space<vmem>>, vector<1x7x64xbf16>
    %77 = vector.shape_cast %76 : vector<1x7x64xbf16> to vector<7x64xbf16>
    %78 = vector.shape_cast %75 : vector<7x64xbf16> to vector<1x7x64xbf16>
    tpu.vector_store %arg8[%c0_84, %c35, %c0_85], %78 {strides = array<i32>} : memref<2x49x64xbf16, #tpu.memory_space<vmem>>, vector<1x7x64xbf16>,
    %c66 = arith.constant 66 : index
    %c0_86 = arith.constant 0 : index
    %79 = vector.load %arg11[%c66, %c0_86] : memref<80x64xbf16, #tpu.memory_space<vmem>>, vector<7x64xbf16>
    %c0_87 = arith.constant 0 : index
    %c42 = arith.constant 42 : index
    %c0_88 = arith.constant 0 : index
    %80 = vector.load %arg8[%c0_87, %c42, %c0_88] : memref<2x49x64xbf16, #tpu.memory_space<vmem>>, vector<1x7x64xbf16>
    %81 = vector.shape_cast %80 : vector<1x7x64xbf16> to vector<7x64xbf16>
    %82 = vector.shape_cast %79 : vector<7x64xbf16> to vector<1x7x64xbf16>
    tpu.vector_store %arg8[%c0_87, %c42, %c0_88], %82 {strides = array<i32>} : memref<2x49x64xbf16, #tpu.memory_space<vmem>>, vector<1x7x64xbf16>,
    %c1_89 = arith.constant 1 : index
    %c0_90 = arith.constant 0 : index
    %c0_91 = arith.constant 0 : index
    %c0_92 = arith.constant 0 : index
    %83 = vector.load %arg1[%c1_89, %c0_90, %c0_91, %c0_92] : memref<2x2x128x128xbf16, #tpu.memory_space<vmem>>, vector<1x1x112x128xbf16>
    %84 = vector.shape_cast %83 : vector<1x1x112x128xbf16> to vector<112x128xbf16>
    %c1_93 = arith.constant 1 : index
    %c0_94 = arith.constant 0 : index
    %c1_95 = arith.constant 1 : index
    %c0_96 = arith.constant 0 : index
    %85 = vector.load %arg1[%c1_93, %c0_94, %c1_95, %c0_96] : memref<2x2x128x128xbf16, #tpu.memory_space<vmem>>, vector<1x1x112x128xbf16>
    %86 = vector.shape_cast %85 : vector<1x1x112x128xbf16> to vector<112x128xbf16>
    %c1_97 = arith.constant 1 : index
    %c1_98 = arith.constant 1 : index
    %c0_99 = arith.constant 0 : index
    %c0_100 = arith.constant 0 : index
    %87 = vector.load %arg1[%c1_97, %c1_98, %c0_99, %c0_100] : memref<2x2x128x128xbf16, #tpu.memory_space<vmem>>, vector<1x1x112x128xbf16>
    %88 = vector.shape_cast %87 : vector<1x1x112x128xbf16> to vector<112x128xbf16>
    %c1_101 = arith.constant 1 : index
    %c1_102 = arith.constant 1 : index
    %c1_103 = arith.constant 1 : index
    %c0_104 = arith.constant 0 : index
    %89 = vector.load %arg1[%c1_101, %c1_102, %c1_103, %c0_104] : memref<2x2x128x128xbf16, #tpu.memory_space<vmem>>, vector<1x1x112x128xbf16>
    %90 = vector.shape_cast %89 : vector<1x1x112x128xbf16> to vector<112x128xbf16>
    %c1_105 = arith.constant 1 : index
    %c0_106 = arith.constant 0 : index
    %c11_107 = arith.constant 11 : index
    %c0_108 = arith.constant 0 : index
    %91 = vector.load %arg1[%c1_105, %c0_106, %c11_107, %c0_108] : memref<2x2x128x128xbf16, #tpu.memory_space<vmem>>, vector<1x1x112x128xbf16>
    %92 = vector.shape_cast %91 : vector<1x1x112x128xbf16> to vector<112x128xbf16>
    %c1_109 = arith.constant 1 : index
    %c0_110 = arith.constant 0 : index
    %c12_111 = arith.constant 12 : index
    %c0_112 = arith.constant 0 : index
    %93 = vector.load %arg1[%c1_109, %c0_110, %c12_111, %c0_112] : memref<2x2x128x128xbf16, #tpu.memory_space<vmem>>, vector<1x1x112x128xbf16>
    %94 = vector.shape_cast %93 : vector<1x1x112x128xbf16> to vector<112x128xbf16>
    %95 = tpu.concatenate %84, %86, %88, %90, %92, %94 in 1 : vector<112x128xbf16>, vector<112x128xbf16>, vector<112x128xbf16>, vector<112x128xbf16>, vector<112x128xbf16>, vector<112x128xbf16> -> vector<112x768xbf16>
    %c0_113 = arith.constant 0 : index
    %c0_114 = arith.constant 0 : index
    %96 = vector.load %arg2[%c0_113, %c0_114] : memref<768x128xbf16, #tpu.memory_space<vmem>>, vector<768x128xbf16>
    %cst_115 = arith.constant dense<0.000000e+00> : vector<112x128xf32>
    %97 = tpu.matmul %95, %96, %cst_115 {dimension_numbers = #tpu.dot_dimension_numbers<[1], [0], [0], [1], [0, 0, 1, 1], [], []>} : vector<112x768xbf16>, vector<768x128xbf16>, vector<112x128xf32> -> vector<112x128xf32>
    %98 = vector.broadcast %0 : vector<1x128xf32> to vector<112x128xf32>
    %99 = arith.addf %97, %98 : vector<112x128xf32>
    %cst_116 = arith.constant 0.000000e+00 : f32
    %100 = vector.broadcast %cst_116 : f32 to vector<112x128xf32>
    %101 = arith.maximumf %99, %100 : vector<112x128xf32>
    %102 = arith.truncf %101 : vector<112x128xf32> to vector<112x128xbf16>
    %c0_117 = arith.constant 0 : index
    %c0_118 = arith.constant 0 : index
    %103 = vector.load %arg9[%c0_117, %c0_118] : memref<112x128xbf16, #tpu.memory_space<vmem>>, vector<112x128xbf16>
    tpu.vector_store %arg9[%c0_117, %c0_118], %102 {strides = array<i32>} : memref<112x128xbf16, #tpu.memory_space<vmem>>, vector<112x128xbf16>,
    %c0_119 = arith.constant 0 : index
    %c0_120 = arith.constant 0 : index
    %104 = vector.load %arg9[%c0_119, %c0_120] : memref<112x128xbf16, #tpu.memory_space<vmem>>, vector<97x128xbf16>
    %c1_121 = arith.constant 1 : index
    %c0_122 = arith.constant 0 : index
    %105 = vector.load %arg9[%c1_121, %c0_122] : memref<112x128xbf16, #tpu.memory_space<vmem>>, vector<97x128xbf16>
    %c11_123 = arith.constant 11 : index
    %c0_124 = arith.constant 0 : index
    %106 = vector.load %arg9[%c11_123, %c0_124] : memref<112x128xbf16, #tpu.memory_space<vmem>>, vector<97x128xbf16>
    %c12_125 = arith.constant 12 : index
    %c0_126 = arith.constant 0 : index
    %107 = vector.load %arg9[%c12_125, %c0_126] : memref<112x128xbf16, #tpu.memory_space<vmem>>, vector<97x128xbf16>
    %108 = tpu.concatenate %104, %105, %106, %107 in 1 : vector<97x128xbf16>, vector<97x128xbf16>, vector<97x128xbf16>, vector<97x128xbf16> -> vector<97x512xbf16>
    %c0_127 = arith.constant 0 : index
    %c0_128 = arith.constant 0 : index
    %109 = vector.load %arg4[%c0_127, %c0_128] : memref<512x128xbf16, #tpu.memory_space<vmem>>, vector<512x128xbf16>
    %cst_129 = arith.constant dense<0.000000e+00> : vector<97x128xf32>
    %110 = tpu.matmul %108, %109, %cst_129 {dimension_numbers = #tpu.dot_dimension_numbers<[1], [0], [0], [1], [0, 0, 1, 1], [], []>} : vector<97x512xbf16>, vector<512x128xbf16>, vector<97x128xf32> -> vector<97x128xf32>
    %111 = vector.broadcast %1 : vector<1x128xf32> to vector<97x128xf32>
    %112 = arith.addf %110, %111 : vector<97x128xf32>
    %cst_130 = arith.constant 0.000000e+00 : f32
    %113 = vector.broadcast %cst_130 : f32 to vector<97x128xf32>
    %114 = arith.maximumf %112, %113 : vector<97x128xf32>
    %115 = arith.truncf %114 : vector<97x128xf32> to vector<97x128xbf16>
    %c0_131 = arith.constant 0 : index
    %c0_132 = arith.constant 0 : index
    %116 = vector.load %arg10[%c0_131, %c0_132] : memref<104x128xbf16, #tpu.memory_space<vmem>>, vector<97x128xbf16>
    tpu.vector_store %arg10[%c0_131, %c0_132], %115 {strides = array<i32>} : memref<104x128xbf16, #tpu.memory_space<vmem>>, vector<97x128xbf16>,
    %c0_133 = arith.constant 0 : index
    %c0_134 = arith.constant 0 : index
    %117 = vector.load %arg10[%c0_133, %c0_134] : memref<104x128xbf16, #tpu.memory_space<vmem>>, vector<73x128xbf16>
    %c1_135 = arith.constant 1 : index
    %c0_136 = arith.constant 0 : index
    %118 = vector.load %arg10[%c1_135, %c0_136] : memref<104x128xbf16, #tpu.memory_space<vmem>>, vector<73x128xbf16>
    %c2_137 = arith.constant 2 : index
    %c0_138 = arith.constant 0 : index
    %119 = vector.load %arg10[%c2_137, %c0_138] : memref<104x128xbf16, #tpu.memory_space<vmem>>, vector<73x128xbf16>
    %c11_139 = arith.constant 11 : index
    %c0_140 = arith.constant 0 : index
    %120 = vector.load %arg10[%c11_139, %c0_140] : memref<104x128xbf16, #tpu.memory_space<vmem>>, vector<73x128xbf16>
    %c12_141 = arith.constant 12 : index
    %c0_142 = arith.constant 0 : index
    %121 = vector.load %arg10[%c12_141, %c0_142] : memref<104x128xbf16, #tpu.memory_space<vmem>>, vector<73x128xbf16>
    %c13_143 = arith.constant 13 : index
    %c0_144 = arith.constant 0 : index
    %122 = vector.load %arg10[%c13_143, %c0_144] : memref<104x128xbf16, #tpu.memory_space<vmem>>, vector<73x128xbf16>
    %c22_145 = arith.constant 22 : index
    %c0_146 = arith.constant 0 : index
    %123 = vector.load %arg10[%c22_145, %c0_146] : memref<104x128xbf16, #tpu.memory_space<vmem>>, vector<73x128xbf16>
    %c23_147 = arith.constant 23 : index
    %c0_148 = arith.constant 0 : index
    %124 = vector.load %arg10[%c23_147, %c0_148] : memref<104x128xbf16, #tpu.memory_space<vmem>>, vector<73x128xbf16>
    %c24_149 = arith.constant 24 : index
    %c0_150 = arith.constant 0 : index
    %125 = vector.load %arg10[%c24_149, %c0_150] : memref<104x128xbf16, #tpu.memory_space<vmem>>, vector<73x128xbf16>
    %126 = tpu.concatenate %117, %118, %119, %120, %121, %122, %123, %124, %125 in 1 : vector<73x128xbf16>, vector<73x128xbf16>, vector<73x128xbf16>, vector<73x128xbf16>, vector<73x128xbf16>, vector<73x128xbf16>, vector<73x128xbf16>, vector<73x128xbf16>, vector<73x128xbf16> -> vector<73x1152xbf16>
    %c0_151 = arith.constant 0 : index
    %c0_152 = arith.constant 0 : index
    %127 = vector.load %arg6[%c0_151, %c0_152] : memref<1152x64xbf16, #tpu.memory_space<vmem>>, vector<1152x64xbf16>
    %cst_153 = arith.constant dense<0.000000e+00> : vector<73x64xf32>
    %128 = tpu.matmul %126, %127, %cst_153 {dimension_numbers = #tpu.dot_dimension_numbers<[1], [0], [0], [1], [0, 0, 1, 1], [], []>} : vector<73x1152xbf16>, vector<1152x64xbf16>, vector<73x64xf32> -> vector<73x64xf32>
    %129 = vector.broadcast %2 : vector<1x64xf32> to vector<73x64xf32>
    %130 = arith.addf %128, %129 : vector<73x64xf32>
    %cst_154 = arith.constant 0.000000e+00 : f32
    %131 = vector.broadcast %cst_154 : f32 to vector<73x64xf32>
    %132 = arith.maximumf %130, %131 : vector<73x64xf32>
    %133 = arith.truncf %132 : vector<73x64xf32> to vector<73x64xbf16>
    %c0_155 = arith.constant 0 : index
    %c0_156 = arith.constant 0 : index
    %134 = vector.load %arg11[%c0_155, %c0_156] : memref<80x64xbf16, #tpu.memory_space<vmem>>, vector<73x64xbf16>
    tpu.vector_store %arg11[%c0_155, %c0_156], %133 {strides = array<i32>} : memref<80x64xbf16, #tpu.memory_space<vmem>>, vector<73x64xbf16>,
    %c0_157 = arith.constant 0 : index
    %c0_158 = arith.constant 0 : index
    %135 = vector.load %arg11[%c0_157, %c0_158] : memref<80x64xbf16, #tpu.memory_space<vmem>>, vector<7x64xbf16>
    %c1_159 = arith.constant 1 : index
    %c0_160 = arith.constant 0 : index
    %c0_161 = arith.constant 0 : index
    %136 = vector.load %arg8[%c1_159, %c0_160, %c0_161] : memref<2x49x64xbf16, #tpu.memory_space<vmem>>, vector<1x7x64xbf16>
    %137 = vector.shape_cast %136 : vector<1x7x64xbf16> to vector<7x64xbf16>
    %138 = vector.shape_cast %135 : vector<7x64xbf16> to vector<1x7x64xbf16>
    tpu.vector_store %arg8[%c1_159, %c0_160, %c0_161], %138 {strides = array<i32>} : memref<2x49x64xbf16, #tpu.memory_space<vmem>>, vector<1x7x64xbf16>,
    %c11_162 = arith.constant 11 : index
    %c0_163 = arith.constant 0 : index
    %139 = vector.load %arg11[%c11_162, %c0_163] : memref<80x64xbf16, #tpu.memory_space<vmem>>, vector<7x64xbf16>
    %c1_164 = arith.constant 1 : index
    %c7_165 = arith.constant 7 : index
    %c0_166 = arith.constant 0 : index
    %140 = vector.load %arg8[%c1_164, %c7_165, %c0_166] : memref<2x49x64xbf16, #tpu.memory_space<vmem>>, vector<1x7x64xbf16>
    %141 = vector.shape_cast %140 : vector<1x7x64xbf16> to vector<7x64xbf16>
    %142 = vector.shape_cast %139 : vector<7x64xbf16> to vector<1x7x64xbf16>
    tpu.vector_store %arg8[%c1_164, %c7_165, %c0_166], %142 {strides = array<i32>} : memref<2x49x64xbf16, #tpu.memory_space<vmem>>, vector<1x7x64xbf16>,
    %c22_167 = arith.constant 22 : index
    %c0_168 = arith.constant 0 : index
    %143 = vector.load %arg11[%c22_167, %c0_168] : memref<80x64xbf16, #tpu.memory_space<vmem>>, vector<7x64xbf16>
    %c1_169 = arith.constant 1 : index
    %c14_170 = arith.constant 14 : index
    %c0_171 = arith.constant 0 : index
    %144 = vector.load %arg8[%c1_169, %c14_170, %c0_171] : memref<2x49x64xbf16, #tpu.memory_space<vmem>>, vector<1x7x64xbf16>
    %145 = vector.shape_cast %144 : vector<1x7x64xbf16> to vector<7x64xbf16>
    %146 = vector.shape_cast %143 : vector<7x64xbf16> to vector<1x7x64xbf16>
    tpu.vector_store %arg8[%c1_169, %c14_170, %c0_171], %146 {strides = array<i32>} : memref<2x49x64xbf16, #tpu.memory_space<vmem>>, vector<1x7x64xbf16>,
    %c33_172 = arith.constant 33 : index
    %c0_173 = arith.constant 0 : index
    %147 = vector.load %arg11[%c33_172, %c0_173] : memref<80x64xbf16, #tpu.memory_space<vmem>>, vector<7x64xbf16>
    %c1_174 = arith.constant 1 : index
    %c21_175 = arith.constant 21 : index
    %c0_176 = arith.constant 0 : index
    %148 = vector.load %arg8[%c1_174, %c21_175, %c0_176] : memref<2x49x64xbf16, #tpu.memory_space<vmem>>, vector<1x7x64xbf16>
    %149 = vector.shape_cast %148 : vector<1x7x64xbf16> to vector<7x64xbf16>
    %150 = vector.shape_cast %147 : vector<7x64xbf16> to vector<1x7x64xbf16>
    tpu.vector_store %arg8[%c1_174, %c21_175, %c0_176], %150 {strides = array<i32>} : memref<2x49x64xbf16, #tpu.memory_space<vmem>>, vector<1x7x64xbf16>,
    %c44_177 = arith.constant 44 : index
    %c0_178 = arith.constant 0 : index
    %151 = vector.load %arg11[%c44_177, %c0_178] : memref<80x64xbf16, #tpu.memory_space<vmem>>, vector<7x64xbf16>
    %c1_179 = arith.constant 1 : index
    %c28_180 = arith.constant 28 : index
    %c0_181 = arith.constant 0 : index
    %152 = vector.load %arg8[%c1_179, %c28_180, %c0_181] : memref<2x49x64xbf16, #tpu.memory_space<vmem>>, vector<1x7x64xbf16>
    %153 = vector.shape_cast %152 : vector<1x7x64xbf16> to vector<7x64xbf16>
    %154 = vector.shape_cast %151 : vector<7x64xbf16> to vector<1x7x64xbf16>
    tpu.vector_store %arg8[%c1_179, %c28_180, %c0_181], %154 {strides = array<i32>} : memref<2x49x64xbf16, #tpu.memory_space<vmem>>, vector<1x7x64xbf16>,
    %c55_182 = arith.constant 55 : index
    %c0_183 = arith.constant 0 : index
    %155 = vector.load %arg11[%c55_182, %c0_183] : memref<80x64xbf16, #tpu.memory_space<vmem>>, vector<7x64xbf16>
    %c1_184 = arith.constant 1 : index
    %c35_185 = arith.constant 35 : index
    %c0_186 = arith.constant 0 : index
    %156 = vector.load %arg8[%c1_184, %c35_185, %c0_186] : memref<2x49x64xbf16, #tpu.memory_space<vmem>>, vector<1x7x64xbf16>
    %157 = vector.shape_cast %156 : vector<1x7x64xbf16> to vector<7x64xbf16>
    %158 = vector.shape_cast %155 : vector<7x64xbf16> to vector<1x7x64xbf16>
    tpu.vector_store %arg8[%c1_184, %c35_185, %c0_186], %158 {strides = array<i32>} : memref<2x49x64xbf16, #tpu.memory_space<vmem>>, vector<1x7x64xbf16>,
    %c66_187 = arith.constant 66 : index
    %c0_188 = arith.constant 0 : index
    %159 = vector.load %arg11[%c66_187, %c0_188] : memref<80x64xbf16, #tpu.memory_space<vmem>>, vector<7x64xbf16>
    %c1_189 = arith.constant 1 : index
    %c42_190 = arith.constant 42 : index
    %c0_191 = arith.constant 0 : index
    %160 = vector.load %arg8[%c1_189, %c42_190, %c0_191] : memref<2x49x64xbf16, #tpu.memory_space<vmem>>, vector<1x7x64xbf16>
    %161 = vector.shape_cast %160 : vector<1x7x64xbf16> to vector<7x64xbf16>
    %162 = vector.shape_cast %159 : vector<7x64xbf16> to vector<1x7x64xbf16>
    tpu.vector_store %arg8[%c1_189, %c42_190, %c0_191], %162 {strides = array<i32>} : memref<2x49x64xbf16, #tpu.memory_space<vmem>>, vector<1x7x64xbf16>,
    return
  }
  func.func @transform_0(%arg0: i32) -> (i32, i32, i32, i32) {
    %c0_i32 = arith.constant 0 : i32
    %c0_i32_0 = arith.constant 0 : i32
    %c0_i32_1 = arith.constant 0 : i32
    %c0_i32_2 = arith.constant 0 : i32
    return %arg0, %c0_i32, %c0_i32_0, %c0_i32_1 : i32, i32, i32, i32
  }
  func.func @transform_1(%arg0: i32) -> (i32, i32) {
    %c0_i32 = arith.constant 0 : i32
    %c0_i32_0 = arith.constant 0 : i32
    %c0_i32_1 = arith.constant 0 : i32
    return %c0_i32, %c0_i32_0 : i32, i32
  }
  func.func @transform_2(%arg0: i32) -> (i32, i32) {
    %c0_i32 = arith.constant 0 : i32
    %c0_i32_0 = arith.constant 0 : i32
    %c0_i32_1 = arith.constant 0 : i32
    return %c0_i32, %c0_i32_0 : i32, i32
  }
  func.func @transform_3(%arg0: i32) -> (i32, i32) {
    %c0_i32 = arith.constant 0 : i32
    %c0_i32_0 = arith.constant 0 : i32
    %c0_i32_1 = arith.constant 0 : i32
    return %c0_i32, %c0_i32_0 : i32, i32
  }
  func.func @transform_4(%arg0: i32) -> (i32, i32) {
    %c0_i32 = arith.constant 0 : i32
    %c0_i32_0 = arith.constant 0 : i32
    %c0_i32_1 = arith.constant 0 : i32
    return %c0_i32, %c0_i32_0 : i32, i32
  }
  func.func @transform_5(%arg0: i32) -> (i32, i32) {
    %c0_i32 = arith.constant 0 : i32
    %c0_i32_0 = arith.constant 0 : i32
    %c0_i32_1 = arith.constant 0 : i32
    return %c0_i32, %c0_i32_0 : i32, i32
  }
  func.func @transform_6(%arg0: i32) -> (i32, i32) {
    %c0_i32 = arith.constant 0 : i32
    %c0_i32_0 = arith.constant 0 : i32
    %c0_i32_1 = arith.constant 0 : i32
    return %c0_i32, %c0_i32_0 : i32, i32
  }
  func.func @transform_7(%arg0: i32) -> (i32, i32, i32) {
    %c0_i32 = arith.constant 0 : i32
    %c0_i32_0 = arith.constant 0 : i32
    %c0_i32_1 = arith.constant 0 : i32
    return %arg0, %c0_i32, %c0_i32_0 : i32, i32, i32
  }
}

module attributes {stable_mosaic.version = 11 : i64} {
  func.func @_head_kernel(%arg0: i32, %arg1: memref<2x3136xbf16, #tpu.memory_space<vmem>>, %arg2: memref<3136x512xbf16, #tpu.memory_space<vmem>>, %arg3: memref<1x512xf32, #tpu.memory_space<vmem>>, %arg4: memref<512x128xbf16, #tpu.memory_space<vmem>>, %arg5: memref<1x128xf32, #tpu.memory_space<vmem>>, %arg6: memref<2x128xf32, #tpu.memory_space<vmem>>) attributes {dimension_semantics = [#tpu.dimension_semantics<parallel>], iteration_bounds = array<i64: 1>, scalar_prefetch = 0 : i64, scratch_operands = 0 : i64, tpu.core_type = #tpu.core_type<tc>, window_params = [{transform_indices = @transform_0, window_bounds = array<i64: 2, 3136>}, {pipeline_mode = #tpu.pipeline_mode<synchronous>, transform_indices = @transform_1, window_bounds = array<i64: 3136, 512>}, {pipeline_mode = #tpu.pipeline_mode<synchronous>, transform_indices = @transform_2, window_bounds = array<i64: 1, 512>}, {pipeline_mode = #tpu.pipeline_mode<synchronous>, transform_indices = @transform_3, window_bounds = array<i64: 512, 128>}, {pipeline_mode = #tpu.pipeline_mode<synchronous>, transform_indices = @transform_4, window_bounds = array<i64: 1, 128>}, {transform_indices = @transform_5, window_bounds = array<i64: 2, 128>}]} {
    %c0 = arith.constant 0 : index
    %c0_0 = arith.constant 0 : index
    %0 = vector.load %arg1[%c0, %c0_0] : memref<2x3136xbf16, #tpu.memory_space<vmem>>, vector<2x3136xbf16>
    %c0_1 = arith.constant 0 : index
    %c0_2 = arith.constant 0 : index
    %1 = vector.load %arg2[%c0_1, %c0_2] : memref<3136x512xbf16, #tpu.memory_space<vmem>>, vector<3136x512xbf16>
    %cst = arith.constant dense<0.000000e+00> : vector<2x512xf32>
    %2 = tpu.matmul %0, %1, %cst {dimension_numbers = #tpu.dot_dimension_numbers<[1], [0], [0], [1], [0, 0, 1, 1], [], []>} : vector<2x3136xbf16>, vector<3136x512xbf16>, vector<2x512xf32> -> vector<2x512xf32>
    %c0_3 = arith.constant 0 : index
    %c0_4 = arith.constant 0 : index
    %3 = vector.load %arg3[%c0_3, %c0_4] : memref<1x512xf32, #tpu.memory_space<vmem>>, vector<1x512xf32>
    %4 = vector.broadcast %3 : vector<1x512xf32> to vector<2x512xf32>
    %5 = arith.addf %2, %4 : vector<2x512xf32>
    %cst_5 = arith.constant 0.000000e+00 : f32
    %6 = vector.broadcast %cst_5 : f32 to vector<2x512xf32>
    %7 = arith.maximumf %5, %6 : vector<2x512xf32>
    %8 = arith.truncf %7 : vector<2x512xf32> to vector<2x512xbf16>
    %c0_6 = arith.constant 0 : index
    %c0_7 = arith.constant 0 : index
    %9 = vector.load %arg4[%c0_6, %c0_7] : memref<512x128xbf16, #tpu.memory_space<vmem>>, vector<512x128xbf16>
    %cst_8 = arith.constant dense<0.000000e+00> : vector<2x128xf32>
    %10 = tpu.matmul %8, %9, %cst_8 {dimension_numbers = #tpu.dot_dimension_numbers<[1], [0], [0], [1], [0, 0, 1, 1], [], []>} : vector<2x512xbf16>, vector<512x128xbf16>, vector<2x128xf32> -> vector<2x128xf32>
    %c0_9 = arith.constant 0 : index
    %c0_10 = arith.constant 0 : index
    %11 = vector.load %arg5[%c0_9, %c0_10] : memref<1x128xf32, #tpu.memory_space<vmem>>, vector<1x128xf32>
    %12 = vector.broadcast %11 : vector<1x128xf32> to vector<2x128xf32>
    %13 = arith.addf %10, %12 : vector<2x128xf32>
    %c0_11 = arith.constant 0 : index
    %c0_12 = arith.constant 0 : index
    %14 = vector.load %arg6[%c0_11, %c0_12] : memref<2x128xf32, #tpu.memory_space<vmem>>, vector<2x128xf32>
    tpu.vector_store %arg6[%c0_11, %c0_12], %13 {strides = array<i32>} : memref<2x128xf32, #tpu.memory_space<vmem>>, vector<2x128xf32>,
    return
  }
  func.func @transform_0(%arg0: i32) -> (i32, i32) {
    %c0_i32 = arith.constant 0 : i32
    %c0_i32_0 = arith.constant 0 : i32
    return %arg0, %c0_i32 : i32, i32
  }
  func.func @transform_1(%arg0: i32) -> (i32, i32) {
    %c0_i32 = arith.constant 0 : i32
    %c0_i32_0 = arith.constant 0 : i32
    %c0_i32_1 = arith.constant 0 : i32
    return %c0_i32, %c0_i32_0 : i32, i32
  }
  func.func @transform_2(%arg0: i32) -> (i32, i32) {
    %c0_i32 = arith.constant 0 : i32
    %c0_i32_0 = arith.constant 0 : i32
    %c0_i32_1 = arith.constant 0 : i32
    return %c0_i32, %c0_i32_0 : i32, i32
  }
  func.func @transform_3(%arg0: i32) -> (i32, i32) {
    %c0_i32 = arith.constant 0 : i32
    %c0_i32_0 = arith.constant 0 : i32
    %c0_i32_1 = arith.constant 0 : i32
    return %c0_i32, %c0_i32_0 : i32, i32
  }
  func.func @transform_4(%arg0: i32) -> (i32, i32) {
    %c0_i32 = arith.constant 0 : i32
    %c0_i32_0 = arith.constant 0 : i32
    %c0_i32_1 = arith.constant 0 : i32
    return %c0_i32, %c0_i32_0 : i32, i32
  }
  func.func @transform_5(%arg0: i32) -> (i32, i32) {
    %c0_i32 = arith.constant 0 : i32
    %c0_i32_0 = arith.constant 0 : i32
    return %arg0, %c0_i32 : i32, i32
  }
}

</mosaic_0001>

<llo_original>
// kernel: network_forward.3
$region0: #{network_forward.3}
  #allocation0 [shape = 'u32[]', space=smem, size = 0x4, offset = 0x4, fixed_abs, tag = 'smem constant byte address 0x4 - core index']
  #allocation1 [shape = 'u32[72,128]{1,0:T(1,128)}', space=vmem, size = 0x9000, scoped, tag = 'internal scratch']
  %s0 = inlined_call_operand.vmem [shape: bf16[2,3136], index: 0, kind: input, shape index: {}]
  %s1 = inlined_call_operand.vmem [shape: bf16[3136,512], index: 1, kind: input, shape index: {}]
  %s2 = inlined_call_operand.vmem [shape: f32[1,512], index: 2, kind: input, shape index: {}]
  %s3 = inlined_call_operand.vmem [shape: bf16[512,128], index: 3, kind: input, shape index: {}]
  %s4 = inlined_call_operand.vmem [shape: f32[1,128], index: 4, kind: input, shape index: {}]
  %s5 = inlined_call_operand.hbm [shape: f32[2,128], index: 5, kind: output, shape index: {}]
  %s6 = sld [smem:[#allocation0]]
  $region30: #{network_forward.3} parent=0
    _
  %s8 = ssub.s32 1, %s6
  %s9 = scalar_select 0, %s8, %s6
  $region1: #{network_forward.3} parent=0
    #allocation2 [shape = 'u8[1024]{0}', space=vmem, size = 0x400, scoped, tag = 'output window, operand 0, single buffered']
    #allocation3 [shape = 's32[1]{0}', space=sflag, size = 0x4, scoped, tag = 'scoped memory for network_forward.3']
    %10 = vsyncpa [#allocation3], 0
    // Predicated region
    $region2: #{network_forward.3} parent=1 // pred_check
      _
    $region3: #{network_forward.3} parent=1 // pred_check_branch
      %12 = sbr.rel (0) target = $region5
    $region4: #{network_forward.3} parent=1 // pred_region
      _
    $region5: #{network_forward.3} parent=1 // pred_fallthru
      _
    // Predicated region
    $region6: #{network_forward.3} parent=1 // pred_check
      _
    $region7: #{network_forward.3} parent=1 // pred_check_branch
      %14 = sbr.rel (0) target = $region9
    $region8: #{network_forward.3} parent=1 // pred_region
      _
    $region9: #{network_forward.3} parent=1 // pred_fallthru
      _
    // Predicated region
    $region10: #{network_forward.3} parent=1 // pred_check
      _
    $region11: #{network_forward.3} parent=1 // pred_check_branch
      %16 = sbr.rel (0) target = $region13
    $region12: #{network_forward.3} parent=1 // pred_region
      _
    $region13: #{network_forward.3} parent=1 // pred_fallthru
      _
    // Predicated region
    $region14: #{network_forward.3} parent=1 // pred_check
      _
    $region15: #{network_forward.3} parent=1 // pred_check_branch
      %18 = sbr.rel (0) target = $region17
    $region16: #{network_forward.3} parent=1 // pred_region
      _
    $region17: #{network_forward.3} parent=1 // pred_fallthru
      _
    // Predicated region
    $region18: #{network_forward.3} parent=1 // pred_check
      _
    $region19: #{network_forward.3} parent=1 // pred_check_branch
      %20 = sbr.rel (0) target = $region21
    $region20: #{network_forward.3} parent=1 // pred_region
      _
    $region21: #{network_forward.3} parent=1 // pred_fallthru
      _
    %v22 = vld [vmem:[%s0] sm:$0xff]
    %v23 = vld [vmem:[%s0 + $0x8] sm:$0xff]
    %v24 = vld [vmem:[%s0 + $0x10] sm:$0xff]
    %v25 = vld [vmem:[%s0 + $0x18] sm:$0x1]
    %v26 = vld [vmem:[%s1] sm:$0xff]
    %v27 = vld [vmem:[%s1 + $0x8] sm:$0xff]
    %v28 = vld [vmem:[%s1 + $0x10] sm:$0xff]
    %v29 = vld [vmem:[%s1 + $0x18] sm:$0xff]
    %v30 = vld [vmem:[%s1 + $0x20] sm:$0xff]
    %v31 = vld [vmem:[%s1 + $0x28] sm:$0xff]
    %v32 = vld [vmem:[%s1 + $0x30] sm:$0xff]
    %v33 = vld [vmem:[%s1 + $0x38] sm:$0xff]
    %v34 = vld [vmem:[%s1 + $0x40] sm:$0xff]
    %v35 = vld [vmem:[%s1 + $0x48] sm:$0xff]
    %v36 = vld [vmem:[%s1 + $0x50] sm:$0xff]
    %v37 = vld [vmem:[%s1 + $0x58] sm:$0xff]
    %v38 = vld [vmem:[%s1 + $0x60] sm:$0xff]
    %v39 = vld [vmem:[%s1 + $0x68] sm:$0xff]
    %v40 = vld [vmem:[%s1 + $0x70] sm:$0xff]
    %v41 = vld [vmem:[%s1 + $0x78] sm:$0xff]
    %v42 = vld [vmem:[%s1 + $0x80] sm:$0xff]
    %v43 = vld [vmem:[%s1 + $0x88] sm:$0xff]
    %v44 = vld [vmem:[%s1 + $0x90] sm:$0xff]
    %v45 = vld [vmem:[%s1 + $0x98] sm:$0xff]
    %v46 = vld [vmem:[%s1 + $0xa0] sm:$0xff]
    %v47 = vld [vmem:[%s1 + $0xa8] sm:$0xff]
    %v48 = vld [vmem:[%s1 + $0xb0] sm:$0xff]
    %v49 = vld [vmem:[%s1 + $0xb8] sm:$0xff]
    %v50 = vld [vmem:[%s1 + $0xc0] sm:$0xff]
    %v51 = vld [vmem:[%s1 + $0xc8] sm:$0xff]
    %v52 = vld [vmem:[%s1 + $0xd0] sm:$0xff]
    %v53 = vld [vmem:[%s1 + $0xd8] sm:$0xff]
    %v54 = vld [vmem:[%s1 + $0xe0] sm:$0xff]
    %v55 = vld [vmem:[%s1 + $0xe8] sm:$0xff]
    %v56 = vld [vmem:[%s1 + $0xf0] sm:$0xff]
    %v57 = vld [vmem:[%s1 + $0xf8] sm:$0xff]
    %v58 = vld [vmem:[%s1 + $0x100] sm:$0xff]
    %v59 = vld [vmem:[%s1 + $0x108] sm:$0xff]
    %v60 = vld [vmem:[%s1 + $0x110] sm:$0xff]
    %v61 = vld [vmem:[%s1 + $0x118] sm:$0xff]
    %v62 = vld [vmem:[%s1 + $0x120] sm:$0xff]
    %v63 = vld [vmem:[%s1 + $0x128] sm:$0xff]
    %v64 = vld [vmem:[%s1 + $0x130] sm:$0xff]
    %v65 = vld [vmem:[%s1 + $0x138] sm:$0xff]
    %v66 = vld [vmem:[%s1 + $0x140] sm:$0xff]
    %v67 = vld [vmem:[%s1 + $0x148] sm:$0xff]
    %v68 = vld [vmem:[%s1 + $0x150] sm:$0xff]
    %v69 = vld [vmem:[%s1 + $0x158] sm:$0xff]
    %v70 = vld [vmem:[%s1 + $0x160] sm:$0xff]
    %v71 = vld [vmem:[%s1 + $0x168] sm:$0xff]
    %v72 = vld [vmem:[%s1 + $0x170] sm:$0xff]
    %v73 = vld [vmem:[%s1 + $0x178] sm:$0xff]
    %v74 = vld [vmem:[%s1 + $0x180] sm:$0xff]
    %v75 = vld [vmem:[%s1 + $0x188] sm:$0xff]
    %v76 = vld [vmem:[%s1 + $0x190] sm:$0xff]
    %v77 = vld [vmem:[%s1 + $0x198] sm:$0xff]
    %v78 = vld [vmem:[%s1 + $0x1a0] sm:$0xff]
    %v79 = vld [vmem:[%s1 + $0x1a8] sm:$0xff]
    %v80 = vld [vmem:[%s1 + $0x1b0] sm:$0xff]
    %v81 = vld [vmem:[%s1 + $0x1b8] sm:$0xff]
    %v82 = vld [vmem:[%s1 + $0x1c0] sm:$0xff]
    %v83 = vld [vmem:[%s1 + $0x1c8] sm:$0xff]
    %v84 = vld [vmem:[%s1 + $0x1d0] sm:$0xff]
    %v85 = vld [vmem:[%s1 + $0x1d8] sm:$0xff]
    %v86 = vld [vmem:[%s1 + $0x1e0] sm:$0xff]
    %v87 = vld [vmem:[%s1 + $0x1e8] sm:$0xff]
    %v88 = vld [vmem:[%s1 + $0x1f0] sm:$0xff]
    %v89 = vld [vmem:[%s1 + $0x1f8] sm:$0xff]
    %v90 = vld [vmem:[%s1 + $0x200] sm:$0xff]
    %v91 = vld [vmem:[%s1 + $0x208] sm:$0xff]
    %v92 = vld [vmem:[%s1 + $0x210] sm:$0xff]
    %v93 = vld [vmem:[%s1 + $0x218] sm:$0xff]
    %v94 = vld [vmem:[%s1 + $0x220] sm:$0xff]
    %v95 = vld [vmem:[%s1 + $0x228] sm:$0xff]
    %v96 = vld [vmem:[%s1 + $0x230] sm:$0xff]
    %v97 = vld [vmem:[%s1 + $0x238] sm:$0xff]
    %v98 = vld [vmem:[%s1 + $0x240] sm:$0xff]
    %v99 = vld [vmem:[%s1 + $0x248] sm:$0xff]
    %v100 = vld [vmem:[%s1 + $0x250] sm:$0xff]
    %v101 = vld [vmem:[%s1 + $0x258] sm:$0xff]
    %v102 = vld [vmem:[%s1 + $0x260] sm:$0xff]
    %v103 = vld [vmem:[%s1 + $0x268] sm:$0xff]
    %v104 = vld [vmem:[%s1 + $0x270] sm:$0xff]
    %v105 = vld [vmem:[%s1 + $0x278] sm:$0xff]
    %v106 = vld [vmem:[%s1 + $0x280] sm:$0xff]
    %v107 = vld [vmem:[%s1 + $0x288] sm:$0xff]
    %v108 = vld [vmem:[%s1 + $0x290] sm:$0xff]
    %v109 = vld [vmem:[%s1 + $0x298] sm:$0xff]
    %v110 = vld [vmem:[%s1 + $0x2a0] sm:$0xff]
    %v111 = vld [vmem:[%s1 + $0x2a8] sm:$0xff]
    %v112 = vld [vmem:[%s1 + $0x2b0] sm:$0xff]
    %v113 = vld [vmem:[%s1 + $0x2b8] sm:$0xff]
    %v114 = vld [vmem:[%s1 + $0x2c0] sm:$0xff]
    %v115 = vld [vmem:[%s1 + $0x2c8] sm:$0xff]
    %v116 = vld [vmem:[%s1 + $0x2d0] sm:$0xff]
    %v117 = vld [vmem:[%s1 + $0x2d8] sm:$0xff]
    %v118 = vld [vmem:[%s1 + $0x2e0] sm:$0xff]
    %v119 = vld [vmem:[%s1 + $0x2e8] sm:$0xff]
    %v120 = vld [vmem:[%s1 + $0x2f0] sm:$0xff]
    %v121 = vld [vmem:[%s1 + $0x2f8] sm:$0xff]
    %v122 = vld [vmem:[%s1 + $0x300] sm:$0xff]
    %v123 = vld [vmem:[%s1 + $0x308] sm:$0xff]
    %v124 = vld [vmem:[%s1 + $0x310] sm:$0xff]
    %v125 = vld [vmem:[%s1 + $0x318] sm:$0xff]
    %v126 = vld [vmem:[%s1 + $0x320] sm:$0xff]
    %v127 = vld [vmem:[%s1 + $0x328] sm:$0xff]
    %v128 = vld [vmem:[%s1 + $0x330] sm:$0xff]
    %v129 = vld [vmem:[%s1 + $0x338] sm:$0xff]
    %v130 = vld [vmem:[%s1 + $0x340] sm:$0xff]
    %v131 = vld [vmem:[%s1 + $0x348] sm:$0xff]
    %v132 = vld [vmem:[%s1 + $0x350] sm:$0xff]
    %v133 = vld [vmem:[%s1 + $0x358] sm:$0xff]
    %v134 = vld [vmem:[%s1 + $0x360] sm:$0xff]
    %v135 = vld [vmem:[%s1 + $0x368] sm:$0xff]
    %v136 = vld [vmem:[%s1 + $0x370] sm:$0xff]
    %v137 = vld [vmem:[%s1 + $0x378] sm:$0xff]
    %v138 = vld [vmem:[%s1 + $0x380] sm:$0xff]
    %v139 = vld [vmem:[%s1 + $0x388] sm:$0xff]
    %v140 = vld [vmem:[%s1 + $0x390] sm:$0xff]
    %v141 = vld [vmem:[%s1 + $0x398] sm:$0xff]
    %v142 = vld [vmem:[%s1 + $0x3a0] sm:$0xff]
    %v143 = vld [vmem:[%s1 + $0x3a8] sm:$0xff]
    %v144 = vld [vmem:[%s1 + $0x3b0] sm:$0xff]
    %v145 = vld [vmem:[%s1 + $0x3b8] sm:$0xff]
    %v146 = vld [vmem:[%s1 + $0x3c0] sm:$0xff]
    %v147 = vld [vmem:[%s1 + $0x3c8] sm:$0xff]
    %v148 = vld [vmem:[%s1 + $0x3d0] sm:$0xff]
    %v149 = vld [vmem:[%s1 + $0x3d8] sm:$0xff]
    %v150 = vld [vmem:[%s1 + $0x3e0] sm:$0xff]
    %v151 = vld [vmem:[%s1 + $0x3e8] sm:$0xff]
    %v152 = vld [vmem:[%s1 + $0x3f0] sm:$0xff]
    %v153 = vld [vmem:[%s1 + $0x3f8] sm:$0xff]
    %v154 = vld [vmem:[%s1 + $0x400] sm:$0xff]
    %v155 = vld [vmem:[%s1 + $0x408] sm:$0xff]
    %v156 = vld [vmem:[%s1 + $0x410] sm:$0xff]
    %v157 = vld [vmem:[%s1 + $0x418] sm:$0xff]
    %v158 = vld [vmem:[%s1 + $0x420] sm:$0xff]
    %v159 = vld [vmem:[%s1 + $0x428] sm:$0xff]
    %v160 = vld [vmem:[%s1 + $0x430] sm:$0xff]
    %v161 = vld [vmem:[%s1 + $0x438] sm:$0xff]
    %v162 = vld [vmem:[%s1 + $0x440] sm:$0xff]
    %v163 = vld [vmem:[%s1 + $0x448] sm:$0xff]
    %v164 = vld [vmem:[%s1 + $0x450] sm:$0xff]
    %v165 = vld [vmem:[%s1 + $0x458] sm:$0xff]
    %v166 = vld [vmem:[%s1 + $0x460] sm:$0xff]
    %v167 = vld [vmem:[%s1 + $0x468] sm:$0xff]
    %v168 = vld [vmem:[%s1 + $0x470] sm:$0xff]
    %v169 = vld [vmem:[%s1 + $0x478] sm:$0xff]
    %v170 = vld [vmem:[%s1 + $0x480] sm:$0xff]
    %v171 = vld [vmem:[%s1 + $0x488] sm:$0xff]
    %v172 = vld [vmem:[%s1 + $0x490] sm:$0xff]
    %v173 = vld [vmem:[%s1 + $0x498] sm:$0xff]
    %v174 = vld [vmem:[%s1 + $0x4a0] sm:$0xff]
    %v175 = vld [vmem:[%s1 + $0x4a8] sm:$0xff]
    %v176 = vld [vmem:[%s1 + $0x4b0] sm:$0xff]
    %v177 = vld [vmem:[%s1 + $0x4b8] sm:$0xff]
    %v178 = vld [vmem:[%s1 + $0x4c0] sm:$0xff]
    %v179 = vld [vmem:[%s1 + $0x4c8] sm:$0xff]
    %v180 = vld [vmem:[%s1 + $0x4d0] sm:$0xff]
    %v181 = vld [vmem:[%s1 + $0x4d8] sm:$0xff]
    %v182 = vld [vmem:[%s1 + $0x4e0] sm:$0xff]
    %v183 = vld [vmem:[%s1 + $0x4e8] sm:$0xff]
    %v184 = vld [vmem:[%s1 + $0x4f0] sm:$0xff]
    %v185 = vld [vmem:[%s1 + $0x4f8] sm:$0xff]
    %v186 = vld [vmem:[%s1 + $0x500] sm:$0xff]
    %v187 = vld [vmem:[%s1 + $0x508] sm:$0xff]
    %v188 = vld [vmem:[%s1 + $0x510] sm:$0xff]
    %v189 = vld [vmem:[%s1 + $0x518] sm:$0xff]
    %v190 = vld [vmem:[%s1 + $0x520] sm:$0xff]
    %v191 = vld [vmem:[%s1 + $0x528] sm:$0xff]
    %v192 = vld [vmem:[%s1 + $0x530] sm:$0xff]
    %v193 = vld [vmem:[%s1 + $0x538] sm:$0xff]
    %v194 = vld [vmem:[%s1 + $0x540] sm:$0xff]
    %v195 = vld [vmem:[%s1 + $0x548] sm:$0xff]
    %v196 = vld [vmem:[%s1 + $0x550] sm:$0xff]
    %v197 = vld [vmem:[%s1 + $0x558] sm:$0xff]
    %v198 = vld [vmem:[%s1 + $0x560] sm:$0xff]
    %v199 = vld [vmem:[%s1 + $0x568] sm:$0xff]
    %v200 = vld [vmem:[%s1 + $0x570] sm:$0xff]
    %v201 = vld [vmem:[%s1 + $0x578] sm:$0xff]
    %v202 = vld [vmem:[%s1 + $0x580] sm:$0xff]
    %v203 = vld [vmem:[%s1 + $0x588] sm:$0xff]
    %v204 = vld [vmem:[%s1 + $0x590] sm:$0xff]
    %v205 = vld [vmem:[%s1 + $0x598] sm:$0xff]
    %v206 = vld [vmem:[%s1 + $0x5a0] sm:$0xff]
    %v207 = vld [vmem:[%s1 + $0x5a8] sm:$0xff]
    %v208 = vld [vmem:[%s1 + $0x5b0] sm:$0xff]
    %v209 = vld [vmem:[%s1 + $0x5b8] sm:$0xff]
    %v210 = vld [vmem:[%s1 + $0x5c0] sm:$0xff]
    %v211 = vld [vmem:[%s1 + $0x5c8] sm:$0xff]
    %v212 = vld [vmem:[%s1 + $0x5d0] sm:$0xff]
    %v213 = vld [vmem:[%s1 + $0x5d8] sm:$0xff]
    %v214 = vld [vmem:[%s1 + $0x5e0] sm:$0xff]
    %v215 = vld [vmem:[%s1 + $0x5e8] sm:$0xff]
    %v216 = vld [vmem:[%s1 + $0x5f0] sm:$0xff]
    %v217 = vld [vmem:[%s1 + $0x5f8] sm:$0xff]
    %v218 = vld [vmem:[%s1 + $0x600] sm:$0xff]
    %v219 = vld [vmem:[%s1 + $0x608] sm:$0xff]
    %v220 = vld [vmem:[%s1 + $0x610] sm:$0xff]
    %v221 = vld [vmem:[%s1 + $0x618] sm:$0xff]
    %v222 = vld [vmem:[%s1 + $0x620] sm:$0xff]
    %v223 = vld [vmem:[%s1 + $0x628] sm:$0xff]
    %v224 = vld [vmem:[%s1 + $0x630] sm:$0xff]
    %v225 = vld [vmem:[%s1 + $0x638] sm:$0xff]
    %v226 = vld [vmem:[%s1 + $0x640] sm:$0xff]
    %v227 = vld [vmem:[%s1 + $0x648] sm:$0xff]
    %v228 = vld [vmem:[%s1 + $0x650] sm:$0xff]
    %v229 = vld [vmem:[%s1 + $0x658] sm:$0xff]
    %v230 = vld [vmem:[%s1 + $0x660] sm:$0xff]
    %v231 = vld [vmem:[%s1 + $0x668] sm:$0xff]
    %v232 = vld [vmem:[%s1 + $0x670] sm:$0xff]
    %v233 = vld [vmem:[%s1 + $0x678] sm:$0xff]
    %v234 = vld [vmem:[%s1 + $0x680] sm:$0xff]
    %v235 = vld [vmem:[%s1 + $0x688] sm:$0xff]
    %v236 = vld [vmem:[%s1 + $0x690] sm:$0xff]
    %v237 = vld [vmem:[%s1 + $0x698] sm:$0xff]
    %v238 = vld [vmem:[%s1 + $0x6a0] sm:$0xff]
    %v239 = vld [vmem:[%s1 + $0x6a8] sm:$0xff]
    %v240 = vld [vmem:[%s1 + $0x6b0] sm:$0xff]
    %v241 = vld [vmem:[%s1 + $0x6b8] sm:$0xff]
    %v242 = vld [vmem:[%s1 + $0x6c0] sm:$0xff]
    %v243 = vld [vmem:[%s1 + $0x6c8] sm:$0xff]
    %v244 = vld [vmem:[%s1 + $0x6d0] sm:$0xff]
    %v245 = vld [vmem:[%s1 + $0x6d8] sm:$0xff]
    %v246 = vld [vmem:[%s1 + $0x6e0] sm:$0xff]
    %v247 = vld [vmem:[%s1 + $0x6e8] sm:$0xff]
    %v248 = vld [vmem:[%s1 + $0x6f0] sm:$0xff]
    %v249 = vld [vmem:[%s1 + $0x6f8] sm:$0xff]
    %v250 = vld [vmem:[%s1 + $0x700] sm:$0xff]
    %v251 = vld [vmem:[%s1 + $0x708] sm:$0xff]
    %v252 = vld [vmem:[%s1 + $0x710] sm:$0xff]
    %v253 = vld [vmem:[%s1 + $0x718] sm:$0xff]
    %v254 = vld [vmem:[%s1 + $0x720] sm:$0xff]
    %v255 = vld [vmem:[%s1 + $0x728] sm:$0xff]
    %v256 = vld [vmem:[%s1 + $0x730] sm:$0xff]
    %v257 = vld [vmem:[%s1 + $0x738] sm:$0xff]
    %v258 = vld [vmem:[%s1 + $0x740] sm:$0xff]
    %v259 = vld [vmem:[%s1 + $0x748] sm:$0xff]
    %v260 = vld [vmem:[%s1 + $0x750] sm:$0xff]
    %v261 = vld [vmem:[%s1 + $0x758] sm:$0xff]
    %v262 = vld [vmem:[%s1 + $0x760] sm:$0xff]
    %v263 = vld [vmem:[%s1 + $0x768] sm:$0xff]
    %v264 = vld [vmem:[%s1 + $0x770] sm:$0xff]
    %v265 = vld [vmem:[%s1 + $0x778] sm:$0xff]
    %v266 = vld [vmem:[%s1 + $0x780] sm:$0xff]
    %v267 = vld [vmem:[%s1 + $0x788] sm:$0xff]
    %v268 = vld [vmem:[%s1 + $0x790] sm:$0xff]
    %v269 = vld [vmem:[%s1 + $0x798] sm:$0xff]
    %v270 = vld [vmem:[%s1 + $0x7a0] sm:$0xff]
    %v271 = vld [vmem:[%s1 + $0x7a8] sm:$0xff]
    %v272 = vld [vmem:[%s1 + $0x7b0] sm:$0xff]
    %v273 = vld [vmem:[%s1 + $0x7b8] sm:$0xff]
    %v274 = vld [vmem:[%s1 + $0x7c0] sm:$0xff]
    %v275 = vld [vmem:[%s1 + $0x7c8] sm:$0xff]
    %v276 = vld [vmem:[%s1 + $0x7d0] sm:$0xff]
    %v277 = vld [vmem:[%s1 + $0x7d8] sm:$0xff]
    %v278 = vld [vmem:[%s1 + $0x7e0] sm:$0xff]
    %v279 = vld [vmem:[%s1 + $0x7e8] sm:$0xff]
    %v280 = vld [vmem:[%s1 + $0x7f0] sm:$0xff]
    %v281 = vld [vmem:[%s1 + $0x7f8] sm:$0xff]
    %v282 = vld [vmem:[%s1 + $0x800] sm:$0xff]
    %v283 = vld [vmem:[%s1 + $0x808] sm:$0xff]
    %v284 = vld [vmem:[%s1 + $0x810] sm:$0xff]
    %v285 = vld [vmem:[%s1 + $0x818] sm:$0xff]
    %v286 = vld [vmem:[%s1 + $0x820] sm:$0xff]
    %v287 = vld [vmem:[%s1 + $0x828] sm:$0xff]
    %v288 = vld [vmem:[%s1 + $0x830] sm:$0xff]
    %v289 = vld [vmem:[%s1 + $0x838] sm:$0xff]
    %v290 = vld [vmem:[%s1 + $0x840] sm:$0xff]
    %v291 = vld [vmem:[%s1 + $0x848] sm:$0xff]
    %v292 = vld [vmem:[%s1 + $0x850] sm:$0xff]
    %v293 = vld [vmem:[%s1 + $0x858] sm:$0xff]
    %v294 = vld [vmem:[%s1 + $0x860] sm:$0xff]
    %v295 = vld [vmem:[%s1 + $0x868] sm:$0xff]
    %v296 = vld [vmem:[%s1 + $0x870] sm:$0xff]
    %v297 = vld [vmem:[%s1 + $0x878] sm:$0xff]
    %v298 = vld [vmem:[%s1 + $0x880] sm:$0xff]
    %v299 = vld [vmem:[%s1 + $0x888] sm:$0xff]
    %v300 = vld [vmem:[%s1 + $0x890] sm:$0xff]
    %v301 = vld [vmem:[%s1 + $0x898] sm:$0xff]
    %v302 = vld [vmem:[%s1 + $0x8a0] sm:$0xff]
    %v303 = vld [vmem:[%s1 + $0x8a8] sm:$0xff]
    %v304 = vld [vmem:[%s1 + $0x8b0] sm:$0xff]
    %v305 = vld [vmem:[%s1 + $0x8b8] sm:$0xff]
    %v306 = vld [vmem:[%s1 + $0x8c0] sm:$0xff]
    %v307 = vld [vmem:[%s1 + $0x8c8] sm:$0xff]
    %v308 = vld [vmem:[%s1 + $0x8d0] sm:$0xff]
    %v309 = vld [vmem:[%s1 + $0x8d8] sm:$0xff]
    %v310 = vld [vmem:[%s1 + $0x8e0] sm:$0xff]
    %v311 = vld [vmem:[%s1 + $0x8e8] sm:$0xff]
    %v312 = vld [vmem:[%s1 + $0x8f0] sm:$0xff]
    %v313 = vld [vmem:[%s1 + $0x8f8] sm:$0xff]
    %v314 = vld [vmem:[%s1 + $0x900] sm:$0xff]
    %v315 = vld [vmem:[%s1 + $0x908] sm:$0xff]
    %v316 = vld [vmem:[%s1 + $0x910] sm:$0xff]
    %v317 = vld [vmem:[%s1 + $0x918] sm:$0xff]
    %v318 = vld [vmem:[%s1 + $0x920] sm:$0xff]
    %v319 = vld [vmem:[%s1 + $0x928] sm:$0xff]
    %v320 = vld [vmem:[%s1 + $0x930] sm:$0xff]
    %v321 = vld [vmem:[%s1 + $0x938] sm:$0xff]
    %v322 = vld [vmem:[%s1 + $0x940] sm:$0xff]
    %v323 = vld [vmem:[%s1 + $0x948] sm:$0xff]
    %v324 = vld [vmem:[%s1 + $0x950] sm:$0xff]
    %v325 = vld [vmem:[%s1 + $0x958] sm:$0xff]
    %v326 = vld [vmem:[%s1 + $0x960] sm:$0xff]
    %v327 = vld [vmem:[%s1 + $0x968] sm:$0xff]
    %v328 = vld [vmem:[%s1 + $0x970] sm:$0xff]
    %v329 = vld [vmem:[%s1 + $0x978] sm:$0xff]
    %v330 = vld [vmem:[%s1 + $0x980] sm:$0xff]
    %v331 = vld [vmem:[%s1 + $0x988] sm:$0xff]
    %v332 = vld [vmem:[%s1 + $0x990] sm:$0xff]
    %v333 = vld [vmem:[%s1 + $0x998] sm:$0xff]
    %v334 = vld [vmem:[%s1 + $0x9a0] sm:$0xff]
    %v335 = vld [vmem:[%s1 + $0x9a8] sm:$0xff]
    %v336 = vld [vmem:[%s1 + $0x9b0] sm:$0xff]
    %v337 = vld [vmem:[%s1 + $0x9b8] sm:$0xff]
    %v338 = vld [vmem:[%s1 + $0x9c0] sm:$0xff]
    %v339 = vld [vmem:[%s1 + $0x9c8] sm:$0xff]
    %v340 = vld [vmem:[%s1 + $0x9d0] sm:$0xff]
    %v341 = vld [vmem:[%s1 + $0x9d8] sm:$0xff]
    %v342 = vld [vmem:[%s1 + $0x9e0] sm:$0xff]
    %v343 = vld [vmem:[%s1 + $0x9e8] sm:$0xff]
    %v344 = vld [vmem:[%s1 + $0x9f0] sm:$0xff]
    %v345 = vld [vmem:[%s1 + $0x9f8] sm:$0xff]
    %v346 = vld [vmem:[%s1 + $0xa00] sm:$0xff]
    %v347 = vld [vmem:[%s1 + $0xa08] sm:$0xff]
    %v348 = vld [vmem:[%s1 + $0xa10] sm:$0xff]
    %v349 = vld [vmem:[%s1 + $0xa18] sm:$0xff]
    %v350 = vld [vmem:[%s1 + $0xa20] sm:$0xff]
    %v351 = vld [vmem:[%s1 + $0xa28] sm:$0xff]
    %v352 = vld [vmem:[%s1 + $0xa30] sm:$0xff]
    %v353 = vld [vmem:[%s1 + $0xa38] sm:$0xff]
    %v354 = vld [vmem:[%s1 + $0xa40] sm:$0xff]
    %v355 = vld [vmem:[%s1 + $0xa48] sm:$0xff]
    %v356 = vld [vmem:[%s1 + $0xa50] sm:$0xff]
    %v357 = vld [vmem:[%s1 + $0xa58] sm:$0xff]
    %v358 = vld [vmem:[%s1 + $0xa60] sm:$0xff]
    %v359 = vld [vmem:[%s1 + $0xa68] sm:$0xff]
    %v360 = vld [vmem:[%s1 + $0xa70] sm:$0xff]
    %v361 = vld [vmem:[%s1 + $0xa78] sm:$0xff]
    %v362 = vld [vmem:[%s1 + $0xa80] sm:$0xff]
    %v363 = vld [vmem:[%s1 + $0xa88] sm:$0xff]
    %v364 = vld [vmem:[%s1 + $0xa90] sm:$0xff]
    %v365 = vld [vmem:[%s1 + $0xa98] sm:$0xff]
    %v366 = vld [vmem:[%s1 + $0xaa0] sm:$0xff]
    %v367 = vld [vmem:[%s1 + $0xaa8] sm:$0xff]
    %v368 = vld [vmem:[%s1 + $0xab0] sm:$0xff]
    %v369 = vld [vmem:[%s1 + $0xab8] sm:$0xff]
    %v370 = vld [vmem:[%s1 + $0xac0] sm:$0xff]
    %v371 = vld [vmem:[%s1 + $0xac8] sm:$0xff]
    %v372 = vld [vmem:[%s1 + $0xad0] sm:$0xff]
    %v373 = vld [vmem:[%s1 + $0xad8] sm:$0xff]
    %v374 = vld [vmem:[%s1 + $0xae0] sm:$0xff]
    %v375 = vld [vmem:[%s1 + $0xae8] sm:$0xff]
    %v376 = vld [vmem:[%s1 + $0xaf0] sm:$0xff]
    %v377 = vld [vmem:[%s1 + $0xaf8] sm:$0xff]
    %v378 = vld [vmem:[%s1 + $0xb00] sm:$0xff]
    %v379 = vld [vmem:[%s1 + $0xb08] sm:$0xff]
    %v380 = vld [vmem:[%s1 + $0xb10] sm:$0xff]
    %v381 = vld [vmem:[%s1 + $0xb18] sm:$0xff]
    %v382 = vld [vmem:[%s1 + $0xb20] sm:$0xff]
    %v383 = vld [vmem:[%s1 + $0xb28] sm:$0xff]
    %v384 = vld [vmem:[%s1 + $0xb30] sm:$0xff]
    %v385 = vld [vmem:[%s1 + $0xb38] sm:$0xff]
    %v386 = vld [vmem:[%s1 + $0xb40] sm:$0xff]
    %v387 = vld [vmem:[%s1 + $0xb48] sm:$0xff]
    %v388 = vld [vmem:[%s1 + $0xb50] sm:$0xff]
    %v389 = vld [vmem:[%s1 + $0xb58] sm:$0xff]
    %v390 = vld [vmem:[%s1 + $0xb60] sm:$0xff]
    %v391 = vld [vmem:[%s1 + $0xb68] sm:$0xff]
    %v392 = vld [vmem:[%s1 + $0xb70] sm:$0xff]
    %v393 = vld [vmem:[%s1 + $0xb78] sm:$0xff]
    %v394 = vld [vmem:[%s1 + $0xb80] sm:$0xff]
    %v395 = vld [vmem:[%s1 + $0xb88] sm:$0xff]
    %v396 = vld [vmem:[%s1 + $0xb90] sm:$0xff]
    %v397 = vld [vmem:[%s1 + $0xb98] sm:$0xff]
    %v398 = vld [vmem:[%s1 + $0xba0] sm:$0xff]
    %v399 = vld [vmem:[%s1 + $0xba8] sm:$0xff]
    %v400 = vld [vmem:[%s1 + $0xbb0] sm:$0xff]
    %v401 = vld [vmem:[%s1 + $0xbb8] sm:$0xff]
    %v402 = vld [vmem:[%s1 + $0xbc0] sm:$0xff]
    %v403 = vld [vmem:[%s1 + $0xbc8] sm:$0xff]
    %v404 = vld [vmem:[%s1 + $0xbd0] sm:$0xff]
    %v405 = vld [vmem:[%s1 + $0xbd8] sm:$0xff]
    %v406 = vld [vmem:[%s1 + $0xbe0] sm:$0xff]
    %v407 = vld [vmem:[%s1 + $0xbe8] sm:$0xff]
    %v408 = vld [vmem:[%s1 + $0xbf0] sm:$0xff]
    %v409 = vld [vmem:[%s1 + $0xbf8] sm:$0xff]
    %v410 = vld [vmem:[%s1 + $0xc00] sm:$0xff]
    %v411 = vld [vmem:[%s1 + $0xc08] sm:$0xff]
    %v412 = vld [vmem:[%s1 + $0xc10] sm:$0xff]
    %v413 = vld [vmem:[%s1 + $0xc18] sm:$0xff]
    %v414 = vld [vmem:[%s1 + $0xc20] sm:$0xff]
    %v415 = vld [vmem:[%s1 + $0xc28] sm:$0xff]
    %v416 = vld [vmem:[%s1 + $0xc30] sm:$0xff]
    %v417 = vld [vmem:[%s1 + $0xc38] sm:$0xff]
    %v418 = vld [vmem:[%s1 + $0xc40] sm:$0xff]
    %v419 = vld [vmem:[%s1 + $0xc48] sm:$0xff]
    %v420 = vld [vmem:[%s1 + $0xc50] sm:$0xff]
    %v421 = vld [vmem:[%s1 + $0xc58] sm:$0xff]
    %v422 = vld [vmem:[%s1 + $0xc60] sm:$0xff]
    %v423 = vld [vmem:[%s1 + $0xc68] sm:$0xff]
    %v424 = vld [vmem:[%s1 + $0xc70] sm:$0xff]
    %v425 = vld [vmem:[%s1 + $0xc78] sm:$0xff]
    %v426 = vld [vmem:[%s1 + $0xc80] sm:$0xff]
    %v427 = vld [vmem:[%s1 + $0xc88] sm:$0xff]
    %v428 = vld [vmem:[%s1 + $0xc90] sm:$0xff]
    %v429 = vld [vmem:[%s1 + $0xc98] sm:$0xff]
    %v430 = vld [vmem:[%s1 + $0xca0] sm:$0xff]
    %v431 = vld [vmem:[%s1 + $0xca8] sm:$0xff]
    %v432 = vld [vmem:[%s1 + $0xcb0] sm:$0xff]
    %v433 = vld [vmem:[%s1 + $0xcb8] sm:$0xff]
    %v434 = vld [vmem:[%s1 + $0xcc0] sm:$0xff]
    %v435 = vld [vmem:[%s1 + $0xcc8] sm:$0xff]
    %v436 = vld [vmem:[%s1 + $0xcd0] sm:$0xff]
    %v437 = vld [vmem:[%s1 + $0xcd8] sm:$0xff]
    %v438 = vld [vmem:[%s1 + $0xce0] sm:$0xff]
    %v439 = vld [vmem:[%s1 + $0xce8] sm:$0xff]
    %v440 = vld [vmem:[%s1 + $0xcf0] sm:$0xff]
    %v441 = vld [vmem:[%s1 + $0xcf8] sm:$0xff]
    %v442 = vld [vmem:[%s1 + $0xd00] sm:$0xff]
    %v443 = vld [vmem:[%s1 + $0xd08] sm:$0xff]
    %v444 = vld [vmem:[%s1 + $0xd10] sm:$0xff]
    %v445 = vld [vmem:[%s1 + $0xd18] sm:$0xff]
    %v446 = vld [vmem:[%s1 + $0xd20] sm:$0xff]
    %v447 = vld [vmem:[%s1 + $0xd28] sm:$0xff]
    %v448 = vld [vmem:[%s1 + $0xd30] sm:$0xff]
    %v449 = vld [vmem:[%s1 + $0xd38] sm:$0xff]
    %v450 = vld [vmem:[%s1 + $0xd40] sm:$0xff]
    %v451 = vld [vmem:[%s1 + $0xd48] sm:$0xff]
    %v452 = vld [vmem:[%s1 + $0xd50] sm:$0xff]
    %v453 = vld [vmem:[%s1 + $0xd58] sm:$0xff]
    %v454 = vld [vmem:[%s1 + $0xd60] sm:$0xff]
    %v455 = vld [vmem:[%s1 + $0xd68] sm:$0xff]
    %v456 = vld [vmem:[%s1 + $0xd70] sm:$0xff]
    %v457 = vld [vmem:[%s1 + $0xd78] sm:$0xff]
    %v458 = vld [vmem:[%s1 + $0xd80] sm:$0xff]
    %v459 = vld [vmem:[%s1 + $0xd88] sm:$0xff]
    %v460 = vld [vmem:[%s1 + $0xd90] sm:$0xff]
    %v461 = vld [vmem:[%s1 + $0xd98] sm:$0xff]
    %v462 = vld [vmem:[%s1 + $0xda0] sm:$0xff]
    %v463 = vld [vmem:[%s1 + $0xda8] sm:$0xff]
    %v464 = vld [vmem:[%s1 + $0xdb0] sm:$0xff]
    %v465 = vld [vmem:[%s1 + $0xdb8] sm:$0xff]
    %v466 = vld [vmem:[%s1 + $0xdc0] sm:$0xff]
    %v467 = vld [vmem:[%s1 + $0xdc8] sm:$0xff]
    %v468 = vld [vmem:[%s1 + $0xdd0] sm:$0xff]
    %v469 = vld [vmem:[%s1 + $0xdd8] sm:$0xff]
    %v470 = vld [vmem:[%s1 + $0xde0] sm:$0xff]
    %v471 = vld [vmem:[%s1 + $0xde8] sm:$0xff]
    %v472 = vld [vmem:[%s1 + $0xdf0] sm:$0xff]
    %v473 = vld [vmem:[%s1 + $0xdf8] sm:$0xff]
    %v474 = vld [vmem:[%s1 + $0xe00] sm:$0xff]
    %v475 = vld [vmem:[%s1 + $0xe08] sm:$0xff]
    %v476 = vld [vmem:[%s1 + $0xe10] sm:$0xff]
    %v477 = vld [vmem:[%s1 + $0xe18] sm:$0xff]
    %v478 = vld [vmem:[%s1 + $0xe20] sm:$0xff]
    %v479 = vld [vmem:[%s1 + $0xe28] sm:$0xff]
    %v480 = vld [vmem:[%s1 + $0xe30] sm:$0xff]
    %v481 = vld [vmem:[%s1 + $0xe38] sm:$0xff]
    %v482 = vld [vmem:[%s1 + $0xe40] sm:$0xff]
    %v483 = vld [vmem:[%s1 + $0xe48] sm:$0xff]
    %v484 = vld [vmem:[%s1 + $0xe50] sm:$0xff]
    %v485 = vld [vmem:[%s1 + $0xe58] sm:$0xff]
    %v486 = vld [vmem:[%s1 + $0xe60] sm:$0xff]
    %v487 = vld [vmem:[%s1 + $0xe68] sm:$0xff]
    %v488 = vld [vmem:[%s1 + $0xe70] sm:$0xff]
    %v489 = vld [vmem:[%s1 + $0xe78] sm:$0xff]
    %v490 = vld [vmem:[%s1 + $0xe80] sm:$0xff]
    %v491 = vld [vmem:[%s1 + $0xe88] sm:$0xff]
    %v492 = vld [vmem:[%s1 + $0xe90] sm:$0xff]
    %v493 = vld [vmem:[%s1 + $0xe98] sm:$0xff]
    %v494 = vld [vmem:[%s1 + $0xea0] sm:$0xff]
    %v495 = vld [vmem:[%s1 + $0xea8] sm:$0xff]
    %v496 = vld [vmem:[%s1 + $0xeb0] sm:$0xff]
    %v497 = vld [vmem:[%s1 + $0xeb8] sm:$0xff]
    %v498 = vld [vmem:[%s1 + $0xec0] sm:$0xff]
    %v499 = vld [vmem:[%s1 + $0xec8] sm:$0xff]
    %v500 = vld [vmem:[%s1 + $0xed0] sm:$0xff]
    %v501 = vld [vmem:[%s1 + $0xed8] sm:$0xff]
    %v502 = vld [vmem:[%s1 + $0xee0] sm:$0xff]
    %v503 = vld [vmem:[%s1 + $0xee8] sm:$0xff]
    %v504 = vld [vmem:[%s1 + $0xef0] sm:$0xff]
    %v505 = vld [vmem:[%s1 + $0xef8] sm:$0xff]
    %v506 = vld [vmem:[%s1 + $0xf00] sm:$0xff]
    %v507 = vld [vmem:[%s1 + $0xf08] sm:$0xff]
    %v508 = vld [vmem:[%s1 + $0xf10] sm:$0xff]
    %v509 = vld [vmem:[%s1 + $0xf18] sm:$0xff]
    %v510 = vld [vmem:[%s1 + $0xf20] sm:$0xff]
    %v511 = vld [vmem:[%s1 + $0xf28] sm:$0xff]
    %v512 = vld [vmem:[%s1 + $0xf30] sm:$0xff]
    %v513 = vld [vmem:[%s1 + $0xf38] sm:$0xff]
    %v514 = vld [vmem:[%s1 + $0xf40] sm:$0xff]
    %v515 = vld [vmem:[%s1 + $0xf48] sm:$0xff]
    %v516 = vld [vmem:[%s1 + $0xf50] sm:$0xff]
    %v517 = vld [vmem:[%s1 + $0xf58] sm:$0xff]
    %v518 = vld [vmem:[%s1 + $0xf60] sm:$0xff]
    %v519 = vld [vmem:[%s1 + $0xf68] sm:$0xff]
    %v520 = vld [vmem:[%s1 + $0xf70] sm:$0xff]
    %v521 = vld [vmem:[%s1 + $0xf78] sm:$0xff]
    %v522 = vld [vmem:[%s1 + $0xf80] sm:$0xff]
    %v523 = vld [vmem:[%s1 + $0xf88] sm:$0xff]
    %v524 = vld [vmem:[%s1 + $0xf90] sm:$0xff]
    %v525 = vld [vmem:[%s1 + $0xf98] sm:$0xff]
    %v526 = vld [vmem:[%s1 + $0xfa0] sm:$0xff]
    %v527 = vld [vmem:[%s1 + $0xfa8] sm:$0xff]
    %v528 = vld [vmem:[%s1 + $0xfb0] sm:$0xff]
    %v529 = vld [vmem:[%s1 + $0xfb8] sm:$0xff]
    %v530 = vld [vmem:[%s1 + $0xfc0] sm:$0xff]
    %v531 = vld [vmem:[%s1 + $0xfc8] sm:$0xff]
    %v532 = vld [vmem:[%s1 + $0xfd0] sm:$0xff]
    %v533 = vld [vmem:[%s1 + $0xfd8] sm:$0xff]
    %v534 = vld [vmem:[%s1 + $0xfe0] sm:$0xff]
    %v535 = vld [vmem:[%s1 + $0xfe8] sm:$0xff]
    %v536 = vld [vmem:[%s1 + $0xff0] sm:$0xff]
    %v537 = vld [vmem:[%s1 + $0xff8] sm:$0xff]
    %v538 = vld [vmem:[%s1 + $0x1000] sm:$0xff]
    %v539 = vld [vmem:[%s1 + $0x1008] sm:$0xff]
    %v540 = vld [vmem:[%s1 + $0x1010] sm:$0xff]
    %v541 = vld [vmem:[%s1 + $0x1018] sm:$0xff]
    %v542 = vld [vmem:[%s1 + $0x1020] sm:$0xff]
    %v543 = vld [vmem:[%s1 + $0x1028] sm:$0xff]
    %v544 = vld [vmem:[%s1 + $0x1030] sm:$0xff]
    %v545 = vld [vmem:[%s1 + $0x1038] sm:$0xff]
    %v546 = vld [vmem:[%s1 + $0x1040] sm:$0xff]
    %v547 = vld [vmem:[%s1 + $0x1048] sm:$0xff]
    %v548 = vld [vmem:[%s1 + $0x1050] sm:$0xff]
    %v549 = vld [vmem:[%s1 + $0x1058] sm:$0xff]
    %v550 = vld [vmem:[%s1 + $0x1060] sm:$0xff]
    %v551 = vld [vmem:[%s1 + $0x1068] sm:$0xff]
    %v552 = vld [vmem:[%s1 + $0x1070] sm:$0xff]
    %v553 = vld [vmem:[%s1 + $0x1078] sm:$0xff]
    %v554 = vld [vmem:[%s1 + $0x1080] sm:$0xff]
    %v555 = vld [vmem:[%s1 + $0x1088] sm:$0xff]
    %v556 = vld [vmem:[%s1 + $0x1090] sm:$0xff]
    %v557 = vld [vmem:[%s1 + $0x1098] sm:$0xff]
    %v558 = vld [vmem:[%s1 + $0x10a0] sm:$0xff]
    %v559 = vld [vmem:[%s1 + $0x10a8] sm:$0xff]
    %v560 = vld [vmem:[%s1 + $0x10b0] sm:$0xff]
    %v561 = vld [vmem:[%s1 + $0x10b8] sm:$0xff]
    %v562 = vld [vmem:[%s1 + $0x10c0] sm:$0xff]
    %v563 = vld [vmem:[%s1 + $0x10c8] sm:$0xff]
    %v564 = vld [vmem:[%s1 + $0x10d0] sm:$0xff]
    %v565 = vld [vmem:[%s1 + $0x10d8] sm:$0xff]
    %v566 = vld [vmem:[%s1 + $0x10e0] sm:$0xff]
    %v567 = vld [vmem:[%s1 + $0x10e8] sm:$0xff]
    %v568 = vld [vmem:[%s1 + $0x10f0] sm:$0xff]
    %v569 = vld [vmem:[%s1 + $0x10f8] sm:$0xff]
    %v570 = vld [vmem:[%s1 + $0x1100] sm:$0xff]
    %v571 = vld [vmem:[%s1 + $0x1108] sm:$0xff]
    %v572 = vld [vmem:[%s1 + $0x1110] sm:$0xff]
    %v573 = vld [vmem:[%s1 + $0x1118] sm:$0xff]
    %v574 = vld [vmem:[%s1 + $0x1120] sm:$0xff]
    %v575 = vld [vmem:[%s1 + $0x1128] sm:$0xff]
    %v576 = vld [vmem:[%s1 + $0x1130] sm:$0xff]
    %v577 = vld [vmem:[%s1 + $0x1138] sm:$0xff]
    %v578 = vld [vmem:[%s1 + $0x1140] sm:$0xff]
    %v579 = vld [vmem:[%s1 + $0x1148] sm:$0xff]
    %v580 = vld [vmem:[%s1 + $0x1150] sm:$0xff]
    %v581 = vld [vmem:[%s1 + $0x1158] sm:$0xff]
    %v582 = vld [vmem:[%s1 + $0x1160] sm:$0xff]
    %v583 = vld [vmem:[%s1 + $0x1168] sm:$0xff]
    %v584 = vld [vmem:[%s1 + $0x1170] sm:$0xff]
    %v585 = vld [vmem:[%s1 + $0x1178] sm:$0xff]
    %v586 = vld [vmem:[%s1 + $0x1180] sm:$0xff]
    %v587 = vld [vmem:[%s1 + $0x1188] sm:$0xff]
    %v588 = vld [vmem:[%s1 + $0x1190] sm:$0xff]
    %v589 = vld [vmem:[%s1 + $0x1198] sm:$0xff]
    %v590 = vld [vmem:[%s1 + $0x11a0] sm:$0xff]
    %v591 = vld [vmem:[%s1 + $0x11a8] sm:$0xff]
    %v592 = vld [vmem:[%s1 + $0x11b0] sm:$0xff]
    %v593 = vld [vmem:[%s1 + $0x11b8] sm:$0xff]
    %v594 = vld [vmem:[%s1 + $0x11c0] sm:$0xff]
    %v595 = vld [vmem:[%s1 + $0x11c8] sm:$0xff]
    %v596 = vld [vmem:[%s1 + $0x11d0] sm:$0xff]
    %v597 = vld [vmem:[%s1 + $0x11d8] sm:$0xff]
    %v598 = vld [vmem:[%s1 + $0x11e0] sm:$0xff]
    %v599 = vld [vmem:[%s1 + $0x11e8] sm:$0xff]
    %v600 = vld [vmem:[%s1 + $0x11f0] sm:$0xff]
    %v601 = vld [vmem:[%s1 + $0x11f8] sm:$0xff]
    %v602 = vld [vmem:[%s1 + $0x1200] sm:$0xff]
    %v603 = vld [vmem:[%s1 + $0x1208] sm:$0xff]
    %v604 = vld [vmem:[%s1 + $0x1210] sm:$0xff]
    %v605 = vld [vmem:[%s1 + $0x1218] sm:$0xff]
    %v606 = vld [vmem:[%s1 + $0x1220] sm:$0xff]
    %v607 = vld [vmem:[%s1 + $0x1228] sm:$0xff]
    %v608 = vld [vmem:[%s1 + $0x1230] sm:$0xff]
    %v609 = vld [vmem:[%s1 + $0x1238] sm:$0xff]
    %v610 = vld [vmem:[%s1 + $0x1240] sm:$0xff]
    %v611 = vld [vmem:[%s1 + $0x1248] sm:$0xff]
    %v612 = vld [vmem:[%s1 + $0x1250] sm:$0xff]
    %v613 = vld [vmem:[%s1 + $0x1258] sm:$0xff]
    %v614 = vld [vmem:[%s1 + $0x1260] sm:$0xff]
    %v615 = vld [vmem:[%s1 + $0x1268] sm:$0xff]
    %v616 = vld [vmem:[%s1 + $0x1270] sm:$0xff]
    %v617 = vld [vmem:[%s1 + $0x1278] sm:$0xff]
    %v618 = vld [vmem:[%s1 + $0x1280] sm:$0xff]
    %v619 = vld [vmem:[%s1 + $0x1288] sm:$0xff]
    %v620 = vld [vmem:[%s1 + $0x1290] sm:$0xff]
    %v621 = vld [vmem:[%s1 + $0x1298] sm:$0xff]
    %v622 = vld [vmem:[%s1 + $0x12a0] sm:$0xff]
    %v623 = vld [vmem:[%s1 + $0x12a8] sm:$0xff]
    %v624 = vld [vmem:[%s1 + $0x12b0] sm:$0xff]
    %v625 = vld [vmem:[%s1 + $0x12b8] sm:$0xff]
    %v626 = vld [vmem:[%s1 + $0x12c0] sm:$0xff]
    %v627 = vld [vmem:[%s1 + $0x12c8] sm:$0xff]
    %v628 = vld [vmem:[%s1 + $0x12d0] sm:$0xff]
    %v629 = vld [vmem:[%s1 + $0x12d8] sm:$0xff]
    %v630 = vld [vmem:[%s1 + $0x12e0] sm:$0xff]
    %v631 = vld [vmem:[%s1 + $0x12e8] sm:$0xff]
    %v632 = vld [vmem:[%s1 + $0x12f0] sm:$0xff]
    %v633 = vld [vmem:[%s1 + $0x12f8] sm:$0xff]
    %v634 = vld [vmem:[%s1 + $0x1300] sm:$0xff]
    %v635 = vld [vmem:[%s1 + $0x1308] sm:$0xff]
    %v636 = vld [vmem:[%s1 + $0x1310] sm:$0xff]
    %v637 = vld [vmem:[%s1 + $0x1318] sm:$0xff]
    %v638 = vld [vmem:[%s1 + $0x1320] sm:$0xff]
    %v639 = vld [vmem:[%s1 + $0x1328] sm:$0xff]
    %v640 = vld [vmem:[%s1 + $0x1330] sm:$0xff]
    %v641 = vld [vmem:[%s1 + $0x1338] sm:$0xff]
    %v642 = vld [vmem:[%s1 + $0x1340] sm:$0xff]
    %v643 = vld [vmem:[%s1 + $0x1348] sm:$0xff]
    %v644 = vld [vmem:[%s1 + $0x1350] sm:$0xff]
    %v645 = vld [vmem:[%s1 + $0x1358] sm:$0xff]
    %v646 = vld [vmem:[%s1 + $0x1360] sm:$0xff]
    %v647 = vld [vmem:[%s1 + $0x1368] sm:$0xff]
    %v648 = vld [vmem:[%s1 + $0x1370] sm:$0xff]
    %v649 = vld [vmem:[%s1 + $0x1378] sm:$0xff]
    %v650 = vld [vmem:[%s1 + $0x1380] sm:$0xff]
    %v651 = vld [vmem:[%s1 + $0x1388] sm:$0xff]
    %v652 = vld [vmem:[%s1 + $0x1390] sm:$0xff]
    %v653 = vld [vmem:[%s1 + $0x1398] sm:$0xff]
    %v654 = vld [vmem:[%s1 + $0x13a0] sm:$0xff]
    %v655 = vld [vmem:[%s1 + $0x13a8] sm:$0xff]
    %v656 = vld [vmem:[%s1 + $0x13b0] sm:$0xff]
    %v657 = vld [vmem:[%s1 + $0x13b8] sm:$0xff]
    %v658 = vld [vmem:[%s1 + $0x13c0] sm:$0xff]
    %v659 = vld [vmem:[%s1 + $0x13c8] sm:$0xff]
    %v660 = vld [vmem:[%s1 + $0x13d0] sm:$0xff]
    %v661 = vld [vmem:[%s1 + $0x13d8] sm:$0xff]
    %v662 = vld [vmem:[%s1 + $0x13e0] sm:$0xff]
    %v663 = vld [vmem:[%s1 + $0x13e8] sm:$0xff]
    %v664 = vld [vmem:[%s1 + $0x13f0] sm:$0xff]
    %v665 = vld [vmem:[%s1 + $0x13f8] sm:$0xff]
    %v666 = vld [vmem:[%s1 + $0x1400] sm:$0xff]
    %v667 = vld [vmem:[%s1 + $0x1408] sm:$0xff]
    %v668 = vld [vmem:[%s1 + $0x1410] sm:$0xff]
    %v669 = vld [vmem:[%s1 + $0x1418] sm:$0xff]
    %v670 = vld [vmem:[%s1 + $0x1420] sm:$0xff]
    %v671 = vld [vmem:[%s1 + $0x1428] sm:$0xff]
    %v672 = vld [vmem:[%s1 + $0x1430] sm:$0xff]
    %v673 = vld [vmem:[%s1 + $0x1438] sm:$0xff]
    %v674 = vld [vmem:[%s1 + $0x1440] sm:$0xff]
    %v675 = vld [vmem:[%s1 + $0x1448] sm:$0xff]
    %v676 = vld [vmem:[%s1 + $0x1450] sm:$0xff]
    %v677 = vld [vmem:[%s1 + $0x1458] sm:$0xff]
    %v678 = vld [vmem:[%s1 + $0x1460] sm:$0xff]
    %v679 = vld [vmem:[%s1 + $0x1468] sm:$0xff]
    %v680 = vld [vmem:[%s1 + $0x1470] sm:$0xff]
    %v681 = vld [vmem:[%s1 + $0x1478] sm:$0xff]
    %v682 = vld [vmem:[%s1 + $0x1480] sm:$0xff]
    %v683 = vld [vmem:[%s1 + $0x1488] sm:$0xff]
    %v684 = vld [vmem:[%s1 + $0x1490] sm:$0xff]
    %v685 = vld [vmem:[%s1 + $0x1498] sm:$0xff]
    %v686 = vld [vmem:[%s1 + $0x14a0] sm:$0xff]
    %v687 = vld [vmem:[%s1 + $0x14a8] sm:$0xff]
    %v688 = vld [vmem:[%s1 + $0x14b0] sm:$0xff]
    %v689 = vld [vmem:[%s1 + $0x14b8] sm:$0xff]
    %v690 = vld [vmem:[%s1 + $0x14c0] sm:$0xff]
    %v691 = vld [vmem:[%s1 + $0x14c8] sm:$0xff]
    %v692 = vld [vmem:[%s1 + $0x14d0] sm:$0xff]
    %v693 = vld [vmem:[%s1 + $0x14d8] sm:$0xff]
    %v694 = vld [vmem:[%s1 + $0x14e0] sm:$0xff]
    %v695 = vld [vmem:[%s1 + $0x14e8] sm:$0xff]
    %v696 = vld [vmem:[%s1 + $0x14f0] sm:$0xff]
    %v697 = vld [vmem:[%s1 + $0x14f8] sm:$0xff]
    %v698 = vld [vmem:[%s1 + $0x1500] sm:$0xff]
    %v699 = vld [vmem:[%s1 + $0x1508] sm:$0xff]
    %v700 = vld [vmem:[%s1 + $0x1510] sm:$0xff]
    %v701 = vld [vmem:[%s1 + $0x1518] sm:$0xff]
    %v702 = vld [vmem:[%s1 + $0x1520] sm:$0xff]
    %v703 = vld [vmem:[%s1 + $0x1528] sm:$0xff]
    %v704 = vld [vmem:[%s1 + $0x1530] sm:$0xff]
    %v705 = vld [vmem:[%s1 + $0x1538] sm:$0xff]
    %v706 = vld [vmem:[%s1 + $0x1540] sm:$0xff]
    %v707 = vld [vmem:[%s1 + $0x1548] sm:$0xff]
    %v708 = vld [vmem:[%s1 + $0x1550] sm:$0xff]
    %v709 = vld [vmem:[%s1 + $0x1558] sm:$0xff]
    %v710 = vld [vmem:[%s1 + $0x1560] sm:$0xff]
    %v711 = vld [vmem:[%s1 + $0x1568] sm:$0xff]
    %v712 = vld [vmem:[%s1 + $0x1570] sm:$0xff]
    %v713 = vld [vmem:[%s1 + $0x1578] sm:$0xff]
    %v714 = vld [vmem:[%s1 + $0x1580] sm:$0xff]
    %v715 = vld [vmem:[%s1 + $0x1588] sm:$0xff]
    %v716 = vld [vmem:[%s1 + $0x1590] sm:$0xff]
    %v717 = vld [vmem:[%s1 + $0x1598] sm:$0xff]
    %v718 = vld [vmem:[%s1 + $0x15a0] sm:$0xff]
    %v719 = vld [vmem:[%s1 + $0x15a8] sm:$0xff]
    %v720 = vld [vmem:[%s1 + $0x15b0] sm:$0xff]
    %v721 = vld [vmem:[%s1 + $0x15b8] sm:$0xff]
    %v722 = vld [vmem:[%s1 + $0x15c0] sm:$0xff]
    %v723 = vld [vmem:[%s1 + $0x15c8] sm:$0xff]
    %v724 = vld [vmem:[%s1 + $0x15d0] sm:$0xff]
    %v725 = vld [vmem:[%s1 + $0x15d8] sm:$0xff]
    %v726 = vld [vmem:[%s1 + $0x15e0] sm:$0xff]
    %v727 = vld [vmem:[%s1 + $0x15e8] sm:$0xff]
    %v728 = vld [vmem:[%s1 + $0x15f0] sm:$0xff]
    %v729 = vld [vmem:[%s1 + $0x15f8] sm:$0xff]
    %v730 = vld [vmem:[%s1 + $0x1600] sm:$0xff]
    %v731 = vld [vmem:[%s1 + $0x1608] sm:$0xff]
    %v732 = vld [vmem:[%s1 + $0x1610] sm:$0xff]
    %v733 = vld [vmem:[%s1 + $0x1618] sm:$0xff]
    %v734 = vld [vmem:[%s1 + $0x1620] sm:$0xff]
    %v735 = vld [vmem:[%s1 + $0x1628] sm:$0xff]
    %v736 = vld [vmem:[%s1 + $0x1630] sm:$0xff]
    %v737 = vld [vmem:[%s1 + $0x1638] sm:$0xff]
    %v738 = vld [vmem:[%s1 + $0x1640] sm:$0xff]
    %v739 = vld [vmem:[%s1 + $0x1648] sm:$0xff]
    %v740 = vld [vmem:[%s1 + $0x1650] sm:$0xff]
    %v741 = vld [vmem:[%s1 + $0x1658] sm:$0xff]
    %v742 = vld [vmem:[%s1 + $0x1660] sm:$0xff]
    %v743 = vld [vmem:[%s1 + $0x1668] sm:$0xff]
    %v744 = vld [vmem:[%s1 + $0x1670] sm:$0xff]
    %v745 = vld [vmem:[%s1 + $0x1678] sm:$0xff]
    %v746 = vld [vmem:[%s1 + $0x1680] sm:$0xff]
    %v747 = vld [vmem:[%s1 + $0x1688] sm:$0xff]
    %v748 = vld [vmem:[%s1 + $0x1690] sm:$0xff]
    %v749 = vld [vmem:[%s1 + $0x1698] sm:$0xff]
    %v750 = vld [vmem:[%s1 + $0x16a0] sm:$0xff]
    %v751 = vld [vmem:[%s1 + $0x16a8] sm:$0xff]
    %v752 = vld [vmem:[%s1 + $0x16b0] sm:$0xff]
    %v753 = vld [vmem:[%s1 + $0x16b8] sm:$0xff]
    %v754 = vld [vmem:[%s1 + $0x16c0] sm:$0xff]
    %v755 = vld [vmem:[%s1 + $0x16c8] sm:$0xff]
    %v756 = vld [vmem:[%s1 + $0x16d0] sm:$0xff]
    %v757 = vld [vmem:[%s1 + $0x16d8] sm:$0xff]
    %v758 = vld [vmem:[%s1 + $0x16e0] sm:$0xff]
    %v759 = vld [vmem:[%s1 + $0x16e8] sm:$0xff]
    %v760 = vld [vmem:[%s1 + $0x16f0] sm:$0xff]
    %v761 = vld [vmem:[%s1 + $0x16f8] sm:$0xff]
    %v762 = vld [vmem:[%s1 + $0x1700] sm:$0xff]
    %v763 = vld [vmem:[%s1 + $0x1708] sm:$0xff]
    %v764 = vld [vmem:[%s1 + $0x1710] sm:$0xff]
    %v765 = vld [vmem:[%s1 + $0x1718] sm:$0xff]
    %v766 = vld [vmem:[%s1 + $0x1720] sm:$0xff]
    %v767 = vld [vmem:[%s1 + $0x1728] sm:$0xff]
    %v768 = vld [vmem:[%s1 + $0x1730] sm:$0xff]
    %v769 = vld [vmem:[%s1 + $0x1738] sm:$0xff]
    %v770 = vld [vmem:[%s1 + $0x1740] sm:$0xff]
    %v771 = vld [vmem:[%s1 + $0x1748] sm:$0xff]
    %v772 = vld [vmem:[%s1 + $0x1750] sm:$0xff]
    %v773 = vld [vmem:[%s1 + $0x1758] sm:$0xff]
    %v774 = vld [vmem:[%s1 + $0x1760] sm:$0xff]
    %v775 = vld [vmem:[%s1 + $0x1768] sm:$0xff]
    %v776 = vld [vmem:[%s1 + $0x1770] sm:$0xff]
    %v777 = vld [vmem:[%s1 + $0x1778] sm:$0xff]
    %v778 = vld [vmem:[%s1 + $0x1780] sm:$0xff]
    %v779 = vld [vmem:[%s1 + $0x1788] sm:$0xff]
    %v780 = vld [vmem:[%s1 + $0x1790] sm:$0xff]
    %v781 = vld [vmem:[%s1 + $0x1798] sm:$0xff]
    %v782 = vld [vmem:[%s1 + $0x17a0] sm:$0xff]
    %v783 = vld [vmem:[%s1 + $0x17a8] sm:$0xff]
    %v784 = vld [vmem:[%s1 + $0x17b0] sm:$0xff]
    %v785 = vld [vmem:[%s1 + $0x17b8] sm:$0xff]
    %v786 = vld [vmem:[%s1 + $0x17c0] sm:$0xff]
    %v787 = vld [vmem:[%s1 + $0x17c8] sm:$0xff]
    %v788 = vld [vmem:[%s1 + $0x17d0] sm:$0xff]
    %v789 = vld [vmem:[%s1 + $0x17d8] sm:$0xff]
    %v790 = vld [vmem:[%s1 + $0x17e0] sm:$0xff]
    %v791 = vld [vmem:[%s1 + $0x17e8] sm:$0xff]
    %v792 = vld [vmem:[%s1 + $0x17f0] sm:$0xff]
    %v793 = vld [vmem:[%s1 + $0x17f8] sm:$0xff]
    %v794 = vld [vmem:[%s1 + $0x1800] sm:$0xff]
    %v795 = vld [vmem:[%s1 + $0x1808] sm:$0xff]
    %v796 = vld [vmem:[%s1 + $0x1810] sm:$0xff]
    %v797 = vld [vmem:[%s1 + $0x1818] sm:$0xff]
    %v798 = vld [vmem:[%s1 + $0x1820] sm:$0xff]
    %v799 = vld [vmem:[%s1 + $0x1828] sm:$0xff]
    %v800 = vld [vmem:[%s1 + $0x1830] sm:$0xff]
    %v801 = vld [vmem:[%s1 + $0x1838] sm:$0xff]
    %v802 = vld [vmem:[%s1 + $0x1840] sm:$0xff]
    %v803 = vld [vmem:[%s1 + $0x1848] sm:$0xff]
    %v804 = vld [vmem:[%s1 + $0x1850] sm:$0xff]
    %v805 = vld [vmem:[%s1 + $0x1858] sm:$0xff]
    %v806 = vld [vmem:[%s1 + $0x1860] sm:$0xff]
    %v807 = vld [vmem:[%s1 + $0x1868] sm:$0xff]
    %v808 = vld [vmem:[%s1 + $0x1870] sm:$0xff]
    %v809 = vld [vmem:[%s1 + $0x1878] sm:$0xff]
    %v810 = vld [vmem:[%s2] sm:$0xf]
    %v812 = vperm.slane %v810, 0
    %v813 = vperm.slane %v810, 1
    %v814 = vperm.slane %v810, 2
    %v815 = vperm.slane %v810, 3
    %821 = vst [vmem:[#allocation1] ss:$9 sm:$0xff] %v22
    %v822 = vld [vmem:[#allocation1] sm:$0xff]
    %v823 = vld [vmem:[#allocation1 + $0x9] sm:$0xff]
    %v824 = vld [vmem:[#allocation1 + $0x12] sm:$0xff]
    %v825 = vld [vmem:[#allocation1 + $0x1b] sm:$0xff]
    %v826 = vld [vmem:[#allocation1 + $0x24] sm:$0xff]
    %v827 = vld [vmem:[#allocation1 + $0x2d] sm:$0xff]
    %v828 = vld [vmem:[#allocation1 + $0x36] sm:$0xff]
    %v829 = vld [vmem:[#allocation1 + $0x3f] sm:$0xff]
    %831 = vst [vmem:[#allocation1] ss:$9 sm:$0xff] %v23
    %v832 = vld [vmem:[#allocation1] sm:$0xff]
    %v833 = vld [vmem:[#allocation1 + $0x9] sm:$0xff]
    %v834 = vld [vmem:[#allocation1 + $0x12] sm:$0xff]
    %v835 = vld [vmem:[#allocation1 + $0x1b] sm:$0xff]
    %v836 = vld [vmem:[#allocation1 + $0x24] sm:$0xff]
    %v837 = vld [vmem:[#allocation1 + $0x2d] sm:$0xff]
    %v838 = vld [vmem:[#allocation1 + $0x36] sm:$0xff]
    %v839 = vld [vmem:[#allocation1 + $0x3f] sm:$0xff]
    %841 = vst [vmem:[#allocation1] ss:$9 sm:$0xff] %v24
    %v842 = vld [vmem:[#allocation1] sm:$0xff]
    %v843 = vld [vmem:[#allocation1 + $0x9] sm:$0xff]
    %v844 = vld [vmem:[#allocation1 + $0x12] sm:$0xff]
    %v845 = vld [vmem:[#allocation1 + $0x1b] sm:$0xff]
    %v846 = vld [vmem:[#allocation1 + $0x24] sm:$0xff]
    %v847 = vld [vmem:[#allocation1 + $0x2d] sm:$0xff]
    %v848 = vld [vmem:[#allocation1 + $0x36] sm:$0xff]
    %v849 = vld [vmem:[#allocation1 + $0x3f] sm:$0xff]
    %851 = vst [vmem:[#allocation1] ss:$9 sm:$0xff] %v25
    %v852 = vld [vmem:[#allocation1] sm:$0xff]
    %v1661 = vunpack.c.l.b16 %v26
    %v1662 = vunpack.c.h.b16 %v26
    %v1663 = vunpack.c.l.b16 %v27
    %v1664 = vunpack.c.h.b16 %v27
    %v1665 = vunpack.c.l.b16 %v28
    %v1666 = vunpack.c.h.b16 %v28
    %v1667 = vunpack.c.l.b16 %v29
    %v1668 = vunpack.c.h.b16 %v29
    %v1669 = vunpack.c.l.b16 %v30
    %v1670 = vunpack.c.h.b16 %v30
    %v1671 = vunpack.c.l.b16 %v31
    %v1672 = vunpack.c.h.b16 %v31
    %v1673 = vunpack.c.l.b16 %v32
    %v1674 = vunpack.c.h.b16 %v32
    %v1675 = vunpack.c.l.b16 %v33
    %v1676 = vunpack.c.h.b16 %v33
    %v1677 = vunpack.c.l.b16 %v34
    %v1678 = vunpack.c.h.b16 %v34
    %v1679 = vunpack.c.l.b16 %v35
    %v1680 = vunpack.c.h.b16 %v35
    %v1681 = vunpack.c.l.b16 %v36
    %v1682 = vunpack.c.h.b16 %v36
    %v1683 = vunpack.c.l.b16 %v37
    %v1684 = vunpack.c.h.b16 %v37
    %v1685 = vunpack.c.l.b16 %v38
    %v1686 = vunpack.c.h.b16 %v38
    %v1687 = vunpack.c.l.b16 %v39
    %v1688 = vunpack.c.h.b16 %v39
    %v1689 = vunpack.c.l.b16 %v40
    %v1690 = vunpack.c.h.b16 %v40
    %v1691 = vunpack.c.l.b16 %v41
    %v1692 = vunpack.c.h.b16 %v41
    %v1693 = vunpack.c.l.b16 %v42
    %v1694 = vunpack.c.h.b16 %v42
    %v1695 = vunpack.c.l.b16 %v43
    %v1696 = vunpack.c.h.b16 %v43
    %v1697 = vunpack.c.l.b16 %v44
    %v1698 = vunpack.c.h.b16 %v44
    %v1699 = vunpack.c.l.b16 %v45
    %v1700 = vunpack.c.h.b16 %v45
    %v1701 = vunpack.c.l.b16 %v46
    %v1702 = vunpack.c.h.b16 %v46
    %v1703 = vunpack.c.l.b16 %v47
    %v1704 = vunpack.c.h.b16 %v47
    %v1705 = vunpack.c.l.b16 %v48
    %v1706 = vunpack.c.h.b16 %v48
    %v1707 = vunpack.c.l.b16 %v49
    %v1708 = vunpack.c.h.b16 %v49
    %v1709 = vunpack.c.l.b16 %v50
    %v1710 = vunpack.c.h.b16 %v50
    %v1711 = vunpack.c.l.b16 %v51
    %v1712 = vunpack.c.h.b16 %v51
    %v1713 = vunpack.c.l.b16 %v52
    %v1714 = vunpack.c.h.b16 %v52
    %v1715 = vunpack.c.l.b16 %v53
    %v1716 = vunpack.c.h.b16 %v53
    %v1717 = vunpack.c.l.b16 %v54
    %v1718 = vunpack.c.h.b16 %v54
    %v1719 = vunpack.c.l.b16 %v55
    %v1720 = vunpack.c.h.b16 %v55
    %v1721 = vunpack.c.l.b16 %v56
    %v1722 = vunpack.c.h.b16 %v56
    %v1723 = vunpack.c.l.b16 %v57
    %v1724 = vunpack.c.h.b16 %v57
    %v1725 = vunpack.c.l.b16 %v58
    %v1726 = vunpack.c.h.b16 %v58
    %v1727 = vunpack.c.l.b16 %v59
    %v1728 = vunpack.c.h.b16 %v59
    %v1729 = vunpack.c.l.b16 %v60
    %v1730 = vunpack.c.h.b16 %v60
    %v1731 = vunpack.c.l.b16 %v61
    %v1732 = vunpack.c.h.b16 %v61
    %v1733 = vunpack.c.l.b16 %v62
    %v1734 = vunpack.c.h.b16 %v62
    %v1735 = vunpack.c.l.b16 %v63
    %v1736 = vunpack.c.h.b16 %v63
    %v1737 = vunpack.c.l.b16 %v64
    %v1738 = vunpack.c.h.b16 %v64
    %v1739 = vunpack.c.l.b16 %v65
    %v1740 = vunpack.c.h.b16 %v65
    %v1741 = vunpack.c.l.b16 %v66
    %v1742 = vunpack.c.h.b16 %v66
    %v1743 = vunpack.c.l.b16 %v67
    %v1744 = vunpack.c.h.b16 %v67
    %v1745 = vunpack.c.l.b16 %v68
    %v1746 = vunpack.c.h.b16 %v68
    %v1747 = vunpack.c.l.b16 %v69
    %v1748 = vunpack.c.h.b16 %v69
    %v1749 = vunpack.c.l.b16 %v70
    %v1750 = vunpack.c.h.b16 %v70
    %v1751 = vunpack.c.l.b16 %v71
    %v1752 = vunpack.c.h.b16 %v71
    %v1753 = vunpack.c.l.b16 %v72
    %v1754 = vunpack.c.h.b16 %v72
    %v1755 = vunpack.c.l.b16 %v73
    %v1756 = vunpack.c.h.b16 %v73
    %v1757 = vunpack.c.l.b16 %v74
    %v1758 = vunpack.c.h.b16 %v74
    %v1759 = vunpack.c.l.b16 %v75
    %v1760 = vunpack.c.h.b16 %v75
    %v1761 = vunpack.c.l.b16 %v76
    %v1762 = vunpack.c.h.b16 %v76
    %v1763 = vunpack.c.l.b16 %v77
    %v1764 = vunpack.c.h.b16 %v77
    %v1765 = vunpack.c.l.b16 %v78
    %v1766 = vunpack.c.h.b16 %v78
    %v1767 = vunpack.c.l.b16 %v79
    %v1768 = vunpack.c.h.b16 %v79
    %v1769 = vunpack.c.l.b16 %v80
    %v1770 = vunpack.c.h.b16 %v80
    %v1771 = vunpack.c.l.b16 %v81
    %v1772 = vunpack.c.h.b16 %v81
    %v1773 = vunpack.c.l.b16 %v82
    %v1774 = vunpack.c.h.b16 %v82
    %v1775 = vunpack.c.l.b16 %v83
    %v1776 = vunpack.c.h.b16 %v83
    %v1777 = vunpack.c.l.b16 %v84
    %v1778 = vunpack.c.h.b16 %v84
    %v1779 = vunpack.c.l.b16 %v85
    %v1780 = vunpack.c.h.b16 %v85
    %v1781 = vunpack.c.l.b16 %v86
    %v1782 = vunpack.c.h.b16 %v86
    %v1783 = vunpack.c.l.b16 %v87
    %v1784 = vunpack.c.h.b16 %v87
    %v1785 = vunpack.c.l.b16 %v88
    %v1786 = vunpack.c.h.b16 %v88
    %v1787 = vunpack.c.l.b16 %v89
    %v1788 = vunpack.c.h.b16 %v89
    %v1789 = vunpack.c.l.b16 %v90
    %v1790 = vunpack.c.h.b16 %v90
    %v1791 = vunpack.c.l.b16 %v91
    %v1792 = vunpack.c.h.b16 %v91
    %v1793 = vunpack.c.l.b16 %v92
    %v1794 = vunpack.c.h.b16 %v92
    %v1795 = vunpack.c.l.b16 %v93
    %v1796 = vunpack.c.h.b16 %v93
    %v1797 = vunpack.c.l.b16 %v94
    %v1798 = vunpack.c.h.b16 %v94
    %v1799 = vunpack.c.l.b16 %v95
    %v1800 = vunpack.c.h.b16 %v95
    %v1801 = vunpack.c.l.b16 %v96
    %v1802 = vunpack.c.h.b16 %v96
    %v1803 = vunpack.c.l.b16 %v97
    %v1804 = vunpack.c.h.b16 %v97
    %v1805 = vunpack.c.l.b16 %v98
    %v1806 = vunpack.c.h.b16 %v98
    %v1807 = vunpack.c.l.b16 %v99
    %v1808 = vunpack.c.h.b16 %v99
    %v1809 = vunpack.c.l.b16 %v100
    %v1810 = vunpack.c.h.b16 %v100
    %v1811 = vunpack.c.l.b16 %v101
    %v1812 = vunpack.c.h.b16 %v101
    %v1813 = vunpack.c.l.b16 %v102
    %v1814 = vunpack.c.h.b16 %v102
    %v1815 = vunpack.c.l.b16 %v103
    %v1816 = vunpack.c.h.b16 %v103
    %v1817 = vunpack.c.l.b16 %v104
    %v1818 = vunpack.c.h.b16 %v104
    %v1819 = vunpack.c.l.b16 %v105
    %v1820 = vunpack.c.h.b16 %v105
    %v1821 = vunpack.c.l.b16 %v106
    %v1822 = vunpack.c.h.b16 %v106
    %v1823 = vunpack.c.l.b16 %v107
    %v1824 = vunpack.c.h.b16 %v107
    %v1825 = vunpack.c.l.b16 %v108
    %v1826 = vunpack.c.h.b16 %v108
    %v1827 = vunpack.c.l.b16 %v109
    %v1828 = vunpack.c.h.b16 %v109
    %v1829 = vunpack.c.l.b16 %v110
    %v1830 = vunpack.c.h.b16 %v110
    %v1831 = vunpack.c.l.b16 %v111
    %v1832 = vunpack.c.h.b16 %v111
    %v1833 = vunpack.c.l.b16 %v112
    %v1834 = vunpack.c.h.b16 %v112
    %v1835 = vunpack.c.l.b16 %v113
    %v1836 = vunpack.c.h.b16 %v113
    %v1837 = vunpack.c.l.b16 %v114
    %v1838 = vunpack.c.h.b16 %v114
    %v1839 = vunpack.c.l.b16 %v115
    %v1840 = vunpack.c.h.b16 %v115
    %v1841 = vunpack.c.l.b16 %v116
    %v1842 = vunpack.c.h.b16 %v116
    %v1843 = vunpack.c.l.b16 %v117
    %v1844 = vunpack.c.h.b16 %v117
    %v1845 = vunpack.c.l.b16 %v118
    %v1846 = vunpack.c.h.b16 %v118
    %v1847 = vunpack.c.l.b16 %v119
    %v1848 = vunpack.c.h.b16 %v119
    %v1849 = vunpack.c.l.b16 %v120
    %v1850 = vunpack.c.h.b16 %v120
    %v1851 = vunpack.c.l.b16 %v121
    %v1852 = vunpack.c.h.b16 %v121
    %v1853 = vunpack.c.l.b16 %v122
    %v1854 = vunpack.c.h.b16 %v122
    %v1855 = vunpack.c.l.b16 %v123
    %v1856 = vunpack.c.h.b16 %v123
    %v1857 = vunpack.c.l.b16 %v124
    %v1858 = vunpack.c.h.b16 %v124
    %v1859 = vunpack.c.l.b16 %v125
    %v1860 = vunpack.c.h.b16 %v125
    %v1861 = vunpack.c.l.b16 %v126
    %v1862 = vunpack.c.h.b16 %v126
    %v1863 = vunpack.c.l.b16 %v127
    %v1864 = vunpack.c.h.b16 %v127
    %v1865 = vunpack.c.l.b16 %v128
    %v1866 = vunpack.c.h.b16 %v128
    %v1867 = vunpack.c.l.b16 %v129
    %v1868 = vunpack.c.h.b16 %v129
    %v1869 = vunpack.c.l.b16 %v130
    %v1870 = vunpack.c.h.b16 %v130
    %v1871 = vunpack.c.l.b16 %v131
    %v1872 = vunpack.c.h.b16 %v131
    %v1873 = vunpack.c.l.b16 %v132
    %v1874 = vunpack.c.h.b16 %v132
    %v1875 = vunpack.c.l.b16 %v133
    %v1876 = vunpack.c.h.b16 %v133
    %v1877 = vunpack.c.l.b16 %v134
    %v1878 = vunpack.c.h.b16 %v134
    %v1879 = vunpack.c.l.b16 %v135
    %v1880 = vunpack.c.h.b16 %v135
    %v1881 = vunpack.c.l.b16 %v136
    %v1882 = vunpack.c.h.b16 %v136
    %v1883 = vunpack.c.l.b16 %v137
    %v1884 = vunpack.c.h.b16 %v137
    %v1885 = vunpack.c.l.b16 %v138
    %v1886 = vunpack.c.h.b16 %v138
    %v1887 = vunpack.c.l.b16 %v139
    %v1888 = vunpack.c.h.b16 %v139
    %v1889 = vunpack.c.l.b16 %v140
    %v1890 = vunpack.c.h.b16 %v140
    %v1891 = vunpack.c.l.b16 %v141
    %v1892 = vunpack.c.h.b16 %v141
    %v1893 = vunpack.c.l.b16 %v142
    %v1894 = vunpack.c.h.b16 %v142
    %v1895 = vunpack.c.l.b16 %v143
    %v1896 = vunpack.c.h.b16 %v143
    %v1897 = vunpack.c.l.b16 %v144
    %v1898 = vunpack.c.h.b16 %v144
    %v1899 = vunpack.c.l.b16 %v145
    %v1900 = vunpack.c.h.b16 %v145
    %v1901 = vunpack.c.l.b16 %v146
    %v1902 = vunpack.c.h.b16 %v146
    %v1903 = vunpack.c.l.b16 %v147
    %v1904 = vunpack.c.h.b16 %v147
    %v1905 = vunpack.c.l.b16 %v148
    %v1906 = vunpack.c.h.b16 %v148
    %v1907 = vunpack.c.l.b16 %v149
    %v1908 = vunpack.c.h.b16 %v149
    %v1909 = vunpack.c.l.b16 %v150
    %v1910 = vunpack.c.h.b16 %v150
    %v1911 = vunpack.c.l.b16 %v151
    %v1912 = vunpack.c.h.b16 %v151
    %v1913 = vunpack.c.l.b16 %v152
    %v1914 = vunpack.c.h.b16 %v152
    %v1915 = vunpack.c.l.b16 %v153
    %v1916 = vunpack.c.h.b16 %v153
    %v1917 = vunpack.c.l.b16 %v154
    %v1918 = vunpack.c.h.b16 %v154
    %v1919 = vunpack.c.l.b16 %v155
    %v1920 = vunpack.c.h.b16 %v155
    %v1921 = vunpack.c.l.b16 %v156
    %v1922 = vunpack.c.h.b16 %v156
    %v1923 = vunpack.c.l.b16 %v157
    %v1924 = vunpack.c.h.b16 %v157
    %v1925 = vunpack.c.l.b16 %v158
    %v1926 = vunpack.c.h.b16 %v158
    %v1927 = vunpack.c.l.b16 %v159
    %v1928 = vunpack.c.h.b16 %v159
    %v1929 = vunpack.c.l.b16 %v160
    %v1930 = vunpack.c.h.b16 %v160
    %v1931 = vunpack.c.l.b16 %v161
    %v1932 = vunpack.c.h.b16 %v161
    %v1933 = vunpack.c.l.b16 %v162
    %v1934 = vunpack.c.h.b16 %v162
    %v1935 = vunpack.c.l.b16 %v163
    %v1936 = vunpack.c.h.b16 %v163
    %v1937 = vunpack.c.l.b16 %v164
    %v1938 = vunpack.c.h.b16 %v164
    %v1939 = vunpack.c.l.b16 %v165
    %v1940 = vunpack.c.h.b16 %v165
    %v1941 = vunpack.c.l.b16 %v166
    %v1942 = vunpack.c.h.b16 %v166
    %v1943 = vunpack.c.l.b16 %v167
    %v1944 = vunpack.c.h.b16 %v167
    %v1945 = vunpack.c.l.b16 %v168
    %v1946 = vunpack.c.h.b16 %v168
    %v1947 = vunpack.c.l.b16 %v169
    %v1948 = vunpack.c.h.b16 %v169
    %v1949 = vunpack.c.l.b16 %v170
    %v1950 = vunpack.c.h.b16 %v170
    %v1951 = vunpack.c.l.b16 %v171
    %v1952 = vunpack.c.h.b16 %v171
    %v1953 = vunpack.c.l.b16 %v172
    %v1954 = vunpack.c.h.b16 %v172
    %v1955 = vunpack.c.l.b16 %v173
    %v1956 = vunpack.c.h.b16 %v173
    %v1957 = vunpack.c.l.b16 %v174
    %v1958 = vunpack.c.h.b16 %v174
    %v1959 = vunpack.c.l.b16 %v175
    %v1960 = vunpack.c.h.b16 %v175
    %v1961 = vunpack.c.l.b16 %v176
    %v1962 = vunpack.c.h.b16 %v176
    %v1963 = vunpack.c.l.b16 %v177
    %v1964 = vunpack.c.h.b16 %v177
    %v1965 = vunpack.c.l.b16 %v178
    %v1966 = vunpack.c.h.b16 %v178
    %v1967 = vunpack.c.l.b16 %v179
    %v1968 = vunpack.c.h.b16 %v179
    %v1969 = vunpack.c.l.b16 %v180
    %v1970 = vunpack.c.h.b16 %v180
    %v1971 = vunpack.c.l.b16 %v181
    %v1972 = vunpack.c.h.b16 %v181
    %v1973 = vunpack.c.l.b16 %v182
    %v1974 = vunpack.c.h.b16 %v182
    %v1975 = vunpack.c.l.b16 %v183
    %v1976 = vunpack.c.h.b16 %v183
    %v1977 = vunpack.c.l.b16 %v184
    %v1978 = vunpack.c.h.b16 %v184
    %v1979 = vunpack.c.l.b16 %v185
    %v1980 = vunpack.c.h.b16 %v185
    %v1981 = vunpack.c.l.b16 %v186
    %v1982 = vunpack.c.h.b16 %v186
    %v1983 = vunpack.c.l.b16 %v187
    %v1984 = vunpack.c.h.b16 %v187
    %v1985 = vunpack.c.l.b16 %v188
    %v1986 = vunpack.c.h.b16 %v188
    %v1987 = vunpack.c.l.b16 %v189
    %v1988 = vunpack.c.h.b16 %v189
    %v1989 = vunpack.c.l.b16 %v190
    %v1990 = vunpack.c.h.b16 %v190
    %v1991 = vunpack.c.l.b16 %v191
    %v1992 = vunpack.c.h.b16 %v191
    %v1993 = vunpack.c.l.b16 %v192
    %v1994 = vunpack.c.h.b16 %v192
    %v1995 = vunpack.c.l.b16 %v193
    %v1996 = vunpack.c.h.b16 %v193
    %v1997 = vunpack.c.l.b16 %v194
    %v1998 = vunpack.c.h.b16 %v194
    %v1999 = vunpack.c.l.b16 %v195
    %v2000 = vunpack.c.h.b16 %v195
    %v2001 = vunpack.c.l.b16 %v196
    %v2002 = vunpack.c.h.b16 %v196
    %v2003 = vunpack.c.l.b16 %v197
    %v2004 = vunpack.c.h.b16 %v197
    %v2005 = vunpack.c.l.b16 %v198
    %v2006 = vunpack.c.h.b16 %v198
    %v2007 = vunpack.c.l.b16 %v199
    %v2008 = vunpack.c.h.b16 %v199
    %v2009 = vunpack.c.l.b16 %v200
    %v2010 = vunpack.c.h.b16 %v200
    %v2011 = vunpack.c.l.b16 %v201
    %v2012 = vunpack.c.h.b16 %v201
    %v2013 = vunpack.c.l.b16 %v202
    %v2014 = vunpack.c.h.b16 %v202
    %v2015 = vunpack.c.l.b16 %v203
    %v2016 = vunpack.c.h.b16 %v203
    %v2017 = vunpack.c.l.b16 %v204
    %v2018 = vunpack.c.h.b16 %v204
    %v2019 = vunpack.c.l.b16 %v205
    %v2020 = vunpack.c.h.b16 %v205
    %v2021 = vunpack.c.l.b16 %v206
    %v2022 = vunpack.c.h.b16 %v206
    %v2023 = vunpack.c.l.b16 %v207
    %v2024 = vunpack.c.h.b16 %v207
    %v2025 = vunpack.c.l.b16 %v208
    %v2026 = vunpack.c.h.b16 %v208
    %v2027 = vunpack.c.l.b16 %v209
    %v2028 = vunpack.c.h.b16 %v209
    %v2029 = vunpack.c.l.b16 %v210
    %v2030 = vunpack.c.h.b16 %v210
    %v2031 = vunpack.c.l.b16 %v211
    %v2032 = vunpack.c.h.b16 %v211
    %v2033 = vunpack.c.l.b16 %v212
    %v2034 = vunpack.c.h.b16 %v212
    %v2035 = vunpack.c.l.b16 %v213
    %v2036 = vunpack.c.h.b16 %v213
    %v2037 = vunpack.c.l.b16 %v214
    %v2038 = vunpack.c.h.b16 %v214
    %v2039 = vunpack.c.l.b16 %v215
    %v2040 = vunpack.c.h.b16 %v215
    %v2041 = vunpack.c.l.b16 %v216
    %v2042 = vunpack.c.h.b16 %v216
    %v2043 = vunpack.c.l.b16 %v217
    %v2044 = vunpack.c.h.b16 %v217
    %v2045 = vunpack.c.l.b16 %v218
    %v2046 = vunpack.c.h.b16 %v218
    %v2047 = vunpack.c.l.b16 %v219
    %v2048 = vunpack.c.h.b16 %v219
    %v2049 = vunpack.c.l.b16 %v220
    %v2050 = vunpack.c.h.b16 %v220
    %v2051 = vunpack.c.l.b16 %v221
    %v2052 = vunpack.c.h.b16 %v221
    %v2053 = vunpack.c.l.b16 %v222
    %v2054 = vunpack.c.h.b16 %v222
    %v2055 = vunpack.c.l.b16 %v223
    %v2056 = vunpack.c.h.b16 %v223
    %v2057 = vunpack.c.l.b16 %v224
    %v2058 = vunpack.c.h.b16 %v224
    %v2059 = vunpack.c.l.b16 %v225
    %v2060 = vunpack.c.h.b16 %v225
    %v2061 = vunpack.c.l.b16 %v226
    %v2062 = vunpack.c.h.b16 %v226
    %v2063 = vunpack.c.l.b16 %v227
    %v2064 = vunpack.c.h.b16 %v227
    %v2065 = vunpack.c.l.b16 %v228
    %v2066 = vunpack.c.h.b16 %v228
    %v2067 = vunpack.c.l.b16 %v229
    %v2068 = vunpack.c.h.b16 %v229
    %v2069 = vunpack.c.l.b16 %v230
    %v2070 = vunpack.c.h.b16 %v230
    %v2071 = vunpack.c.l.b16 %v231
    %v2072 = vunpack.c.h.b16 %v231
    %v2073 = vunpack.c.l.b16 %v232
    %v2074 = vunpack.c.h.b16 %v232
    %v2075 = vunpack.c.l.b16 %v233
    %v2076 = vunpack.c.h.b16 %v233
    %v2077 = vunpack.c.l.b16 %v234
    %v2078 = vunpack.c.h.b16 %v234
    %v2079 = vunpack.c.l.b16 %v235
    %v2080 = vunpack.c.h.b16 %v235
    %v2081 = vunpack.c.l.b16 %v236
    %v2082 = vunpack.c.h.b16 %v236
    %v2083 = vunpack.c.l.b16 %v237
    %v2084 = vunpack.c.h.b16 %v237
    %v2085 = vunpack.c.l.b16 %v238
    %v2086 = vunpack.c.h.b16 %v238
    %v2087 = vunpack.c.l.b16 %v239
    %v2088 = vunpack.c.h.b16 %v239
    %v2089 = vunpack.c.l.b16 %v240
    %v2090 = vunpack.c.h.b16 %v240
    %v2091 = vunpack.c.l.b16 %v241
    %v2092 = vunpack.c.h.b16 %v241
    %v2093 = vunpack.c.l.b16 %v242
    %v2094 = vunpack.c.h.b16 %v242
    %v2095 = vunpack.c.l.b16 %v243
    %v2096 = vunpack.c.h.b16 %v243
    %v2097 = vunpack.c.l.b16 %v244
    %v2098 = vunpack.c.h.b16 %v244
    %v2099 = vunpack.c.l.b16 %v245
    %v2100 = vunpack.c.h.b16 %v245
    %v2101 = vunpack.c.l.b16 %v246
    %v2102 = vunpack.c.h.b16 %v246
    %v2103 = vunpack.c.l.b16 %v247
    %v2104 = vunpack.c.h.b16 %v247
    %v2105 = vunpack.c.l.b16 %v248
    %v2106 = vunpack.c.h.b16 %v248
    %v2107 = vunpack.c.l.b16 %v249
    %v2108 = vunpack.c.h.b16 %v249
    %v2109 = vunpack.c.l.b16 %v250
    %v2110 = vunpack.c.h.b16 %v250
    %v2111 = vunpack.c.l.b16 %v251
    %v2112 = vunpack.c.h.b16 %v251
    %v2113 = vunpack.c.l.b16 %v252
    %v2114 = vunpack.c.h.b16 %v252
    %v2115 = vunpack.c.l.b16 %v253
    %v2116 = vunpack.c.h.b16 %v253
    %v2117 = vunpack.c.l.b16 %v254
    %v2118 = vunpack.c.h.b16 %v254
    %v2119 = vunpack.c.l.b16 %v255
    %v2120 = vunpack.c.h.b16 %v255
    %v2121 = vunpack.c.l.b16 %v256
    %v2122 = vunpack.c.h.b16 %v256
    %v2123 = vunpack.c.l.b16 %v257
    %v2124 = vunpack.c.h.b16 %v257
    %v2125 = vunpack.c.l.b16 %v258
    %v2126 = vunpack.c.h.b16 %v258
    %v2127 = vunpack.c.l.b16 %v259
    %v2128 = vunpack.c.h.b16 %v259
    %v2129 = vunpack.c.l.b16 %v260
    %v2130 = vunpack.c.h.b16 %v260
    %v2131 = vunpack.c.l.b16 %v261
    %v2132 = vunpack.c.h.b16 %v261
    %v2133 = vunpack.c.l.b16 %v262
    %v2134 = vunpack.c.h.b16 %v262
    %v2135 = vunpack.c.l.b16 %v263
    %v2136 = vunpack.c.h.b16 %v263
    %v2137 = vunpack.c.l.b16 %v264
    %v2138 = vunpack.c.h.b16 %v264
    %v2139 = vunpack.c.l.b16 %v265
    %v2140 = vunpack.c.h.b16 %v265
    %v2141 = vunpack.c.l.b16 %v266
    %v2142 = vunpack.c.h.b16 %v266
    %v2143 = vunpack.c.l.b16 %v267
    %v2144 = vunpack.c.h.b16 %v267
    %v2145 = vunpack.c.l.b16 %v268
    %v2146 = vunpack.c.h.b16 %v268
    %v2147 = vunpack.c.l.b16 %v269
    %v2148 = vunpack.c.h.b16 %v269
    %v2149 = vunpack.c.l.b16 %v270
    %v2150 = vunpack.c.h.b16 %v270
    %v2151 = vunpack.c.l.b16 %v271
    %v2152 = vunpack.c.h.b16 %v271
    %v2153 = vunpack.c.l.b16 %v272
    %v2154 = vunpack.c.h.b16 %v272
    %v2155 = vunpack.c.l.b16 %v273
    %v2156 = vunpack.c.h.b16 %v273
    %v2157 = vunpack.c.l.b16 %v274
    %v2158 = vunpack.c.h.b16 %v274
    %v2159 = vunpack.c.l.b16 %v275
    %v2160 = vunpack.c.h.b16 %v275
    %v2161 = vunpack.c.l.b16 %v276
    %v2162 = vunpack.c.h.b16 %v276
    %v2163 = vunpack.c.l.b16 %v277
    %v2164 = vunpack.c.h.b16 %v277
    %v2165 = vunpack.c.l.b16 %v278
    %v2166 = vunpack.c.h.b16 %v278
    %v2167 = vunpack.c.l.b16 %v279
    %v2168 = vunpack.c.h.b16 %v279
    %v2169 = vunpack.c.l.b16 %v280
    %v2170 = vunpack.c.h.b16 %v280
    %v2171 = vunpack.c.l.b16 %v281
    %v2172 = vunpack.c.h.b16 %v281
    %v2173 = vunpack.c.l.b16 %v282
    %v2174 = vunpack.c.h.b16 %v282
    %v2175 = vunpack.c.l.b16 %v283
    %v2176 = vunpack.c.h.b16 %v283
    %v2177 = vunpack.c.l.b16 %v284
    %v2178 = vunpack.c.h.b16 %v284
    %v2179 = vunpack.c.l.b16 %v285
    %v2180 = vunpack.c.h.b16 %v285
    %v2181 = vunpack.c.l.b16 %v286
    %v2182 = vunpack.c.h.b16 %v286
    %v2183 = vunpack.c.l.b16 %v287
    %v2184 = vunpack.c.h.b16 %v287
    %v2185 = vunpack.c.l.b16 %v288
    %v2186 = vunpack.c.h.b16 %v288
    %v2187 = vunpack.c.l.b16 %v289
    %v2188 = vunpack.c.h.b16 %v289
    %v2189 = vunpack.c.l.b16 %v290
    %v2190 = vunpack.c.h.b16 %v290
    %v2191 = vunpack.c.l.b16 %v291
    %v2192 = vunpack.c.h.b16 %v291
    %v2193 = vunpack.c.l.b16 %v292
    %v2194 = vunpack.c.h.b16 %v292
    %v2195 = vunpack.c.l.b16 %v293
    %v2196 = vunpack.c.h.b16 %v293
    %v2197 = vunpack.c.l.b16 %v294
    %v2198 = vunpack.c.h.b16 %v294
    %v2199 = vunpack.c.l.b16 %v295
    %v2200 = vunpack.c.h.b16 %v295
    %v2201 = vunpack.c.l.b16 %v296
    %v2202 = vunpack.c.h.b16 %v296
    %v2203 = vunpack.c.l.b16 %v297
    %v2204 = vunpack.c.h.b16 %v297
    %v2205 = vunpack.c.l.b16 %v298
    %v2206 = vunpack.c.h.b16 %v298
    %v2207 = vunpack.c.l.b16 %v299
    %v2208 = vunpack.c.h.b16 %v299
    %v2209 = vunpack.c.l.b16 %v300
    %v2210 = vunpack.c.h.b16 %v300
    %v2211 = vunpack.c.l.b16 %v301
    %v2212 = vunpack.c.h.b16 %v301
    %v2213 = vunpack.c.l.b16 %v302
    %v2214 = vunpack.c.h.b16 %v302
    %v2215 = vunpack.c.l.b16 %v303
    %v2216 = vunpack.c.h.b16 %v303
    %v2217 = vunpack.c.l.b16 %v304
    %v2218 = vunpack.c.h.b16 %v304
    %v2219 = vunpack.c.l.b16 %v305
    %v2220 = vunpack.c.h.b16 %v305
    %v2221 = vunpack.c.l.b16 %v306
    %v2222 = vunpack.c.h.b16 %v306
    %v2223 = vunpack.c.l.b16 %v307
    %v2224 = vunpack.c.h.b16 %v307
    %v2225 = vunpack.c.l.b16 %v308
    %v2226 = vunpack.c.h.b16 %v308
    %v2227 = vunpack.c.l.b16 %v309
    %v2228 = vunpack.c.h.b16 %v309
    %v2229 = vunpack.c.l.b16 %v310
    %v2230 = vunpack.c.h.b16 %v310
    %v2231 = vunpack.c.l.b16 %v311
    %v2232 = vunpack.c.h.b16 %v311
    %v2233 = vunpack.c.l.b16 %v312
    %v2234 = vunpack.c.h.b16 %v312
    %v2235 = vunpack.c.l.b16 %v313
    %v2236 = vunpack.c.h.b16 %v313
    %v2237 = vunpack.c.l.b16 %v314
    %v2238 = vunpack.c.h.b16 %v314
    %v2239 = vunpack.c.l.b16 %v315
    %v2240 = vunpack.c.h.b16 %v315
    %v2241 = vunpack.c.l.b16 %v316
    %v2242 = vunpack.c.h.b16 %v316
    %v2243 = vunpack.c.l.b16 %v317
    %v2244 = vunpack.c.h.b16 %v317
    %v2245 = vunpack.c.l.b16 %v318
    %v2246 = vunpack.c.h.b16 %v318
    %v2247 = vunpack.c.l.b16 %v319
    %v2248 = vunpack.c.h.b16 %v319
    %v2249 = vunpack.c.l.b16 %v320
    %v2250 = vunpack.c.h.b16 %v320
    %v2251 = vunpack.c.l.b16 %v321
    %v2252 = vunpack.c.h.b16 %v321
    %v2253 = vunpack.c.l.b16 %v322
    %v2254 = vunpack.c.h.b16 %v322
    %v2255 = vunpack.c.l.b16 %v323
    %v2256 = vunpack.c.h.b16 %v323
    %v2257 = vunpack.c.l.b16 %v324
    %v2258 = vunpack.c.h.b16 %v324
    %v2259 = vunpack.c.l.b16 %v325
    %v2260 = vunpack.c.h.b16 %v325
    %v2261 = vunpack.c.l.b16 %v326
    %v2262 = vunpack.c.h.b16 %v326
    %v2263 = vunpack.c.l.b16 %v327
    %v2264 = vunpack.c.h.b16 %v327
    %v2265 = vunpack.c.l.b16 %v328
    %v2266 = vunpack.c.h.b16 %v328
    %v2267 = vunpack.c.l.b16 %v329
    %v2268 = vunpack.c.h.b16 %v329
    %v2269 = vunpack.c.l.b16 %v330
    %v2270 = vunpack.c.h.b16 %v330
    %v2271 = vunpack.c.l.b16 %v331
    %v2272 = vunpack.c.h.b16 %v331
    %v2273 = vunpack.c.l.b16 %v332
    %v2274 = vunpack.c.h.b16 %v332
    %v2275 = vunpack.c.l.b16 %v333
    %v2276 = vunpack.c.h.b16 %v333
    %v2277 = vunpack.c.l.b16 %v334
    %v2278 = vunpack.c.h.b16 %v334
    %v2279 = vunpack.c.l.b16 %v335
    %v2280 = vunpack.c.h.b16 %v335
    %v2281 = vunpack.c.l.b16 %v336
    %v2282 = vunpack.c.h.b16 %v336
    %v2283 = vunpack.c.l.b16 %v337
    %v2284 = vunpack.c.h.b16 %v337
    %v2285 = vunpack.c.l.b16 %v338
    %v2286 = vunpack.c.h.b16 %v338
    %v2287 = vunpack.c.l.b16 %v339
    %v2288 = vunpack.c.h.b16 %v339
    %v2289 = vunpack.c.l.b16 %v340
    %v2290 = vunpack.c.h.b16 %v340
    %v2291 = vunpack.c.l.b16 %v341
    %v2292 = vunpack.c.h.b16 %v341
    %v2293 = vunpack.c.l.b16 %v342
    %v2294 = vunpack.c.h.b16 %v342
    %v2295 = vunpack.c.l.b16 %v343
    %v2296 = vunpack.c.h.b16 %v343
    %v2297 = vunpack.c.l.b16 %v344
    %v2298 = vunpack.c.h.b16 %v344
    %v2299 = vunpack.c.l.b16 %v345
    %v2300 = vunpack.c.h.b16 %v345
    %v2301 = vunpack.c.l.b16 %v346
    %v2302 = vunpack.c.h.b16 %v346
    %v2303 = vunpack.c.l.b16 %v347
    %v2304 = vunpack.c.h.b16 %v347
    %v2305 = vunpack.c.l.b16 %v348
    %v2306 = vunpack.c.h.b16 %v348
    %v2307 = vunpack.c.l.b16 %v349
    %v2308 = vunpack.c.h.b16 %v349
    %v2309 = vunpack.c.l.b16 %v350
    %v2310 = vunpack.c.h.b16 %v350
    %v2311 = vunpack.c.l.b16 %v351
    %v2312 = vunpack.c.h.b16 %v351
    %v2313 = vunpack.c.l.b16 %v352
    %v2314 = vunpack.c.h.b16 %v352
    %v2315 = vunpack.c.l.b16 %v353
    %v2316 = vunpack.c.h.b16 %v353
    %v2317 = vunpack.c.l.b16 %v354
    %v2318 = vunpack.c.h.b16 %v354
    %v2319 = vunpack.c.l.b16 %v355
    %v2320 = vunpack.c.h.b16 %v355
    %v2321 = vunpack.c.l.b16 %v356
    %v2322 = vunpack.c.h.b16 %v356
    %v2323 = vunpack.c.l.b16 %v357
    %v2324 = vunpack.c.h.b16 %v357
    %v2325 = vunpack.c.l.b16 %v358
    %v2326 = vunpack.c.h.b16 %v358
    %v2327 = vunpack.c.l.b16 %v359
    %v2328 = vunpack.c.h.b16 %v359
    %v2329 = vunpack.c.l.b16 %v360
    %v2330 = vunpack.c.h.b16 %v360
    %v2331 = vunpack.c.l.b16 %v361
    %v2332 = vunpack.c.h.b16 %v361
    %v2333 = vunpack.c.l.b16 %v362
    %v2334 = vunpack.c.h.b16 %v362
    %v2335 = vunpack.c.l.b16 %v363
    %v2336 = vunpack.c.h.b16 %v363
    %v2337 = vunpack.c.l.b16 %v364
    %v2338 = vunpack.c.h.b16 %v364
    %v2339 = vunpack.c.l.b16 %v365
    %v2340 = vunpack.c.h.b16 %v365
    %v2341 = vunpack.c.l.b16 %v366
    %v2342 = vunpack.c.h.b16 %v366
    %v2343 = vunpack.c.l.b16 %v367
    %v2344 = vunpack.c.h.b16 %v367
    %v2345 = vunpack.c.l.b16 %v368
    %v2346 = vunpack.c.h.b16 %v368
    %v2347 = vunpack.c.l.b16 %v369
    %v2348 = vunpack.c.h.b16 %v369
    %v2349 = vunpack.c.l.b16 %v370
    %v2350 = vunpack.c.h.b16 %v370
    %v2351 = vunpack.c.l.b16 %v371
    %v2352 = vunpack.c.h.b16 %v371
    %v2353 = vunpack.c.l.b16 %v372
    %v2354 = vunpack.c.h.b16 %v372
    %v2355 = vunpack.c.l.b16 %v373
    %v2356 = vunpack.c.h.b16 %v373
    %v2357 = vunpack.c.l.b16 %v374
    %v2358 = vunpack.c.h.b16 %v374
    %v2359 = vunpack.c.l.b16 %v375
    %v2360 = vunpack.c.h.b16 %v375
    %v2361 = vunpack.c.l.b16 %v376
    %v2362 = vunpack.c.h.b16 %v376
    %v2363 = vunpack.c.l.b16 %v377
    %v2364 = vunpack.c.h.b16 %v377
    %v2365 = vunpack.c.l.b16 %v378
    %v2366 = vunpack.c.h.b16 %v378
    %v2367 = vunpack.c.l.b16 %v379
    %v2368 = vunpack.c.h.b16 %v379
    %v2369 = vunpack.c.l.b16 %v380
    %v2370 = vunpack.c.h.b16 %v380
    %v2371 = vunpack.c.l.b16 %v381
    %v2372 = vunpack.c.h.b16 %v381
    %v2373 = vunpack.c.l.b16 %v382
    %v2374 = vunpack.c.h.b16 %v382
    %v2375 = vunpack.c.l.b16 %v383
    %v2376 = vunpack.c.h.b16 %v383
    %v2377 = vunpack.c.l.b16 %v384
    %v2378 = vunpack.c.h.b16 %v384
    %v2379 = vunpack.c.l.b16 %v385
    %v2380 = vunpack.c.h.b16 %v385
    %v2381 = vunpack.c.l.b16 %v386
    %v2382 = vunpack.c.h.b16 %v386
    %v2383 = vunpack.c.l.b16 %v387
    %v2384 = vunpack.c.h.b16 %v387
    %v2385 = vunpack.c.l.b16 %v388
    %v2386 = vunpack.c.h.b16 %v388
    %v2387 = vunpack.c.l.b16 %v389
    %v2388 = vunpack.c.h.b16 %v389
    %v2389 = vunpack.c.l.b16 %v390
    %v2390 = vunpack.c.h.b16 %v390
    %v2391 = vunpack.c.l.b16 %v391
    %v2392 = vunpack.c.h.b16 %v391
    %v2393 = vunpack.c.l.b16 %v392
    %v2394 = vunpack.c.h.b16 %v392
    %v2395 = vunpack.c.l.b16 %v393
    %v2396 = vunpack.c.h.b16 %v393
    %v2397 = vunpack.c.l.b16 %v394
    %v2398 = vunpack.c.h.b16 %v394
    %v2399 = vunpack.c.l.b16 %v395
    %v2400 = vunpack.c.h.b16 %v395
    %v2401 = vunpack.c.l.b16 %v396
    %v2402 = vunpack.c.h.b16 %v396
    %v2403 = vunpack.c.l.b16 %v397
    %v2404 = vunpack.c.h.b16 %v397
    %v2405 = vunpack.c.l.b16 %v398
    %v2406 = vunpack.c.h.b16 %v398
    %v2407 = vunpack.c.l.b16 %v399
    %v2408 = vunpack.c.h.b16 %v399
    %v2409 = vunpack.c.l.b16 %v400
    %v2410 = vunpack.c.h.b16 %v400
    %v2411 = vunpack.c.l.b16 %v401
    %v2412 = vunpack.c.h.b16 %v401
    %v2413 = vunpack.c.l.b16 %v402
    %v2414 = vunpack.c.h.b16 %v402
    %v2415 = vunpack.c.l.b16 %v403
    %v2416 = vunpack.c.h.b16 %v403
    %v2417 = vunpack.c.l.b16 %v404
    %v2418 = vunpack.c.h.b16 %v404
    %v2419 = vunpack.c.l.b16 %v405
    %v2420 = vunpack.c.h.b16 %v405
    %v2421 = vunpack.c.l.b16 %v406
    %v2422 = vunpack.c.h.b16 %v406
    %v2423 = vunpack.c.l.b16 %v407
    %v2424 = vunpack.c.h.b16 %v407
    %v2425 = vunpack.c.l.b16 %v408
    %v2426 = vunpack.c.h.b16 %v408
    %v2427 = vunpack.c.l.b16 %v409
    %v2428 = vunpack.c.h.b16 %v409
    %v2429 = vunpack.c.l.b16 %v410
    %v2430 = vunpack.c.h.b16 %v410
    %v2431 = vunpack.c.l.b16 %v411
    %v2432 = vunpack.c.h.b16 %v411
    %v2433 = vunpack.c.l.b16 %v412
    %v2434 = vunpack.c.h.b16 %v412
    %v2435 = vunpack.c.l.b16 %v413
    %v2436 = vunpack.c.h.b16 %v413
    %v2437 = vunpack.c.l.b16 %v414
    %v2438 = vunpack.c.h.b16 %v414
    %v2439 = vunpack.c.l.b16 %v415
    %v2440 = vunpack.c.h.b16 %v415
    %v2441 = vunpack.c.l.b16 %v416
    %v2442 = vunpack.c.h.b16 %v416
    %v2443 = vunpack.c.l.b16 %v417
    %v2444 = vunpack.c.h.b16 %v417
    %v2445 = vunpack.c.l.b16 %v418
    %v2446 = vunpack.c.h.b16 %v418
    %v2447 = vunpack.c.l.b16 %v419
    %v2448 = vunpack.c.h.b16 %v419
    %v2449 = vunpack.c.l.b16 %v420
    %v2450 = vunpack.c.h.b16 %v420
    %v2451 = vunpack.c.l.b16 %v421
    %v2452 = vunpack.c.h.b16 %v421
    %v2453 = vunpack.c.l.b16 %v422
    %v2454 = vunpack.c.h.b16 %v422
    %v2455 = vunpack.c.l.b16 %v423
    %v2456 = vunpack.c.h.b16 %v423
    %v2457 = vunpack.c.l.b16 %v424
    %v2458 = vunpack.c.h.b16 %v424
    %v2459 = vunpack.c.l.b16 %v425
    %v2460 = vunpack.c.h.b16 %v425
    %v2461 = vunpack.c.l.b16 %v426
    %v2462 = vunpack.c.h.b16 %v426
    %v2463 = vunpack.c.l.b16 %v427
    %v2464 = vunpack.c.h.b16 %v427
    %v2465 = vunpack.c.l.b16 %v428
    %v2466 = vunpack.c.h.b16 %v428
    %v2467 = vunpack.c.l.b16 %v429
    %v2468 = vunpack.c.h.b16 %v429
    %v2469 = vunpack.c.l.b16 %v430
    %v2470 = vunpack.c.h.b16 %v430
    %v2471 = vunpack.c.l.b16 %v431
    %v2472 = vunpack.c.h.b16 %v431
    %v2473 = vunpack.c.l.b16 %v432
    %v2474 = vunpack.c.h.b16 %v432
    %v2475 = vunpack.c.l.b16 %v433
    %v2476 = vunpack.c.h.b16 %v433
    %v2477 = vunpack.c.l.b16 %v434
    %v2478 = vunpack.c.h.b16 %v434
    %v2479 = vunpack.c.l.b16 %v435
    %v2480 = vunpack.c.h.b16 %v435
    %v2481 = vunpack.c.l.b16 %v436
    %v2482 = vunpack.c.h.b16 %v436
    %v2483 = vunpack.c.l.b16 %v437
    %v2484 = vunpack.c.h.b16 %v437
    %v2485 = vunpack.c.l.b16 %v438
    %v2486 = vunpack.c.h.b16 %v438
    %v2487 = vunpack.c.l.b16 %v439
    %v2488 = vunpack.c.h.b16 %v439
    %v2489 = vunpack.c.l.b16 %v440
    %v2490 = vunpack.c.h.b16 %v440
    %v2491 = vunpack.c.l.b16 %v441
    %v2492 = vunpack.c.h.b16 %v441
    %v2493 = vunpack.c.l.b16 %v442
    %v2494 = vunpack.c.h.b16 %v442
    %v2495 = vunpack.c.l.b16 %v443
    %v2496 = vunpack.c.h.b16 %v443
    %v2497 = vunpack.c.l.b16 %v444
    %v2498 = vunpack.c.h.b16 %v444
    %v2499 = vunpack.c.l.b16 %v445
    %v2500 = vunpack.c.h.b16 %v445
    %v2501 = vunpack.c.l.b16 %v446
    %v2502 = vunpack.c.h.b16 %v446
    %v2503 = vunpack.c.l.b16 %v447
    %v2504 = vunpack.c.h.b16 %v447
    %v2505 = vunpack.c.l.b16 %v448
    %v2506 = vunpack.c.h.b16 %v448
    %v2507 = vunpack.c.l.b16 %v449
    %v2508 = vunpack.c.h.b16 %v449
    %v2509 = vunpack.c.l.b16 %v450
    %v2510 = vunpack.c.h.b16 %v450
    %v2511 = vunpack.c.l.b16 %v451
    %v2512 = vunpack.c.h.b16 %v451
    %v2513 = vunpack.c.l.b16 %v452
    %v2514 = vunpack.c.h.b16 %v452
    %v2515 = vunpack.c.l.b16 %v453
    %v2516 = vunpack.c.h.b16 %v453
    %v2517 = vunpack.c.l.b16 %v454
    %v2518 = vunpack.c.h.b16 %v454
    %v2519 = vunpack.c.l.b16 %v455
    %v2520 = vunpack.c.h.b16 %v455
    %v2521 = vunpack.c.l.b16 %v456
    %v2522 = vunpack.c.h.b16 %v456
    %v2523 = vunpack.c.l.b16 %v457
    %v2524 = vunpack.c.h.b16 %v457
    %v2525 = vunpack.c.l.b16 %v458
    %v2526 = vunpack.c.h.b16 %v458
    %v2527 = vunpack.c.l.b16 %v459
    %v2528 = vunpack.c.h.b16 %v459
    %v2529 = vunpack.c.l.b16 %v460
    %v2530 = vunpack.c.h.b16 %v460
    %v2531 = vunpack.c.l.b16 %v461
    %v2532 = vunpack.c.h.b16 %v461
    %v2533 = vunpack.c.l.b16 %v462
    %v2534 = vunpack.c.h.b16 %v462
    %v2535 = vunpack.c.l.b16 %v463
    %v2536 = vunpack.c.h.b16 %v463
    %v2537 = vunpack.c.l.b16 %v464
    %v2538 = vunpack.c.h.b16 %v464
    %v2539 = vunpack.c.l.b16 %v465
    %v2540 = vunpack.c.h.b16 %v465
    %v2541 = vunpack.c.l.b16 %v466
    %v2542 = vunpack.c.h.b16 %v466
    %v2543 = vunpack.c.l.b16 %v467
    %v2544 = vunpack.c.h.b16 %v467
    %v2545 = vunpack.c.l.b16 %v468
    %v2546 = vunpack.c.h.b16 %v468
    %v2547 = vunpack.c.l.b16 %v469
    %v2548 = vunpack.c.h.b16 %v469
    %v2549 = vunpack.c.l.b16 %v470
    %v2550 = vunpack.c.h.b16 %v470
    %v2551 = vunpack.c.l.b16 %v471
    %v2552 = vunpack.c.h.b16 %v471
    %v2553 = vunpack.c.l.b16 %v472
    %v2554 = vunpack.c.h.b16 %v472
    %v2555 = vunpack.c.l.b16 %v473
    %v2556 = vunpack.c.h.b16 %v473
    %v2557 = vunpack.c.l.b16 %v474
    %v2558 = vunpack.c.h.b16 %v474
    %v2559 = vunpack.c.l.b16 %v475
    %v2560 = vunpack.c.h.b16 %v475
    %v2561 = vunpack.c.l.b16 %v476
    %v2562 = vunpack.c.h.b16 %v476
    %v2563 = vunpack.c.l.b16 %v477
    %v2564 = vunpack.c.h.b16 %v477
    %v2565 = vunpack.c.l.b16 %v478
    %v2566 = vunpack.c.h.b16 %v478
    %v2567 = vunpack.c.l.b16 %v479
    %v2568 = vunpack.c.h.b16 %v479
    %v2569 = vunpack.c.l.b16 %v480
    %v2570 = vunpack.c.h.b16 %v480
    %v2571 = vunpack.c.l.b16 %v481
    %v2572 = vunpack.c.h.b16 %v481
    %v2573 = vunpack.c.l.b16 %v482
    %v2574 = vunpack.c.h.b16 %v482
    %v2575 = vunpack.c.l.b16 %v483
    %v2576 = vunpack.c.h.b16 %v483
    %v2577 = vunpack.c.l.b16 %v484
    %v2578 = vunpack.c.h.b16 %v484
    %v2579 = vunpack.c.l.b16 %v485
    %v2580 = vunpack.c.h.b16 %v485
    %v2581 = vunpack.c.l.b16 %v486
    %v2582 = vunpack.c.h.b16 %v486
    %v2583 = vunpack.c.l.b16 %v487
    %v2584 = vunpack.c.h.b16 %v487
    %v2585 = vunpack.c.l.b16 %v488
    %v2586 = vunpack.c.h.b16 %v488
    %v2587 = vunpack.c.l.b16 %v489
    %v2588 = vunpack.c.h.b16 %v489
    %v2589 = vunpack.c.l.b16 %v490
    %v2590 = vunpack.c.h.b16 %v490
    %v2591 = vunpack.c.l.b16 %v491
    %v2592 = vunpack.c.h.b16 %v491
    %v2593 = vunpack.c.l.b16 %v492
    %v2594 = vunpack.c.h.b16 %v492
    %v2595 = vunpack.c.l.b16 %v493
    %v2596 = vunpack.c.h.b16 %v493
    %v2597 = vunpack.c.l.b16 %v494
    %v2598 = vunpack.c.h.b16 %v494
    %v2599 = vunpack.c.l.b16 %v495
    %v2600 = vunpack.c.h.b16 %v495
    %v2601 = vunpack.c.l.b16 %v496
    %v2602 = vunpack.c.h.b16 %v496
    %v2603 = vunpack.c.l.b16 %v497
    %v2604 = vunpack.c.h.b16 %v497
    %v2605 = vunpack.c.l.b16 %v498
    %v2606 = vunpack.c.h.b16 %v498
    %v2607 = vunpack.c.l.b16 %v499
    %v2608 = vunpack.c.h.b16 %v499
    %v2609 = vunpack.c.l.b16 %v500
    %v2610 = vunpack.c.h.b16 %v500
    %v2611 = vunpack.c.l.b16 %v501
    %v2612 = vunpack.c.h.b16 %v501
    %v2613 = vunpack.c.l.b16 %v502
    %v2614 = vunpack.c.h.b16 %v502
    %v2615 = vunpack.c.l.b16 %v503
    %v2616 = vunpack.c.h.b16 %v503
    %v2617 = vunpack.c.l.b16 %v504
    %v2618 = vunpack.c.h.b16 %v504
    %v2619 = vunpack.c.l.b16 %v505
    %v2620 = vunpack.c.h.b16 %v505
    %v2621 = vunpack.c.l.b16 %v506
    %v2622 = vunpack.c.h.b16 %v506
    %v2623 = vunpack.c.l.b16 %v507
    %v2624 = vunpack.c.h.b16 %v507
    %v2625 = vunpack.c.l.b16 %v508
    %v2626 = vunpack.c.h.b16 %v508
    %v2627 = vunpack.c.l.b16 %v509
    %v2628 = vunpack.c.h.b16 %v509
    %v2629 = vunpack.c.l.b16 %v510
    %v2630 = vunpack.c.h.b16 %v510
    %v2631 = vunpack.c.l.b16 %v511
    %v2632 = vunpack.c.h.b16 %v511
    %v2633 = vunpack.c.l.b16 %v512
    %v2634 = vunpack.c.h.b16 %v512
    %v2635 = vunpack.c.l.b16 %v513
    %v2636 = vunpack.c.h.b16 %v513
    %v2637 = vunpack.c.l.b16 %v514
    %v2638 = vunpack.c.h.b16 %v514
    %v2639 = vunpack.c.l.b16 %v515
    %v2640 = vunpack.c.h.b16 %v515
    %v2641 = vunpack.c.l.b16 %v516
    %v2642 = vunpack.c.h.b16 %v516
    %v2643 = vunpack.c.l.b16 %v517
    %v2644 = vunpack.c.h.b16 %v517
    %v2645 = vunpack.c.l.b16 %v518
    %v2646 = vunpack.c.h.b16 %v518
    %v2647 = vunpack.c.l.b16 %v519
    %v2648 = vunpack.c.h.b16 %v519
    %v2649 = vunpack.c.l.b16 %v520
    %v2650 = vunpack.c.h.b16 %v520
    %v2651 = vunpack.c.l.b16 %v521
    %v2652 = vunpack.c.h.b16 %v521
    %v2653 = vunpack.c.l.b16 %v522
    %v2654 = vunpack.c.h.b16 %v522
    %v2655 = vunpack.c.l.b16 %v523
    %v2656 = vunpack.c.h.b16 %v523
    %v2657 = vunpack.c.l.b16 %v524
    %v2658 = vunpack.c.h.b16 %v524
    %v2659 = vunpack.c.l.b16 %v525
    %v2660 = vunpack.c.h.b16 %v525
    %v2661 = vunpack.c.l.b16 %v526
    %v2662 = vunpack.c.h.b16 %v526
    %v2663 = vunpack.c.l.b16 %v527
    %v2664 = vunpack.c.h.b16 %v527
    %v2665 = vunpack.c.l.b16 %v528
    %v2666 = vunpack.c.h.b16 %v528
    %v2667 = vunpack.c.l.b16 %v529
    %v2668 = vunpack.c.h.b16 %v529
    %v2669 = vunpack.c.l.b16 %v530
    %v2670 = vunpack.c.h.b16 %v530
    %v2671 = vunpack.c.l.b16 %v531
    %v2672 = vunpack.c.h.b16 %v531
    %v2673 = vunpack.c.l.b16 %v532
    %v2674 = vunpack.c.h.b16 %v532
    %v2675 = vunpack.c.l.b16 %v533
    %v2676 = vunpack.c.h.b16 %v533
    %v2677 = vunpack.c.l.b16 %v534
    %v2678 = vunpack.c.h.b16 %v534
    %v2679 = vunpack.c.l.b16 %v535
    %v2680 = vunpack.c.h.b16 %v535
    %v2681 = vunpack.c.l.b16 %v536
    %v2682 = vunpack.c.h.b16 %v536
    %v2683 = vunpack.c.l.b16 %v537
    %v2684 = vunpack.c.h.b16 %v537
    %v2685 = vunpack.c.l.b16 %v538
    %v2686 = vunpack.c.h.b16 %v538
    %v2687 = vunpack.c.l.b16 %v539
    %v2688 = vunpack.c.h.b16 %v539
    %v2689 = vunpack.c.l.b16 %v540
    %v2690 = vunpack.c.h.b16 %v540
    %v2691 = vunpack.c.l.b16 %v541
    %v2692 = vunpack.c.h.b16 %v541
    %v2693 = vunpack.c.l.b16 %v542
    %v2694 = vunpack.c.h.b16 %v542
    %v2695 = vunpack.c.l.b16 %v543
    %v2696 = vunpack.c.h.b16 %v543
    %v2697 = vunpack.c.l.b16 %v544
    %v2698 = vunpack.c.h.b16 %v544
    %v2699 = vunpack.c.l.b16 %v545
    %v2700 = vunpack.c.h.b16 %v545
    %v2701 = vunpack.c.l.b16 %v546
    %v2702 = vunpack.c.h.b16 %v546
    %v2703 = vunpack.c.l.b16 %v547
    %v2704 = vunpack.c.h.b16 %v547
    %v2705 = vunpack.c.l.b16 %v548
    %v2706 = vunpack.c.h.b16 %v548
    %v2707 = vunpack.c.l.b16 %v549
    %v2708 = vunpack.c.h.b16 %v549
    %v2709 = vunpack.c.l.b16 %v550
    %v2710 = vunpack.c.h.b16 %v550
    %v2711 = vunpack.c.l.b16 %v551
    %v2712 = vunpack.c.h.b16 %v551
    %v2713 = vunpack.c.l.b16 %v552
    %v2714 = vunpack.c.h.b16 %v552
    %v2715 = vunpack.c.l.b16 %v553
    %v2716 = vunpack.c.h.b16 %v553
    %v2717 = vunpack.c.l.b16 %v554
    %v2718 = vunpack.c.h.b16 %v554
    %v2719 = vunpack.c.l.b16 %v555
    %v2720 = vunpack.c.h.b16 %v555
    %v2721 = vunpack.c.l.b16 %v556
    %v2722 = vunpack.c.h.b16 %v556
    %v2723 = vunpack.c.l.b16 %v557
    %v2724 = vunpack.c.h.b16 %v557
    %v2725 = vunpack.c.l.b16 %v558
    %v2726 = vunpack.c.h.b16 %v558
    %v2727 = vunpack.c.l.b16 %v559
    %v2728 = vunpack.c.h.b16 %v559
    %v2729 = vunpack.c.l.b16 %v560
    %v2730 = vunpack.c.h.b16 %v560
    %v2731 = vunpack.c.l.b16 %v561
    %v2732 = vunpack.c.h.b16 %v561
    %v2733 = vunpack.c.l.b16 %v562
    %v2734 = vunpack.c.h.b16 %v562
    %v2735 = vunpack.c.l.b16 %v563
    %v2736 = vunpack.c.h.b16 %v563
    %v2737 = vunpack.c.l.b16 %v564
    %v2738 = vunpack.c.h.b16 %v564
    %v2739 = vunpack.c.l.b16 %v565
    %v2740 = vunpack.c.h.b16 %v565
    %v2741 = vunpack.c.l.b16 %v566
    %v2742 = vunpack.c.h.b16 %v566
    %v2743 = vunpack.c.l.b16 %v567
    %v2744 = vunpack.c.h.b16 %v567
    %v2745 = vunpack.c.l.b16 %v568
    %v2746 = vunpack.c.h.b16 %v568
    %v2747 = vunpack.c.l.b16 %v569
    %v2748 = vunpack.c.h.b16 %v569
    %v2749 = vunpack.c.l.b16 %v570
    %v2750 = vunpack.c.h.b16 %v570
    %v2751 = vunpack.c.l.b16 %v571
    %v2752 = vunpack.c.h.b16 %v571
    %v2753 = vunpack.c.l.b16 %v572
    %v2754 = vunpack.c.h.b16 %v572
    %v2755 = vunpack.c.l.b16 %v573
    %v2756 = vunpack.c.h.b16 %v573
    %v2757 = vunpack.c.l.b16 %v574
    %v2758 = vunpack.c.h.b16 %v574
    %v2759 = vunpack.c.l.b16 %v575
    %v2760 = vunpack.c.h.b16 %v575
    %v2761 = vunpack.c.l.b16 %v576
    %v2762 = vunpack.c.h.b16 %v576
    %v2763 = vunpack.c.l.b16 %v577
    %v2764 = vunpack.c.h.b16 %v577
    %v2765 = vunpack.c.l.b16 %v578
    %v2766 = vunpack.c.h.b16 %v578
    %v2767 = vunpack.c.l.b16 %v579
    %v2768 = vunpack.c.h.b16 %v579
    %v2769 = vunpack.c.l.b16 %v580
    %v2770 = vunpack.c.h.b16 %v580
    %v2771 = vunpack.c.l.b16 %v581
    %v2772 = vunpack.c.h.b16 %v581
    %v2773 = vunpack.c.l.b16 %v582
    %v2774 = vunpack.c.h.b16 %v582
    %v2775 = vunpack.c.l.b16 %v583
    %v2776 = vunpack.c.h.b16 %v583
    %v2777 = vunpack.c.l.b16 %v584
    %v2778 = vunpack.c.h.b16 %v584
    %v2779 = vunpack.c.l.b16 %v585
    %v2780 = vunpack.c.h.b16 %v585
    %v2781 = vunpack.c.l.b16 %v586
    %v2782 = vunpack.c.h.b16 %v586
    %v2783 = vunpack.c.l.b16 %v587
    %v2784 = vunpack.c.h.b16 %v587
    %v2785 = vunpack.c.l.b16 %v588
    %v2786 = vunpack.c.h.b16 %v588
    %v2787 = vunpack.c.l.b16 %v589
    %v2788 = vunpack.c.h.b16 %v589
    %v2789 = vunpack.c.l.b16 %v590
    %v2790 = vunpack.c.h.b16 %v590
    %v2791 = vunpack.c.l.b16 %v591
    %v2792 = vunpack.c.h.b16 %v591
    %v2793 = vunpack.c.l.b16 %v592
    %v2794 = vunpack.c.h.b16 %v592
    %v2795 = vunpack.c.l.b16 %v593
    %v2796 = vunpack.c.h.b16 %v593
    %v2797 = vunpack.c.l.b16 %v594
    %v2798 = vunpack.c.h.b16 %v594
    %v2799 = vunpack.c.l.b16 %v595
    %v2800 = vunpack.c.h.b16 %v595
    %v2801 = vunpack.c.l.b16 %v596
    %v2802 = vunpack.c.h.b16 %v596
    %v2803 = vunpack.c.l.b16 %v597
    %v2804 = vunpack.c.h.b16 %v597
    %v2805 = vunpack.c.l.b16 %v598
    %v2806 = vunpack.c.h.b16 %v598
    %v2807 = vunpack.c.l.b16 %v599
    %v2808 = vunpack.c.h.b16 %v599
    %v2809 = vunpack.c.l.b16 %v600
    %v2810 = vunpack.c.h.b16 %v600
    %v2811 = vunpack.c.l.b16 %v601
    %v2812 = vunpack.c.h.b16 %v601
    %v2813 = vunpack.c.l.b16 %v602
    %v2814 = vunpack.c.h.b16 %v602
    %v2815 = vunpack.c.l.b16 %v603
    %v2816 = vunpack.c.h.b16 %v603
    %v2817 = vunpack.c.l.b16 %v604
    %v2818 = vunpack.c.h.b16 %v604
    %v2819 = vunpack.c.l.b16 %v605
    %v2820 = vunpack.c.h.b16 %v605
    %v2821 = vunpack.c.l.b16 %v606
    %v2822 = vunpack.c.h.b16 %v606
    %v2823 = vunpack.c.l.b16 %v607
    %v2824 = vunpack.c.h.b16 %v607
    %v2825 = vunpack.c.l.b16 %v608
    %v2826 = vunpack.c.h.b16 %v608
    %v2827 = vunpack.c.l.b16 %v609
    %v2828 = vunpack.c.h.b16 %v609
    %v2829 = vunpack.c.l.b16 %v610
    %v2830 = vunpack.c.h.b16 %v610
    %v2831 = vunpack.c.l.b16 %v611
    %v2832 = vunpack.c.h.b16 %v611
    %v2833 = vunpack.c.l.b16 %v612
    %v2834 = vunpack.c.h.b16 %v612
    %v2835 = vunpack.c.l.b16 %v613
    %v2836 = vunpack.c.h.b16 %v613
    %v2837 = vunpack.c.l.b16 %v614
    %v2838 = vunpack.c.h.b16 %v614
    %v2839 = vunpack.c.l.b16 %v615
    %v2840 = vunpack.c.h.b16 %v615
    %v2841 = vunpack.c.l.b16 %v616
    %v2842 = vunpack.c.h.b16 %v616
    %v2843 = vunpack.c.l.b16 %v617
    %v2844 = vunpack.c.h.b16 %v617
    %v2845 = vunpack.c.l.b16 %v618
    %v2846 = vunpack.c.h.b16 %v618
    %v2847 = vunpack.c.l.b16 %v619
    %v2848 = vunpack.c.h.b16 %v619
    %v2849 = vunpack.c.l.b16 %v620
    %v2850 = vunpack.c.h.b16 %v620
    %v2851 = vunpack.c.l.b16 %v621
    %v2852 = vunpack.c.h.b16 %v621
    %v2853 = vunpack.c.l.b16 %v622
    %v2854 = vunpack.c.h.b16 %v622
    %v2855 = vunpack.c.l.b16 %v623
    %v2856 = vunpack.c.h.b16 %v623
    %v2857 = vunpack.c.l.b16 %v624
    %v2858 = vunpack.c.h.b16 %v624
    %v2859 = vunpack.c.l.b16 %v625
    %v2860 = vunpack.c.h.b16 %v625
    %v2861 = vunpack.c.l.b16 %v626
    %v2862 = vunpack.c.h.b16 %v626
    %v2863 = vunpack.c.l.b16 %v627
    %v2864 = vunpack.c.h.b16 %v627
    %v2865 = vunpack.c.l.b16 %v628
    %v2866 = vunpack.c.h.b16 %v628
    %v2867 = vunpack.c.l.b16 %v629
    %v2868 = vunpack.c.h.b16 %v629
    %v2869 = vunpack.c.l.b16 %v630
    %v2870 = vunpack.c.h.b16 %v630
    %v2871 = vunpack.c.l.b16 %v631
    %v2872 = vunpack.c.h.b16 %v631
    %v2873 = vunpack.c.l.b16 %v632
    %v2874 = vunpack.c.h.b16 %v632
    %v2875 = vunpack.c.l.b16 %v633
    %v2876 = vunpack.c.h.b16 %v633
    %v2877 = vunpack.c.l.b16 %v634
    %v2878 = vunpack.c.h.b16 %v634
    %v2879 = vunpack.c.l.b16 %v635
    %v2880 = vunpack.c.h.b16 %v635
    %v2881 = vunpack.c.l.b16 %v636
    %v2882 = vunpack.c.h.b16 %v636
    %v2883 = vunpack.c.l.b16 %v637
    %v2884 = vunpack.c.h.b16 %v637
    %v2885 = vunpack.c.l.b16 %v638
    %v2886 = vunpack.c.h.b16 %v638
    %v2887 = vunpack.c.l.b16 %v639
    %v2888 = vunpack.c.h.b16 %v639
    %v2889 = vunpack.c.l.b16 %v640
    %v2890 = vunpack.c.h.b16 %v640
    %v2891 = vunpack.c.l.b16 %v641
    %v2892 = vunpack.c.h.b16 %v641
    %v2893 = vunpack.c.l.b16 %v642
    %v2894 = vunpack.c.h.b16 %v642
    %v2895 = vunpack.c.l.b16 %v643
    %v2896 = vunpack.c.h.b16 %v643
    %v2897 = vunpack.c.l.b16 %v644
    %v2898 = vunpack.c.h.b16 %v644
    %v2899 = vunpack.c.l.b16 %v645
    %v2900 = vunpack.c.h.b16 %v645
    %v2901 = vunpack.c.l.b16 %v646
    %v2902 = vunpack.c.h.b16 %v646
    %v2903 = vunpack.c.l.b16 %v647
    %v2904 = vunpack.c.h.b16 %v647
    %v2905 = vunpack.c.l.b16 %v648
    %v2906 = vunpack.c.h.b16 %v648
    %v2907 = vunpack.c.l.b16 %v649
    %v2908 = vunpack.c.h.b16 %v649
    %v2909 = vunpack.c.l.b16 %v650
    %v2910 = vunpack.c.h.b16 %v650
    %v2911 = vunpack.c.l.b16 %v651
    %v2912 = vunpack.c.h.b16 %v651
    %v2913 = vunpack.c.l.b16 %v652
    %v2914 = vunpack.c.h.b16 %v652
    %v2915 = vunpack.c.l.b16 %v653
    %v2916 = vunpack.c.h.b16 %v653
    %v2917 = vunpack.c.l.b16 %v654
    %v2918 = vunpack.c.h.b16 %v654
    %v2919 = vunpack.c.l.b16 %v655
    %v2920 = vunpack.c.h.b16 %v655
    %v2921 = vunpack.c.l.b16 %v656
    %v2922 = vunpack.c.h.b16 %v656
    %v2923 = vunpack.c.l.b16 %v657
    %v2924 = vunpack.c.h.b16 %v657
    %v2925 = vunpack.c.l.b16 %v658
    %v2926 = vunpack.c.h.b16 %v658
    %v2927 = vunpack.c.l.b16 %v659
    %v2928 = vunpack.c.h.b16 %v659
    %v2929 = vunpack.c.l.b16 %v660
    %v2930 = vunpack.c.h.b16 %v660
    %v2931 = vunpack.c.l.b16 %v661
    %v2932 = vunpack.c.h.b16 %v661
    %v2933 = vunpack.c.l.b16 %v662
    %v2934 = vunpack.c.h.b16 %v662
    %v2935 = vunpack.c.l.b16 %v663
    %v2936 = vunpack.c.h.b16 %v663
    %v2937 = vunpack.c.l.b16 %v664
    %v2938 = vunpack.c.h.b16 %v664
    %v2939 = vunpack.c.l.b16 %v665
    %v2940 = vunpack.c.h.b16 %v665
    %v2941 = vunpack.c.l.b16 %v666
    %v2942 = vunpack.c.h.b16 %v666
    %v2943 = vunpack.c.l.b16 %v667
    %v2944 = vunpack.c.h.b16 %v667
    %v2945 = vunpack.c.l.b16 %v668
    %v2946 = vunpack.c.h.b16 %v668
    %v2947 = vunpack.c.l.b16 %v669
    %v2948 = vunpack.c.h.b16 %v669
    %v2949 = vunpack.c.l.b16 %v670
    %v2950 = vunpack.c.h.b16 %v670
    %v2951 = vunpack.c.l.b16 %v671
    %v2952 = vunpack.c.h.b16 %v671
    %v2953 = vunpack.c.l.b16 %v672
    %v2954 = vunpack.c.h.b16 %v672
    %v2955 = vunpack.c.l.b16 %v673
    %v2956 = vunpack.c.h.b16 %v673
    %v2957 = vunpack.c.l.b16 %v674
    %v2958 = vunpack.c.h.b16 %v674
    %v2959 = vunpack.c.l.b16 %v675
    %v2960 = vunpack.c.h.b16 %v675
    %v2961 = vunpack.c.l.b16 %v676
    %v2962 = vunpack.c.h.b16 %v676
    %v2963 = vunpack.c.l.b16 %v677
    %v2964 = vunpack.c.h.b16 %v677
    %v2965 = vunpack.c.l.b16 %v678
    %v2966 = vunpack.c.h.b16 %v678
    %v2967 = vunpack.c.l.b16 %v679
    %v2968 = vunpack.c.h.b16 %v679
    %v2969 = vunpack.c.l.b16 %v680
    %v2970 = vunpack.c.h.b16 %v680
    %v2971 = vunpack.c.l.b16 %v681
    %v2972 = vunpack.c.h.b16 %v681
    %v2973 = vunpack.c.l.b16 %v682
    %v2974 = vunpack.c.h.b16 %v682
    %v2975 = vunpack.c.l.b16 %v683
    %v2976 = vunpack.c.h.b16 %v683
    %v2977 = vunpack.c.l.b16 %v684
    %v2978 = vunpack.c.h.b16 %v684
    %v2979 = vunpack.c.l.b16 %v685
    %v2980 = vunpack.c.h.b16 %v685
    %v2981 = vunpack.c.l.b16 %v686
    %v2982 = vunpack.c.h.b16 %v686
    %v2983 = vunpack.c.l.b16 %v687
    %v2984 = vunpack.c.h.b16 %v687
    %v2985 = vunpack.c.l.b16 %v688
    %v2986 = vunpack.c.h.b16 %v688
    %v2987 = vunpack.c.l.b16 %v689
    %v2988 = vunpack.c.h.b16 %v689
    %v2989 = vunpack.c.l.b16 %v690
    %v2990 = vunpack.c.h.b16 %v690
    %v2991 = vunpack.c.l.b16 %v691
    %v2992 = vunpack.c.h.b16 %v691
    %v2993 = vunpack.c.l.b16 %v692
    %v2994 = vunpack.c.h.b16 %v692
    %v2995 = vunpack.c.l.b16 %v693
    %v2996 = vunpack.c.h.b16 %v693
    %v2997 = vunpack.c.l.b16 %v694
    %v2998 = vunpack.c.h.b16 %v694
    %v2999 = vunpack.c.l.b16 %v695
    %v3000 = vunpack.c.h.b16 %v695
    %v3001 = vunpack.c.l.b16 %v696
    %v3002 = vunpack.c.h.b16 %v696
    %v3003 = vunpack.c.l.b16 %v697
    %v3004 = vunpack.c.h.b16 %v697
    %v3005 = vunpack.c.l.b16 %v698
    %v3006 = vunpack.c.h.b16 %v698
    %v3007 = vunpack.c.l.b16 %v699
    %v3008 = vunpack.c.h.b16 %v699
    %v3009 = vunpack.c.l.b16 %v700
    %v3010 = vunpack.c.h.b16 %v700
    %v3011 = vunpack.c.l.b16 %v701
    %v3012 = vunpack.c.h.b16 %v701
    %v3013 = vunpack.c.l.b16 %v702
    %v3014 = vunpack.c.h.b16 %v702
    %v3015 = vunpack.c.l.b16 %v703
    %v3016 = vunpack.c.h.b16 %v703
    %v3017 = vunpack.c.l.b16 %v704
    %v3018 = vunpack.c.h.b16 %v704
    %v3019 = vunpack.c.l.b16 %v705
    %v3020 = vunpack.c.h.b16 %v705
    %v3021 = vunpack.c.l.b16 %v706
    %v3022 = vunpack.c.h.b16 %v706
    %v3023 = vunpack.c.l.b16 %v707
    %v3024 = vunpack.c.h.b16 %v707
    %v3025 = vunpack.c.l.b16 %v708
    %v3026 = vunpack.c.h.b16 %v708
    %v3027 = vunpack.c.l.b16 %v709
    %v3028 = vunpack.c.h.b16 %v709
    %v3029 = vunpack.c.l.b16 %v710
    %v3030 = vunpack.c.h.b16 %v710
    %v3031 = vunpack.c.l.b16 %v711
    %v3032 = vunpack.c.h.b16 %v711
    %v3033 = vunpack.c.l.b16 %v712
    %v3034 = vunpack.c.h.b16 %v712
    %v3035 = vunpack.c.l.b16 %v713
    %v3036 = vunpack.c.h.b16 %v713
    %v3037 = vunpack.c.l.b16 %v714
    %v3038 = vunpack.c.h.b16 %v714
    %v3039 = vunpack.c.l.b16 %v715
    %v3040 = vunpack.c.h.b16 %v715
    %v3041 = vunpack.c.l.b16 %v716
    %v3042 = vunpack.c.h.b16 %v716
    %v3043 = vunpack.c.l.b16 %v717
    %v3044 = vunpack.c.h.b16 %v717
    %v3045 = vunpack.c.l.b16 %v718
    %v3046 = vunpack.c.h.b16 %v718
    %v3047 = vunpack.c.l.b16 %v719
    %v3048 = vunpack.c.h.b16 %v719
    %v3049 = vunpack.c.l.b16 %v720
    %v3050 = vunpack.c.h.b16 %v720
    %v3051 = vunpack.c.l.b16 %v721
    %v3052 = vunpack.c.h.b16 %v721
    %v3053 = vunpack.c.l.b16 %v722
    %v3054 = vunpack.c.h.b16 %v722
    %v3055 = vunpack.c.l.b16 %v723
    %v3056 = vunpack.c.h.b16 %v723
    %v3057 = vunpack.c.l.b16 %v724
    %v3058 = vunpack.c.h.b16 %v724
    %v3059 = vunpack.c.l.b16 %v725
    %v3060 = vunpack.c.h.b16 %v725
    %v3061 = vunpack.c.l.b16 %v726
    %v3062 = vunpack.c.h.b16 %v726
    %v3063 = vunpack.c.l.b16 %v727
    %v3064 = vunpack.c.h.b16 %v727
    %v3065 = vunpack.c.l.b16 %v728
    %v3066 = vunpack.c.h.b16 %v728
    %v3067 = vunpack.c.l.b16 %v729
    %v3068 = vunpack.c.h.b16 %v729
    %v3069 = vunpack.c.l.b16 %v730
    %v3070 = vunpack.c.h.b16 %v730
    %v3071 = vunpack.c.l.b16 %v731
    %v3072 = vunpack.c.h.b16 %v731
    %v3073 = vunpack.c.l.b16 %v732
    %v3074 = vunpack.c.h.b16 %v732
    %v3075 = vunpack.c.l.b16 %v733
    %v3076 = vunpack.c.h.b16 %v733
    %v3077 = vunpack.c.l.b16 %v734
    %v3078 = vunpack.c.h.b16 %v734
    %v3079 = vunpack.c.l.b16 %v735
    %v3080 = vunpack.c.h.b16 %v735
    %v3081 = vunpack.c.l.b16 %v736
    %v3082 = vunpack.c.h.b16 %v736
    %v3083 = vunpack.c.l.b16 %v737
    %v3084 = vunpack.c.h.b16 %v737
    %v3085 = vunpack.c.l.b16 %v738
    %v3086 = vunpack.c.h.b16 %v738
    %v3087 = vunpack.c.l.b16 %v739
    %v3088 = vunpack.c.h.b16 %v739
    %v3089 = vunpack.c.l.b16 %v740
    %v3090 = vunpack.c.h.b16 %v740
    %v3091 = vunpack.c.l.b16 %v741
    %v3092 = vunpack.c.h.b16 %v741
    %v3093 = vunpack.c.l.b16 %v742
    %v3094 = vunpack.c.h.b16 %v742
    %v3095 = vunpack.c.l.b16 %v743
    %v3096 = vunpack.c.h.b16 %v743
    %v3097 = vunpack.c.l.b16 %v744
    %v3098 = vunpack.c.h.b16 %v744
    %v3099 = vunpack.c.l.b16 %v745
    %v3100 = vunpack.c.h.b16 %v745
    %v3101 = vunpack.c.l.b16 %v746
    %v3102 = vunpack.c.h.b16 %v746
    %v3103 = vunpack.c.l.b16 %v747
    %v3104 = vunpack.c.h.b16 %v747
    %v3105 = vunpack.c.l.b16 %v748
    %v3106 = vunpack.c.h.b16 %v748
    %v3107 = vunpack.c.l.b16 %v749
    %v3108 = vunpack.c.h.b16 %v749
    %v3109 = vunpack.c.l.b16 %v750
    %v3110 = vunpack.c.h.b16 %v750
    %v3111 = vunpack.c.l.b16 %v751
    %v3112 = vunpack.c.h.b16 %v751
    %v3113 = vunpack.c.l.b16 %v752
    %v3114 = vunpack.c.h.b16 %v752
    %v3115 = vunpack.c.l.b16 %v753
    %v3116 = vunpack.c.h.b16 %v753
    %v3117 = vunpack.c.l.b16 %v754
    %v3118 = vunpack.c.h.b16 %v754
    %v3119 = vunpack.c.l.b16 %v755
    %v3120 = vunpack.c.h.b16 %v755
    %v3121 = vunpack.c.l.b16 %v756
    %v3122 = vunpack.c.h.b16 %v756
    %v3123 = vunpack.c.l.b16 %v757
    %v3124 = vunpack.c.h.b16 %v757
    %v3125 = vunpack.c.l.b16 %v758
    %v3126 = vunpack.c.h.b16 %v758
    %v3127 = vunpack.c.l.b16 %v759
    %v3128 = vunpack.c.h.b16 %v759
    %v3129 = vunpack.c.l.b16 %v760
    %v3130 = vunpack.c.h.b16 %v760
    %v3131 = vunpack.c.l.b16 %v761
    %v3132 = vunpack.c.h.b16 %v761
    %v3133 = vunpack.c.l.b16 %v762
    %v3134 = vunpack.c.h.b16 %v762
    %v3135 = vunpack.c.l.b16 %v763
    %v3136 = vunpack.c.h.b16 %v763
    %v3137 = vunpack.c.l.b16 %v764
    %v3138 = vunpack.c.h.b16 %v764
    %v3139 = vunpack.c.l.b16 %v765
    %v3140 = vunpack.c.h.b16 %v765
    %v3141 = vunpack.c.l.b16 %v766
    %v3142 = vunpack.c.h.b16 %v766
    %v3143 = vunpack.c.l.b16 %v767
    %v3144 = vunpack.c.h.b16 %v767
    %v3145 = vunpack.c.l.b16 %v768
    %v3146 = vunpack.c.h.b16 %v768
    %v3147 = vunpack.c.l.b16 %v769
    %v3148 = vunpack.c.h.b16 %v769
    %v3149 = vunpack.c.l.b16 %v770
    %v3150 = vunpack.c.h.b16 %v770
    %v3151 = vunpack.c.l.b16 %v771
    %v3152 = vunpack.c.h.b16 %v771
    %v3153 = vunpack.c.l.b16 %v772
    %v3154 = vunpack.c.h.b16 %v772
    %v3155 = vunpack.c.l.b16 %v773
    %v3156 = vunpack.c.h.b16 %v773
    %v3157 = vunpack.c.l.b16 %v774
    %v3158 = vunpack.c.h.b16 %v774
    %v3159 = vunpack.c.l.b16 %v775
    %v3160 = vunpack.c.h.b16 %v775
    %v3161 = vunpack.c.l.b16 %v776
    %v3162 = vunpack.c.h.b16 %v776
    %v3163 = vunpack.c.l.b16 %v777
    %v3164 = vunpack.c.h.b16 %v777
    %v3165 = vunpack.c.l.b16 %v778
    %v3166 = vunpack.c.h.b16 %v778
    %v3167 = vunpack.c.l.b16 %v779
    %v3168 = vunpack.c.h.b16 %v779
    %v3169 = vunpack.c.l.b16 %v780
    %v3170 = vunpack.c.h.b16 %v780
    %v3171 = vunpack.c.l.b16 %v781
    %v3172 = vunpack.c.h.b16 %v781
    %v3173 = vunpack.c.l.b16 %v782
    %v3174 = vunpack.c.h.b16 %v782
    %v3175 = vunpack.c.l.b16 %v783
    %v3176 = vunpack.c.h.b16 %v783
    %v3177 = vunpack.c.l.b16 %v784
    %v3178 = vunpack.c.h.b16 %v784
    %v3179 = vunpack.c.l.b16 %v785
    %v3180 = vunpack.c.h.b16 %v785
    %v3181 = vunpack.c.l.b16 %v786
    %v3182 = vunpack.c.h.b16 %v786
    %v3183 = vunpack.c.l.b16 %v787
    %v3184 = vunpack.c.h.b16 %v787
    %v3185 = vunpack.c.l.b16 %v788
    %v3186 = vunpack.c.h.b16 %v788
    %v3187 = vunpack.c.l.b16 %v789
    %v3188 = vunpack.c.h.b16 %v789
    %v3189 = vunpack.c.l.b16 %v790
    %v3190 = vunpack.c.h.b16 %v790
    %v3191 = vunpack.c.l.b16 %v791
    %v3192 = vunpack.c.h.b16 %v791
    %v3193 = vunpack.c.l.b16 %v792
    %v3194 = vunpack.c.h.b16 %v792
    %v3195 = vunpack.c.l.b16 %v793
    %v3196 = vunpack.c.h.b16 %v793
    %v3197 = vunpack.c.l.b16 %v794
    %v3198 = vunpack.c.h.b16 %v794
    %v3199 = vunpack.c.l.b16 %v795
    %v3200 = vunpack.c.h.b16 %v795
    %v3201 = vunpack.c.l.b16 %v796
    %v3202 = vunpack.c.h.b16 %v796
    %v3203 = vunpack.c.l.b16 %v797
    %v3204 = vunpack.c.h.b16 %v797
    %v3205 = vunpack.c.l.b16 %v798
    %v3206 = vunpack.c.h.b16 %v798
    %v3207 = vunpack.c.l.b16 %v799
    %v3208 = vunpack.c.h.b16 %v799
    %v3209 = vunpack.c.l.b16 %v800
    %v3210 = vunpack.c.h.b16 %v800
    %v3211 = vunpack.c.l.b16 %v801
    %v3212 = vunpack.c.h.b16 %v801
    %v3213 = vunpack.c.l.b16 %v802
    %v3214 = vunpack.c.h.b16 %v802
    %v3215 = vunpack.c.l.b16 %v803
    %v3216 = vunpack.c.h.b16 %v803
    %v3217 = vunpack.c.l.b16 %v804
    %v3218 = vunpack.c.h.b16 %v804
    %v3219 = vunpack.c.l.b16 %v805
    %v3220 = vunpack.c.h.b16 %v805
    %v3221 = vunpack.c.l.b16 %v806
    %v3222 = vunpack.c.h.b16 %v806
    %v3223 = vunpack.c.l.b16 %v807
    %v3224 = vunpack.c.h.b16 %v807
    %v3225 = vunpack.c.l.b16 %v808
    %v3226 = vunpack.c.h.b16 %v808
    %v3227 = vunpack.c.l.b16 %v809
    %v3228 = vunpack.c.h.b16 %v809
    %v3229 = vpack.c.b16 %v1665, %v1661
    %v3230 = vpack.c.b16 %v1666, %v1662
    %v3231 = vpack.c.b16 %v1667, %v1663
    %v3232 = vpack.c.b16 %v1668, %v1664
    %v3233 = vpack.c.b16 %v1673, %v1669
    %v3234 = vpack.c.b16 %v1674, %v1670
    %v3235 = vpack.c.b16 %v1675, %v1671
    %v3236 = vpack.c.b16 %v1676, %v1672
    %v3237 = vpack.c.b16 %v1681, %v1677
    %v3238 = vpack.c.b16 %v1682, %v1678
    %v3239 = vpack.c.b16 %v1683, %v1679
    %v3240 = vpack.c.b16 %v1684, %v1680
    %v3241 = vpack.c.b16 %v1689, %v1685
    %v3242 = vpack.c.b16 %v1690, %v1686
    %v3243 = vpack.c.b16 %v1691, %v1687
    %v3244 = vpack.c.b16 %v1692, %v1688
    %v3245 = vpack.c.b16 %v1697, %v1693
    %v3246 = vpack.c.b16 %v1698, %v1694
    %v3247 = vpack.c.b16 %v1699, %v1695
    %v3248 = vpack.c.b16 %v1700, %v1696
    %v3249 = vpack.c.b16 %v1705, %v1701
    %v3250 = vpack.c.b16 %v1706, %v1702
    %v3251 = vpack.c.b16 %v1707, %v1703
    %v3252 = vpack.c.b16 %v1708, %v1704
    %v3253 = vpack.c.b16 %v1713, %v1709
    %v3254 = vpack.c.b16 %v1714, %v1710
    %v3255 = vpack.c.b16 %v1715, %v1711
    %v3256 = vpack.c.b16 %v1716, %v1712
    %v3257 = vpack.c.b16 %v1721, %v1717
    %v3258 = vpack.c.b16 %v1722, %v1718
    %v3259 = vpack.c.b16 %v1723, %v1719
    %v3260 = vpack.c.b16 %v1724, %v1720
    %v3261 = vpack.c.b16 %v1729, %v1725
    %v3262 = vpack.c.b16 %v1730, %v1726
    %v3263 = vpack.c.b16 %v1731, %v1727
    %v3264 = vpack.c.b16 %v1732, %v1728
    %v3265 = vpack.c.b16 %v1737, %v1733
    %v3266 = vpack.c.b16 %v1738, %v1734
    %v3267 = vpack.c.b16 %v1739, %v1735
    %v3268 = vpack.c.b16 %v1740, %v1736
    %v3269 = vpack.c.b16 %v1745, %v1741
    %v3270 = vpack.c.b16 %v1746, %v1742
    %v3271 = vpack.c.b16 %v1747, %v1743
    %v3272 = vpack.c.b16 %v1748, %v1744
    %v3273 = vpack.c.b16 %v1753, %v1749
    %v3274 = vpack.c.b16 %v1754, %v1750
    %v3275 = vpack.c.b16 %v1755, %v1751
    %v3276 = vpack.c.b16 %v1756, %v1752
    %v3277 = vpack.c.b16 %v1761, %v1757
    %v3278 = vpack.c.b16 %v1762, %v1758
    %v3279 = vpack.c.b16 %v1763, %v1759
    %v3280 = vpack.c.b16 %v1764, %v1760
    %v3281 = vpack.c.b16 %v1769, %v1765
    %v3282 = vpack.c.b16 %v1770, %v1766
    %v3283 = vpack.c.b16 %v1771, %v1767
    %v3284 = vpack.c.b16 %v1772, %v1768
    %v3285 = vpack.c.b16 %v1777, %v1773
    %v3286 = vpack.c.b16 %v1778, %v1774
    %v3287 = vpack.c.b16 %v1779, %v1775
    %v3288 = vpack.c.b16 %v1780, %v1776
    %v3289 = vpack.c.b16 %v1785, %v1781
    %v3290 = vpack.c.b16 %v1786, %v1782
    %v3291 = vpack.c.b16 %v1787, %v1783
    %v3292 = vpack.c.b16 %v1788, %v1784
    %v3293 = vpack.c.b16 %v1793, %v1789
    %v3294 = vpack.c.b16 %v1794, %v1790
    %v3295 = vpack.c.b16 %v1795, %v1791
    %v3296 = vpack.c.b16 %v1796, %v1792
    %v3297 = vpack.c.b16 %v1801, %v1797
    %v3298 = vpack.c.b16 %v1802, %v1798
    %v3299 = vpack.c.b16 %v1803, %v1799
    %v3300 = vpack.c.b16 %v1804, %v1800
    %v3301 = vpack.c.b16 %v1809, %v1805
    %v3302 = vpack.c.b16 %v1810, %v1806
    %v3303 = vpack.c.b16 %v1811, %v1807
    %v3304 = vpack.c.b16 %v1812, %v1808
    %v3305 = vpack.c.b16 %v1817, %v1813
    %v3306 = vpack.c.b16 %v1818, %v1814
    %v3307 = vpack.c.b16 %v1819, %v1815
    %v3308 = vpack.c.b16 %v1820, %v1816
    %v3309 = vpack.c.b16 %v1825, %v1821
    %v3310 = vpack.c.b16 %v1826, %v1822
    %v3311 = vpack.c.b16 %v1827, %v1823
    %v3312 = vpack.c.b16 %v1828, %v1824
    %v3313 = vpack.c.b16 %v1833, %v1829
    %v3314 = vpack.c.b16 %v1834, %v1830
    %v3315 = vpack.c.b16 %v1835, %v1831
    %v3316 = vpack.c.b16 %v1836, %v1832
    %v3317 = vpack.c.b16 %v1841, %v1837
    %v3318 = vpack.c.b16 %v1842, %v1838
    %v3319 = vpack.c.b16 %v1843, %v1839
    %v3320 = vpack.c.b16 %v1844, %v1840
    %v3321 = vpack.c.b16 %v1849, %v1845
    %v3322 = vpack.c.b16 %v1850, %v1846
    %v3323 = vpack.c.b16 %v1851, %v1847
    %v3324 = vpack.c.b16 %v1852, %v1848
    %v3325 = vpack.c.b16 %v1857, %v1853
    %v3326 = vpack.c.b16 %v1858, %v1854
    %v3327 = vpack.c.b16 %v1859, %v1855
    %v3328 = vpack.c.b16 %v1860, %v1856
    %v3329 = vpack.c.b16 %v1865, %v1861
    %v3330 = vpack.c.b16 %v1866, %v1862
    %v3331 = vpack.c.b16 %v1867, %v1863
    %v3332 = vpack.c.b16 %v1868, %v1864
    %v3333 = vpack.c.b16 %v1873, %v1869
    %v3334 = vpack.c.b16 %v1874, %v1870
    %v3335 = vpack.c.b16 %v1875, %v1871
    %v3336 = vpack.c.b16 %v1876, %v1872
    %v3337 = vpack.c.b16 %v1881, %v1877
    %v3338 = vpack.c.b16 %v1882, %v1878
    %v3339 = vpack.c.b16 %v1883, %v1879
    %v3340 = vpack.c.b16 %v1884, %v1880
    %v3341 = vpack.c.b16 %v1889, %v1885
    %v3342 = vpack.c.b16 %v1890, %v1886
    %v3343 = vpack.c.b16 %v1891, %v1887
    %v3344 = vpack.c.b16 %v1892, %v1888
    %v3345 = vpack.c.b16 %v1897, %v1893
    %v3346 = vpack.c.b16 %v1898, %v1894
    %v3347 = vpack.c.b16 %v1899, %v1895
    %v3348 = vpack.c.b16 %v1900, %v1896
    %v3349 = vpack.c.b16 %v1905, %v1901
    %v3350 = vpack.c.b16 %v1906, %v1902
    %v3351 = vpack.c.b16 %v1907, %v1903
    %v3352 = vpack.c.b16 %v1908, %v1904
    %v3353 = vpack.c.b16 %v1913, %v1909
    %v3354 = vpack.c.b16 %v1914, %v1910
    %v3355 = vpack.c.b16 %v1915, %v1911
    %v3356 = vpack.c.b16 %v1916, %v1912
    %v3357 = vpack.c.b16 %v1921, %v1917
    %v3358 = vpack.c.b16 %v1922, %v1918
    %v3359 = vpack.c.b16 %v1923, %v1919
    %v3360 = vpack.c.b16 %v1924, %v1920
    %v3361 = vpack.c.b16 %v1929, %v1925
    %v3362 = vpack.c.b16 %v1930, %v1926
    %v3363 = vpack.c.b16 %v1931, %v1927
    %v3364 = vpack.c.b16 %v1932, %v1928
    %v3365 = vpack.c.b16 %v1937, %v1933
    %v3366 = vpack.c.b16 %v1938, %v1934
    %v3367 = vpack.c.b16 %v1939, %v1935
    %v3368 = vpack.c.b16 %v1940, %v1936
    %v3369 = vpack.c.b16 %v1945, %v1941
    %v3370 = vpack.c.b16 %v1946, %v1942
    %v3371 = vpack.c.b16 %v1947, %v1943
    %v3372 = vpack.c.b16 %v1948, %v1944
    %v3373 = vpack.c.b16 %v1953, %v1949
    %v3374 = vpack.c.b16 %v1954, %v1950
    %v3375 = vpack.c.b16 %v1955, %v1951
    %v3376 = vpack.c.b16 %v1956, %v1952
    %v3377 = vpack.c.b16 %v1961, %v1957
    %v3378 = vpack.c.b16 %v1962, %v1958
    %v3379 = vpack.c.b16 %v1963, %v1959
    %v3380 = vpack.c.b16 %v1964, %v1960
    %v3381 = vpack.c.b16 %v1969, %v1965
    %v3382 = vpack.c.b16 %v1970, %v1966
    %v3383 = vpack.c.b16 %v1971, %v1967
    %v3384 = vpack.c.b16 %v1972, %v1968
    %v3385 = vpack.c.b16 %v1977, %v1973
    %v3386 = vpack.c.b16 %v1978, %v1974
    %v3387 = vpack.c.b16 %v1979, %v1975
    %v3388 = vpack.c.b16 %v1980, %v1976
    %v3389 = vpack.c.b16 %v1985, %v1981
    %v3390 = vpack.c.b16 %v1986, %v1982
    %v3391 = vpack.c.b16 %v1987, %v1983
    %v3392 = vpack.c.b16 %v1988, %v1984
    %v3393 = vpack.c.b16 %v1993, %v1989
    %v3394 = vpack.c.b16 %v1994, %v1990
    %v3395 = vpack.c.b16 %v1995, %v1991
    %v3396 = vpack.c.b16 %v1996, %v1992
    %v3397 = vpack.c.b16 %v2001, %v1997
    %v3398 = vpack.c.b16 %v2002, %v1998
    %v3399 = vpack.c.b16 %v2003, %v1999
    %v3400 = vpack.c.b16 %v2004, %v2000
    %v3401 = vpack.c.b16 %v2009, %v2005
    %v3402 = vpack.c.b16 %v2010, %v2006
    %v3403 = vpack.c.b16 %v2011, %v2007
    %v3404 = vpack.c.b16 %v2012, %v2008
    %v3405 = vpack.c.b16 %v2017, %v2013
    %v3406 = vpack.c.b16 %v2018, %v2014
    %v3407 = vpack.c.b16 %v2019, %v2015
    %v3408 = vpack.c.b16 %v2020, %v2016
    %v3409 = vpack.c.b16 %v2025, %v2021
    %v3410 = vpack.c.b16 %v2026, %v2022
    %v3411 = vpack.c.b16 %v2027, %v2023
    %v3412 = vpack.c.b16 %v2028, %v2024
    %v3413 = vpack.c.b16 %v2033, %v2029
    %v3414 = vpack.c.b16 %v2034, %v2030
    %v3415 = vpack.c.b16 %v2035, %v2031
    %v3416 = vpack.c.b16 %v2036, %v2032
    %v3417 = vpack.c.b16 %v2041, %v2037
    %v3418 = vpack.c.b16 %v2042, %v2038
    %v3419 = vpack.c.b16 %v2043, %v2039
    %v3420 = vpack.c.b16 %v2044, %v2040
    %v3421 = vpack.c.b16 %v2049, %v2045
    %v3422 = vpack.c.b16 %v2050, %v2046
    %v3423 = vpack.c.b16 %v2051, %v2047
    %v3424 = vpack.c.b16 %v2052, %v2048
    %v3425 = vpack.c.b16 %v2057, %v2053
    %v3426 = vpack.c.b16 %v2058, %v2054
    %v3427 = vpack.c.b16 %v2059, %v2055
    %v3428 = vpack.c.b16 %v2060, %v2056
    %v3429 = vpack.c.b16 %v2065, %v2061
    %v3430 = vpack.c.b16 %v2066, %v2062
    %v3431 = vpack.c.b16 %v2067, %v2063
    %v3432 = vpack.c.b16 %v2068, %v2064
    %v3433 = vpack.c.b16 %v2073, %v2069
    %v3434 = vpack.c.b16 %v2074, %v2070
    %v3435 = vpack.c.b16 %v2075, %v2071
    %v3436 = vpack.c.b16 %v2076, %v2072
    %v3437 = vpack.c.b16 %v2081, %v2077
    %v3438 = vpack.c.b16 %v2082, %v2078
    %v3439 = vpack.c.b16 %v2083, %v2079
    %v3440 = vpack.c.b16 %v2084, %v2080
    %v3441 = vpack.c.b16 %v2089, %v2085
    %v3442 = vpack.c.b16 %v2090, %v2086
    %v3443 = vpack.c.b16 %v2091, %v2087
    %v3444 = vpack.c.b16 %v2092, %v2088
    %v3445 = vpack.c.b16 %v2097, %v2093
    %v3446 = vpack.c.b16 %v2098, %v2094
    %v3447 = vpack.c.b16 %v2099, %v2095
    %v3448 = vpack.c.b16 %v2100, %v2096
    %v3449 = vpack.c.b16 %v2105, %v2101
    %v3450 = vpack.c.b16 %v2106, %v2102
    %v3451 = vpack.c.b16 %v2107, %v2103
    %v3452 = vpack.c.b16 %v2108, %v2104
    %v3453 = vpack.c.b16 %v2113, %v2109
    %v3454 = vpack.c.b16 %v2114, %v2110
    %v3455 = vpack.c.b16 %v2115, %v2111
    %v3456 = vpack.c.b16 %v2116, %v2112
    %v3457 = vpack.c.b16 %v2121, %v2117
    %v3458 = vpack.c.b16 %v2122, %v2118
    %v3459 = vpack.c.b16 %v2123, %v2119
    %v3460 = vpack.c.b16 %v2124, %v2120
    %v3461 = vpack.c.b16 %v2129, %v2125
    %v3462 = vpack.c.b16 %v2130, %v2126
    %v3463 = vpack.c.b16 %v2131, %v2127
    %v3464 = vpack.c.b16 %v2132, %v2128
    %v3465 = vpack.c.b16 %v2137, %v2133
    %v3466 = vpack.c.b16 %v2138, %v2134
    %v3467 = vpack.c.b16 %v2139, %v2135
    %v3468 = vpack.c.b16 %v2140, %v2136
    %v3469 = vpack.c.b16 %v2145, %v2141
    %v3470 = vpack.c.b16 %v2146, %v2142
    %v3471 = vpack.c.b16 %v2147, %v2143
    %v3472 = vpack.c.b16 %v2148, %v2144
    %v3473 = vpack.c.b16 %v2153, %v2149
    %v3474 = vpack.c.b16 %v2154, %v2150
    %v3475 = vpack.c.b16 %v2155, %v2151
    %v3476 = vpack.c.b16 %v2156, %v2152
    %v3477 = vpack.c.b16 %v2161, %v2157
    %v3478 = vpack.c.b16 %v2162, %v2158
    %v3479 = vpack.c.b16 %v2163, %v2159
    %v3480 = vpack.c.b16 %v2164, %v2160
    %v3481 = vpack.c.b16 %v2169, %v2165
    %v3482 = vpack.c.b16 %v2170, %v2166
    %v3483 = vpack.c.b16 %v2171, %v2167
    %v3484 = vpack.c.b16 %v2172, %v2168
    %v3485 = vpack.c.b16 %v2177, %v2173
    %v3486 = vpack.c.b16 %v2178, %v2174
    %v3487 = vpack.c.b16 %v2179, %v2175
    %v3488 = vpack.c.b16 %v2180, %v2176
    %v3489 = vpack.c.b16 %v2185, %v2181
    %v3490 = vpack.c.b16 %v2186, %v2182
    %v3491 = vpack.c.b16 %v2187, %v2183
    %v3492 = vpack.c.b16 %v2188, %v2184
    %v3493 = vpack.c.b16 %v2193, %v2189
    %v3494 = vpack.c.b16 %v2194, %v2190
    %v3495 = vpack.c.b16 %v2195, %v2191
    %v3496 = vpack.c.b16 %v2196, %v2192
    %v3497 = vpack.c.b16 %v2201, %v2197
    %v3498 = vpack.c.b16 %v2202, %v2198
    %v3499 = vpack.c.b16 %v2203, %v2199
    %v3500 = vpack.c.b16 %v2204, %v2200
    %v3501 = vpack.c.b16 %v2209, %v2205
    %v3502 = vpack.c.b16 %v2210, %v2206
    %v3503 = vpack.c.b16 %v2211, %v2207
    %v3504 = vpack.c.b16 %v2212, %v2208
    %v3505 = vpack.c.b16 %v2217, %v2213
    %v3506 = vpack.c.b16 %v2218, %v2214
    %v3507 = vpack.c.b16 %v2219, %v2215
    %v3508 = vpack.c.b16 %v2220, %v2216
    %v3509 = vpack.c.b16 %v2225, %v2221
    %v3510 = vpack.c.b16 %v2226, %v2222
    %v3511 = vpack.c.b16 %v2227, %v2223
    %v3512 = vpack.c.b16 %v2228, %v2224
    %v3513 = vpack.c.b16 %v2233, %v2229
    %v3514 = vpack.c.b16 %v2234, %v2230
    %v3515 = vpack.c.b16 %v2235, %v2231
    %v3516 = vpack.c.b16 %v2236, %v2232
    %v3517 = vpack.c.b16 %v2241, %v2237
    %v3518 = vpack.c.b16 %v2242, %v2238
    %v3519 = vpack.c.b16 %v2243, %v2239
    %v3520 = vpack.c.b16 %v2244, %v2240
    %v3521 = vpack.c.b16 %v2249, %v2245
    %v3522 = vpack.c.b16 %v2250, %v2246
    %v3523 = vpack.c.b16 %v2251, %v2247
    %v3524 = vpack.c.b16 %v2252, %v2248
    %v3525 = vpack.c.b16 %v2257, %v2253
    %v3526 = vpack.c.b16 %v2258, %v2254
    %v3527 = vpack.c.b16 %v2259, %v2255
    %v3528 = vpack.c.b16 %v2260, %v2256
    %v3529 = vpack.c.b16 %v2265, %v2261
    %v3530 = vpack.c.b16 %v2266, %v2262
    %v3531 = vpack.c.b16 %v2267, %v2263
    %v3532 = vpack.c.b16 %v2268, %v2264
    %v3533 = vpack.c.b16 %v2273, %v2269
    %v3534 = vpack.c.b16 %v2274, %v2270
    %v3535 = vpack.c.b16 %v2275, %v2271
    %v3536 = vpack.c.b16 %v2276, %v2272
    %v3537 = vpack.c.b16 %v2281, %v2277
    %v3538 = vpack.c.b16 %v2282, %v2278
    %v3539 = vpack.c.b16 %v2283, %v2279
    %v3540 = vpack.c.b16 %v2284, %v2280
    %v3541 = vpack.c.b16 %v2289, %v2285
    %v3542 = vpack.c.b16 %v2290, %v2286
    %v3543 = vpack.c.b16 %v2291, %v2287
    %v3544 = vpack.c.b16 %v2292, %v2288
    %v3545 = vpack.c.b16 %v2297, %v2293
    %v3546 = vpack.c.b16 %v2298, %v2294
    %v3547 = vpack.c.b16 %v2299, %v2295
    %v3548 = vpack.c.b16 %v2300, %v2296
    %v3549 = vpack.c.b16 %v2305, %v2301
    %v3550 = vpack.c.b16 %v2306, %v2302
    %v3551 = vpack.c.b16 %v2307, %v2303
    %v3552 = vpack.c.b16 %v2308, %v2304
    %v3553 = vpack.c.b16 %v2313, %v2309
    %v3554 = vpack.c.b16 %v2314, %v2310
    %v3555 = vpack.c.b16 %v2315, %v2311
    %v3556 = vpack.c.b16 %v2316, %v2312
    %v3557 = vpack.c.b16 %v2321, %v2317
    %v3558 = vpack.c.b16 %v2322, %v2318
    %v3559 = vpack.c.b16 %v2323, %v2319
    %v3560 = vpack.c.b16 %v2324, %v2320
    %v3561 = vpack.c.b16 %v2329, %v2325
    %v3562 = vpack.c.b16 %v2330, %v2326
    %v3563 = vpack.c.b16 %v2331, %v2327
    %v3564 = vpack.c.b16 %v2332, %v2328
    %v3565 = vpack.c.b16 %v2337, %v2333
    %v3566 = vpack.c.b16 %v2338, %v2334
    %v3567 = vpack.c.b16 %v2339, %v2335
    %v3568 = vpack.c.b16 %v2340, %v2336
    %v3569 = vpack.c.b16 %v2345, %v2341
    %v3570 = vpack.c.b16 %v2346, %v2342
    %v3571 = vpack.c.b16 %v2347, %v2343
    %v3572 = vpack.c.b16 %v2348, %v2344
    %v3573 = vpack.c.b16 %v2353, %v2349
    %v3574 = vpack.c.b16 %v2354, %v2350
    %v3575 = vpack.c.b16 %v2355, %v2351
    %v3576 = vpack.c.b16 %v2356, %v2352
    %v3577 = vpack.c.b16 %v2361, %v2357
    %v3578 = vpack.c.b16 %v2362, %v2358
    %v3579 = vpack.c.b16 %v2363, %v2359
    %v3580 = vpack.c.b16 %v2364, %v2360
    %v3581 = vpack.c.b16 %v2369, %v2365
    %v3582 = vpack.c.b16 %v2370, %v2366
    %v3583 = vpack.c.b16 %v2371, %v2367
    %v3584 = vpack.c.b16 %v2372, %v2368
    %v3585 = vpack.c.b16 %v2377, %v2373
    %v3586 = vpack.c.b16 %v2378, %v2374
    %v3587 = vpack.c.b16 %v2379, %v2375
    %v3588 = vpack.c.b16 %v2380, %v2376
    %v3589 = vpack.c.b16 %v2385, %v2381
    %v3590 = vpack.c.b16 %v2386, %v2382
    %v3591 = vpack.c.b16 %v2387, %v2383
    %v3592 = vpack.c.b16 %v2388, %v2384
    %v3593 = vpack.c.b16 %v2393, %v2389
    %v3594 = vpack.c.b16 %v2394, %v2390
    %v3595 = vpack.c.b16 %v2395, %v2391
    %v3596 = vpack.c.b16 %v2396, %v2392
    %v3597 = vpack.c.b16 %v2401, %v2397
    %v3598 = vpack.c.b16 %v2402, %v2398
    %v3599 = vpack.c.b16 %v2403, %v2399
    %v3600 = vpack.c.b16 %v2404, %v2400
    %v3601 = vpack.c.b16 %v2409, %v2405
    %v3602 = vpack.c.b16 %v2410, %v2406
    %v3603 = vpack.c.b16 %v2411, %v2407
    %v3604 = vpack.c.b16 %v2412, %v2408
    %v3605 = vpack.c.b16 %v2417, %v2413
    %v3606 = vpack.c.b16 %v2418, %v2414
    %v3607 = vpack.c.b16 %v2419, %v2415
    %v3608 = vpack.c.b16 %v2420, %v2416
    %v3609 = vpack.c.b16 %v2425, %v2421
    %v3610 = vpack.c.b16 %v2426, %v2422
    %v3611 = vpack.c.b16 %v2427, %v2423
    %v3612 = vpack.c.b16 %v2428, %v2424
    %v3613 = vpack.c.b16 %v2433, %v2429
    %v3614 = vpack.c.b16 %v2434, %v2430
    %v3615 = vpack.c.b16 %v2435, %v2431
    %v3616 = vpack.c.b16 %v2436, %v2432
    %v3617 = vpack.c.b16 %v2441, %v2437
    %v3618 = vpack.c.b16 %v2442, %v2438
    %v3619 = vpack.c.b16 %v2443, %v2439
    %v3620 = vpack.c.b16 %v2444, %v2440
    %v3621 = vpack.c.b16 %v2449, %v2445
    %v3622 = vpack.c.b16 %v2450, %v2446
    %v3623 = vpack.c.b16 %v2451, %v2447
    %v3624 = vpack.c.b16 %v2452, %v2448
    %v3625 = vpack.c.b16 %v2457, %v2453
    %v3626 = vpack.c.b16 %v2458, %v2454
    %v3627 = vpack.c.b16 %v2459, %v2455
    %v3628 = vpack.c.b16 %v2460, %v2456
    %v3629 = vpack.c.b16 %v2465, %v2461
    %v3630 = vpack.c.b16 %v2466, %v2462
    %v3631 = vpack.c.b16 %v2467, %v2463
    %v3632 = vpack.c.b16 %v2468, %v2464
    %v3633 = vpack.c.b16 %v2473, %v2469
    %v3634 = vpack.c.b16 %v2474, %v2470
    %v3635 = vpack.c.b16 %v2475, %v2471
    %v3636 = vpack.c.b16 %v2476, %v2472
    %v3637 = vpack.c.b16 %v2481, %v2477
    %v3638 = vpack.c.b16 %v2482, %v2478
    %v3639 = vpack.c.b16 %v2483, %v2479
    %v3640 = vpack.c.b16 %v2484, %v2480
    %v3641 = vpack.c.b16 %v2489, %v2485
    %v3642 = vpack.c.b16 %v2490, %v2486
    %v3643 = vpack.c.b16 %v2491, %v2487
    %v3644 = vpack.c.b16 %v2492, %v2488
    %v3645 = vpack.c.b16 %v2497, %v2493
    %v3646 = vpack.c.b16 %v2498, %v2494
    %v3647 = vpack.c.b16 %v2499, %v2495
    %v3648 = vpack.c.b16 %v2500, %v2496
    %v3649 = vpack.c.b16 %v2505, %v2501
    %v3650 = vpack.c.b16 %v2506, %v2502
    %v3651 = vpack.c.b16 %v2507, %v2503
    %v3652 = vpack.c.b16 %v2508, %v2504
    %v3653 = vpack.c.b16 %v2513, %v2509
    %v3654 = vpack.c.b16 %v2514, %v2510
    %v3655 = vpack.c.b16 %v2515, %v2511
    %v3656 = vpack.c.b16 %v2516, %v2512
    %v3657 = vpack.c.b16 %v2521, %v2517
    %v3658 = vpack.c.b16 %v2522, %v2518
    %v3659 = vpack.c.b16 %v2523, %v2519
    %v3660 = vpack.c.b16 %v2524, %v2520
    %v3661 = vpack.c.b16 %v2529, %v2525
    %v3662 = vpack.c.b16 %v2530, %v2526
    %v3663 = vpack.c.b16 %v2531, %v2527
    %v3664 = vpack.c.b16 %v2532, %v2528
    %v3665 = vpack.c.b16 %v2537, %v2533
    %v3666 = vpack.c.b16 %v2538, %v2534
    %v3667 = vpack.c.b16 %v2539, %v2535
    %v3668 = vpack.c.b16 %v2540, %v2536
    %v3669 = vpack.c.b16 %v2545, %v2541
    %v3670 = vpack.c.b16 %v2546, %v2542
    %v3671 = vpack.c.b16 %v2547, %v2543
    %v3672 = vpack.c.b16 %v2548, %v2544
    %v3673 = vpack.c.b16 %v2553, %v2549
    %v3674 = vpack.c.b16 %v2554, %v2550
    %v3675 = vpack.c.b16 %v2555, %v2551
    %v3676 = vpack.c.b16 %v2556, %v2552
    %v3677 = vpack.c.b16 %v2561, %v2557
    %v3678 = vpack.c.b16 %v2562, %v2558
    %v3679 = vpack.c.b16 %v2563, %v2559
    %v3680 = vpack.c.b16 %v2564, %v2560
    %v3681 = vpack.c.b16 %v2569, %v2565
    %v3682 = vpack.c.b16 %v2570, %v2566
    %v3683 = vpack.c.b16 %v2571, %v2567
    %v3684 = vpack.c.b16 %v2572, %v2568
    %v3685 = vpack.c.b16 %v2577, %v2573
    %v3686 = vpack.c.b16 %v2578, %v2574
    %v3687 = vpack.c.b16 %v2579, %v2575
    %v3688 = vpack.c.b16 %v2580, %v2576
    %v3689 = vpack.c.b16 %v2585, %v2581
    %v3690 = vpack.c.b16 %v2586, %v2582
    %v3691 = vpack.c.b16 %v2587, %v2583
    %v3692 = vpack.c.b16 %v2588, %v2584
    %v3693 = vpack.c.b16 %v2593, %v2589
    %v3694 = vpack.c.b16 %v2594, %v2590
    %v3695 = vpack.c.b16 %v2595, %v2591
    %v3696 = vpack.c.b16 %v2596, %v2592
    %v3697 = vpack.c.b16 %v2601, %v2597
    %v3698 = vpack.c.b16 %v2602, %v2598
    %v3699 = vpack.c.b16 %v2603, %v2599
    %v3700 = vpack.c.b16 %v2604, %v2600
    %v3701 = vpack.c.b16 %v2609, %v2605
    %v3702 = vpack.c.b16 %v2610, %v2606
    %v3703 = vpack.c.b16 %v2611, %v2607
    %v3704 = vpack.c.b16 %v2612, %v2608
    %v3705 = vpack.c.b16 %v2617, %v2613
    %v3706 = vpack.c.b16 %v2618, %v2614
    %v3707 = vpack.c.b16 %v2619, %v2615
    %v3708 = vpack.c.b16 %v2620, %v2616
    %v3709 = vpack.c.b16 %v2625, %v2621
    %v3710 = vpack.c.b16 %v2626, %v2622
    %v3711 = vpack.c.b16 %v2627, %v2623
    %v3712 = vpack.c.b16 %v2628, %v2624
    %v3713 = vpack.c.b16 %v2633, %v2629
    %v3714 = vpack.c.b16 %v2634, %v2630
    %v3715 = vpack.c.b16 %v2635, %v2631
    %v3716 = vpack.c.b16 %v2636, %v2632
    %v3717 = vpack.c.b16 %v2641, %v2637
    %v3718 = vpack.c.b16 %v2642, %v2638
    %v3719 = vpack.c.b16 %v2643, %v2639
    %v3720 = vpack.c.b16 %v2644, %v2640
    %v3721 = vpack.c.b16 %v2649, %v2645
    %v3722 = vpack.c.b16 %v2650, %v2646
    %v3723 = vpack.c.b16 %v2651, %v2647
    %v3724 = vpack.c.b16 %v2652, %v2648
    %v3725 = vpack.c.b16 %v2657, %v2653
    %v3726 = vpack.c.b16 %v2658, %v2654
    %v3727 = vpack.c.b16 %v2659, %v2655
    %v3728 = vpack.c.b16 %v2660, %v2656
    %v3729 = vpack.c.b16 %v2665, %v2661
    %v3730 = vpack.c.b16 %v2666, %v2662
    %v3731 = vpack.c.b16 %v2667, %v2663
    %v3732 = vpack.c.b16 %v2668, %v2664
    %v3733 = vpack.c.b16 %v2673, %v2669
    %v3734 = vpack.c.b16 %v2674, %v2670
    %v3735 = vpack.c.b16 %v2675, %v2671
    %v3736 = vpack.c.b16 %v2676, %v2672
    %v3737 = vpack.c.b16 %v2681, %v2677
    %v3738 = vpack.c.b16 %v2682, %v2678
    %v3739 = vpack.c.b16 %v2683, %v2679
    %v3740 = vpack.c.b16 %v2684, %v2680
    %v3741 = vpack.c.b16 %v2689, %v2685
    %v3742 = vpack.c.b16 %v2690, %v2686
    %v3743 = vpack.c.b16 %v2691, %v2687
    %v3744 = vpack.c.b16 %v2692, %v2688
    %v3745 = vpack.c.b16 %v2697, %v2693
    %v3746 = vpack.c.b16 %v2698, %v2694
    %v3747 = vpack.c.b16 %v2699, %v2695
    %v3748 = vpack.c.b16 %v2700, %v2696
    %v3749 = vpack.c.b16 %v2705, %v2701
    %v3750 = vpack.c.b16 %v2706, %v2702
    %v3751 = vpack.c.b16 %v2707, %v2703
    %v3752 = vpack.c.b16 %v2708, %v2704
    %v3753 = vpack.c.b16 %v2713, %v2709
    %v3754 = vpack.c.b16 %v2714, %v2710
    %v3755 = vpack.c.b16 %v2715, %v2711
    %v3756 = vpack.c.b16 %v2716, %v2712
    %v3757 = vpack.c.b16 %v2721, %v2717
    %v3758 = vpack.c.b16 %v2722, %v2718
    %v3759 = vpack.c.b16 %v2723, %v2719
    %v3760 = vpack.c.b16 %v2724, %v2720
    %v3761 = vpack.c.b16 %v2729, %v2725
    %v3762 = vpack.c.b16 %v2730, %v2726
    %v3763 = vpack.c.b16 %v2731, %v2727
    %v3764 = vpack.c.b16 %v2732, %v2728
    %v3765 = vpack.c.b16 %v2737, %v2733
    %v3766 = vpack.c.b16 %v2738, %v2734
    %v3767 = vpack.c.b16 %v2739, %v2735
    %v3768 = vpack.c.b16 %v2740, %v2736
    %v3769 = vpack.c.b16 %v2745, %v2741
    %v3770 = vpack.c.b16 %v2746, %v2742
    %v3771 = vpack.c.b16 %v2747, %v2743
    %v3772 = vpack.c.b16 %v2748, %v2744
    %v3773 = vpack.c.b16 %v2753, %v2749
    %v3774 = vpack.c.b16 %v2754, %v2750
    %v3775 = vpack.c.b16 %v2755, %v2751
    %v3776 = vpack.c.b16 %v2756, %v2752
    %v3777 = vpack.c.b16 %v2761, %v2757
    %v3778 = vpack.c.b16 %v2762, %v2758
    %v3779 = vpack.c.b16 %v2763, %v2759
    %v3780 = vpack.c.b16 %v2764, %v2760
    %v3781 = vpack.c.b16 %v2769, %v2765
    %v3782 = vpack.c.b16 %v2770, %v2766
    %v3783 = vpack.c.b16 %v2771, %v2767
    %v3784 = vpack.c.b16 %v2772, %v2768
    %v3785 = vpack.c.b16 %v2777, %v2773
    %v3786 = vpack.c.b16 %v2778, %v2774
    %v3787 = vpack.c.b16 %v2779, %v2775
    %v3788 = vpack.c.b16 %v2780, %v2776
    %v3789 = vpack.c.b16 %v2785, %v2781
    %v3790 = vpack.c.b16 %v2786, %v2782
    %v3791 = vpack.c.b16 %v2787, %v2783
    %v3792 = vpack.c.b16 %v2788, %v2784
    %v3793 = vpack.c.b16 %v2793, %v2789
    %v3794 = vpack.c.b16 %v2794, %v2790
    %v3795 = vpack.c.b16 %v2795, %v2791
    %v3796 = vpack.c.b16 %v2796, %v2792
    %v3797 = vpack.c.b16 %v2801, %v2797
    %v3798 = vpack.c.b16 %v2802, %v2798
    %v3799 = vpack.c.b16 %v2803, %v2799
    %v3800 = vpack.c.b16 %v2804, %v2800
    %v3801 = vpack.c.b16 %v2809, %v2805
    %v3802 = vpack.c.b16 %v2810, %v2806
    %v3803 = vpack.c.b16 %v2811, %v2807
    %v3804 = vpack.c.b16 %v2812, %v2808
    %v3805 = vpack.c.b16 %v2817, %v2813
    %v3806 = vpack.c.b16 %v2818, %v2814
    %v3807 = vpack.c.b16 %v2819, %v2815
    %v3808 = vpack.c.b16 %v2820, %v2816
    %v3809 = vpack.c.b16 %v2825, %v2821
    %v3810 = vpack.c.b16 %v2826, %v2822
    %v3811 = vpack.c.b16 %v2827, %v2823
    %v3812 = vpack.c.b16 %v2828, %v2824
    %v3813 = vpack.c.b16 %v2833, %v2829
    %v3814 = vpack.c.b16 %v2834, %v2830
    %v3815 = vpack.c.b16 %v2835, %v2831
    %v3816 = vpack.c.b16 %v2836, %v2832
    %v3817 = vpack.c.b16 %v2841, %v2837
    %v3818 = vpack.c.b16 %v2842, %v2838
    %v3819 = vpack.c.b16 %v2843, %v2839
    %v3820 = vpack.c.b16 %v2844, %v2840
    %v3821 = vpack.c.b16 %v2849, %v2845
    %v3822 = vpack.c.b16 %v2850, %v2846
    %v3823 = vpack.c.b16 %v2851, %v2847
    %v3824 = vpack.c.b16 %v2852, %v2848
    %v3825 = vpack.c.b16 %v2857, %v2853
    %v3826 = vpack.c.b16 %v2858, %v2854
    %v3827 = vpack.c.b16 %v2859, %v2855
    %v3828 = vpack.c.b16 %v2860, %v2856
    %v3829 = vpack.c.b16 %v2865, %v2861
    %v3830 = vpack.c.b16 %v2866, %v2862
    %v3831 = vpack.c.b16 %v2867, %v2863
    %v3832 = vpack.c.b16 %v2868, %v2864
    %v3833 = vpack.c.b16 %v2873, %v2869
    %v3834 = vpack.c.b16 %v2874, %v2870
    %v3835 = vpack.c.b16 %v2875, %v2871
    %v3836 = vpack.c.b16 %v2876, %v2872
    %v3837 = vpack.c.b16 %v2881, %v2877
    %v3838 = vpack.c.b16 %v2882, %v2878
    %v3839 = vpack.c.b16 %v2883, %v2879
    %v3840 = vpack.c.b16 %v2884, %v2880
    %v3841 = vpack.c.b16 %v2889, %v2885
    %v3842 = vpack.c.b16 %v2890, %v2886
    %v3843 = vpack.c.b16 %v2891, %v2887
    %v3844 = vpack.c.b16 %v2892, %v2888
    %v3845 = vpack.c.b16 %v2897, %v2893
    %v3846 = vpack.c.b16 %v2898, %v2894
    %v3847 = vpack.c.b16 %v2899, %v2895
    %v3848 = vpack.c.b16 %v2900, %v2896
    %v3849 = vpack.c.b16 %v2905, %v2901
    %v3850 = vpack.c.b16 %v2906, %v2902
    %v3851 = vpack.c.b16 %v2907, %v2903
    %v3852 = vpack.c.b16 %v2908, %v2904
    %v3853 = vpack.c.b16 %v2913, %v2909
    %v3854 = vpack.c.b16 %v2914, %v2910
    %v3855 = vpack.c.b16 %v2915, %v2911
    %v3856 = vpack.c.b16 %v2916, %v2912
    %v3857 = vpack.c.b16 %v2921, %v2917
    %v3858 = vpack.c.b16 %v2922, %v2918
    %v3859 = vpack.c.b16 %v2923, %v2919
    %v3860 = vpack.c.b16 %v2924, %v2920
    %v3861 = vpack.c.b16 %v2929, %v2925
    %v3862 = vpack.c.b16 %v2930, %v2926
    %v3863 = vpack.c.b16 %v2931, %v2927
    %v3864 = vpack.c.b16 %v2932, %v2928
    %v3865 = vpack.c.b16 %v2937, %v2933
    %v3866 = vpack.c.b16 %v2938, %v2934
    %v3867 = vpack.c.b16 %v2939, %v2935
    %v3868 = vpack.c.b16 %v2940, %v2936
    %v3869 = vpack.c.b16 %v2945, %v2941
    %v3870 = vpack.c.b16 %v2946, %v2942
    %v3871 = vpack.c.b16 %v2947, %v2943
    %v3872 = vpack.c.b16 %v2948, %v2944
    %v3873 = vpack.c.b16 %v2953, %v2949
    %v3874 = vpack.c.b16 %v2954, %v2950
    %v3875 = vpack.c.b16 %v2955, %v2951
    %v3876 = vpack.c.b16 %v2956, %v2952
    %v3877 = vpack.c.b16 %v2961, %v2957
    %v3878 = vpack.c.b16 %v2962, %v2958
    %v3879 = vpack.c.b16 %v2963, %v2959
    %v3880 = vpack.c.b16 %v2964, %v2960
    %v3881 = vpack.c.b16 %v2969, %v2965
    %v3882 = vpack.c.b16 %v2970, %v2966
    %v3883 = vpack.c.b16 %v2971, %v2967
    %v3884 = vpack.c.b16 %v2972, %v2968
    %v3885 = vpack.c.b16 %v2977, %v2973
    %v3886 = vpack.c.b16 %v2978, %v2974
    %v3887 = vpack.c.b16 %v2979, %v2975
    %v3888 = vpack.c.b16 %v2980, %v2976
    %v3889 = vpack.c.b16 %v2985, %v2981
    %v3890 = vpack.c.b16 %v2986, %v2982
    %v3891 = vpack.c.b16 %v2987, %v2983
    %v3892 = vpack.c.b16 %v2988, %v2984
    %v3893 = vpack.c.b16 %v2993, %v2989
    %v3894 = vpack.c.b16 %v2994, %v2990
    %v3895 = vpack.c.b16 %v2995, %v2991
    %v3896 = vpack.c.b16 %v2996, %v2992
    %v3897 = vpack.c.b16 %v3001, %v2997
    %v3898 = vpack.c.b16 %v3002, %v2998
    %v3899 = vpack.c.b16 %v3003, %v2999
    %v3900 = vpack.c.b16 %v3004, %v3000
    %v3901 = vpack.c.b16 %v3009, %v3005
    %v3902 = vpack.c.b16 %v3010, %v3006
    %v3903 = vpack.c.b16 %v3011, %v3007
    %v3904 = vpack.c.b16 %v3012, %v3008
    %v3905 = vpack.c.b16 %v3017, %v3013
    %v3906 = vpack.c.b16 %v3018, %v3014
    %v3907 = vpack.c.b16 %v3019, %v3015
    %v3908 = vpack.c.b16 %v3020, %v3016
    %v3909 = vpack.c.b16 %v3025, %v3021
    %v3910 = vpack.c.b16 %v3026, %v3022
    %v3911 = vpack.c.b16 %v3027, %v3023
    %v3912 = vpack.c.b16 %v3028, %v3024
    %v3913 = vpack.c.b16 %v3033, %v3029
    %v3914 = vpack.c.b16 %v3034, %v3030
    %v3915 = vpack.c.b16 %v3035, %v3031
    %v3916 = vpack.c.b16 %v3036, %v3032
    %v3917 = vpack.c.b16 %v3041, %v3037
    %v3918 = vpack.c.b16 %v3042, %v3038
    %v3919 = vpack.c.b16 %v3043, %v3039
    %v3920 = vpack.c.b16 %v3044, %v3040
    %v3921 = vpack.c.b16 %v3049, %v3045
    %v3922 = vpack.c.b16 %v3050, %v3046
    %v3923 = vpack.c.b16 %v3051, %v3047
    %v3924 = vpack.c.b16 %v3052, %v3048
    %v3925 = vpack.c.b16 %v3057, %v3053
    %v3926 = vpack.c.b16 %v3058, %v3054
    %v3927 = vpack.c.b16 %v3059, %v3055
    %v3928 = vpack.c.b16 %v3060, %v3056
    %v3929 = vpack.c.b16 %v3065, %v3061
    %v3930 = vpack.c.b16 %v3066, %v3062
    %v3931 = vpack.c.b16 %v3067, %v3063
    %v3932 = vpack.c.b16 %v3068, %v3064
    %v3933 = vpack.c.b16 %v3073, %v3069
    %v3934 = vpack.c.b16 %v3074, %v3070
    %v3935 = vpack.c.b16 %v3075, %v3071
    %v3936 = vpack.c.b16 %v3076, %v3072
    %v3937 = vpack.c.b16 %v3081, %v3077
    %v3938 = vpack.c.b16 %v3082, %v3078
    %v3939 = vpack.c.b16 %v3083, %v3079
    %v3940 = vpack.c.b16 %v3084, %v3080
    %v3941 = vpack.c.b16 %v3089, %v3085
    %v3942 = vpack.c.b16 %v3090, %v3086
    %v3943 = vpack.c.b16 %v3091, %v3087
    %v3944 = vpack.c.b16 %v3092, %v3088
    %v3945 = vpack.c.b16 %v3097, %v3093
    %v3946 = vpack.c.b16 %v3098, %v3094
    %v3947 = vpack.c.b16 %v3099, %v3095
    %v3948 = vpack.c.b16 %v3100, %v3096
    %v3949 = vpack.c.b16 %v3105, %v3101
    %v3950 = vpack.c.b16 %v3106, %v3102
    %v3951 = vpack.c.b16 %v3107, %v3103
    %v3952 = vpack.c.b16 %v3108, %v3104
    %v3953 = vpack.c.b16 %v3113, %v3109
    %v3954 = vpack.c.b16 %v3114, %v3110
    %v3955 = vpack.c.b16 %v3115, %v3111
    %v3956 = vpack.c.b16 %v3116, %v3112
    %v3957 = vpack.c.b16 %v3121, %v3117
    %v3958 = vpack.c.b16 %v3122, %v3118
    %v3959 = vpack.c.b16 %v3123, %v3119
    %v3960 = vpack.c.b16 %v3124, %v3120
    %v3961 = vpack.c.b16 %v3129, %v3125
    %v3962 = vpack.c.b16 %v3130, %v3126
    %v3963 = vpack.c.b16 %v3131, %v3127
    %v3964 = vpack.c.b16 %v3132, %v3128
    %v3965 = vpack.c.b16 %v3137, %v3133
    %v3966 = vpack.c.b16 %v3138, %v3134
    %v3967 = vpack.c.b16 %v3139, %v3135
    %v3968 = vpack.c.b16 %v3140, %v3136
    %v3969 = vpack.c.b16 %v3145, %v3141
    %v3970 = vpack.c.b16 %v3146, %v3142
    %v3971 = vpack.c.b16 %v3147, %v3143
    %v3972 = vpack.c.b16 %v3148, %v3144
    %v3973 = vpack.c.b16 %v3153, %v3149
    %v3974 = vpack.c.b16 %v3154, %v3150
    %v3975 = vpack.c.b16 %v3155, %v3151
    %v3976 = vpack.c.b16 %v3156, %v3152
    %v3977 = vpack.c.b16 %v3161, %v3157
    %v3978 = vpack.c.b16 %v3162, %v3158
    %v3979 = vpack.c.b16 %v3163, %v3159
    %v3980 = vpack.c.b16 %v3164, %v3160
    %v3981 = vpack.c.b16 %v3169, %v3165
    %v3982 = vpack.c.b16 %v3170, %v3166
    %v3983 = vpack.c.b16 %v3171, %v3167
    %v3984 = vpack.c.b16 %v3172, %v3168
    %v3985 = vpack.c.b16 %v3177, %v3173
    %v3986 = vpack.c.b16 %v3178, %v3174
    %v3987 = vpack.c.b16 %v3179, %v3175
    %v3988 = vpack.c.b16 %v3180, %v3176
    %v3989 = vpack.c.b16 %v3185, %v3181
    %v3990 = vpack.c.b16 %v3186, %v3182
    %v3991 = vpack.c.b16 %v3187, %v3183
    %v3992 = vpack.c.b16 %v3188, %v3184
    %v3993 = vpack.c.b16 %v3193, %v3189
    %v3994 = vpack.c.b16 %v3194, %v3190
    %v3995 = vpack.c.b16 %v3195, %v3191
    %v3996 = vpack.c.b16 %v3196, %v3192
    %v3997 = vpack.c.b16 %v3201, %v3197
    %v3998 = vpack.c.b16 %v3202, %v3198
    %v3999 = vpack.c.b16 %v3203, %v3199
    %v4000 = vpack.c.b16 %v3204, %v3200
    %v4001 = vpack.c.b16 %v3209, %v3205
    %v4002 = vpack.c.b16 %v3210, %v3206
    %v4003 = vpack.c.b16 %v3211, %v3207
    %v4004 = vpack.c.b16 %v3212, %v3208
    %v4005 = vpack.c.b16 %v3217, %v3213
    %v4006 = vpack.c.b16 %v3218, %v3214
    %v4007 = vpack.c.b16 %v3219, %v3215
    %v4008 = vpack.c.b16 %v3220, %v3216
    %v4009 = vpack.c.b16 %v3225, %v3221
    %v4010 = vpack.c.b16 %v3226, %v3222
    %v4011 = vpack.c.b16 %v3227, %v3223
    %v4012 = vpack.c.b16 %v3228, %v3224
    %vm4797 = vcmask 523264
    %v4798 = vsel %vm4797, %v852, 0
    %4800 = vmatpush.bf16.msra.mxu0 %v3257
    %4801 = vmatpush.bf16.msra.mxu0 %v3253
    %4802 = vmatpush.bf16.msra.mxu0 %v3249
    %4803 = vmatpush.bf16.msra.mxu0 %v3245
    %4804 = vmatpush.bf16.msra.mxu0 %v3241
    %4805 = vmatpush.bf16.msra.mxu0 %v3237
    %4806 = vmatpush.bf16.msra.mxu0 %v3233
    %4807 = vmatpush.bf16.msra.mxu0 %v3229
    %4808 = vmatmul.bf16.gmra.mxu0 %v822
    %v4809 = vpop.f32.mrf.mxu0
    %v4810 = vadd.f32 %v812, %v4809
    %v4811 = vpop.f32.mrf.mxu0
    %4812 = vdwg.mxu0
    %4813 = vmatpush.bf16.msra.mxu0 %v3289
    %4814 = vmatpush.bf16.msra.mxu0 %v3285
    %4815 = vmatpush.bf16.msra.mxu0 %v3281
    %4816 = vmatpush.bf16.msra.mxu0 %v3277
    %4817 = vmatpush.bf16.msra.mxu0 %v3273
    %4818 = vmatpush.bf16.msra.mxu0 %v3269
    %4819 = vmatpush.bf16.msra.mxu0 %v3265
    %4820 = vmatpush.bf16.msra.mxu0 %v3261
    %4821 = vmatmul.bf16.gmra.mxu0 %v823
    %v4822 = vpop.f32.mrf.mxu0
    %v4823 = vadd.f32 %v4810, %v4822
    %v4824 = vpop.f32.mrf.mxu0
    %4825 = vdwg.mxu0
    %4826 = vmatpush.bf16.msra.mxu0 %v3321
    %4827 = vmatpush.bf16.msra.mxu0 %v3317
    %4828 = vmatpush.bf16.msra.mxu0 %v3313
    %4829 = vmatpush.bf16.msra.mxu0 %v3309
    %4830 = vmatpush.bf16.msra.mxu0 %v3305
    %4831 = vmatpush.bf16.msra.mxu0 %v3301
    %4832 = vmatpush.bf16.msra.mxu0 %v3297
    %4833 = vmatpush.bf16.msra.mxu0 %v3293
    %4834 = vmatmul.bf16.gmra.mxu0 %v824
    %v4835 = vpop.f32.mrf.mxu0
    %v4836 = vadd.f32 %v4823, %v4835
    %v4837 = vpop.f32.mrf.mxu0
    %4838 = vdwg.mxu0
    %4839 = vmatpush.bf16.msra.mxu0 %v3353
    %4840 = vmatpush.bf16.msra.mxu0 %v3349
    %4841 = vmatpush.bf16.msra.mxu0 %v3345
    %4842 = vmatpush.bf16.msra.mxu0 %v3341
    %4843 = vmatpush.bf16.msra.mxu0 %v3337
    %4844 = vmatpush.bf16.msra.mxu0 %v3333
    %4845 = vmatpush.bf16.msra.mxu0 %v3329
    %4846 = vmatpush.bf16.msra.mxu0 %v3325
    %4847 = vmatmul.bf16.gmra.mxu0 %v825
    %v4848 = vpop.f32.mrf.mxu0
    %v4849 = vadd.f32 %v4836, %v4848
    %v4850 = vpop.f32.mrf.mxu0
    %4851 = vdwg.mxu0
    %4852 = vmatpush.bf16.msra.mxu0 %v3385
    %4853 = vmatpush.bf16.msra.mxu0 %v3381
    %4854 = vmatpush.bf16.msra.mxu0 %v3377
    %4855 = vmatpush.bf16.msra.mxu0 %v3373
    %4856 = vmatpush.bf16.msra.mxu0 %v3369
    %4857 = vmatpush.bf16.msra.mxu0 %v3365
    %4858 = vmatpush.bf16.msra.mxu0 %v3361
    %4859 = vmatpush.bf16.msra.mxu0 %v3357
    %4860 = vmatmul.bf16.gmra.mxu0 %v826
    %v4861 = vpop.f32.mrf.mxu0
    %v4862 = vadd.f32 %v4849, %v4861
    %v4863 = vpop.f32.mrf.mxu0
    %4864 = vdwg.mxu0
    %4865 = vmatpush.bf16.msra.mxu0 %v3417
    %4866 = vmatpush.bf16.msra.mxu0 %v3413
    %4867 = vmatpush.bf16.msra.mxu0 %v3409
    %4868 = vmatpush.bf16.msra.mxu0 %v3405
    %4869 = vmatpush.bf16.msra.mxu0 %v3401
    %4870 = vmatpush.bf16.msra.mxu0 %v3397
    %4871 = vmatpush.bf16.msra.mxu0 %v3393
    %4872 = vmatpush.bf16.msra.mxu0 %v3389
    %4873 = vmatmul.bf16.gmra.mxu0 %v827
    %v4874 = vpop.f32.mrf.mxu0
    %v4875 = vadd.f32 %v4862, %v4874
    %v4876 = vpop.f32.mrf.mxu0
    %4877 = vdwg.mxu0
    %4878 = vmatpush.bf16.msra.mxu0 %v3449
    %4879 = vmatpush.bf16.msra.mxu0 %v3445
    %4880 = vmatpush.bf16.msra.mxu0 %v3441
    %4881 = vmatpush.bf16.msra.mxu0 %v3437
    %4882 = vmatpush.bf16.msra.mxu0 %v3433
    %4883 = vmatpush.bf16.msra.mxu0 %v3429
    %4884 = vmatpush.bf16.msra.mxu0 %v3425
    %4885 = vmatpush.bf16.msra.mxu0 %v3421
    %4886 = vmatmul.bf16.gmra.mxu0 %v828
    %v4887 = vpop.f32.mrf.mxu0
    %v4888 = vadd.f32 %v4875, %v4887
    %v4889 = vpop.f32.mrf.mxu0
    %4890 = vdwg.mxu0
    %4891 = vmatpush.bf16.msra.mxu0 %v3481
    %4892 = vmatpush.bf16.msra.mxu0 %v3477
    %4893 = vmatpush.bf16.msra.mxu0 %v3473
    %4894 = vmatpush.bf16.msra.mxu0 %v3469
    %4895 = vmatpush.bf16.msra.mxu0 %v3465
    %4896 = vmatpush.bf16.msra.mxu0 %v3461
    %4897 = vmatpush.bf16.msra.mxu0 %v3457
    %4898 = vmatpush.bf16.msra.mxu0 %v3453
    %4899 = vmatmul.bf16.gmra.mxu0 %v829
    %v4900 = vpop.f32.mrf.mxu0
    %v4901 = vadd.f32 %v4888, %v4900
    %v4902 = vpop.f32.mrf.mxu0
    %4903 = vdwg.mxu0
    %4904 = vmatpush.bf16.msra.mxu0 %v3513
    %4905 = vmatpush.bf16.msra.mxu0 %v3509
    %4906 = vmatpush.bf16.msra.mxu0 %v3505
    %4907 = vmatpush.bf16.msra.mxu0 %v3501
    %4908 = vmatpush.bf16.msra.mxu0 %v3497
    %4909 = vmatpush.bf16.msra.mxu0 %v3493
    %4910 = vmatpush.bf16.msra.mxu0 %v3489
    %4911 = vmatpush.bf16.msra.mxu0 %v3485
    %4912 = vmatmul.bf16.gmra.mxu0 %v832
    %v4913 = vpop.f32.mrf.mxu0
    %v4914 = vadd.f32 %v4901, %v4913
    %v4915 = vpop.f32.mrf.mxu0
    %4916 = vdwg.mxu0
    %4917 = vmatpush.bf16.msra.mxu0 %v3545
    %4918 = vmatpush.bf16.msra.mxu0 %v3541
    %4919 = vmatpush.bf16.msra.mxu0 %v3537
    %4920 = vmatpush.bf16.msra.mxu0 %v3533
    %4921 = vmatpush.bf16.msra.mxu0 %v3529
    %4922 = vmatpush.bf16.msra.mxu0 %v3525
    %4923 = vmatpush.bf16.msra.mxu0 %v3521
    %4924 = vmatpush.bf16.msra.mxu0 %v3517
    %4925 = vmatmul.bf16.gmra.mxu0 %v833
    %v4926 = vpop.f32.mrf.mxu0
    %v4927 = vadd.f32 %v4914, %v4926
    %v4928 = vpop.f32.mrf.mxu0
    %4929 = vdwg.mxu0
    %4930 = vmatpush.bf16.msra.mxu0 %v3577
    %4931 = vmatpush.bf16.msra.mxu0 %v3573
    %4932 = vmatpush.bf16.msra.mxu0 %v3569
    %4933 = vmatpush.bf16.msra.mxu0 %v3565
    %4934 = vmatpush.bf16.msra.mxu0 %v3561
    %4935 = vmatpush.bf16.msra.mxu0 %v3557
    %4936 = vmatpush.bf16.msra.mxu0 %v3553
    %4937 = vmatpush.bf16.msra.mxu0 %v3549
    %4938 = vmatmul.bf16.gmra.mxu0 %v834
    %v4939 = vpop.f32.mrf.mxu0
    %v4940 = vadd.f32 %v4927, %v4939
    %v4941 = vpop.f32.mrf.mxu0
    %4942 = vdwg.mxu0
    %4943 = vmatpush.bf16.msra.mxu0 %v3609
    %4944 = vmatpush.bf16.msra.mxu0 %v3605
    %4945 = vmatpush.bf16.msra.mxu0 %v3601
    %4946 = vmatpush.bf16.msra.mxu0 %v3597
    %4947 = vmatpush.bf16.msra.mxu0 %v3593
    %4948 = vmatpush.bf16.msra.mxu0 %v3589
    %4949 = vmatpush.bf16.msra.mxu0 %v3585
    %4950 = vmatpush.bf16.msra.mxu0 %v3581
    %4951 = vmatmul.bf16.gmra.mxu0 %v835
    %v4952 = vpop.f32.mrf.mxu0
    %v4953 = vadd.f32 %v4940, %v4952
    %v4954 = vpop.f32.mrf.mxu0
    %4955 = vdwg.mxu0
    %4956 = vmatpush.bf16.msra.mxu0 %v3641
    %4957 = vmatpush.bf16.msra.mxu0 %v3637
    %4958 = vmatpush.bf16.msra.mxu0 %v3633
    %4959 = vmatpush.bf16.msra.mxu0 %v3629
    %4960 = vmatpush.bf16.msra.mxu0 %v3625
    %4961 = vmatpush.bf16.msra.mxu0 %v3621
    %4962 = vmatpush.bf16.msra.mxu0 %v3617
    %4963 = vmatpush.bf16.msra.mxu0 %v3613
    %4964 = vmatmul.bf16.gmra.mxu0 %v836
    %v4965 = vpop.f32.mrf.mxu0
    %v4966 = vadd.f32 %v4953, %v4965
    %v4967 = vpop.f32.mrf.mxu0
    %4968 = vdwg.mxu0
    %4969 = vmatpush.bf16.msra.mxu0 %v3673
    %4970 = vmatpush.bf16.msra.mxu0 %v3669
    %4971 = vmatpush.bf16.msra.mxu0 %v3665
    %4972 = vmatpush.bf16.msra.mxu0 %v3661
    %4973 = vmatpush.bf16.msra.mxu0 %v3657
    %4974 = vmatpush.bf16.msra.mxu0 %v3653
    %4975 = vmatpush.bf16.msra.mxu0 %v3649
    %4976 = vmatpush.bf16.msra.mxu0 %v3645
    %4977 = vmatmul.bf16.gmra.mxu0 %v837
    %v4978 = vpop.f32.mrf.mxu0
    %v4979 = vadd.f32 %v4966, %v4978
    %v4980 = vpop.f32.mrf.mxu0
    %4981 = vdwg.mxu0
    %4982 = vmatpush.bf16.msra.mxu0 %v3705
    %4983 = vmatpush.bf16.msra.mxu0 %v3701
    %4984 = vmatpush.bf16.msra.mxu0 %v3697
    %4985 = vmatpush.bf16.msra.mxu0 %v3693
    %4986 = vmatpush.bf16.msra.mxu0 %v3689
    %4987 = vmatpush.bf16.msra.mxu0 %v3685
    %4988 = vmatpush.bf16.msra.mxu0 %v3681
    %4989 = vmatpush.bf16.msra.mxu0 %v3677
    %4990 = vmatmul.bf16.gmra.mxu0 %v838
    %v4991 = vpop.f32.mrf.mxu0
    %v4992 = vadd.f32 %v4979, %v4991
    %v4993 = vpop.f32.mrf.mxu0
    %4994 = vdwg.mxu0
    %4995 = vmatpush.bf16.msra.mxu0 %v3737
    %4996 = vmatpush.bf16.msra.mxu0 %v3733
    %4997 = vmatpush.bf16.msra.mxu0 %v3729
    %4998 = vmatpush.bf16.msra.mxu0 %v3725
    %4999 = vmatpush.bf16.msra.mxu0 %v3721
    %5000 = vmatpush.bf16.msra.mxu0 %v3717
    %5001 = vmatpush.bf16.msra.mxu0 %v3713
    %5002 = vmatpush.bf16.msra.mxu0 %v3709
    %5003 = vmatmul.bf16.gmra.mxu0 %v839
    %v5004 = vpop.f32.mrf.mxu0
    %v5005 = vadd.f32 %v4992, %v5004
    %v5006 = vpop.f32.mrf.mxu0
    %5007 = vdwg.mxu0
    %5008 = vmatpush.bf16.msra.mxu0 %v3769
    %5009 = vmatpush.bf16.msra.mxu0 %v3765
    %5010 = vmatpush.bf16.msra.mxu0 %v3761
    %5011 = vmatpush.bf16.msra.mxu0 %v3757
    %5012 = vmatpush.bf16.msra.mxu0 %v3753
    %5013 = vmatpush.bf16.msra.mxu0 %v3749
    %5014 = vmatpush.bf16.msra.mxu0 %v3745
    %5015 = vmatpush.bf16.msra.mxu0 %v3741
    %5016 = vmatmul.bf16.gmra.mxu0 %v842
    %v5017 = vpop.f32.mrf.mxu0
    %v5018 = vadd.f32 %v5005, %v5017
    %v5019 = vpop.f32.mrf.mxu0
    %5020 = vdwg.mxu0
    %5021 = vmatpush.bf16.msra.mxu0 %v3801
    %5022 = vmatpush.bf16.msra.mxu0 %v3797
    %5023 = vmatpush.bf16.msra.mxu0 %v3793
    %5024 = vmatpush.bf16.msra.mxu0 %v3789
    %5025 = vmatpush.bf16.msra.mxu0 %v3785
    %5026 = vmatpush.bf16.msra.mxu0 %v3781
    %5027 = vmatpush.bf16.msra.mxu0 %v3777
    %5028 = vmatpush.bf16.msra.mxu0 %v3773
    %5029 = vmatmul.bf16.gmra.mxu0 %v843
    %v5030 = vpop.f32.mrf.mxu0
    %v5031 = vadd.f32 %v5018, %v5030
    %v5032 = vpop.f32.mrf.mxu0
    %5033 = vdwg.mxu0
    %5034 = vmatpush.bf16.msra.mxu0 %v3833
    %5035 = vmatpush.bf16.msra.mxu0 %v3829
    %5036 = vmatpush.bf16.msra.mxu0 %v3825
    %5037 = vmatpush.bf16.msra.mxu0 %v3821
    %5038 = vmatpush.bf16.msra.mxu0 %v3817
    %5039 = vmatpush.bf16.msra.mxu0 %v3813
    %5040 = vmatpush.bf16.msra.mxu0 %v3809
    %5041 = vmatpush.bf16.msra.mxu0 %v3805
    %5042 = vmatmul.bf16.gmra.mxu0 %v844
    %v5043 = vpop.f32.mrf.mxu0
    %v5044 = vadd.f32 %v5031, %v5043
    %v5045 = vpop.f32.mrf.mxu0
    %5046 = vdwg.mxu0
    %5047 = vmatpush.bf16.msra.mxu0 %v3865
    %5048 = vmatpush.bf16.msra.mxu0 %v3861
    %5049 = vmatpush.bf16.msra.mxu0 %v3857
    %5050 = vmatpush.bf16.msra.mxu0 %v3853
    %5051 = vmatpush.bf16.msra.mxu0 %v3849
    %5052 = vmatpush.bf16.msra.mxu0 %v3845
    %5053 = vmatpush.bf16.msra.mxu0 %v3841
    %5054 = vmatpush.bf16.msra.mxu0 %v3837
    %5055 = vmatmul.bf16.gmra.mxu0 %v845
    %v5056 = vpop.f32.mrf.mxu0
    %v5057 = vadd.f32 %v5044, %v5056
    %v5058 = vpop.f32.mrf.mxu0
    %5059 = vdwg.mxu0
    %5060 = vmatpush.bf16.msra.mxu0 %v3897
    %5061 = vmatpush.bf16.msra.mxu0 %v3893
    %5062 = vmatpush.bf16.msra.mxu0 %v3889
    %5063 = vmatpush.bf16.msra.mxu0 %v3885
    %5064 = vmatpush.bf16.msra.mxu0 %v3881
    %5065 = vmatpush.bf16.msra.mxu0 %v3877
    %5066 = vmatpush.bf16.msra.mxu0 %v3873
    %5067 = vmatpush.bf16.msra.mxu0 %v3869
    %5068 = vmatmul.bf16.gmra.mxu0 %v846
    %v5069 = vpop.f32.mrf.mxu0
    %v5070 = vadd.f32 %v5057, %v5069
    %v5071 = vpop.f32.mrf.mxu0
    %5072 = vdwg.mxu0
    %5073 = vmatpush.bf16.msra.mxu0 %v3929
    %5074 = vmatpush.bf16.msra.mxu0 %v3925
    %5075 = vmatpush.bf16.msra.mxu0 %v3921
    %5076 = vmatpush.bf16.msra.mxu0 %v3917
    %5077 = vmatpush.bf16.msra.mxu0 %v3913
    %5078 = vmatpush.bf16.msra.mxu0 %v3909
    %5079 = vmatpush.bf16.msra.mxu0 %v3905
    %5080 = vmatpush.bf16.msra.mxu0 %v3901
    %5081 = vmatmul.bf16.gmra.mxu0 %v847
    %v5082 = vpop.f32.mrf.mxu0
    %v5083 = vadd.f32 %v5070, %v5082
    %v5084 = vpop.f32.mrf.mxu0
    %5085 = vdwg.mxu0
    %5086 = vmatpush.bf16.msra.mxu0 %v3961
    %5087 = vmatpush.bf16.msra.mxu0 %v3957
    %5088 = vmatpush.bf16.msra.mxu0 %v3953
    %5089 = vmatpush.bf16.msra.mxu0 %v3949
    %5090 = vmatpush.bf16.msra.mxu0 %v3945
    %5091 = vmatpush.bf16.msra.mxu0 %v3941
    %5092 = vmatpush.bf16.msra.mxu0 %v3937
    %5093 = vmatpush.bf16.msra.mxu0 %v3933
    %5094 = vmatmul.bf16.gmra.mxu0 %v848
    %v5095 = vpop.f32.mrf.mxu0
    %v5096 = vadd.f32 %v5083, %v5095
    %v5097 = vpop.f32.mrf.mxu0
    %5098 = vdwg.mxu0
    %5099 = vmatpush.bf16.msra.mxu0 %v3993
    %5100 = vmatpush.bf16.msra.mxu0 %v3989
    %5101 = vmatpush.bf16.msra.mxu0 %v3985
    %5102 = vmatpush.bf16.msra.mxu0 %v3981
    %5103 = vmatpush.bf16.msra.mxu0 %v3977
    %5104 = vmatpush.bf16.msra.mxu0 %v3973
    %5105 = vmatpush.bf16.msra.mxu0 %v3969
    %5106 = vmatpush.bf16.msra.mxu0 %v3965
    %5107 = vmatmul.bf16.gmra.mxu0 %v849
    %v5108 = vpop.f32.mrf.mxu0
    %v5109 = vadd.f32 %v5096, %v5108
    %v5110 = vpop.f32.mrf.mxu0
    %5111 = vdwg.mxu0
    %5112 = vmatpush.bf16.msra.mxu0 0
    %5113 = vmatpush.bf16.msra.mxu0 0
    %5114 = vmatpush.bf16.msra.mxu0 0
    %5115 = vmatpush.bf16.msra.mxu0 0
    %5116 = vmatpush.bf16.msra.mxu0 %v4009
    %5117 = vmatpush.bf16.msra.mxu0 %v4005
    %5118 = vmatpush.bf16.msra.mxu0 %v4001
    %5119 = vmatpush.bf16.msra.mxu0 %v3997
    %5120 = vmatmul.bf16.gmra.mxu0 %v4798
    %v5121 = vpop.f32.mrf.mxu0
    %v5122 = vadd.f32 %v5109, %v5121
    %v5123 = vpop.f32.mrf.mxu0
    %5124 = vdwg.mxu0
    %5125 = vmatpush.bf16.msra.mxu0 %v3258
    %5126 = vmatpush.bf16.msra.mxu0 %v3254
    %5127 = vmatpush.bf16.msra.mxu0 %v3250
    %5128 = vmatpush.bf16.msra.mxu0 %v3246
    %5129 = vmatpush.bf16.msra.mxu0 %v3242
    %5130 = vmatpush.bf16.msra.mxu0 %v3238
    %5131 = vmatpush.bf16.msra.mxu0 %v3234
    %5132 = vmatpush.bf16.msra.mxu0 %v3230
    %5133 = vmatmul.bf16.gmra.mxu0 %v822
    %v5134 = vpop.f32.mrf.mxu0
    %v5135 = vadd.f32 %v813, %v5134
    %v5136 = vpop.f32.mrf.mxu0
    %5137 = vdwg.mxu0
    %5138 = vmatpush.bf16.msra.mxu0 %v3290
    %5139 = vmatpush.bf16.msra.mxu0 %v3286
    %5140 = vmatpush.bf16.msra.mxu0 %v3282
    %5141 = vmatpush.bf16.msra.mxu0 %v3278
    %5142 = vmatpush.bf16.msra.mxu0 %v3274
    %5143 = vmatpush.bf16.msra.mxu0 %v3270
    %5144 = vmatpush.bf16.msra.mxu0 %v3266
    %5145 = vmatpush.bf16.msra.mxu0 %v3262
    %5146 = vmatmul.bf16.gmra.mxu0 %v823
    %v5147 = vpop.f32.mrf.mxu0
    %v5148 = vadd.f32 %v5135, %v5147
    %v5149 = vpop.f32.mrf.mxu0
    %5150 = vdwg.mxu0
    %5151 = vmatpush.bf16.msra.mxu0 %v3322
    %5152 = vmatpush.bf16.msra.mxu0 %v3318
    %5153 = vmatpush.bf16.msra.mxu0 %v3314
    %5154 = vmatpush.bf16.msra.mxu0 %v3310
    %5155 = vmatpush.bf16.msra.mxu0 %v3306
    %5156 = vmatpush.bf16.msra.mxu0 %v3302
    %5157 = vmatpush.bf16.msra.mxu0 %v3298
    %5158 = vmatpush.bf16.msra.mxu0 %v3294
    %5159 = vmatmul.bf16.gmra.mxu0 %v824
    %v5160 = vpop.f32.mrf.mxu0
    %v5161 = vadd.f32 %v5148, %v5160
    %v5162 = vpop.f32.mrf.mxu0
    %5163 = vdwg.mxu0
    %5164 = vmatpush.bf16.msra.mxu0 %v3354
    %5165 = vmatpush.bf16.msra.mxu0 %v3350
    %5166 = vmatpush.bf16.msra.mxu0 %v3346
    %5167 = vmatpush.bf16.msra.mxu0 %v3342
    %5168 = vmatpush.bf16.msra.mxu0 %v3338
    %5169 = vmatpush.bf16.msra.mxu0 %v3334
    %5170 = vmatpush.bf16.msra.mxu0 %v3330
    %5171 = vmatpush.bf16.msra.mxu0 %v3326
    %5172 = vmatmul.bf16.gmra.mxu0 %v825
    %v5173 = vpop.f32.mrf.mxu0
    %v5174 = vadd.f32 %v5161, %v5173
    %v5175 = vpop.f32.mrf.mxu0
    %5176 = vdwg.mxu0
    %5177 = vmatpush.bf16.msra.mxu0 %v3386
    %5178 = vmatpush.bf16.msra.mxu0 %v3382
    %5179 = vmatpush.bf16.msra.mxu0 %v3378
    %5180 = vmatpush.bf16.msra.mxu0 %v3374
    %5181 = vmatpush.bf16.msra.mxu0 %v3370
    %5182 = vmatpush.bf16.msra.mxu0 %v3366
    %5183 = vmatpush.bf16.msra.mxu0 %v3362
    %5184 = vmatpush.bf16.msra.mxu0 %v3358
    %5185 = vmatmul.bf16.gmra.mxu0 %v826
    %v5186 = vpop.f32.mrf.mxu0
    %v5187 = vadd.f32 %v5174, %v5186
    %v5188 = vpop.f32.mrf.mxu0
    %5189 = vdwg.mxu0
    %5190 = vmatpush.bf16.msra.mxu0 %v3418
    %5191 = vmatpush.bf16.msra.mxu0 %v3414
    %5192 = vmatpush.bf16.msra.mxu0 %v3410
    %5193 = vmatpush.bf16.msra.mxu0 %v3406
    %5194 = vmatpush.bf16.msra.mxu0 %v3402
    %5195 = vmatpush.bf16.msra.mxu0 %v3398
    %5196 = vmatpush.bf16.msra.mxu0 %v3394
    %5197 = vmatpush.bf16.msra.mxu0 %v3390
    %5198 = vmatmul.bf16.gmra.mxu0 %v827
    %v5199 = vpop.f32.mrf.mxu0
    %v5200 = vadd.f32 %v5187, %v5199
    %v5201 = vpop.f32.mrf.mxu0
    %5202 = vdwg.mxu0
    %5203 = vmatpush.bf16.msra.mxu0 %v3450
    %5204 = vmatpush.bf16.msra.mxu0 %v3446
    %5205 = vmatpush.bf16.msra.mxu0 %v3442
    %5206 = vmatpush.bf16.msra.mxu0 %v3438
    %5207 = vmatpush.bf16.msra.mxu0 %v3434
    %5208 = vmatpush.bf16.msra.mxu0 %v3430
    %5209 = vmatpush.bf16.msra.mxu0 %v3426
    %5210 = vmatpush.bf16.msra.mxu0 %v3422
    %5211 = vmatmul.bf16.gmra.mxu0 %v828
    %v5212 = vpop.f32.mrf.mxu0
    %v5213 = vadd.f32 %v5200, %v5212
    %v5214 = vpop.f32.mrf.mxu0
    %5215 = vdwg.mxu0
    %5216 = vmatpush.bf16.msra.mxu0 %v3482
    %5217 = vmatpush.bf16.msra.mxu0 %v3478
    %5218 = vmatpush.bf16.msra.mxu0 %v3474
    %5219 = vmatpush.bf16.msra.mxu0 %v3470
    %5220 = vmatpush.bf16.msra.mxu0 %v3466
    %5221 = vmatpush.bf16.msra.mxu0 %v3462
    %5222 = vmatpush.bf16.msra.mxu0 %v3458
    %5223 = vmatpush.bf16.msra.mxu0 %v3454
    %5224 = vmatmul.bf16.gmra.mxu0 %v829
    %v5225 = vpop.f32.mrf.mxu0
    %v5226 = vadd.f32 %v5213, %v5225
    %v5227 = vpop.f32.mrf.mxu0
    %5228 = vdwg.mxu0
    %5229 = vmatpush.bf16.msra.mxu0 %v3514
    %5230 = vmatpush.bf16.msra.mxu0 %v3510
    %5231 = vmatpush.bf16.msra.mxu0 %v3506
    %5232 = vmatpush.bf16.msra.mxu0 %v3502
    %5233 = vmatpush.bf16.msra.mxu0 %v3498
    %5234 = vmatpush.bf16.msra.mxu0 %v3494
    %5235 = vmatpush.bf16.msra.mxu0 %v3490
    %5236 = vmatpush.bf16.msra.mxu0 %v3486
    %5237 = vmatmul.bf16.gmra.mxu0 %v832
    %v5238 = vpop.f32.mrf.mxu0
    %v5239 = vadd.f32 %v5226, %v5238
    %v5240 = vpop.f32.mrf.mxu0
    %5241 = vdwg.mxu0
    %5242 = vmatpush.bf16.msra.mxu0 %v3546
    %5243 = vmatpush.bf16.msra.mxu0 %v3542
    %5244 = vmatpush.bf16.msra.mxu0 %v3538
    %5245 = vmatpush.bf16.msra.mxu0 %v3534
    %5246 = vmatpush.bf16.msra.mxu0 %v3530
    %5247 = vmatpush.bf16.msra.mxu0 %v3526
    %5248 = vmatpush.bf16.msra.mxu0 %v3522
    %5249 = vmatpush.bf16.msra.mxu0 %v3518
    %5250 = vmatmul.bf16.gmra.mxu0 %v833
    %v5251 = vpop.f32.mrf.mxu0
    %v5252 = vadd.f32 %v5239, %v5251
    %v5253 = vpop.f32.mrf.mxu0
    %5254 = vdwg.mxu0
    %5255 = vmatpush.bf16.msra.mxu0 %v3578
    %5256 = vmatpush.bf16.msra.mxu0 %v3574
    %5257 = vmatpush.bf16.msra.mxu0 %v3570
    %5258 = vmatpush.bf16.msra.mxu0 %v3566
    %5259 = vmatpush.bf16.msra.mxu0 %v3562
    %5260 = vmatpush.bf16.msra.mxu0 %v3558
    %5261 = vmatpush.bf16.msra.mxu0 %v3554
    %5262 = vmatpush.bf16.msra.mxu0 %v3550
    %5263 = vmatmul.bf16.gmra.mxu0 %v834
    %v5264 = vpop.f32.mrf.mxu0
    %v5265 = vadd.f32 %v5252, %v5264
    %v5266 = vpop.f32.mrf.mxu0
    %5267 = vdwg.mxu0
    %5268 = vmatpush.bf16.msra.mxu0 %v3610
    %5269 = vmatpush.bf16.msra.mxu0 %v3606
    %5270 = vmatpush.bf16.msra.mxu0 %v3602
    %5271 = vmatpush.bf16.msra.mxu0 %v3598
    %5272 = vmatpush.bf16.msra.mxu0 %v3594
    %5273 = vmatpush.bf16.msra.mxu0 %v3590
    %5274 = vmatpush.bf16.msra.mxu0 %v3586
    %5275 = vmatpush.bf16.msra.mxu0 %v3582
    %5276 = vmatmul.bf16.gmra.mxu0 %v835
    %v5277 = vpop.f32.mrf.mxu0
    %v5278 = vadd.f32 %v5265, %v5277
    %v5279 = vpop.f32.mrf.mxu0
    %5280 = vdwg.mxu0
    %5281 = vmatpush.bf16.msra.mxu0 %v3642
    %5282 = vmatpush.bf16.msra.mxu0 %v3638
    %5283 = vmatpush.bf16.msra.mxu0 %v3634
    %5284 = vmatpush.bf16.msra.mxu0 %v3630
    %5285 = vmatpush.bf16.msra.mxu0 %v3626
    %5286 = vmatpush.bf16.msra.mxu0 %v3622
    %5287 = vmatpush.bf16.msra.mxu0 %v3618
    %5288 = vmatpush.bf16.msra.mxu0 %v3614
    %5289 = vmatmul.bf16.gmra.mxu0 %v836
    %v5290 = vpop.f32.mrf.mxu0
    %v5291 = vadd.f32 %v5278, %v5290
    %v5292 = vpop.f32.mrf.mxu0
    %5293 = vdwg.mxu0
    %5294 = vmatpush.bf16.msra.mxu0 %v3674
    %5295 = vmatpush.bf16.msra.mxu0 %v3670
    %5296 = vmatpush.bf16.msra.mxu0 %v3666
    %5297 = vmatpush.bf16.msra.mxu0 %v3662
    %5298 = vmatpush.bf16.msra.mxu0 %v3658
    %5299 = vmatpush.bf16.msra.mxu0 %v3654
    %5300 = vmatpush.bf16.msra.mxu0 %v3650
    %5301 = vmatpush.bf16.msra.mxu0 %v3646
    %5302 = vmatmul.bf16.gmra.mxu0 %v837
    %v5303 = vpop.f32.mrf.mxu0
    %v5304 = vadd.f32 %v5291, %v5303
    %v5305 = vpop.f32.mrf.mxu0
    %5306 = vdwg.mxu0
    %5307 = vmatpush.bf16.msra.mxu0 %v3706
    %5308 = vmatpush.bf16.msra.mxu0 %v3702
    %5309 = vmatpush.bf16.msra.mxu0 %v3698
    %5310 = vmatpush.bf16.msra.mxu0 %v3694
    %5311 = vmatpush.bf16.msra.mxu0 %v3690
    %5312 = vmatpush.bf16.msra.mxu0 %v3686
    %5313 = vmatpush.bf16.msra.mxu0 %v3682
    %5314 = vmatpush.bf16.msra.mxu0 %v3678
    %5315 = vmatmul.bf16.gmra.mxu0 %v838
    %v5316 = vpop.f32.mrf.mxu0
    %v5317 = vadd.f32 %v5304, %v5316
    %v5318 = vpop.f32.mrf.mxu0
    %5319 = vdwg.mxu0
    %5320 = vmatpush.bf16.msra.mxu0 %v3738
    %5321 = vmatpush.bf16.msra.mxu0 %v3734
    %5322 = vmatpush.bf16.msra.mxu0 %v3730
    %5323 = vmatpush.bf16.msra.mxu0 %v3726
    %5324 = vmatpush.bf16.msra.mxu0 %v3722
    %5325 = vmatpush.bf16.msra.mxu0 %v3718
    %5326 = vmatpush.bf16.msra.mxu0 %v3714
    %5327 = vmatpush.bf16.msra.mxu0 %v3710
    %5328 = vmatmul.bf16.gmra.mxu0 %v839
    %v5329 = vpop.f32.mrf.mxu0
    %v5330 = vadd.f32 %v5317, %v5329
    %v5331 = vpop.f32.mrf.mxu0
    %5332 = vdwg.mxu0
    %5333 = vmatpush.bf16.msra.mxu0 %v3770
    %5334 = vmatpush.bf16.msra.mxu0 %v3766
    %5335 = vmatpush.bf16.msra.mxu0 %v3762
    %5336 = vmatpush.bf16.msra.mxu0 %v3758
    %5337 = vmatpush.bf16.msra.mxu0 %v3754
    %5338 = vmatpush.bf16.msra.mxu0 %v3750
    %5339 = vmatpush.bf16.msra.mxu0 %v3746
    %5340 = vmatpush.bf16.msra.mxu0 %v3742
    %5341 = vmatmul.bf16.gmra.mxu0 %v842
    %v5342 = vpop.f32.mrf.mxu0
    %v5343 = vadd.f32 %v5330, %v5342
    %v5344 = vpop.f32.mrf.mxu0
    %5345 = vdwg.mxu0
    %5346 = vmatpush.bf16.msra.mxu0 %v3802
    %5347 = vmatpush.bf16.msra.mxu0 %v3798
    %5348 = vmatpush.bf16.msra.mxu0 %v3794
    %5349 = vmatpush.bf16.msra.mxu0 %v3790
    %5350 = vmatpush.bf16.msra.mxu0 %v3786
    %5351 = vmatpush.bf16.msra.mxu0 %v3782
    %5352 = vmatpush.bf16.msra.mxu0 %v3778
    %5353 = vmatpush.bf16.msra.mxu0 %v3774
    %5354 = vmatmul.bf16.gmra.mxu0 %v843
    %v5355 = vpop.f32.mrf.mxu0
    %v5356 = vadd.f32 %v5343, %v5355
    %v5357 = vpop.f32.mrf.mxu0
    %5358 = vdwg.mxu0
    %5359 = vmatpush.bf16.msra.mxu0 %v3834
    %5360 = vmatpush.bf16.msra.mxu0 %v3830
    %5361 = vmatpush.bf16.msra.mxu0 %v3826
    %5362 = vmatpush.bf16.msra.mxu0 %v3822
    %5363 = vmatpush.bf16.msra.mxu0 %v3818
    %5364 = vmatpush.bf16.msra.mxu0 %v3814
    %5365 = vmatpush.bf16.msra.mxu0 %v3810
    %5366 = vmatpush.bf16.msra.mxu0 %v3806
    %5367 = vmatmul.bf16.gmra.mxu0 %v844
    %v5368 = vpop.f32.mrf.mxu0
    %v5369 = vadd.f32 %v5356, %v5368
    %v5370 = vpop.f32.mrf.mxu0
    %5371 = vdwg.mxu0
    %5372 = vmatpush.bf16.msra.mxu0 %v3866
    %5373 = vmatpush.bf16.msra.mxu0 %v3862
    %5374 = vmatpush.bf16.msra.mxu0 %v3858
    %5375 = vmatpush.bf16.msra.mxu0 %v3854
    %5376 = vmatpush.bf16.msra.mxu0 %v3850
    %5377 = vmatpush.bf16.msra.mxu0 %v3846
    %5378 = vmatpush.bf16.msra.mxu0 %v3842
    %5379 = vmatpush.bf16.msra.mxu0 %v3838
    %5380 = vmatmul.bf16.gmra.mxu0 %v845
    %v5381 = vpop.f32.mrf.mxu0
    %v5382 = vadd.f32 %v5369, %v5381
    %v5383 = vpop.f32.mrf.mxu0
    %5384 = vdwg.mxu0
    %5385 = vmatpush.bf16.msra.mxu0 %v3898
    %5386 = vmatpush.bf16.msra.mxu0 %v3894
    %5387 = vmatpush.bf16.msra.mxu0 %v3890
    %5388 = vmatpush.bf16.msra.mxu0 %v3886
    %5389 = vmatpush.bf16.msra.mxu0 %v3882
    %5390 = vmatpush.bf16.msra.mxu0 %v3878
    %5391 = vmatpush.bf16.msra.mxu0 %v3874
    %5392 = vmatpush.bf16.msra.mxu0 %v3870
    %5393 = vmatmul.bf16.gmra.mxu0 %v846
    %v5394 = vpop.f32.mrf.mxu0
    %v5395 = vadd.f32 %v5382, %v5394
    %v5396 = vpop.f32.mrf.mxu0
    %5397 = vdwg.mxu0
    %5398 = vmatpush.bf16.msra.mxu0 %v3930
    %5399 = vmatpush.bf16.msra.mxu0 %v3926
    %5400 = vmatpush.bf16.msra.mxu0 %v3922
    %5401 = vmatpush.bf16.msra.mxu0 %v3918
    %5402 = vmatpush.bf16.msra.mxu0 %v3914
    %5403 = vmatpush.bf16.msra.mxu0 %v3910
    %5404 = vmatpush.bf16.msra.mxu0 %v3906
    %5405 = vmatpush.bf16.msra.mxu0 %v3902
    %5406 = vmatmul.bf16.gmra.mxu0 %v847
    %v5407 = vpop.f32.mrf.mxu0
    %v5408 = vadd.f32 %v5395, %v5407
    %v5409 = vpop.f32.mrf.mxu0
    %5410 = vdwg.mxu0
    %5411 = vmatpush.bf16.msra.mxu0 %v3962
    %5412 = vmatpush.bf16.msra.mxu0 %v3958
    %5413 = vmatpush.bf16.msra.mxu0 %v3954
    %5414 = vmatpush.bf16.msra.mxu0 %v3950
    %5415 = vmatpush.bf16.msra.mxu0 %v3946
    %5416 = vmatpush.bf16.msra.mxu0 %v3942
    %5417 = vmatpush.bf16.msra.mxu0 %v3938
    %5418 = vmatpush.bf16.msra.mxu0 %v3934
    %5419 = vmatmul.bf16.gmra.mxu0 %v848
    %v5420 = vpop.f32.mrf.mxu0
    %v5421 = vadd.f32 %v5408, %v5420
    %v5422 = vpop.f32.mrf.mxu0
    %5423 = vdwg.mxu0
    %5424 = vmatpush.bf16.msra.mxu0 %v3994
    %5425 = vmatpush.bf16.msra.mxu0 %v3990
    %5426 = vmatpush.bf16.msra.mxu0 %v3986
    %5427 = vmatpush.bf16.msra.mxu0 %v3982
    %5428 = vmatpush.bf16.msra.mxu0 %v3978
    %5429 = vmatpush.bf16.msra.mxu0 %v3974
    %5430 = vmatpush.bf16.msra.mxu0 %v3970
    %5431 = vmatpush.bf16.msra.mxu0 %v3966
    %5432 = vmatmul.bf16.gmra.mxu0 %v849
    %v5433 = vpop.f32.mrf.mxu0
    %v5434 = vadd.f32 %v5421, %v5433
    %v5435 = vpop.f32.mrf.mxu0
    %5436 = vdwg.mxu0
    %5437 = vmatpush.bf16.msra.mxu0 0
    %5438 = vmatpush.bf16.msra.mxu0 0
    %5439 = vmatpush.bf16.msra.mxu0 0
    %5440 = vmatpush.bf16.msra.mxu0 0
    %5441 = vmatpush.bf16.msra.mxu0 %v4010
    %5442 = vmatpush.bf16.msra.mxu0 %v4006
    %5443 = vmatpush.bf16.msra.mxu0 %v4002
    %5444 = vmatpush.bf16.msra.mxu0 %v3998
    %5445 = vmatmul.bf16.gmra.mxu0 %v4798
    %v5446 = vpop.f32.mrf.mxu0
    %v5447 = vadd.f32 %v5434, %v5446
    %v5448 = vpop.f32.mrf.mxu0
    %5449 = vdwg.mxu0
    %5450 = vmatpush.bf16.msra.mxu0 %v3259
    %5451 = vmatpush.bf16.msra.mxu0 %v3255
    %5452 = vmatpush.bf16.msra.mxu0 %v3251
    %5453 = vmatpush.bf16.msra.mxu0 %v3247
    %5454 = vmatpush.bf16.msra.mxu0 %v3243
    %5455 = vmatpush.bf16.msra.mxu0 %v3239
    %5456 = vmatpush.bf16.msra.mxu0 %v3235
    %5457 = vmatpush.bf16.msra.mxu0 %v3231
    %5458 = vmatmul.bf16.gmra.mxu0 %v822
    %v5459 = vpop.f32.mrf.mxu0
    %v5460 = vadd.f32 %v814, %v5459
    %v5461 = vpop.f32.mrf.mxu0
    %5462 = vdwg.mxu0
    %5463 = vmatpush.bf16.msra.mxu0 %v3291
    %5464 = vmatpush.bf16.msra.mxu0 %v3287
    %5465 = vmatpush.bf16.msra.mxu0 %v3283
    %5466 = vmatpush.bf16.msra.mxu0 %v3279
    %5467 = vmatpush.bf16.msra.mxu0 %v3275
    %5468 = vmatpush.bf16.msra.mxu0 %v3271
    %5469 = vmatpush.bf16.msra.mxu0 %v3267
    %5470 = vmatpush.bf16.msra.mxu0 %v3263
    %5471 = vmatmul.bf16.gmra.mxu0 %v823
    %v5472 = vpop.f32.mrf.mxu0
    %v5473 = vadd.f32 %v5460, %v5472
    %v5474 = vpop.f32.mrf.mxu0
    %5475 = vdwg.mxu0
    %5476 = vmatpush.bf16.msra.mxu0 %v3323
    %5477 = vmatpush.bf16.msra.mxu0 %v3319
    %5478 = vmatpush.bf16.msra.mxu0 %v3315
    %5479 = vmatpush.bf16.msra.mxu0 %v3311
    %5480 = vmatpush.bf16.msra.mxu0 %v3307
    %5481 = vmatpush.bf16.msra.mxu0 %v3303
    %5482 = vmatpush.bf16.msra.mxu0 %v3299
    %5483 = vmatpush.bf16.msra.mxu0 %v3295
    %5484 = vmatmul.bf16.gmra.mxu0 %v824
    %v5485 = vpop.f32.mrf.mxu0
    %v5486 = vadd.f32 %v5473, %v5485
    %v5487 = vpop.f32.mrf.mxu0
    %5488 = vdwg.mxu0
    %5489 = vmatpush.bf16.msra.mxu0 %v3355
    %5490 = vmatpush.bf16.msra.mxu0 %v3351
    %5491 = vmatpush.bf16.msra.mxu0 %v3347
    %5492 = vmatpush.bf16.msra.mxu0 %v3343
    %5493 = vmatpush.bf16.msra.mxu0 %v3339
    %5494 = vmatpush.bf16.msra.mxu0 %v3335
    %5495 = vmatpush.bf16.msra.mxu0 %v3331
    %5496 = vmatpush.bf16.msra.mxu0 %v3327
    %5497 = vmatmul.bf16.gmra.mxu0 %v825
    %v5498 = vpop.f32.mrf.mxu0
    %v5499 = vadd.f32 %v5486, %v5498
    %v5500 = vpop.f32.mrf.mxu0
    %5501 = vdwg.mxu0
    %5502 = vmatpush.bf16.msra.mxu0 %v3387
    %5503 = vmatpush.bf16.msra.mxu0 %v3383
    %5504 = vmatpush.bf16.msra.mxu0 %v3379
    %5505 = vmatpush.bf16.msra.mxu0 %v3375
    %5506 = vmatpush.bf16.msra.mxu0 %v3371
    %5507 = vmatpush.bf16.msra.mxu0 %v3367
    %5508 = vmatpush.bf16.msra.mxu0 %v3363
    %5509 = vmatpush.bf16.msra.mxu0 %v3359
    %5510 = vmatmul.bf16.gmra.mxu0 %v826
    %v5511 = vpop.f32.mrf.mxu0
    %v5512 = vadd.f32 %v5499, %v5511
    %v5513 = vpop.f32.mrf.mxu0
    %5514 = vdwg.mxu0
    %5515 = vmatpush.bf16.msra.mxu0 %v3419
    %5516 = vmatpush.bf16.msra.mxu0 %v3415
    %5517 = vmatpush.bf16.msra.mxu0 %v3411
    %5518 = vmatpush.bf16.msra.mxu0 %v3407
    %5519 = vmatpush.bf16.msra.mxu0 %v3403
    %5520 = vmatpush.bf16.msra.mxu0 %v3399
    %5521 = vmatpush.bf16.msra.mxu0 %v3395
    %5522 = vmatpush.bf16.msra.mxu0 %v3391
    %5523 = vmatmul.bf16.gmra.mxu0 %v827
    %v5524 = vpop.f32.mrf.mxu0
    %v5525 = vadd.f32 %v5512, %v5524
    %v5526 = vpop.f32.mrf.mxu0
    %5527 = vdwg.mxu0
    %5528 = vmatpush.bf16.msra.mxu0 %v3451
    %5529 = vmatpush.bf16.msra.mxu0 %v3447
    %5530 = vmatpush.bf16.msra.mxu0 %v3443
    %5531 = vmatpush.bf16.msra.mxu0 %v3439
    %5532 = vmatpush.bf16.msra.mxu0 %v3435
    %5533 = vmatpush.bf16.msra.mxu0 %v3431
    %5534 = vmatpush.bf16.msra.mxu0 %v3427
    %5535 = vmatpush.bf16.msra.mxu0 %v3423
    %5536 = vmatmul.bf16.gmra.mxu0 %v828
    %v5537 = vpop.f32.mrf.mxu0
    %v5538 = vadd.f32 %v5525, %v5537
    %v5539 = vpop.f32.mrf.mxu0
    %5540 = vdwg.mxu0
    %5541 = vmatpush.bf16.msra.mxu0 %v3483
    %5542 = vmatpush.bf16.msra.mxu0 %v3479
    %5543 = vmatpush.bf16.msra.mxu0 %v3475
    %5544 = vmatpush.bf16.msra.mxu0 %v3471
    %5545 = vmatpush.bf16.msra.mxu0 %v3467
    %5546 = vmatpush.bf16.msra.mxu0 %v3463
    %5547 = vmatpush.bf16.msra.mxu0 %v3459
    %5548 = vmatpush.bf16.msra.mxu0 %v3455
    %5549 = vmatmul.bf16.gmra.mxu0 %v829
    %v5550 = vpop.f32.mrf.mxu0
    %v5551 = vadd.f32 %v5538, %v5550
    %v5552 = vpop.f32.mrf.mxu0
    %5553 = vdwg.mxu0
    %5554 = vmatpush.bf16.msra.mxu0 %v3515
    %5555 = vmatpush.bf16.msra.mxu0 %v3511
    %5556 = vmatpush.bf16.msra.mxu0 %v3507
    %5557 = vmatpush.bf16.msra.mxu0 %v3503
    %5558 = vmatpush.bf16.msra.mxu0 %v3499
    %5559 = vmatpush.bf16.msra.mxu0 %v3495
    %5560 = vmatpush.bf16.msra.mxu0 %v3491
    %5561 = vmatpush.bf16.msra.mxu0 %v3487
    %5562 = vmatmul.bf16.gmra.mxu0 %v832
    %v5563 = vpop.f32.mrf.mxu0
    %v5564 = vadd.f32 %v5551, %v5563
    %v5565 = vpop.f32.mrf.mxu0
    %5566 = vdwg.mxu0
    %5567 = vmatpush.bf16.msra.mxu0 %v3547
    %5568 = vmatpush.bf16.msra.mxu0 %v3543
    %5569 = vmatpush.bf16.msra.mxu0 %v3539
    %5570 = vmatpush.bf16.msra.mxu0 %v3535
    %5571 = vmatpush.bf16.msra.mxu0 %v3531
    %5572 = vmatpush.bf16.msra.mxu0 %v3527
    %5573 = vmatpush.bf16.msra.mxu0 %v3523
    %5574 = vmatpush.bf16.msra.mxu0 %v3519
    %5575 = vmatmul.bf16.gmra.mxu0 %v833
    %v5576 = vpop.f32.mrf.mxu0
    %v5577 = vadd.f32 %v5564, %v5576
    %v5578 = vpop.f32.mrf.mxu0
    %5579 = vdwg.mxu0
    %5580 = vmatpush.bf16.msra.mxu0 %v3579
    %5581 = vmatpush.bf16.msra.mxu0 %v3575
    %5582 = vmatpush.bf16.msra.mxu0 %v3571
    %5583 = vmatpush.bf16.msra.mxu0 %v3567
    %5584 = vmatpush.bf16.msra.mxu0 %v3563
    %5585 = vmatpush.bf16.msra.mxu0 %v3559
    %5586 = vmatpush.bf16.msra.mxu0 %v3555
    %5587 = vmatpush.bf16.msra.mxu0 %v3551
    %5588 = vmatmul.bf16.gmra.mxu0 %v834
    %v5589 = vpop.f32.mrf.mxu0
    %v5590 = vadd.f32 %v5577, %v5589
    %v5591 = vpop.f32.mrf.mxu0
    %5592 = vdwg.mxu0
    %5593 = vmatpush.bf16.msra.mxu0 %v3611
    %5594 = vmatpush.bf16.msra.mxu0 %v3607
    %5595 = vmatpush.bf16.msra.mxu0 %v3603
    %5596 = vmatpush.bf16.msra.mxu0 %v3599
    %5597 = vmatpush.bf16.msra.mxu0 %v3595
    %5598 = vmatpush.bf16.msra.mxu0 %v3591
    %5599 = vmatpush.bf16.msra.mxu0 %v3587
    %5600 = vmatpush.bf16.msra.mxu0 %v3583
    %5601 = vmatmul.bf16.gmra.mxu0 %v835
    %v5602 = vpop.f32.mrf.mxu0
    %v5603 = vadd.f32 %v5590, %v5602
    %v5604 = vpop.f32.mrf.mxu0
    %5605 = vdwg.mxu0
    %5606 = vmatpush.bf16.msra.mxu0 %v3643
    %5607 = vmatpush.bf16.msra.mxu0 %v3639
    %5608 = vmatpush.bf16.msra.mxu0 %v3635
    %5609 = vmatpush.bf16.msra.mxu0 %v3631
    %5610 = vmatpush.bf16.msra.mxu0 %v3627
    %5611 = vmatpush.bf16.msra.mxu0 %v3623
    %5612 = vmatpush.bf16.msra.mxu0 %v3619
    %5613 = vmatpush.bf16.msra.mxu0 %v3615
    %5614 = vmatmul.bf16.gmra.mxu0 %v836
    %v5615 = vpop.f32.mrf.mxu0
    %v5616 = vadd.f32 %v5603, %v5615
    %v5617 = vpop.f32.mrf.mxu0
    %5618 = vdwg.mxu0
    %5619 = vmatpush.bf16.msra.mxu0 %v3675
    %5620 = vmatpush.bf16.msra.mxu0 %v3671
    %5621 = vmatpush.bf16.msra.mxu0 %v3667
    %5622 = vmatpush.bf16.msra.mxu0 %v3663
    %5623 = vmatpush.bf16.msra.mxu0 %v3659
    %5624 = vmatpush.bf16.msra.mxu0 %v3655
    %5625 = vmatpush.bf16.msra.mxu0 %v3651
    %5626 = vmatpush.bf16.msra.mxu0 %v3647
    %5627 = vmatmul.bf16.gmra.mxu0 %v837
    %v5628 = vpop.f32.mrf.mxu0
    %v5629 = vadd.f32 %v5616, %v5628
    %v5630 = vpop.f32.mrf.mxu0
    %5631 = vdwg.mxu0
    %5632 = vmatpush.bf16.msra.mxu0 %v3707
    %5633 = vmatpush.bf16.msra.mxu0 %v3703
    %5634 = vmatpush.bf16.msra.mxu0 %v3699
    %5635 = vmatpush.bf16.msra.mxu0 %v3695
    %5636 = vmatpush.bf16.msra.mxu0 %v3691
    %5637 = vmatpush.bf16.msra.mxu0 %v3687
    %5638 = vmatpush.bf16.msra.mxu0 %v3683
    %5639 = vmatpush.bf16.msra.mxu0 %v3679
    %5640 = vmatmul.bf16.gmra.mxu0 %v838
    %v5641 = vpop.f32.mrf.mxu0
    %v5642 = vadd.f32 %v5629, %v5641
    %v5643 = vpop.f32.mrf.mxu0
    %5644 = vdwg.mxu0
    %5645 = vmatpush.bf16.msra.mxu0 %v3739
    %5646 = vmatpush.bf16.msra.mxu0 %v3735
    %5647 = vmatpush.bf16.msra.mxu0 %v3731
    %5648 = vmatpush.bf16.msra.mxu0 %v3727
    %5649 = vmatpush.bf16.msra.mxu0 %v3723
    %5650 = vmatpush.bf16.msra.mxu0 %v3719
    %5651 = vmatpush.bf16.msra.mxu0 %v3715
    %5652 = vmatpush.bf16.msra.mxu0 %v3711
    %5653 = vmatmul.bf16.gmra.mxu0 %v839
    %v5654 = vpop.f32.mrf.mxu0
    %v5655 = vadd.f32 %v5642, %v5654
    %v5656 = vpop.f32.mrf.mxu0
    %5657 = vdwg.mxu0
    %5658 = vmatpush.bf16.msra.mxu0 %v3771
    %5659 = vmatpush.bf16.msra.mxu0 %v3767
    %5660 = vmatpush.bf16.msra.mxu0 %v3763
    %5661 = vmatpush.bf16.msra.mxu0 %v3759
    %5662 = vmatpush.bf16.msra.mxu0 %v3755
    %5663 = vmatpush.bf16.msra.mxu0 %v3751
    %5664 = vmatpush.bf16.msra.mxu0 %v3747
    %5665 = vmatpush.bf16.msra.mxu0 %v3743
    %5666 = vmatmul.bf16.gmra.mxu0 %v842
    %v5667 = vpop.f32.mrf.mxu0
    %v5668 = vadd.f32 %v5655, %v5667
    %v5669 = vpop.f32.mrf.mxu0
    %5670 = vdwg.mxu0
    %5671 = vmatpush.bf16.msra.mxu0 %v3803
    %5672 = vmatpush.bf16.msra.mxu0 %v3799
    %5673 = vmatpush.bf16.msra.mxu0 %v3795
    %5674 = vmatpush.bf16.msra.mxu0 %v3791
    %5675 = vmatpush.bf16.msra.mxu0 %v3787
    %5676 = vmatpush.bf16.msra.mxu0 %v3783
    %5677 = vmatpush.bf16.msra.mxu0 %v3779
    %5678 = vmatpush.bf16.msra.mxu0 %v3775
    %5679 = vmatmul.bf16.gmra.mxu0 %v843
    %v5680 = vpop.f32.mrf.mxu0
    %v5681 = vadd.f32 %v5668, %v5680
    %v5682 = vpop.f32.mrf.mxu0
    %5683 = vdwg.mxu0
    %5684 = vmatpush.bf16.msra.mxu0 %v3835
    %5685 = vmatpush.bf16.msra.mxu0 %v3831
    %5686 = vmatpush.bf16.msra.mxu0 %v3827
    %5687 = vmatpush.bf16.msra.mxu0 %v3823
    %5688 = vmatpush.bf16.msra.mxu0 %v3819
    %5689 = vmatpush.bf16.msra.mxu0 %v3815
    %5690 = vmatpush.bf16.msra.mxu0 %v3811
    %5691 = vmatpush.bf16.msra.mxu0 %v3807
    %5692 = vmatmul.bf16.gmra.mxu0 %v844
    %v5693 = vpop.f32.mrf.mxu0
    %v5694 = vadd.f32 %v5681, %v5693
    %v5695 = vpop.f32.mrf.mxu0
    %5696 = vdwg.mxu0
    %5697 = vmatpush.bf16.msra.mxu0 %v3867
    %5698 = vmatpush.bf16.msra.mxu0 %v3863
    %5699 = vmatpush.bf16.msra.mxu0 %v3859
    %5700 = vmatpush.bf16.msra.mxu0 %v3855
    %5701 = vmatpush.bf16.msra.mxu0 %v3851
    %5702 = vmatpush.bf16.msra.mxu0 %v3847
    %5703 = vmatpush.bf16.msra.mxu0 %v3843
    %5704 = vmatpush.bf16.msra.mxu0 %v3839
    %5705 = vmatmul.bf16.gmra.mxu0 %v845
    %v5706 = vpop.f32.mrf.mxu0
    %v5707 = vadd.f32 %v5694, %v5706
    %v5708 = vpop.f32.mrf.mxu0
    %5709 = vdwg.mxu0
    %5710 = vmatpush.bf16.msra.mxu0 %v3899
    %5711 = vmatpush.bf16.msra.mxu0 %v3895
    %5712 = vmatpush.bf16.msra.mxu0 %v3891
    %5713 = vmatpush.bf16.msra.mxu0 %v3887
    %5714 = vmatpush.bf16.msra.mxu0 %v3883
    %5715 = vmatpush.bf16.msra.mxu0 %v3879
    %5716 = vmatpush.bf16.msra.mxu0 %v3875
    %5717 = vmatpush.bf16.msra.mxu0 %v3871
    %5718 = vmatmul.bf16.gmra.mxu0 %v846
    %v5719 = vpop.f32.mrf.mxu0
    %v5720 = vadd.f32 %v5707, %v5719
    %v5721 = vpop.f32.mrf.mxu0
    %5722 = vdwg.mxu0
    %5723 = vmatpush.bf16.msra.mxu0 %v3931
    %5724 = vmatpush.bf16.msra.mxu0 %v3927
    %5725 = vmatpush.bf16.msra.mxu0 %v3923
    %5726 = vmatpush.bf16.msra.mxu0 %v3919
    %5727 = vmatpush.bf16.msra.mxu0 %v3915
    %5728 = vmatpush.bf16.msra.mxu0 %v3911
    %5729 = vmatpush.bf16.msra.mxu0 %v3907
    %5730 = vmatpush.bf16.msra.mxu0 %v3903
    %5731 = vmatmul.bf16.gmra.mxu0 %v847
    %v5732 = vpop.f32.mrf.mxu0
    %v5733 = vadd.f32 %v5720, %v5732
    %v5734 = vpop.f32.mrf.mxu0
    %5735 = vdwg.mxu0
    %5736 = vmatpush.bf16.msra.mxu0 %v3963
    %5737 = vmatpush.bf16.msra.mxu0 %v3959
    %5738 = vmatpush.bf16.msra.mxu0 %v3955
    %5739 = vmatpush.bf16.msra.mxu0 %v3951
    %5740 = vmatpush.bf16.msra.mxu0 %v3947
    %5741 = vmatpush.bf16.msra.mxu0 %v3943
    %5742 = vmatpush.bf16.msra.mxu0 %v3939
    %5743 = vmatpush.bf16.msra.mxu0 %v3935
    %5744 = vmatmul.bf16.gmra.mxu0 %v848
    %v5745 = vpop.f32.mrf.mxu0
    %v5746 = vadd.f32 %v5733, %v5745
    %v5747 = vpop.f32.mrf.mxu0
    %5748 = vdwg.mxu0
    %5749 = vmatpush.bf16.msra.mxu0 %v3995
    %5750 = vmatpush.bf16.msra.mxu0 %v3991
    %5751 = vmatpush.bf16.msra.mxu0 %v3987
    %5752 = vmatpush.bf16.msra.mxu0 %v3983
    %5753 = vmatpush.bf16.msra.mxu0 %v3979
    %5754 = vmatpush.bf16.msra.mxu0 %v3975
    %5755 = vmatpush.bf16.msra.mxu0 %v3971
    %5756 = vmatpush.bf16.msra.mxu0 %v3967
    %5757 = vmatmul.bf16.gmra.mxu0 %v849
    %v5758 = vpop.f32.mrf.mxu0
    %v5759 = vadd.f32 %v5746, %v5758
    %v5760 = vpop.f32.mrf.mxu0
    %5761 = vdwg.mxu0
    %5762 = vmatpush.bf16.msra.mxu0 0
    %5763 = vmatpush.bf16.msra.mxu0 0
    %5764 = vmatpush.bf16.msra.mxu0 0
    %5765 = vmatpush.bf16.msra.mxu0 0
    %5766 = vmatpush.bf16.msra.mxu0 %v4011
    %5767 = vmatpush.bf16.msra.mxu0 %v4007
    %5768 = vmatpush.bf16.msra.mxu0 %v4003
    %5769 = vmatpush.bf16.msra.mxu0 %v3999
    %5770 = vmatmul.bf16.gmra.mxu0 %v4798
    %v5771 = vpop.f32.mrf.mxu0
    %v5772 = vadd.f32 %v5759, %v5771
    %v5773 = vpop.f32.mrf.mxu0
    %5774 = vdwg.mxu0
    %5775 = vmatpush.bf16.msra.mxu0 %v3260
    %5776 = vmatpush.bf16.msra.mxu0 %v3256
    %5777 = vmatpush.bf16.msra.mxu0 %v3252
    %5778 = vmatpush.bf16.msra.mxu0 %v3248
    %5779 = vmatpush.bf16.msra.mxu0 %v3244
    %5780 = vmatpush.bf16.msra.mxu0 %v3240
    %5781 = vmatpush.bf16.msra.mxu0 %v3236
    %5782 = vmatpush.bf16.msra.mxu0 %v3232
    %5783 = vmatmul.bf16.gmra.mxu0 %v822
    %v5784 = vpop.f32.mrf.mxu0
    %v5785 = vadd.f32 %v815, %v5784
    %v5786 = vpop.f32.mrf.mxu0
    %5787 = vdwg.mxu0
    %5788 = vmatpush.bf16.msra.mxu0 %v3292
    %5789 = vmatpush.bf16.msra.mxu0 %v3288
    %5790 = vmatpush.bf16.msra.mxu0 %v3284
    %5791 = vmatpush.bf16.msra.mxu0 %v3280
    %5792 = vmatpush.bf16.msra.mxu0 %v3276
    %5793 = vmatpush.bf16.msra.mxu0 %v3272
    %5794 = vmatpush.bf16.msra.mxu0 %v3268
    %5795 = vmatpush.bf16.msra.mxu0 %v3264
    %5796 = vmatmul.bf16.gmra.mxu0 %v823
    %v5797 = vpop.f32.mrf.mxu0
    %v5798 = vadd.f32 %v5785, %v5797
    %v5799 = vpop.f32.mrf.mxu0
    %5800 = vdwg.mxu0
    %5801 = vmatpush.bf16.msra.mxu0 %v3324
    %5802 = vmatpush.bf16.msra.mxu0 %v3320
    %5803 = vmatpush.bf16.msra.mxu0 %v3316
    %5804 = vmatpush.bf16.msra.mxu0 %v3312
    %5805 = vmatpush.bf16.msra.mxu0 %v3308
    %5806 = vmatpush.bf16.msra.mxu0 %v3304
    %5807 = vmatpush.bf16.msra.mxu0 %v3300
    %5808 = vmatpush.bf16.msra.mxu0 %v3296
    %5809 = vmatmul.bf16.gmra.mxu0 %v824
    %v5810 = vpop.f32.mrf.mxu0
    %v5811 = vadd.f32 %v5798, %v5810
    %v5812 = vpop.f32.mrf.mxu0
    %5813 = vdwg.mxu0
    %5814 = vmatpush.bf16.msra.mxu0 %v3356
    %5815 = vmatpush.bf16.msra.mxu0 %v3352
    %5816 = vmatpush.bf16.msra.mxu0 %v3348
    %5817 = vmatpush.bf16.msra.mxu0 %v3344
    %5818 = vmatpush.bf16.msra.mxu0 %v3340
    %5819 = vmatpush.bf16.msra.mxu0 %v3336
    %5820 = vmatpush.bf16.msra.mxu0 %v3332
    %5821 = vmatpush.bf16.msra.mxu0 %v3328
    %5822 = vmatmul.bf16.gmra.mxu0 %v825
    %v5823 = vpop.f32.mrf.mxu0
    %v5824 = vadd.f32 %v5811, %v5823
    %v5825 = vpop.f32.mrf.mxu0
    %5826 = vdwg.mxu0
    %5827 = vmatpush.bf16.msra.mxu0 %v3388
    %5828 = vmatpush.bf16.msra.mxu0 %v3384
    %5829 = vmatpush.bf16.msra.mxu0 %v3380
    %5830 = vmatpush.bf16.msra.mxu0 %v3376
    %5831 = vmatpush.bf16.msra.mxu0 %v3372
    %5832 = vmatpush.bf16.msra.mxu0 %v3368
    %5833 = vmatpush.bf16.msra.mxu0 %v3364
    %5834 = vmatpush.bf16.msra.mxu0 %v3360
    %5835 = vmatmul.bf16.gmra.mxu0 %v826
    %v5836 = vpop.f32.mrf.mxu0
    %v5837 = vadd.f32 %v5824, %v5836
    %v5838 = vpop.f32.mrf.mxu0
    %5839 = vdwg.mxu0
    %5840 = vmatpush.bf16.msra.mxu0 %v3420
    %5841 = vmatpush.bf16.msra.mxu0 %v3416
    %5842 = vmatpush.bf16.msra.mxu0 %v3412
    %5843 = vmatpush.bf16.msra.mxu0 %v3408
    %5844 = vmatpush.bf16.msra.mxu0 %v3404
    %5845 = vmatpush.bf16.msra.mxu0 %v3400
    %5846 = vmatpush.bf16.msra.mxu0 %v3396
    %5847 = vmatpush.bf16.msra.mxu0 %v3392
    %5848 = vmatmul.bf16.gmra.mxu0 %v827
    %v5849 = vpop.f32.mrf.mxu0
    %v5850 = vadd.f32 %v5837, %v5849
    %v5851 = vpop.f32.mrf.mxu0
    %5852 = vdwg.mxu0
    %5853 = vmatpush.bf16.msra.mxu0 %v3452
    %5854 = vmatpush.bf16.msra.mxu0 %v3448
    %5855 = vmatpush.bf16.msra.mxu0 %v3444
    %5856 = vmatpush.bf16.msra.mxu0 %v3440
    %5857 = vmatpush.bf16.msra.mxu0 %v3436
    %5858 = vmatpush.bf16.msra.mxu0 %v3432
    %5859 = vmatpush.bf16.msra.mxu0 %v3428
    %5860 = vmatpush.bf16.msra.mxu0 %v3424
    %5861 = vmatmul.bf16.gmra.mxu0 %v828
    %v5862 = vpop.f32.mrf.mxu0
    %v5863 = vadd.f32 %v5850, %v5862
    %v5864 = vpop.f32.mrf.mxu0
    %5865 = vdwg.mxu0
    %5866 = vmatpush.bf16.msra.mxu0 %v3484
    %5867 = vmatpush.bf16.msra.mxu0 %v3480
    %5868 = vmatpush.bf16.msra.mxu0 %v3476
    %5869 = vmatpush.bf16.msra.mxu0 %v3472
    %5870 = vmatpush.bf16.msra.mxu0 %v3468
    %5871 = vmatpush.bf16.msra.mxu0 %v3464
    %5872 = vmatpush.bf16.msra.mxu0 %v3460
    %5873 = vmatpush.bf16.msra.mxu0 %v3456
    %5874 = vmatmul.bf16.gmra.mxu0 %v829
    %v5875 = vpop.f32.mrf.mxu0
    %v5876 = vadd.f32 %v5863, %v5875
    %v5877 = vpop.f32.mrf.mxu0
    %5878 = vdwg.mxu0
    %5879 = vmatpush.bf16.msra.mxu0 %v3516
    %5880 = vmatpush.bf16.msra.mxu0 %v3512
    %5881 = vmatpush.bf16.msra.mxu0 %v3508
    %5882 = vmatpush.bf16.msra.mxu0 %v3504
    %5883 = vmatpush.bf16.msra.mxu0 %v3500
    %5884 = vmatpush.bf16.msra.mxu0 %v3496
    %5885 = vmatpush.bf16.msra.mxu0 %v3492
    %5886 = vmatpush.bf16.msra.mxu0 %v3488
    %5887 = vmatmul.bf16.gmra.mxu0 %v832
    %v5888 = vpop.f32.mrf.mxu0
    %v5889 = vadd.f32 %v5876, %v5888
    %v5890 = vpop.f32.mrf.mxu0
    %5891 = vdwg.mxu0
    %5892 = vmatpush.bf16.msra.mxu0 %v3548
    %5893 = vmatpush.bf16.msra.mxu0 %v3544
    %5894 = vmatpush.bf16.msra.mxu0 %v3540
    %5895 = vmatpush.bf16.msra.mxu0 %v3536
    %5896 = vmatpush.bf16.msra.mxu0 %v3532
    %5897 = vmatpush.bf16.msra.mxu0 %v3528
    %5898 = vmatpush.bf16.msra.mxu0 %v3524
    %5899 = vmatpush.bf16.msra.mxu0 %v3520
    %5900 = vmatmul.bf16.gmra.mxu0 %v833
    %v5901 = vpop.f32.mrf.mxu0
    %v5902 = vadd.f32 %v5889, %v5901
    %v5903 = vpop.f32.mrf.mxu0
    %5904 = vdwg.mxu0
    %5905 = vmatpush.bf16.msra.mxu0 %v3580
    %5906 = vmatpush.bf16.msra.mxu0 %v3576
    %5907 = vmatpush.bf16.msra.mxu0 %v3572
    %5908 = vmatpush.bf16.msra.mxu0 %v3568
    %5909 = vmatpush.bf16.msra.mxu0 %v3564
    %5910 = vmatpush.bf16.msra.mxu0 %v3560
    %5911 = vmatpush.bf16.msra.mxu0 %v3556
    %5912 = vmatpush.bf16.msra.mxu0 %v3552
    %5913 = vmatmul.bf16.gmra.mxu0 %v834
    %v5914 = vpop.f32.mrf.mxu0
    %v5915 = vadd.f32 %v5902, %v5914
    %v5916 = vpop.f32.mrf.mxu0
    %5917 = vdwg.mxu0
    %5918 = vmatpush.bf16.msra.mxu0 %v3612
    %5919 = vmatpush.bf16.msra.mxu0 %v3608
    %5920 = vmatpush.bf16.msra.mxu0 %v3604
    %5921 = vmatpush.bf16.msra.mxu0 %v3600
    %5922 = vmatpush.bf16.msra.mxu0 %v3596
    %5923 = vmatpush.bf16.msra.mxu0 %v3592
    %5924 = vmatpush.bf16.msra.mxu0 %v3588
    %5925 = vmatpush.bf16.msra.mxu0 %v3584
    %5926 = vmatmul.bf16.gmra.mxu0 %v835
    %v5927 = vpop.f32.mrf.mxu0
    %v5928 = vadd.f32 %v5915, %v5927
    %v5929 = vpop.f32.mrf.mxu0
    %5930 = vdwg.mxu0
    %5931 = vmatpush.bf16.msra.mxu0 %v3644
    %5932 = vmatpush.bf16.msra.mxu0 %v3640
    %5933 = vmatpush.bf16.msra.mxu0 %v3636
    %5934 = vmatpush.bf16.msra.mxu0 %v3632
    %5935 = vmatpush.bf16.msra.mxu0 %v3628
    %5936 = vmatpush.bf16.msra.mxu0 %v3624
    %5937 = vmatpush.bf16.msra.mxu0 %v3620
    %5938 = vmatpush.bf16.msra.mxu0 %v3616
    %5939 = vmatmul.bf16.gmra.mxu0 %v836
    %v5940 = vpop.f32.mrf.mxu0
    %v5941 = vadd.f32 %v5928, %v5940
    %v5942 = vpop.f32.mrf.mxu0
    %5943 = vdwg.mxu0
    %5944 = vmatpush.bf16.msra.mxu0 %v3676
    %5945 = vmatpush.bf16.msra.mxu0 %v3672
    %5946 = vmatpush.bf16.msra.mxu0 %v3668
    %5947 = vmatpush.bf16.msra.mxu0 %v3664
    %5948 = vmatpush.bf16.msra.mxu0 %v3660
    %5949 = vmatpush.bf16.msra.mxu0 %v3656
    %5950 = vmatpush.bf16.msra.mxu0 %v3652
    %5951 = vmatpush.bf16.msra.mxu0 %v3648
    %5952 = vmatmul.bf16.gmra.mxu0 %v837
    %v5953 = vpop.f32.mrf.mxu0
    %v5954 = vadd.f32 %v5941, %v5953
    %v5955 = vpop.f32.mrf.mxu0
    %5956 = vdwg.mxu0
    %5957 = vmatpush.bf16.msra.mxu0 %v3708
    %5958 = vmatpush.bf16.msra.mxu0 %v3704
    %5959 = vmatpush.bf16.msra.mxu0 %v3700
    %5960 = vmatpush.bf16.msra.mxu0 %v3696
    %5961 = vmatpush.bf16.msra.mxu0 %v3692
    %5962 = vmatpush.bf16.msra.mxu0 %v3688
    %5963 = vmatpush.bf16.msra.mxu0 %v3684
    %5964 = vmatpush.bf16.msra.mxu0 %v3680
    %5965 = vmatmul.bf16.gmra.mxu0 %v838
    %v5966 = vpop.f32.mrf.mxu0
    %v5967 = vadd.f32 %v5954, %v5966
    %v5968 = vpop.f32.mrf.mxu0
    %5969 = vdwg.mxu0
    %5970 = vmatpush.bf16.msra.mxu0 %v3740
    %5971 = vmatpush.bf16.msra.mxu0 %v3736
    %5972 = vmatpush.bf16.msra.mxu0 %v3732
    %5973 = vmatpush.bf16.msra.mxu0 %v3728
    %5974 = vmatpush.bf16.msra.mxu0 %v3724
    %5975 = vmatpush.bf16.msra.mxu0 %v3720
    %5976 = vmatpush.bf16.msra.mxu0 %v3716
    %5977 = vmatpush.bf16.msra.mxu0 %v3712
    %5978 = vmatmul.bf16.gmra.mxu0 %v839
    %v5979 = vpop.f32.mrf.mxu0
    %v5980 = vadd.f32 %v5967, %v5979
    %v5981 = vpop.f32.mrf.mxu0
    %5982 = vdwg.mxu0
    %5983 = vmatpush.bf16.msra.mxu0 %v3772
    %5984 = vmatpush.bf16.msra.mxu0 %v3768
    %5985 = vmatpush.bf16.msra.mxu0 %v3764
    %5986 = vmatpush.bf16.msra.mxu0 %v3760
    %5987 = vmatpush.bf16.msra.mxu0 %v3756
    %5988 = vmatpush.bf16.msra.mxu0 %v3752
    %5989 = vmatpush.bf16.msra.mxu0 %v3748
    %5990 = vmatpush.bf16.msra.mxu0 %v3744
    %5991 = vmatmul.bf16.gmra.mxu0 %v842
    %v5992 = vpop.f32.mrf.mxu0
    %v5993 = vadd.f32 %v5980, %v5992
    %v5994 = vpop.f32.mrf.mxu0
    %5995 = vdwg.mxu0
    %5996 = vmatpush.bf16.msra.mxu0 %v3804
    %5997 = vmatpush.bf16.msra.mxu0 %v3800
    %5998 = vmatpush.bf16.msra.mxu0 %v3796
    %5999 = vmatpush.bf16.msra.mxu0 %v3792
    %6000 = vmatpush.bf16.msra.mxu0 %v3788
    %6001 = vmatpush.bf16.msra.mxu0 %v3784
    %6002 = vmatpush.bf16.msra.mxu0 %v3780
    %6003 = vmatpush.bf16.msra.mxu0 %v3776
    %6004 = vmatmul.bf16.gmra.mxu0 %v843
    %v6005 = vpop.f32.mrf.mxu0
    %v6006 = vadd.f32 %v5993, %v6005
    %v6007 = vpop.f32.mrf.mxu0
    %6008 = vdwg.mxu0
    %6009 = vmatpush.bf16.msra.mxu0 %v3836
    %6010 = vmatpush.bf16.msra.mxu0 %v3832
    %6011 = vmatpush.bf16.msra.mxu0 %v3828
    %6012 = vmatpush.bf16.msra.mxu0 %v3824
    %6013 = vmatpush.bf16.msra.mxu0 %v3820
    %6014 = vmatpush.bf16.msra.mxu0 %v3816
    %6015 = vmatpush.bf16.msra.mxu0 %v3812
    %6016 = vmatpush.bf16.msra.mxu0 %v3808
    %6017 = vmatmul.bf16.gmra.mxu0 %v844
    %v6018 = vpop.f32.mrf.mxu0
    %v6019 = vadd.f32 %v6006, %v6018
    %v6020 = vpop.f32.mrf.mxu0
    %6021 = vdwg.mxu0
    %6022 = vmatpush.bf16.msra.mxu0 %v3868
    %6023 = vmatpush.bf16.msra.mxu0 %v3864
    %6024 = vmatpush.bf16.msra.mxu0 %v3860
    %6025 = vmatpush.bf16.msra.mxu0 %v3856
    %6026 = vmatpush.bf16.msra.mxu0 %v3852
    %6027 = vmatpush.bf16.msra.mxu0 %v3848
    %6028 = vmatpush.bf16.msra.mxu0 %v3844
    %6029 = vmatpush.bf16.msra.mxu0 %v3840
    %6030 = vmatmul.bf16.gmra.mxu0 %v845
    %v6031 = vpop.f32.mrf.mxu0
    %v6032 = vadd.f32 %v6019, %v6031
    %v6033 = vpop.f32.mrf.mxu0
    %6034 = vdwg.mxu0
    %6035 = vmatpush.bf16.msra.mxu0 %v3900
    %6036 = vmatpush.bf16.msra.mxu0 %v3896
    %6037 = vmatpush.bf16.msra.mxu0 %v3892
    %6038 = vmatpush.bf16.msra.mxu0 %v3888
    %6039 = vmatpush.bf16.msra.mxu0 %v3884
    %6040 = vmatpush.bf16.msra.mxu0 %v3880
    %6041 = vmatpush.bf16.msra.mxu0 %v3876
    %6042 = vmatpush.bf16.msra.mxu0 %v3872
    %6043 = vmatmul.bf16.gmra.mxu0 %v846
    %v6044 = vpop.f32.mrf.mxu0
    %v6045 = vadd.f32 %v6032, %v6044
    %v6046 = vpop.f32.mrf.mxu0
    %6047 = vdwg.mxu0
    %6048 = vmatpush.bf16.msra.mxu0 %v3932
    %6049 = vmatpush.bf16.msra.mxu0 %v3928
    %6050 = vmatpush.bf16.msra.mxu0 %v3924
    %6051 = vmatpush.bf16.msra.mxu0 %v3920
    %6052 = vmatpush.bf16.msra.mxu0 %v3916
    %6053 = vmatpush.bf16.msra.mxu0 %v3912
    %6054 = vmatpush.bf16.msra.mxu0 %v3908
    %6055 = vmatpush.bf16.msra.mxu0 %v3904
    %6056 = vmatmul.bf16.gmra.mxu0 %v847
    %v6057 = vpop.f32.mrf.mxu0
    %v6058 = vadd.f32 %v6045, %v6057
    %v6059 = vpop.f32.mrf.mxu0
    %6060 = vdwg.mxu0
    %6061 = vmatpush.bf16.msra.mxu0 %v3964
    %6062 = vmatpush.bf16.msra.mxu0 %v3960
    %6063 = vmatpush.bf16.msra.mxu0 %v3956
    %6064 = vmatpush.bf16.msra.mxu0 %v3952
    %6065 = vmatpush.bf16.msra.mxu0 %v3948
    %6066 = vmatpush.bf16.msra.mxu0 %v3944
    %6067 = vmatpush.bf16.msra.mxu0 %v3940
    %6068 = vmatpush.bf16.msra.mxu0 %v3936
    %6069 = vmatmul.bf16.gmra.mxu0 %v848
    %v6070 = vpop.f32.mrf.mxu0
    %v6071 = vadd.f32 %v6058, %v6070
    %v6072 = vpop.f32.mrf.mxu0
    %6073 = vdwg.mxu0
    %6074 = vmatpush.bf16.msra.mxu0 %v3996
    %6075 = vmatpush.bf16.msra.mxu0 %v3992
    %6076 = vmatpush.bf16.msra.mxu0 %v3988
    %6077 = vmatpush.bf16.msra.mxu0 %v3984
    %6078 = vmatpush.bf16.msra.mxu0 %v3980
    %6079 = vmatpush.bf16.msra.mxu0 %v3976
    %6080 = vmatpush.bf16.msra.mxu0 %v3972
    %6081 = vmatpush.bf16.msra.mxu0 %v3968
    %6082 = vmatmul.bf16.gmra.mxu0 %v849
    %v6083 = vpop.f32.mrf.mxu0
    %v6084 = vadd.f32 %v6071, %v6083
    %v6085 = vpop.f32.mrf.mxu0
    %6086 = vdwg.mxu0
    %6087 = vmatpush.bf16.msra.mxu0 0
    %6088 = vmatpush.bf16.msra.mxu0 0
    %6089 = vmatpush.bf16.msra.mxu0 0
    %6090 = vmatpush.bf16.msra.mxu0 0
    %6091 = vmatpush.bf16.msra.mxu0 %v4012
    %6092 = vmatpush.bf16.msra.mxu0 %v4008
    %6093 = vmatpush.bf16.msra.mxu0 %v4004
    %6094 = vmatpush.bf16.msra.mxu0 %v4000
    %6095 = vmatmul.bf16.gmra.mxu0 %v4798
    %v6096 = vpop.f32.mrf.mxu0
    %v6097 = vadd.f32 %v6084, %v6096
    %v6098 = vpop.f32.mrf.mxu0
    %6099 = vdwg.mxu0
    %v6100 = vmax.f32 %v5122, 0.0
    %v6101 = vmax.f32 %v5447, 0.0
    %v6102 = vmax.f32 %v5772, 0.0
    %v6103 = vmax.f32 %v6097, 0.0
    %v6104 = vpack.c.bf16 %v6100, %v6100
    %v6105 = vpack.c.bf16 %v6101, %v6101
    %v6106 = vpack.c.bf16 %v6102, %v6102
    %v6107 = vpack.c.bf16 %v6103, %v6103
    %v6108 = vld [vmem:[%s3] sm:$0xf]
    %v6109 = vld [vmem:[%s3 + $0x4] sm:$0xf]
    %v6110 = vld [vmem:[%s3 + $0x8] sm:$0xf]
    %v6111 = vld [vmem:[%s3 + $0xc] sm:$0xf]
    %v6112 = vld [vmem:[%s3 + $0x10] sm:$0xf]
    %v6113 = vld [vmem:[%s3 + $0x14] sm:$0xf]
    %v6114 = vld [vmem:[%s3 + $0x18] sm:$0xf]
    %v6115 = vld [vmem:[%s3 + $0x1c] sm:$0xf]
    %v6116 = vld [vmem:[%s3 + $0x20] sm:$0xf]
    %v6117 = vld [vmem:[%s3 + $0x24] sm:$0xf]
    %v6118 = vld [vmem:[%s3 + $0x28] sm:$0xf]
    %v6119 = vld [vmem:[%s3 + $0x2c] sm:$0xf]
    %v6120 = vld [vmem:[%s3 + $0x30] sm:$0xf]
    %v6121 = vld [vmem:[%s3 + $0x34] sm:$0xf]
    %v6122 = vld [vmem:[%s3 + $0x38] sm:$0xf]
    %v6123 = vld [vmem:[%s3 + $0x3c] sm:$0xf]
    %v6124 = vld [vmem:[%s3 + $0x40] sm:$0xf]
    %v6125 = vld [vmem:[%s3 + $0x44] sm:$0xf]
    %v6126 = vld [vmem:[%s3 + $0x48] sm:$0xf]
    %v6127 = vld [vmem:[%s3 + $0x4c] sm:$0xf]
    %v6128 = vld [vmem:[%s3 + $0x50] sm:$0xf]
    %v6129 = vld [vmem:[%s3 + $0x54] sm:$0xf]
    %v6130 = vld [vmem:[%s3 + $0x58] sm:$0xf]
    %v6131 = vld [vmem:[%s3 + $0x5c] sm:$0xf]
    %v6132 = vld [vmem:[%s3 + $0x60] sm:$0xf]
    %v6133 = vld [vmem:[%s3 + $0x64] sm:$0xf]
    %v6134 = vld [vmem:[%s3 + $0x68] sm:$0xf]
    %v6135 = vld [vmem:[%s3 + $0x6c] sm:$0xf]
    %v6136 = vld [vmem:[%s3 + $0x70] sm:$0xf]
    %v6137 = vld [vmem:[%s3 + $0x74] sm:$0xf]
    %v6138 = vld [vmem:[%s3 + $0x78] sm:$0xf]
    %v6139 = vld [vmem:[%s3 + $0x7c] sm:$0xf]
    %v6140 = vld [vmem:[%s3 + $0x80] sm:$0xf]
    %v6141 = vld [vmem:[%s3 + $0x84] sm:$0xf]
    %v6142 = vld [vmem:[%s3 + $0x88] sm:$0xf]
    %v6143 = vld [vmem:[%s3 + $0x8c] sm:$0xf]
    %v6144 = vld [vmem:[%s3 + $0x90] sm:$0xf]
    %v6145 = vld [vmem:[%s3 + $0x94] sm:$0xf]
    %v6146 = vld [vmem:[%s3 + $0x98] sm:$0xf]
    %v6147 = vld [vmem:[%s3 + $0x9c] sm:$0xf]
    %v6148 = vld [vmem:[%s3 + $0xa0] sm:$0xf]
    %v6149 = vld [vmem:[%s3 + $0xa4] sm:$0xf]
    %v6150 = vld [vmem:[%s3 + $0xa8] sm:$0xf]
    %v6151 = vld [vmem:[%s3 + $0xac] sm:$0xf]
    %v6152 = vld [vmem:[%s3 + $0xb0] sm:$0xf]
    %v6153 = vld [vmem:[%s3 + $0xb4] sm:$0xf]
    %v6154 = vld [vmem:[%s3 + $0xb8] sm:$0xf]
    %v6155 = vld [vmem:[%s3 + $0xbc] sm:$0xf]
    %v6156 = vld [vmem:[%s3 + $0xc0] sm:$0xf]
    %v6157 = vld [vmem:[%s3 + $0xc4] sm:$0xf]
    %v6158 = vld [vmem:[%s3 + $0xc8] sm:$0xf]
    %v6159 = vld [vmem:[%s3 + $0xcc] sm:$0xf]
    %v6160 = vld [vmem:[%s3 + $0xd0] sm:$0xf]
    %v6161 = vld [vmem:[%s3 + $0xd4] sm:$0xf]
    %v6162 = vld [vmem:[%s3 + $0xd8] sm:$0xf]
    %v6163 = vld [vmem:[%s3 + $0xdc] sm:$0xf]
    %v6164 = vld [vmem:[%s3 + $0xe0] sm:$0xf]
    %v6165 = vld [vmem:[%s3 + $0xe4] sm:$0xf]
    %v6166 = vld [vmem:[%s3 + $0xe8] sm:$0xf]
    %v6167 = vld [vmem:[%s3 + $0xec] sm:$0xf]
    %v6168 = vld [vmem:[%s3 + $0xf0] sm:$0xf]
    %v6169 = vld [vmem:[%s3 + $0xf4] sm:$0xf]
    %v6170 = vld [vmem:[%s3 + $0xf8] sm:$0xf]
    %v6171 = vld [vmem:[%s3 + $0xfc] sm:$0xf]
    %v6172 = vld [vmem:[%s4] sm:$0x1]
    %v6174 = vperm.slane %v6172, 0
    %v6240 = vunpack.c.l.b16 %v6108
    %v6241 = vunpack.c.l.b16 %v6109
    %v6242 = vunpack.c.l.b16 %v6110
    %v6243 = vunpack.c.l.b16 %v6111
    %v6244 = vunpack.c.l.b16 %v6112
    %v6245 = vunpack.c.l.b16 %v6113
    %v6246 = vunpack.c.l.b16 %v6114
    %v6247 = vunpack.c.l.b16 %v6115
    %v6248 = vunpack.c.l.b16 %v6116
    %v6249 = vunpack.c.l.b16 %v6117
    %v6250 = vunpack.c.l.b16 %v6118
    %v6251 = vunpack.c.l.b16 %v6119
    %v6252 = vunpack.c.l.b16 %v6120
    %v6253 = vunpack.c.l.b16 %v6121
    %v6254 = vunpack.c.l.b16 %v6122
    %v6255 = vunpack.c.l.b16 %v6123
    %v6256 = vunpack.c.l.b16 %v6124
    %v6257 = vunpack.c.l.b16 %v6125
    %v6258 = vunpack.c.l.b16 %v6126
    %v6259 = vunpack.c.l.b16 %v6127
    %v6260 = vunpack.c.l.b16 %v6128
    %v6261 = vunpack.c.l.b16 %v6129
    %v6262 = vunpack.c.l.b16 %v6130
    %v6263 = vunpack.c.l.b16 %v6131
    %v6264 = vunpack.c.l.b16 %v6132
    %v6265 = vunpack.c.l.b16 %v6133
    %v6266 = vunpack.c.l.b16 %v6134
    %v6267 = vunpack.c.l.b16 %v6135
    %v6268 = vunpack.c.l.b16 %v6136
    %v6269 = vunpack.c.l.b16 %v6137
    %v6270 = vunpack.c.l.b16 %v6138
    %v6271 = vunpack.c.l.b16 %v6139
    %v6272 = vunpack.c.l.b16 %v6140
    %v6273 = vunpack.c.l.b16 %v6141
    %v6274 = vunpack.c.l.b16 %v6142
    %v6275 = vunpack.c.l.b16 %v6143
    %v6276 = vunpack.c.l.b16 %v6144
    %v6277 = vunpack.c.l.b16 %v6145
    %v6278 = vunpack.c.l.b16 %v6146
    %v6279 = vunpack.c.l.b16 %v6147
    %v6280 = vunpack.c.l.b16 %v6148
    %v6281 = vunpack.c.l.b16 %v6149
    %v6282 = vunpack.c.l.b16 %v6150
    %v6283 = vunpack.c.l.b16 %v6151
    %v6284 = vunpack.c.l.b16 %v6152
    %v6285 = vunpack.c.l.b16 %v6153
    %v6286 = vunpack.c.l.b16 %v6154
    %v6287 = vunpack.c.l.b16 %v6155
    %v6288 = vunpack.c.l.b16 %v6156
    %v6289 = vunpack.c.l.b16 %v6157
    %v6290 = vunpack.c.l.b16 %v6158
    %v6291 = vunpack.c.l.b16 %v6159
    %v6292 = vunpack.c.l.b16 %v6160
    %v6293 = vunpack.c.l.b16 %v6161
    %v6294 = vunpack.c.l.b16 %v6162
    %v6295 = vunpack.c.l.b16 %v6163
    %v6296 = vunpack.c.l.b16 %v6164
    %v6297 = vunpack.c.l.b16 %v6165
    %v6298 = vunpack.c.l.b16 %v6166
    %v6299 = vunpack.c.l.b16 %v6167
    %v6300 = vunpack.c.l.b16 %v6168
    %v6301 = vunpack.c.l.b16 %v6169
    %v6302 = vunpack.c.l.b16 %v6170
    %v6303 = vunpack.c.l.b16 %v6171
    %v6304 = vpack.c.b16 %v6241, %v6240
    %v6305 = vpack.c.b16 %v6243, %v6242
    %v6306 = vpack.c.b16 %v6245, %v6244
    %v6307 = vpack.c.b16 %v6247, %v6246
    %v6308 = vpack.c.b16 %v6249, %v6248
    %v6309 = vpack.c.b16 %v6251, %v6250
    %v6310 = vpack.c.b16 %v6253, %v6252
    %v6311 = vpack.c.b16 %v6255, %v6254
    %v6312 = vpack.c.b16 %v6257, %v6256
    %v6313 = vpack.c.b16 %v6259, %v6258
    %v6314 = vpack.c.b16 %v6261, %v6260
    %v6315 = vpack.c.b16 %v6263, %v6262
    %v6316 = vpack.c.b16 %v6265, %v6264
    %v6317 = vpack.c.b16 %v6267, %v6266
    %v6318 = vpack.c.b16 %v6269, %v6268
    %v6319 = vpack.c.b16 %v6271, %v6270
    %v6320 = vpack.c.b16 %v6273, %v6272
    %v6321 = vpack.c.b16 %v6275, %v6274
    %v6322 = vpack.c.b16 %v6277, %v6276
    %v6323 = vpack.c.b16 %v6279, %v6278
    %v6324 = vpack.c.b16 %v6281, %v6280
    %v6325 = vpack.c.b16 %v6283, %v6282
    %v6326 = vpack.c.b16 %v6285, %v6284
    %v6327 = vpack.c.b16 %v6287, %v6286
    %v6328 = vpack.c.b16 %v6289, %v6288
    %v6329 = vpack.c.b16 %v6291, %v6290
    %v6330 = vpack.c.b16 %v6293, %v6292
    %v6331 = vpack.c.b16 %v6295, %v6294
    %v6332 = vpack.c.b16 %v6297, %v6296
    %v6333 = vpack.c.b16 %v6299, %v6298
    %v6334 = vpack.c.b16 %v6301, %v6300
    %v6335 = vpack.c.b16 %v6303, %v6302
    %6368 = vmatpush.bf16.msra.mxu0 %v6311
    %6369 = vmatpush.bf16.msra.mxu0 %v6310
    %6370 = vmatpush.bf16.msra.mxu0 %v6309
    %6371 = vmatpush.bf16.msra.mxu0 %v6308
    %6372 = vmatpush.bf16.msra.mxu0 %v6307
    %6373 = vmatpush.bf16.msra.mxu0 %v6306
    %6374 = vmatpush.bf16.msra.mxu0 %v6305
    %6375 = vmatpush.bf16.msra.mxu0 %v6304
    %6376 = vmatmul.bf16.gmra.mxu0 %v6104
    %v6377 = vpop.f32.mrf.mxu0
    %v6378 = vadd.f32 %v6174, %v6377
    %v6379 = vpop.f32.mrf.mxu0
    %6380 = vdwg.mxu0
    %6381 = vmatpush.bf16.msra.mxu0 %v6319
    %6382 = vmatpush.bf16.msra.mxu0 %v6318
    %6383 = vmatpush.bf16.msra.mxu0 %v6317
    %6384 = vmatpush.bf16.msra.mxu0 %v6316
    %6385 = vmatpush.bf16.msra.mxu0 %v6315
    %6386 = vmatpush.bf16.msra.mxu0 %v6314
    %6387 = vmatpush.bf16.msra.mxu0 %v6313
    %6388 = vmatpush.bf16.msra.mxu0 %v6312
    %6389 = vmatmul.bf16.gmra.mxu0 %v6105
    %v6390 = vpop.f32.mrf.mxu0
    %v6391 = vadd.f32 %v6378, %v6390
    %v6392 = vpop.f32.mrf.mxu0
    %6393 = vdwg.mxu0
    %6394 = vmatpush.bf16.msra.mxu0 %v6327
    %6395 = vmatpush.bf16.msra.mxu0 %v6326
    %6396 = vmatpush.bf16.msra.mxu0 %v6325
    %6397 = vmatpush.bf16.msra.mxu0 %v6324
    %6398 = vmatpush.bf16.msra.mxu0 %v6323
    %6399 = vmatpush.bf16.msra.mxu0 %v6322
    %6400 = vmatpush.bf16.msra.mxu0 %v6321
    %6401 = vmatpush.bf16.msra.mxu0 %v6320
    %6402 = vmatmul.bf16.gmra.mxu0 %v6106
    %v6403 = vpop.f32.mrf.mxu0
    %v6404 = vadd.f32 %v6391, %v6403
    %v6405 = vpop.f32.mrf.mxu0
    %6406 = vdwg.mxu0
    %6407 = vmatpush.bf16.msra.mxu0 %v6335
    %6408 = vmatpush.bf16.msra.mxu0 %v6334
    %6409 = vmatpush.bf16.msra.mxu0 %v6333
    %6410 = vmatpush.bf16.msra.mxu0 %v6332
    %6411 = vmatpush.bf16.msra.mxu0 %v6331
    %6412 = vmatpush.bf16.msra.mxu0 %v6330
    %6413 = vmatpush.bf16.msra.mxu0 %v6329
    %6414 = vmatpush.bf16.msra.mxu0 %v6328
    %6415 = vmatmul.bf16.gmra.mxu0 %v6107
    %v6416 = vpop.f32.mrf.mxu0
    %v6417 = vadd.f32 %v6404, %v6416
    %v6418 = vpop.f32.mrf.mxu0
    %6419 = vdwg.mxu0
    %6420 = vst [vmem:[#allocation2] sm:$0x3] %v6417
    // Predicated region
    $region22: #{network_forward.3} parent=1 // pred_check
      _
    $region23: #{network_forward.3} parent=1 // pred_check_branch
      %6422 = sbr.rel (0) target = $region25
    $region24: #{network_forward.3} parent=1 // pred_region
      %6424 = vsyncadd [#allocation3], 0
      %s6426 = sshll.u32 [#allocation2], 4
      %s6427 = int_to_ptr.vmem [resolvable:$true] %s6426
      %s6428 = sshll.u32 %s5, 4
      %s6429 = int_to_ptr.hbm [resolvable:$true] %s6428
      %6431 = dma.vmem_to_hbm [thread:$0]  %s6427, 32, %s6429, [#allocation3]
    $region25: #{network_forward.3} parent=1 // pred_fallthru
      _
    // Predicated region
    $region26: #{network_forward.3} parent=1 // pred_check
      _
    $region27: #{network_forward.3} parent=1 // pred_check_branch
      %6433 = sbr.rel (0) target = $region29
    $region28: #{network_forward.3} parent=1 // pred_region
      %6435 = dma.done [#allocation3], 32
    $region29: #{network_forward.3} parent=1 // pred_fallthru
      _
    %6436 = vsyncpa [#allocation3], 1

// kernel: network_forward.2
$region0: #{network_forward.2}
  #allocation0 [shape = 'u32[]', space=smem, size = 0x4, offset = 0x4, fixed_abs, tag = 'smem constant byte address 0x4 - core index']
  #allocation1 [shape = 'u32[72,128]{1,0:T(1,128)}', space=vmem, size = 0x9000, scoped, tag = 'internal scratch']
  #allocation2 [shape = 'bf16[112,128]{1,0:T(8,128)(2,1)}', space=vmem, size = 0x7000, scoped, tag = 'scratch operand']
  #allocation3 [shape = 'bf16[104,128]{1,0:T(8,128)(2,1)}', space=vmem, size = 0x6800, scoped, tag = 'scratch operand']
  #allocation4 [shape = 'bf16[80,64]{1,0:T(8,128)(2,1)}', space=vmem, size = 0x5000, scoped, tag = 'scratch operand']
  %s0 = inlined_call_operand.vmem [shape: bf16[2,2,128,128], index: 0, kind: input, shape index: {}]
  %s1 = inlined_call_operand.vmem [shape: bf16[768,128], index: 1, kind: input, shape index: {}]
  %s2 = inlined_call_operand.vmem [shape: f32[1,128], index: 2, kind: input, shape index: {}]
  %s3 = inlined_call_operand.vmem [shape: bf16[512,128], index: 3, kind: input, shape index: {}]
  %s4 = inlined_call_operand.vmem [shape: f32[1,128], index: 4, kind: input, shape index: {}]
  %s5 = inlined_call_operand.vmem [shape: bf16[1152,64], index: 5, kind: input, shape index: {}]
  %s6 = inlined_call_operand.vmem [shape: f32[1,64], index: 6, kind: input, shape index: {}]
  %s7 = inlined_call_operand.vmem [shape: bf16[2,49,64], index: 7, kind: output, shape index: {}]
  %s8 = sld [smem:[#allocation0]]
  $region38: #{network_forward.2} parent=0
    _
  %s10 = ssub.s32 1, %s8
  %s11 = scalar_select 0, %s10, %s8
  // Predicated region
  $region2: #{network_forward.2} parent=0 // pred_check
    _
  $region3: #{network_forward.2} parent=0 // pred_check_branch
    %13 = sbr.rel (0) target = $region5
  $region4: #{network_forward.2} parent=0 // pred_region
    _
  $region5: #{network_forward.2} parent=0 // pred_fallthru
    _
  // Predicated region
  $region6: #{network_forward.2} parent=0 // pred_check
    _
  $region7: #{network_forward.2} parent=0 // pred_check_branch
    %15 = sbr.rel (0) target = $region9
  $region8: #{network_forward.2} parent=0 // pred_region
    _
  $region9: #{network_forward.2} parent=0 // pred_fallthru
    _
  // Predicated region
  $region10: #{network_forward.2} parent=0 // pred_check
    _
  $region11: #{network_forward.2} parent=0 // pred_check_branch
    %17 = sbr.rel (0) target = $region13
  $region12: #{network_forward.2} parent=0 // pred_region
    _
  $region13: #{network_forward.2} parent=0 // pred_fallthru
    _
  // Predicated region
  $region14: #{network_forward.2} parent=0 // pred_check
    _
  $region15: #{network_forward.2} parent=0 // pred_check_branch
    %19 = sbr.rel (0) target = $region17
  $region16: #{network_forward.2} parent=0 // pred_region
    _
  $region17: #{network_forward.2} parent=0 // pred_fallthru
    _
  // Predicated region
  $region18: #{network_forward.2} parent=0 // pred_check
    _
  $region19: #{network_forward.2} parent=0 // pred_check_branch
    %21 = sbr.rel (0) target = $region21
  $region20: #{network_forward.2} parent=0 // pred_region
    _
  $region21: #{network_forward.2} parent=0 // pred_fallthru
    _
  // Predicated region
  $region22: #{network_forward.2} parent=0 // pred_check
    _
  $region23: #{network_forward.2} parent=0 // pred_check_branch
    %23 = sbr.rel (0) target = $region25
  $region24: #{network_forward.2} parent=0 // pred_region
    _
  $region25: #{network_forward.2} parent=0 // pred_fallthru
    _
  // Predicated region
  $region26: #{network_forward.2} parent=0 // pred_check
    _
  $region27: #{network_forward.2} parent=0 // pred_check_branch
    %25 = sbr.rel (0) target = $region29
  $region28: #{network_forward.2} parent=0 // pred_region
    _
  $region29: #{network_forward.2} parent=0 // pred_fallthru
    _
  %v26 = vld [vmem:[%s2] sm:$0x1]
  %v27 = vld [vmem:[%s4] sm:$0x1]
  %v28 = vld [vmem:[%s6] sm:$0x1]
  %v29 = vld [vmem:[%s0] sm:$0xf]
  %v30 = vld [vmem:[%s0 + $0x4] sm:$0xf]
  %v31 = vld [vmem:[%s0 + $0x8] sm:$0xf]
  %v32 = vld [vmem:[%s0 + $0xc] sm:$0xf]
  %v33 = vld [vmem:[%s0 + $0x10] sm:$0xf]
  %v34 = vld [vmem:[%s0 + $0x14] sm:$0xf]
  %v35 = vld [vmem:[%s0 + $0x18] sm:$0xf]
  %v36 = vld [vmem:[%s0 + $0x1c] sm:$0xf]
  %v37 = vld [vmem:[%s0 + $0x20] sm:$0xf]
  %v38 = vld [vmem:[%s0 + $0x24] sm:$0xf]
  %v39 = vld [vmem:[%s0 + $0x28] sm:$0xf]
  %v40 = vld [vmem:[%s0 + $0x2c] sm:$0xf]
  %v41 = vld [vmem:[%s0 + $0x30] sm:$0xf]
  %v42 = vld [vmem:[%s0 + $0x34] sm:$0xf]
  %v43 = vld [vmem:[%s0 + $0x38] sm:$0x1]
  %s44 = scalar_lea.vmem %s0, 64
  %v45 = vld [vmem:[%s44] sm:$0xf]
  %v46 = vld [vmem:[%s44 + $0x4] sm:$0xf]
  %v47 = vld [vmem:[%s44 + $0x8] sm:$0xf]
  %v48 = vld [vmem:[%s44 + $0xc] sm:$0xf]
  %v49 = vld [vmem:[%s44 + $0x10] sm:$0xf]
  %v50 = vld [vmem:[%s44 + $0x14] sm:$0xf]
  %v51 = vld [vmem:[%s44 + $0x18] sm:$0xf]
  %v52 = vld [vmem:[%s44 + $0x1c] sm:$0xf]
  %v53 = vld [vmem:[%s44 + $0x20] sm:$0xf]
  %v54 = vld [vmem:[%s44 + $0x24] sm:$0xf]
  %v55 = vld [vmem:[%s44 + $0x28] sm:$0xf]
  %v56 = vld [vmem:[%s44 + $0x2c] sm:$0xf]
  %v57 = vld [vmem:[%s44 + $0x30] sm:$0xf]
  %v58 = vld [vmem:[%s44 + $0x34] sm:$0xf]
  %v59 = vld [vmem:[%s44 + $0x38] sm:$0x1]
  %v60 = vld [vmem:[%s0 + $0x4] sm:$0xe]
  %v61 = vld [vmem:[%s0 + $0x38] sm:$0xf]
  %v62 = vld [vmem:[%s0 + $0x3c] sm:$0x3]
  %v63 = vld [vmem:[%s0 + $0x4] sm:$0xc]
  %v78 = vunpack.c.l.b16 %v29
  %v79 = vunpack.c.l.b16 %v30
  %v80 = vunpack.c.l.b16 %v31
  %v81 = vunpack.c.l.b16 %v32
  %v82 = vunpack.c.l.b16 %v33
  %v83 = vunpack.c.l.b16 %v34
  %v84 = vunpack.c.l.b16 %v35
  %v85 = vunpack.c.l.b16 %v36
  %v86 = vunpack.c.l.b16 %v37
  %v87 = vunpack.c.l.b16 %v38
  %v88 = vunpack.c.l.b16 %v39
  %v89 = vunpack.c.l.b16 %v40
  %v90 = vunpack.c.l.b16 %v41
  %v91 = vunpack.c.l.b16 %v42
  %v92 = vpack.c.b16 %v79, %v78
  %v93 = vpack.c.b16 %v81, %v80
  %v94 = vpack.c.b16 %v83, %v82
  %v95 = vpack.c.b16 %v85, %v84
  %v96 = vpack.c.b16 %v87, %v86
  %v97 = vpack.c.b16 %v89, %v88
  %v98 = vpack.c.b16 %v91, %v90
  %v107 = vunpack.c.l.b16 %v43
  %v108 = vpack.c.b16 %v107, %v107
  %vm109 = vsmask.f32 7424
  %v111 = vshrl.u32 %v92, 16
  %v113 = vshll.u32 %v92, 16
  %v115 = vrot.slane %v113, 1
  %v116 = vor.u32 %v111, %v115
  %v118 = vshll.u32 %v93, 16
  %v120 = vrot.slane %v118, 1
  %v121 = vsel %vm109, %v116, %v120
  %v122 = vshrl.u32 %v93, 16
  %v124 = vor.u32 %v122, %v120
  %v126 = vshll.u32 %v94, 16
  %v128 = vrot.slane %v126, 1
  %v129 = vsel %vm109, %v124, %v128
  %v130 = vshrl.u32 %v94, 16
  %v132 = vor.u32 %v130, %v128
  %v134 = vshll.u32 %v95, 16
  %v136 = vrot.slane %v134, 1
  %v137 = vsel %vm109, %v132, %v136
  %v138 = vshrl.u32 %v95, 16
  %v140 = vor.u32 %v138, %v136
  %v142 = vshll.u32 %v96, 16
  %v144 = vrot.slane %v142, 1
  %v145 = vsel %vm109, %v140, %v144
  %v146 = vshrl.u32 %v96, 16
  %v148 = vor.u32 %v146, %v144
  %v150 = vshll.u32 %v97, 16
  %v152 = vrot.slane %v150, 1
  %v153 = vsel %vm109, %v148, %v152
  %v154 = vshrl.u32 %v97, 16
  %v156 = vor.u32 %v154, %v152
  %v158 = vshll.u32 %v98, 16
  %v160 = vrot.slane %v158, 1
  %v161 = vsel %vm109, %v156, %v160
  %v162 = vshrl.u32 %v98, 16
  %v164 = vor.u32 %v162, %v160
  %v166 = vshll.u32 %v108, 16
  %v168 = vrot.slane %v166, 1
  %v169 = vsel %vm109, %v164, %v168
  %v191 = vunpack.c.l.b16 %v45
  %v192 = vunpack.c.l.b16 %v46
  %v193 = vunpack.c.l.b16 %v47
  %v194 = vunpack.c.l.b16 %v48
  %v195 = vunpack.c.l.b16 %v49
  %v196 = vunpack.c.l.b16 %v50
  %v197 = vunpack.c.l.b16 %v51
  %v198 = vunpack.c.l.b16 %v52
  %v199 = vunpack.c.l.b16 %v53
  %v200 = vunpack.c.l.b16 %v54
  %v201 = vunpack.c.l.b16 %v55
  %v202 = vunpack.c.l.b16 %v56
  %v203 = vunpack.c.l.b16 %v57
  %v204 = vunpack.c.l.b16 %v58
  %v205 = vpack.c.b16 %v192, %v191
  %v206 = vpack.c.b16 %v194, %v193
  %v207 = vpack.c.b16 %v196, %v195
  %v208 = vpack.c.b16 %v198, %v197
  %v209 = vpack.c.b16 %v200, %v199
  %v210 = vpack.c.b16 %v202, %v201
  %v211 = vpack.c.b16 %v204, %v203
  %v220 = vunpack.c.l.b16 %v59
  %v221 = vpack.c.b16 %v220, %v220
  %v223 = vshrl.u32 %v205, 16
  %v225 = vshll.u32 %v205, 16
  %v227 = vrot.slane %v225, 1
  %v228 = vor.u32 %v223, %v227
  %v230 = vshll.u32 %v206, 16
  %v232 = vrot.slane %v230, 1
  %v233 = vsel %vm109, %v228, %v232
  %v234 = vshrl.u32 %v206, 16
  %v236 = vor.u32 %v234, %v232
  %v238 = vshll.u32 %v207, 16
  %v240 = vrot.slane %v238, 1
  %v241 = vsel %vm109, %v236, %v240
  %v242 = vshrl.u32 %v207, 16
  %v244 = vor.u32 %v242, %v240
  %v246 = vshll.u32 %v208, 16
  %v248 = vrot.slane %v246, 1
  %v249 = vsel %vm109, %v244, %v248
  %v250 = vshrl.u32 %v208, 16
  %v252 = vor.u32 %v250, %v248
  %v254 = vshll.u32 %v209, 16
  %v256 = vrot.slane %v254, 1
  %v257 = vsel %vm109, %v252, %v256
  %v258 = vshrl.u32 %v209, 16
  %v260 = vor.u32 %v258, %v256
  %v262 = vshll.u32 %v210, 16
  %v264 = vrot.slane %v262, 1
  %v265 = vsel %vm109, %v260, %v264
  %v266 = vshrl.u32 %v210, 16
  %v268 = vor.u32 %v266, %v264
  %v270 = vshll.u32 %v211, 16
  %v272 = vrot.slane %v270, 1
  %v273 = vsel %vm109, %v268, %v272
  %v274 = vshrl.u32 %v211, 16
  %v276 = vor.u32 %v274, %v272
  %v278 = vshll.u32 %v221, 16
  %v280 = vrot.slane %v278, 1
  %v281 = vsel %vm109, %v276, %v280
  %v292 = vunpack.c.l.b16 %v60
  %v293 = vunpack.c.l.b16 %v61
  %v294 = vunpack.c.l.b16 %v62
  %v295 = vpack.c.b16 %v80, %v292
  %v296 = vpack.c.b16 %v82, %v81
  %v297 = vpack.c.b16 %v84, %v83
  %v298 = vpack.c.b16 %v86, %v85
  %v299 = vpack.c.b16 %v88, %v87
  %v300 = vpack.c.b16 %v90, %v89
  %v301 = vpack.c.b16 %v293, %v91
  %v302 = vpack.c.b16 %v294, %v294
  %vm303 = vsmask.f32 6400
  %v305 = vshrl.u32 %v295, 16
  %v307 = vrot.slane %v305, 1
  %v308 = vshll.u32 %v295, 16
  %v310 = vrot.slane %v308, 2
  %v311 = vor.u32 %v307, %v310
  %v313 = vshrl.u32 %v296, 16
  %v315 = vrot.slane %v313, 1
  %v316 = vshll.u32 %v296, 16
  %v318 = vrot.slane %v316, 2
  %v319 = vor.u32 %v315, %v318
  %v320 = vsel %vm303, %v311, %v319
  %v322 = vshrl.u32 %v297, 16
  %v324 = vrot.slane %v322, 1
  %v325 = vshll.u32 %v297, 16
  %v327 = vrot.slane %v325, 2
  %v328 = vor.u32 %v324, %v327
  %v329 = vsel %vm303, %v319, %v328
  %v331 = vshrl.u32 %v298, 16
  %v333 = vrot.slane %v331, 1
  %v334 = vshll.u32 %v298, 16
  %v336 = vrot.slane %v334, 2
  %v337 = vor.u32 %v333, %v336
  %v338 = vsel %vm303, %v328, %v337
  %v340 = vshrl.u32 %v299, 16
  %v342 = vrot.slane %v340, 1
  %v343 = vshll.u32 %v299, 16
  %v345 = vrot.slane %v343, 2
  %v346 = vor.u32 %v342, %v345
  %v347 = vsel %vm303, %v337, %v346
  %v349 = vshrl.u32 %v300, 16
  %v351 = vrot.slane %v349, 1
  %v352 = vshll.u32 %v300, 16
  %v354 = vrot.slane %v352, 2
  %v355 = vor.u32 %v351, %v354
  %v356 = vsel %vm303, %v346, %v355
  %v358 = vshrl.u32 %v301, 16
  %v360 = vrot.slane %v358, 1
  %v361 = vshll.u32 %v301, 16
  %v363 = vrot.slane %v361, 2
  %v364 = vor.u32 %v360, %v363
  %v365 = vsel %vm303, %v355, %v364
  %v367 = vshrl.u32 %v302, 16
  %v369 = vrot.slane %v367, 1
  %v370 = vshll.u32 %v302, 16
  %v372 = vrot.slane %v370, 2
  %v373 = vor.u32 %v369, %v372
  %v374 = vsel %vm303, %v364, %v373
  %v383 = vunpack.c.l.b16 %v63
  %v384 = vpack.c.b16 %v80, %v383
  %vm385 = vcmask 1045504
  %v386 = vrot.slane %v384, 2
  %v387 = vrot.slane %v296, 2
  %v388 = vsel %vm385, %v386, %v387
  %v389 = vrot.slane %v297, 2
  %v390 = vsel %vm385, %v387, %v389
  %v391 = vrot.slane %v298, 2
  %v392 = vsel %vm385, %v389, %v391
  %v393 = vrot.slane %v299, 2
  %v394 = vsel %vm385, %v391, %v393
  %v395 = vrot.slane %v300, 2
  %v396 = vsel %vm385, %v393, %v395
  %v397 = vrot.slane %v301, 2
  %v398 = vsel %vm385, %v395, %v397
  %v399 = vrot.slane %v302, 2
  %v400 = vsel %vm385, %v397, %v399
  %v408 = vld [vmem:[%s1] sm:$0xf]
  %v409 = vld [vmem:[%s1 + $0x4] sm:$0xf]
  %v410 = vld [vmem:[%s1 + $0x8] sm:$0xf]
  %v411 = vld [vmem:[%s1 + $0xc] sm:$0xf]
  %v412 = vld [vmem:[%s1 + $0x10] sm:$0xf]
  %v413 = vld [vmem:[%s1 + $0x14] sm:$0xf]
  %v414 = vld [vmem:[%s1 + $0x18] sm:$0xf]
  %v415 = vld [vmem:[%s1 + $0x1c] sm:$0xf]
  %v416 = vld [vmem:[%s1 + $0x20] sm:$0xf]
  %v417 = vld [vmem:[%s1 + $0x24] sm:$0xf]
  %v418 = vld [vmem:[%s1 + $0x28] sm:$0xf]
  %v419 = vld [vmem:[%s1 + $0x2c] sm:$0xf]
  %v420 = vld [vmem:[%s1 + $0x30] sm:$0xf]
  %v421 = vld [vmem:[%s1 + $0x34] sm:$0xf]
  %v422 = vld [vmem:[%s1 + $0x38] sm:$0xf]
  %v423 = vld [vmem:[%s1 + $0x3c] sm:$0xf]
  %v424 = vld [vmem:[%s1 + $0x40] sm:$0xf]
  %v425 = vld [vmem:[%s1 + $0x44] sm:$0xf]
  %v426 = vld [vmem:[%s1 + $0x48] sm:$0xf]
  %v427 = vld [vmem:[%s1 + $0x4c] sm:$0xf]
  %v428 = vld [vmem:[%s1 + $0x50] sm:$0xf]
  %v429 = vld [vmem:[%s1 + $0x54] sm:$0xf]
  %v430 = vld [vmem:[%s1 + $0x58] sm:$0xf]
  %v431 = vld [vmem:[%s1 + $0x5c] sm:$0xf]
  %v432 = vld [vmem:[%s1 + $0x60] sm:$0xf]
  %v433 = vld [vmem:[%s1 + $0x64] sm:$0xf]
  %v434 = vld [vmem:[%s1 + $0x68] sm:$0xf]
  %v435 = vld [vmem:[%s1 + $0x6c] sm:$0xf]
  %v436 = vld [vmem:[%s1 + $0x70] sm:$0xf]
  %v437 = vld [vmem:[%s1 + $0x74] sm:$0xf]
  %v438 = vld [vmem:[%s1 + $0x78] sm:$0xf]
  %v439 = vld [vmem:[%s1 + $0x7c] sm:$0xf]
  %v440 = vld [vmem:[%s1 + $0x80] sm:$0xf]
  %v441 = vld [vmem:[%s1 + $0x84] sm:$0xf]
  %v442 = vld [vmem:[%s1 + $0x88] sm:$0xf]
  %v443 = vld [vmem:[%s1 + $0x8c] sm:$0xf]
  %v444 = vld [vmem:[%s1 + $0x90] sm:$0xf]
  %v445 = vld [vmem:[%s1 + $0x94] sm:$0xf]
  %v446 = vld [vmem:[%s1 + $0x98] sm:$0xf]
  %v447 = vld [vmem:[%s1 + $0x9c] sm:$0xf]
  %v448 = vld [vmem:[%s1 + $0xa0] sm:$0xf]
  %v449 = vld [vmem:[%s1 + $0xa4] sm:$0xf]
  %v450 = vld [vmem:[%s1 + $0xa8] sm:$0xf]
  %v451 = vld [vmem:[%s1 + $0xac] sm:$0xf]
  %v452 = vld [vmem:[%s1 + $0xb0] sm:$0xf]
  %v453 = vld [vmem:[%s1 + $0xb4] sm:$0xf]
  %v454 = vld [vmem:[%s1 + $0xb8] sm:$0xf]
  %v455 = vld [vmem:[%s1 + $0xbc] sm:$0xf]
  %v456 = vld [vmem:[%s1 + $0xc0] sm:$0xf]
  %v457 = vld [vmem:[%s1 + $0xc4] sm:$0xf]
  %v458 = vld [vmem:[%s1 + $0xc8] sm:$0xf]
  %v459 = vld [vmem:[%s1 + $0xcc] sm:$0xf]
  %v460 = vld [vmem:[%s1 + $0xd0] sm:$0xf]
  %v461 = vld [vmem:[%s1 + $0xd4] sm:$0xf]
  %v462 = vld [vmem:[%s1 + $0xd8] sm:$0xf]
  %v463 = vld [vmem:[%s1 + $0xdc] sm:$0xf]
  %v464 = vld [vmem:[%s1 + $0xe0] sm:$0xf]
  %v465 = vld [vmem:[%s1 + $0xe4] sm:$0xf]
  %v466 = vld [vmem:[%s1 + $0xe8] sm:$0xf]
  %v467 = vld [vmem:[%s1 + $0xec] sm:$0xf]
  %v468 = vld [vmem:[%s1 + $0xf0] sm:$0xf]
  %v469 = vld [vmem:[%s1 + $0xf4] sm:$0xf]
  %v470 = vld [vmem:[%s1 + $0xf8] sm:$0xf]
  %v471 = vld [vmem:[%s1 + $0xfc] sm:$0xf]
  %v472 = vld [vmem:[%s1 + $0x100] sm:$0xf]
  %v473 = vld [vmem:[%s1 + $0x104] sm:$0xf]
  %v474 = vld [vmem:[%s1 + $0x108] sm:$0xf]
  %v475 = vld [vmem:[%s1 + $0x10c] sm:$0xf]
  %v476 = vld [vmem:[%s1 + $0x110] sm:$0xf]
  %v477 = vld [vmem:[%s1 + $0x114] sm:$0xf]
  %v478 = vld [vmem:[%s1 + $0x118] sm:$0xf]
  %v479 = vld [vmem:[%s1 + $0x11c] sm:$0xf]
  %v480 = vld [vmem:[%s1 + $0x120] sm:$0xf]
  %v481 = vld [vmem:[%s1 + $0x124] sm:$0xf]
  %v482 = vld [vmem:[%s1 + $0x128] sm:$0xf]
  %v483 = vld [vmem:[%s1 + $0x12c] sm:$0xf]
  %v484 = vld [vmem:[%s1 + $0x130] sm:$0xf]
  %v485 = vld [vmem:[%s1 + $0x134] sm:$0xf]
  %v486 = vld [vmem:[%s1 + $0x138] sm:$0xf]
  %v487 = vld [vmem:[%s1 + $0x13c] sm:$0xf]
  %v488 = vld [vmem:[%s1 + $0x140] sm:$0xf]
  %v489 = vld [vmem:[%s1 + $0x144] sm:$0xf]
  %v490 = vld [vmem:[%s1 + $0x148] sm:$0xf]
  %v491 = vld [vmem:[%s1 + $0x14c] sm:$0xf]
  %v492 = vld [vmem:[%s1 + $0x150] sm:$0xf]
  %v493 = vld [vmem:[%s1 + $0x154] sm:$0xf]
  %v494 = vld [vmem:[%s1 + $0x158] sm:$0xf]
  %v495 = vld [vmem:[%s1 + $0x15c] sm:$0xf]
  %v496 = vld [vmem:[%s1 + $0x160] sm:$0xf]
  %v497 = vld [vmem:[%s1 + $0x164] sm:$0xf]
  %v498 = vld [vmem:[%s1 + $0x168] sm:$0xf]
  %v499 = vld [vmem:[%s1 + $0x16c] sm:$0xf]
  %v500 = vld [vmem:[%s1 + $0x170] sm:$0xf]
  %v501 = vld [vmem:[%s1 + $0x174] sm:$0xf]
  %v502 = vld [vmem:[%s1 + $0x178] sm:$0xf]
  %v503 = vld [vmem:[%s1 + $0x17c] sm:$0xf]
  %v505 = vperm.slane %v26, 0
  %v603 = vunpack.c.l.b16 %v408
  %v604 = vunpack.c.l.b16 %v409
  %v605 = vunpack.c.l.b16 %v410
  %v606 = vunpack.c.l.b16 %v411
  %v607 = vunpack.c.l.b16 %v412
  %v608 = vunpack.c.l.b16 %v413
  %v609 = vunpack.c.l.b16 %v414
  %v610 = vunpack.c.l.b16 %v415
  %v611 = vunpack.c.l.b16 %v416
  %v612 = vunpack.c.l.b16 %v417
  %v613 = vunpack.c.l.b16 %v418
  %v614 = vunpack.c.l.b16 %v419
  %v615 = vunpack.c.l.b16 %v420
  %v616 = vunpack.c.l.b16 %v421
  %v617 = vunpack.c.l.b16 %v422
  %v618 = vunpack.c.l.b16 %v423
  %v619 = vunpack.c.l.b16 %v424
  %v620 = vunpack.c.l.b16 %v425
  %v621 = vunpack.c.l.b16 %v426
  %v622 = vunpack.c.l.b16 %v427
  %v623 = vunpack.c.l.b16 %v428
  %v624 = vunpack.c.l.b16 %v429
  %v625 = vunpack.c.l.b16 %v430
  %v626 = vunpack.c.l.b16 %v431
  %v627 = vunpack.c.l.b16 %v432
  %v628 = vunpack.c.l.b16 %v433
  %v629 = vunpack.c.l.b16 %v434
  %v630 = vunpack.c.l.b16 %v435
  %v631 = vunpack.c.l.b16 %v436
  %v632 = vunpack.c.l.b16 %v437
  %v633 = vunpack.c.l.b16 %v438
  %v634 = vunpack.c.l.b16 %v439
  %v635 = vunpack.c.l.b16 %v440
  %v636 = vunpack.c.l.b16 %v441
  %v637 = vunpack.c.l.b16 %v442
  %v638 = vunpack.c.l.b16 %v443
  %v639 = vunpack.c.l.b16 %v444
  %v640 = vunpack.c.l.b16 %v445
  %v641 = vunpack.c.l.b16 %v446
  %v642 = vunpack.c.l.b16 %v447
  %v643 = vunpack.c.l.b16 %v448
  %v644 = vunpack.c.l.b16 %v449
  %v645 = vunpack.c.l.b16 %v450
  %v646 = vunpack.c.l.b16 %v451
  %v647 = vunpack.c.l.b16 %v452
  %v648 = vunpack.c.l.b16 %v453
  %v649 = vunpack.c.l.b16 %v454
  %v650 = vunpack.c.l.b16 %v455
  %v651 = vunpack.c.l.b16 %v456
  %v652 = vunpack.c.l.b16 %v457
  %v653 = vunpack.c.l.b16 %v458
  %v654 = vunpack.c.l.b16 %v459
  %v655 = vunpack.c.l.b16 %v460
  %v656 = vunpack.c.l.b16 %v461
  %v657 = vunpack.c.l.b16 %v462
  %v658 = vunpack.c.l.b16 %v463
  %v659 = vunpack.c.l.b16 %v464
  %v660 = vunpack.c.l.b16 %v465
  %v661 = vunpack.c.l.b16 %v466
  %v662 = vunpack.c.l.b16 %v467
  %v663 = vunpack.c.l.b16 %v468
  %v664 = vunpack.c.l.b16 %v469
  %v665 = vunpack.c.l.b16 %v470
  %v666 = vunpack.c.l.b16 %v471
  %v667 = vunpack.c.l.b16 %v472
  %v668 = vunpack.c.l.b16 %v473
  %v669 = vunpack.c.l.b16 %v474
  %v670 = vunpack.c.l.b16 %v475
  %v671 = vunpack.c.l.b16 %v476
  %v672 = vunpack.c.l.b16 %v477
  %v673 = vunpack.c.l.b16 %v478
  %v674 = vunpack.c.l.b16 %v479
  %v675 = vunpack.c.l.b16 %v480
  %v676 = vunpack.c.l.b16 %v481
  %v677 = vunpack.c.l.b16 %v482
  %v678 = vunpack.c.l.b16 %v483
  %v679 = vunpack.c.l.b16 %v484
  %v680 = vunpack.c.l.b16 %v485
  %v681 = vunpack.c.l.b16 %v486
  %v682 = vunpack.c.l.b16 %v487
  %v683 = vunpack.c.l.b16 %v488
  %v684 = vunpack.c.l.b16 %v489
  %v685 = vunpack.c.l.b16 %v490
  %v686 = vunpack.c.l.b16 %v491
  %v687 = vunpack.c.l.b16 %v492
  %v688 = vunpack.c.l.b16 %v493
  %v689 = vunpack.c.l.b16 %v494
  %v690 = vunpack.c.l.b16 %v495
  %v691 = vunpack.c.l.b16 %v496
  %v692 = vunpack.c.l.b16 %v497
  %v693 = vunpack.c.l.b16 %v498
  %v694 = vunpack.c.l.b16 %v499
  %v695 = vunpack.c.l.b16 %v500
  %v696 = vunpack.c.l.b16 %v501
  %v697 = vunpack.c.l.b16 %v502
  %v698 = vunpack.c.l.b16 %v503
  %v699 = vpack.c.b16 %v604, %v603
  %v700 = vpack.c.b16 %v606, %v605
  %v701 = vpack.c.b16 %v608, %v607
  %v702 = vpack.c.b16 %v610, %v609
  %v703 = vpack.c.b16 %v612, %v611
  %v704 = vpack.c.b16 %v614, %v613
  %v705 = vpack.c.b16 %v616, %v615
  %v706 = vpack.c.b16 %v618, %v617
  %v707 = vpack.c.b16 %v620, %v619
  %v708 = vpack.c.b16 %v622, %v621
  %v709 = vpack.c.b16 %v624, %v623
  %v710 = vpack.c.b16 %v626, %v625
  %v711 = vpack.c.b16 %v628, %v627
  %v712 = vpack.c.b16 %v630, %v629
  %v713 = vpack.c.b16 %v632, %v631
  %v714 = vpack.c.b16 %v634, %v633
  %v715 = vpack.c.b16 %v636, %v635
  %v716 = vpack.c.b16 %v638, %v637
  %v717 = vpack.c.b16 %v640, %v639
  %v718 = vpack.c.b16 %v642, %v641
  %v719 = vpack.c.b16 %v644, %v643
  %v720 = vpack.c.b16 %v646, %v645
  %v721 = vpack.c.b16 %v648, %v647
  %v722 = vpack.c.b16 %v650, %v649
  %v723 = vpack.c.b16 %v652, %v651
  %v724 = vpack.c.b16 %v654, %v653
  %v725 = vpack.c.b16 %v656, %v655
  %v726 = vpack.c.b16 %v658, %v657
  %v727 = vpack.c.b16 %v660, %v659
  %v728 = vpack.c.b16 %v662, %v661
  %v729 = vpack.c.b16 %v664, %v663
  %v730 = vpack.c.b16 %v666, %v665
  %v731 = vpack.c.b16 %v668, %v667
  %v732 = vpack.c.b16 %v670, %v669
  %v733 = vpack.c.b16 %v672, %v671
  %v734 = vpack.c.b16 %v674, %v673
  %v735 = vpack.c.b16 %v676, %v675
  %v736 = vpack.c.b16 %v678, %v677
  %v737 = vpack.c.b16 %v680, %v679
  %v738 = vpack.c.b16 %v682, %v681
  %v739 = vpack.c.b16 %v684, %v683
  %v740 = vpack.c.b16 %v686, %v685
  %v741 = vpack.c.b16 %v688, %v687
  %v742 = vpack.c.b16 %v690, %v689
  %v743 = vpack.c.b16 %v692, %v691
  %v744 = vpack.c.b16 %v694, %v693
  %v745 = vpack.c.b16 %v696, %v695
  %v746 = vpack.c.b16 %v698, %v697
  %795 = vmatpush.bf16.msra.mxu0 %v706
  %796 = vmatpush.bf16.msra.mxu0 %v705
  %797 = vmatpush.bf16.msra.mxu0 %v704
  %798 = vmatpush.bf16.msra.mxu0 %v703
  %799 = vmatpush.bf16.msra.mxu0 %v702
  %800 = vmatpush.bf16.msra.mxu0 %v701
  %801 = vmatpush.bf16.msra.mxu0 %v700
  %802 = vmatpush.bf16.msra.mxu0 %v699
  %803 = vmatmul.bf16.gmra.mxu0 %v92
  %v804 = vpop.f32.mrf.mxu0
  %v805 = vadd.f32 %v505, %v804
  %v806 = vpop.f32.mrf.mxu0
  %v807 = vadd.f32 %v505, %v806
  %808 = vmatmul.bf16.gmra.mxu0 %v93
  %v809 = vpop.f32.mrf.mxu0
  %v810 = vadd.f32 %v505, %v809
  %v811 = vpop.f32.mrf.mxu0
  %v812 = vadd.f32 %v505, %v811
  %813 = vmatmul.bf16.gmra.mxu0 %v94
  %v814 = vpop.f32.mrf.mxu0
  %v815 = vadd.f32 %v505, %v814
  %v816 = vpop.f32.mrf.mxu0
  %v817 = vadd.f32 %v505, %v816
  %818 = vmatmul.bf16.gmra.mxu0 %v95
  %v819 = vpop.f32.mrf.mxu0
  %v820 = vadd.f32 %v505, %v819
  %v821 = vpop.f32.mrf.mxu0
  %v822 = vadd.f32 %v505, %v821
  %823 = vmatmul.bf16.gmra.mxu0 %v96
  %v824 = vpop.f32.mrf.mxu0
  %v825 = vadd.f32 %v505, %v824
  %v826 = vpop.f32.mrf.mxu0
  %v827 = vadd.f32 %v505, %v826
  %828 = vmatmul.bf16.gmra.mxu0 %v97
  %v829 = vpop.f32.mrf.mxu0
  %v830 = vadd.f32 %v505, %v829
  %v831 = vpop.f32.mrf.mxu0
  %v832 = vadd.f32 %v505, %v831
  %833 = vmatmul.bf16.gmra.mxu0 %v98
  %v834 = vpop.f32.mrf.mxu0
  %v835 = vadd.f32 %v505, %v834
  %v836 = vpop.f32.mrf.mxu0
  %v837 = vadd.f32 %v505, %v836
  %838 = vdwg.mxu0
  %839 = vmatpush.bf16.msra.mxu0 %v714
  %840 = vmatpush.bf16.msra.mxu0 %v713
  %841 = vmatpush.bf16.msra.mxu0 %v712
  %842 = vmatpush.bf16.msra.mxu0 %v711
  %843 = vmatpush.bf16.msra.mxu0 %v710
  %844 = vmatpush.bf16.msra.mxu0 %v709
  %845 = vmatpush.bf16.msra.mxu0 %v708
  %846 = vmatpush.bf16.msra.mxu0 %v707
  %847 = vmatmul.bf16.gmra.mxu0 %v121
  %v848 = vpop.f32.mrf.mxu0
  %v849 = vadd.f32 %v805, %v848
  %v850 = vpop.f32.mrf.mxu0
  %v851 = vadd.f32 %v807, %v850
  %852 = vmatmul.bf16.gmra.mxu0 %v129
  %v853 = vpop.f32.mrf.mxu0
  %v854 = vadd.f32 %v810, %v853
  %v855 = vpop.f32.mrf.mxu0
  %v856 = vadd.f32 %v812, %v855
  %857 = vmatmul.bf16.gmra.mxu0 %v137
  %v858 = vpop.f32.mrf.mxu0
  %v859 = vadd.f32 %v815, %v858
  %v860 = vpop.f32.mrf.mxu0
  %v861 = vadd.f32 %v817, %v860
  %862 = vmatmul.bf16.gmra.mxu0 %v145
  %v863 = vpop.f32.mrf.mxu0
  %v864 = vadd.f32 %v820, %v863
  %v865 = vpop.f32.mrf.mxu0
  %v866 = vadd.f32 %v822, %v865
  %867 = vmatmul.bf16.gmra.mxu0 %v153
  %v868 = vpop.f32.mrf.mxu0
  %v869 = vadd.f32 %v825, %v868
  %v870 = vpop.f32.mrf.mxu0
  %v871 = vadd.f32 %v827, %v870
  %872 = vmatmul.bf16.gmra.mxu0 %v161
  %v873 = vpop.f32.mrf.mxu0
  %v874 = vadd.f32 %v830, %v873
  %v875 = vpop.f32.mrf.mxu0
  %v876 = vadd.f32 %v832, %v875
  %877 = vmatmul.bf16.gmra.mxu0 %v169
  %v878 = vpop.f32.mrf.mxu0
  %v879 = vadd.f32 %v835, %v878
  %v880 = vpop.f32.mrf.mxu0
  %v881 = vadd.f32 %v837, %v880
  %882 = vdwg.mxu0
  %883 = vmatpush.bf16.msra.mxu0 %v722
  %884 = vmatpush.bf16.msra.mxu0 %v721
  %885 = vmatpush.bf16.msra.mxu0 %v720
  %886 = vmatpush.bf16.msra.mxu0 %v719
  %887 = vmatpush.bf16.msra.mxu0 %v718
  %888 = vmatpush.bf16.msra.mxu0 %v717
  %889 = vmatpush.bf16.msra.mxu0 %v716
  %890 = vmatpush.bf16.msra.mxu0 %v715
  %891 = vmatmul.bf16.gmra.mxu0 %v205
  %v892 = vpop.f32.mrf.mxu0
  %v893 = vadd.f32 %v849, %v892
  %v894 = vpop.f32.mrf.mxu0
  %v895 = vadd.f32 %v851, %v894
  %896 = vmatmul.bf16.gmra.mxu0 %v206
  %v897 = vpop.f32.mrf.mxu0
  %v898 = vadd.f32 %v854, %v897
  %v899 = vpop.f32.mrf.mxu0
  %v900 = vadd.f32 %v856, %v899
  %901 = vmatmul.bf16.gmra.mxu0 %v207
  %v902 = vpop.f32.mrf.mxu0
  %v903 = vadd.f32 %v859, %v902
  %v904 = vpop.f32.mrf.mxu0
  %v905 = vadd.f32 %v861, %v904
  %906 = vmatmul.bf16.gmra.mxu0 %v208
  %v907 = vpop.f32.mrf.mxu0
  %v908 = vadd.f32 %v864, %v907
  %v909 = vpop.f32.mrf.mxu0
  %v910 = vadd.f32 %v866, %v909
  %911 = vmatmul.bf16.gmra.mxu0 %v209
  %v912 = vpop.f32.mrf.mxu0
  %v913 = vadd.f32 %v869, %v912
  %v914 = vpop.f32.mrf.mxu0
  %v915 = vadd.f32 %v871, %v914
  %916 = vmatmul.bf16.gmra.mxu0 %v210
  %v917 = vpop.f32.mrf.mxu0
  %v918 = vadd.f32 %v874, %v917
  %v919 = vpop.f32.mrf.mxu0
  %v920 = vadd.f32 %v876, %v919
  %921 = vmatmul.bf16.gmra.mxu0 %v211
  %v922 = vpop.f32.mrf.mxu0
  %v923 = vadd.f32 %v879, %v922
  %v924 = vpop.f32.mrf.mxu0
  %v925 = vadd.f32 %v881, %v924
  %926 = vdwg.mxu0
  %927 = vmatpush.bf16.msra.mxu0 %v730
  %928 = vmatpush.bf16.msra.mxu0 %v729
  %929 = vmatpush.bf16.msra.mxu0 %v728
  %930 = vmatpush.bf16.msra.mxu0 %v727
  %931 = vmatpush.bf16.msra.mxu0 %v726
  %932 = vmatpush.bf16.msra.mxu0 %v725
  %933 = vmatpush.bf16.msra.mxu0 %v724
  %934 = vmatpush.bf16.msra.mxu0 %v723
  %935 = vmatmul.bf16.gmra.mxu0 %v233
  %v936 = vpop.f32.mrf.mxu0
  %v937 = vadd.f32 %v893, %v936
  %v938 = vpop.f32.mrf.mxu0
  %v939 = vadd.f32 %v895, %v938
  %940 = vmatmul.bf16.gmra.mxu0 %v241
  %v941 = vpop.f32.mrf.mxu0
  %v942 = vadd.f32 %v898, %v941
  %v943 = vpop.f32.mrf.mxu0
  %v944 = vadd.f32 %v900, %v943
  %945 = vmatmul.bf16.gmra.mxu0 %v249
  %v946 = vpop.f32.mrf.mxu0
  %v947 = vadd.f32 %v903, %v946
  %v948 = vpop.f32.mrf.mxu0
  %v949 = vadd.f32 %v905, %v948
  %950 = vmatmul.bf16.gmra.mxu0 %v257
  %v951 = vpop.f32.mrf.mxu0
  %v952 = vadd.f32 %v908, %v951
  %v953 = vpop.f32.mrf.mxu0
  %v954 = vadd.f32 %v910, %v953
  %955 = vmatmul.bf16.gmra.mxu0 %v265
  %v956 = vpop.f32.mrf.mxu0
  %v957 = vadd.f32 %v913, %v956
  %v958 = vpop.f32.mrf.mxu0
  %v959 = vadd.f32 %v915, %v958
  %960 = vmatmul.bf16.gmra.mxu0 %v273
  %v961 = vpop.f32.mrf.mxu0
  %v962 = vadd.f32 %v918, %v961
  %v963 = vpop.f32.mrf.mxu0
  %v964 = vadd.f32 %v920, %v963
  %965 = vmatmul.bf16.gmra.mxu0 %v281
  %v966 = vpop.f32.mrf.mxu0
  %v967 = vadd.f32 %v923, %v966
  %v968 = vpop.f32.mrf.mxu0
  %v969 = vadd.f32 %v925, %v968
  %970 = vdwg.mxu0
  %971 = vmatpush.bf16.msra.mxu0 %v738
  %972 = vmatpush.bf16.msra.mxu0 %v737
  %973 = vmatpush.bf16.msra.mxu0 %v736
  %974 = vmatpush.bf16.msra.mxu0 %v735
  %975 = vmatpush.bf16.msra.mxu0 %v734
  %976 = vmatpush.bf16.msra.mxu0 %v733
  %977 = vmatpush.bf16.msra.mxu0 %v732
  %978 = vmatpush.bf16.msra.mxu0 %v731
  %979 = vmatmul.bf16.gmra.mxu0 %v320
  %v980 = vpop.f32.mrf.mxu0
  %v981 = vadd.f32 %v937, %v980
  %v982 = vpop.f32.mrf.mxu0
  %v983 = vadd.f32 %v939, %v982
  %984 = vmatmul.bf16.gmra.mxu0 %v329
  %v985 = vpop.f32.mrf.mxu0
  %v986 = vadd.f32 %v942, %v985
  %v987 = vpop.f32.mrf.mxu0
  %v988 = vadd.f32 %v944, %v987
  %989 = vmatmul.bf16.gmra.mxu0 %v338
  %v990 = vpop.f32.mrf.mxu0
  %v991 = vadd.f32 %v947, %v990
  %v992 = vpop.f32.mrf.mxu0
  %v993 = vadd.f32 %v949, %v992
  %994 = vmatmul.bf16.gmra.mxu0 %v347
  %v995 = vpop.f32.mrf.mxu0
  %v996 = vadd.f32 %v952, %v995
  %v997 = vpop.f32.mrf.mxu0
  %v998 = vadd.f32 %v954, %v997
  %999 = vmatmul.bf16.gmra.mxu0 %v356
  %v1000 = vpop.f32.mrf.mxu0
  %v1001 = vadd.f32 %v957, %v1000
  %v1002 = vpop.f32.mrf.mxu0
  %v1003 = vadd.f32 %v959, %v1002
  %1004 = vmatmul.bf16.gmra.mxu0 %v365
  %v1005 = vpop.f32.mrf.mxu0
  %v1006 = vadd.f32 %v962, %v1005
  %v1007 = vpop.f32.mrf.mxu0
  %v1008 = vadd.f32 %v964, %v1007
  %1009 = vmatmul.bf16.gmra.mxu0 %v374
  %v1010 = vpop.f32.mrf.mxu0
  %v1011 = vadd.f32 %v967, %v1010
  %v1012 = vpop.f32.mrf.mxu0
  %v1013 = vadd.f32 %v969, %v1012
  %1014 = vdwg.mxu0
  %1015 = vmatpush.bf16.msra.mxu0 %v746
  %1016 = vmatpush.bf16.msra.mxu0 %v745
  %1017 = vmatpush.bf16.msra.mxu0 %v744
  %1018 = vmatpush.bf16.msra.mxu0 %v743
  %1019 = vmatpush.bf16.msra.mxu0 %v742
  %1020 = vmatpush.bf16.msra.mxu0 %v741
  %1021 = vmatpush.bf16.msra.mxu0 %v740
  %1022 = vmatpush.bf16.msra.mxu0 %v739
  %1023 = vmatmul.bf16.gmra.mxu0 %v388
  %v1024 = vpop.f32.mrf.mxu0
  %v1025 = vadd.f32 %v981, %v1024
  %v1026 = vpop.f32.mrf.mxu0
  %v1027 = vadd.f32 %v983, %v1026
  %1028 = vmatmul.bf16.gmra.mxu0 %v390
  %v1029 = vpop.f32.mrf.mxu0
  %v1030 = vadd.f32 %v986, %v1029
  %v1031 = vpop.f32.mrf.mxu0
  %v1032 = vadd.f32 %v988, %v1031
  %1033 = vmatmul.bf16.gmra.mxu0 %v392
  %v1034 = vpop.f32.mrf.mxu0
  %v1035 = vadd.f32 %v991, %v1034
  %v1036 = vpop.f32.mrf.mxu0
  %v1037 = vadd.f32 %v993, %v1036
  %1038 = vmatmul.bf16.gmra.mxu0 %v394
  %v1039 = vpop.f32.mrf.mxu0
  %v1040 = vadd.f32 %v996, %v1039
  %v1041 = vpop.f32.mrf.mxu0
  %v1042 = vadd.f32 %v998, %v1041
  %1043 = vmatmul.bf16.gmra.mxu0 %v396
  %v1044 = vpop.f32.mrf.mxu0
  %v1045 = vadd.f32 %v1001, %v1044
  %v1046 = vpop.f32.mrf.mxu0
  %v1047 = vadd.f32 %v1003, %v1046
  %1048 = vmatmul.bf16.gmra.mxu0 %v398
  %v1049 = vpop.f32.mrf.mxu0
  %v1050 = vadd.f32 %v1006, %v1049
  %v1051 = vpop.f32.mrf.mxu0
  %v1052 = vadd.f32 %v1008, %v1051
  %1053 = vmatmul.bf16.gmra.mxu0 %v400
  %v1054 = vpop.f32.mrf.mxu0
  %v1055 = vadd.f32 %v1011, %v1054
  %v1056 = vpop.f32.mrf.mxu0
  %v1057 = vadd.f32 %v1013, %v1056
  %1058 = vdwg.mxu0
  %v1059 = vmax.f32 %v1025, 0.0
  %v1060 = vmax.f32 %v1027, 0.0
  %v1061 = vmax.f32 %v1030, 0.0
  %v1062 = vmax.f32 %v1032, 0.0
  %v1063 = vmax.f32 %v1035, 0.0
  %v1064 = vmax.f32 %v1037, 0.0
  %v1065 = vmax.f32 %v1040, 0.0
  %v1066 = vmax.f32 %v1042, 0.0
  %v1067 = vmax.f32 %v1045, 0.0
  %v1068 = vmax.f32 %v1047, 0.0
  %v1069 = vmax.f32 %v1050, 0.0
  %v1070 = vmax.f32 %v1052, 0.0
  %v1071 = vmax.f32 %v1055, 0.0
  %v1072 = vmax.f32 %v1057, 0.0
  %v1073 = vpack.c.bf16 %v1059, %v1059
  %v1074 = vpack.c.bf16 %v1060, %v1060
  %v1075 = vpack.c.bf16 %v1061, %v1061
  %v1076 = vpack.c.bf16 %v1062, %v1062
  %v1077 = vpack.c.bf16 %v1063, %v1063
  %v1078 = vpack.c.bf16 %v1064, %v1064
  %v1079 = vpack.c.bf16 %v1065, %v1065
  %v1080 = vpack.c.bf16 %v1066, %v1066
  %v1081 = vpack.c.bf16 %v1067, %v1067
  %v1082 = vpack.c.bf16 %v1068, %v1068
  %v1083 = vpack.c.bf16 %v1069, %v1069
  %v1084 = vpack.c.bf16 %v1070, %v1070
  %v1085 = vpack.c.bf16 %v1071, %v1071
  %v1086 = vpack.c.bf16 %v1072, %v1072
  %1087 = vst [vmem:[#allocation2] sm:$0xf] %v1073
  %1088 = vst [vmem:[#allocation2 + $0x4] sm:$0xf] %v1074
  %1089 = vst [vmem:[#allocation2 + $0x8] sm:$0xf] %v1075
  %1090 = vst [vmem:[#allocation2 + $0xc] sm:$0xf] %v1076
  %1091 = vst [vmem:[#allocation2 + $0x10] sm:$0xf] %v1077
  %1092 = vst [vmem:[#allocation2 + $0x14] sm:$0xf] %v1078
  %1093 = vst [vmem:[#allocation2 + $0x18] sm:$0xf] %v1079
  %1094 = vst [vmem:[#allocation2 + $0x1c] sm:$0xf] %v1080
  %1095 = vst [vmem:[#allocation2 + $0x20] sm:$0xf] %v1081
  %1096 = vst [vmem:[#allocation2 + $0x24] sm:$0xf] %v1082
  %1097 = vst [vmem:[#allocation2 + $0x28] sm:$0xf] %v1083
  %1098 = vst [vmem:[#allocation2 + $0x2c] sm:$0xf] %v1084
  %1099 = vst [vmem:[#allocation2 + $0x30] sm:$0xf] %v1085
  %1100 = vst [vmem:[#allocation2 + $0x34] sm:$0xf] %v1086
  %v1101 = vld [vmem:[#allocation2] sm:$0xf]
  %v1102 = vld [vmem:[#allocation2 + $0x4] sm:$0xf]
  %v1103 = vld [vmem:[#allocation2 + $0x8] sm:$0xf]
  %v1104 = vld [vmem:[#allocation2 + $0xc] sm:$0xf]
  %v1105 = vld [vmem:[#allocation2 + $0x10] sm:$0xf]
  %v1106 = vld [vmem:[#allocation2 + $0x14] sm:$0xf]
  %v1107 = vld [vmem:[#allocation2 + $0x18] sm:$0xf]
  %v1108 = vld [vmem:[#allocation2 + $0x1c] sm:$0xf]
  %v1109 = vld [vmem:[#allocation2 + $0x20] sm:$0xf]
  %v1110 = vld [vmem:[#allocation2 + $0x24] sm:$0xf]
  %v1111 = vld [vmem:[#allocation2 + $0x28] sm:$0xf]
  %v1112 = vld [vmem:[#allocation2 + $0x2c] sm:$0xf]
  %v1113 = vld [vmem:[#allocation2 + $0x30] sm:$0x1]
  %v1114 = vld [vmem:[#allocation2 + $0x4] sm:$0xe]
  %v1115 = vld [vmem:[#allocation2 + $0x8] sm:$0xf]
  %v1116 = vld [vmem:[#allocation2 + $0xc] sm:$0xf]
  %v1117 = vld [vmem:[#allocation2 + $0x10] sm:$0xf]
  %v1118 = vld [vmem:[#allocation2 + $0x14] sm:$0xf]
  %v1119 = vld [vmem:[#allocation2 + $0x18] sm:$0xf]
  %v1120 = vld [vmem:[#allocation2 + $0x1c] sm:$0xf]
  %v1121 = vld [vmem:[#allocation2 + $0x20] sm:$0xf]
  %v1122 = vld [vmem:[#allocation2 + $0x24] sm:$0xf]
  %v1123 = vld [vmem:[#allocation2 + $0x28] sm:$0xf]
  %v1124 = vld [vmem:[#allocation2 + $0x2c] sm:$0xf]
  %v1125 = vld [vmem:[#allocation2 + $0x30] sm:$0xf]
  %v1126 = vld [vmem:[#allocation2 + $0x34] sm:$0x3]
  %v1127 = vld [vmem:[#allocation2 + $0x4] sm:$0xc]
  %v1128 = vld [vmem:[#allocation2 + $0x34] sm:$0x7]
  %v1142 = vunpack.c.l.b16 %v1101
  %v1143 = vunpack.c.l.b16 %v1102
  %v1144 = vunpack.c.l.b16 %v1103
  %v1145 = vunpack.c.l.b16 %v1104
  %v1146 = vunpack.c.l.b16 %v1105
  %v1147 = vunpack.c.l.b16 %v1106
  %v1148 = vunpack.c.l.b16 %v1107
  %v1149 = vunpack.c.l.b16 %v1108
  %v1150 = vunpack.c.l.b16 %v1109
  %v1151 = vunpack.c.l.b16 %v1110
  %v1152 = vunpack.c.l.b16 %v1111
  %v1153 = vunpack.c.l.b16 %v1112
  %v1154 = vunpack.c.l.b16 %v1113
  %v1155 = vpack.c.b16 %v1143, %v1142
  %v1156 = vpack.c.b16 %v1145, %v1144
  %v1157 = vpack.c.b16 %v1147, %v1146
  %v1158 = vpack.c.b16 %v1149, %v1148
  %v1159 = vpack.c.b16 %v1151, %v1150
  %v1160 = vpack.c.b16 %v1153, %v1152
  %v1161 = vpack.c.b16 %v1154, %v1154
  %v1170 = vshrl.u32 %v1155, 16
  %v1172 = vshll.u32 %v1155, 16
  %v1174 = vrot.slane %v1172, 1
  %v1175 = vor.u32 %v1170, %v1174
  %v1177 = vshll.u32 %v1156, 16
  %v1179 = vrot.slane %v1177, 1
  %v1180 = vsel %vm109, %v1175, %v1179
  %v1181 = vshrl.u32 %v1156, 16
  %v1183 = vor.u32 %v1181, %v1179
  %v1185 = vshll.u32 %v1157, 16
  %v1187 = vrot.slane %v1185, 1
  %v1188 = vsel %vm109, %v1183, %v1187
  %v1189 = vshrl.u32 %v1157, 16
  %v1191 = vor.u32 %v1189, %v1187
  %v1193 = vshll.u32 %v1158, 16
  %v1195 = vrot.slane %v1193, 1
  %v1196 = vsel %vm109, %v1191, %v1195
  %v1197 = vshrl.u32 %v1158, 16
  %v1199 = vor.u32 %v1197, %v1195
  %v1201 = vshll.u32 %v1159, 16
  %v1203 = vrot.slane %v1201, 1
  %v1204 = vsel %vm109, %v1199, %v1203
  %v1205 = vshrl.u32 %v1159, 16
  %v1207 = vor.u32 %v1205, %v1203
  %v1209 = vshll.u32 %v1160, 16
  %v1211 = vrot.slane %v1209, 1
  %v1212 = vsel %vm109, %v1207, %v1211
  %v1213 = vshrl.u32 %v1160, 16
  %v1215 = vor.u32 %v1213, %v1211
  %v1217 = vshll.u32 %v1161, 16
  %v1219 = vrot.slane %v1217, 1
  %v1220 = vsel %vm109, %v1215, %v1219
  %v1221 = vshrl.u32 %v1161, 16
  %v1243 = vunpack.c.l.b16 %v1114
  %v1244 = vunpack.c.l.b16 %v1115
  %v1245 = vunpack.c.l.b16 %v1116
  %v1246 = vunpack.c.l.b16 %v1117
  %v1247 = vunpack.c.l.b16 %v1118
  %v1248 = vunpack.c.l.b16 %v1119
  %v1249 = vunpack.c.l.b16 %v1120
  %v1250 = vunpack.c.l.b16 %v1121
  %v1251 = vunpack.c.l.b16 %v1122
  %v1252 = vunpack.c.l.b16 %v1123
  %v1253 = vunpack.c.l.b16 %v1124
  %v1254 = vunpack.c.l.b16 %v1125
  %v1255 = vunpack.c.l.b16 %v1126
  %v1256 = vpack.c.b16 %v1244, %v1243
  %v1257 = vpack.c.b16 %v1246, %v1245
  %v1258 = vpack.c.b16 %v1248, %v1247
  %v1259 = vpack.c.b16 %v1250, %v1249
  %v1260 = vpack.c.b16 %v1252, %v1251
  %v1261 = vpack.c.b16 %v1254, %v1253
  %v1262 = vpack.c.b16 %v1255, %v1255
  %v1264 = vshrl.u32 %v1256, 16
  %v1266 = vrot.slane %v1264, 1
  %v1267 = vshll.u32 %v1256, 16
  %v1269 = vrot.slane %v1267, 2
  %v1270 = vor.u32 %v1266, %v1269
  %v1272 = vshrl.u32 %v1257, 16
  %v1274 = vrot.slane %v1272, 1
  %v1275 = vshll.u32 %v1257, 16
  %v1277 = vrot.slane %v1275, 2
  %v1278 = vor.u32 %v1274, %v1277
  %v1279 = vsel %vm303, %v1270, %v1278
  %v1281 = vshrl.u32 %v1258, 16
  %v1283 = vrot.slane %v1281, 1
  %v1284 = vshll.u32 %v1258, 16
  %v1286 = vrot.slane %v1284, 2
  %v1287 = vor.u32 %v1283, %v1286
  %v1288 = vsel %vm303, %v1278, %v1287
  %v1290 = vshrl.u32 %v1259, 16
  %v1292 = vrot.slane %v1290, 1
  %v1293 = vshll.u32 %v1259, 16
  %v1295 = vrot.slane %v1293, 2
  %v1296 = vor.u32 %v1292, %v1295
  %v1297 = vsel %vm303, %v1287, %v1296
  %v1299 = vshrl.u32 %v1260, 16
  %v1301 = vrot.slane %v1299, 1
  %v1302 = vshll.u32 %v1260, 16
  %v1304 = vrot.slane %v1302, 2
  %v1305 = vor.u32 %v1301, %v1304
  %v1306 = vsel %vm303, %v1296, %v1305
  %v1308 = vshrl.u32 %v1261, 16
  %v1310 = vrot.slane %v1308, 1
  %v1311 = vshll.u32 %v1261, 16
  %v1313 = vrot.slane %v1311, 2
  %v1314 = vor.u32 %v1310, %v1313
  %v1315 = vsel %vm303, %v1305, %v1314
  %v1317 = vshrl.u32 %v1262, 16
  %v1319 = vrot.slane %v1317, 1
  %v1320 = vshll.u32 %v1262, 16
  %v1322 = vrot.slane %v1320, 2
  %v1323 = vor.u32 %v1319, %v1322
  %v1324 = vsel %vm303, %v1314, %v1323
  %v1334 = vunpack.c.l.b16 %v1127
  %v1335 = vunpack.c.l.b16 %v1128
  %v1336 = vpack.c.b16 %v1244, %v1334
  %v1337 = vpack.c.b16 %v1335, %v1335
  %v1338 = vrot.slane %v1336, 2
  %v1339 = vrot.slane %v1257, 2
  %v1340 = vsel %vm385, %v1338, %v1339
  %v1341 = vrot.slane %v1258, 2
  %v1342 = vsel %vm385, %v1339, %v1341
  %v1343 = vrot.slane %v1259, 2
  %v1344 = vsel %vm385, %v1341, %v1343
  %v1345 = vrot.slane %v1260, 2
  %v1346 = vsel %vm385, %v1343, %v1345
  %v1347 = vrot.slane %v1261, 2
  %v1348 = vsel %vm385, %v1345, %v1347
  %v1349 = vrot.slane %v1337, 2
  %v1350 = vsel %vm385, %v1347, %v1349
  %v1358 = vld [vmem:[%s3] sm:$0xf]
  %v1359 = vld [vmem:[%s3 + $0x4] sm:$0xf]
  %v1360 = vld [vmem:[%s3 + $0x8] sm:$0xf]
  %v1361 = vld [vmem:[%s3 + $0xc] sm:$0xf]
  %v1362 = vld [vmem:[%s3 + $0x10] sm:$0xf]
  %v1363 = vld [vmem:[%s3 + $0x14] sm:$0xf]
  %v1364 = vld [vmem:[%s3 + $0x18] sm:$0xf]
  %v1365 = vld [vmem:[%s3 + $0x1c] sm:$0xf]
  %v1366 = vld [vmem:[%s3 + $0x20] sm:$0xf]
  %v1367 = vld [vmem:[%s3 + $0x24] sm:$0xf]
  %v1368 = vld [vmem:[%s3 + $0x28] sm:$0xf]
  %v1369 = vld [vmem:[%s3 + $0x2c] sm:$0xf]
  %v1370 = vld [vmem:[%s3 + $0x30] sm:$0xf]
  %v1371 = vld [vmem:[%s3 + $0x34] sm:$0xf]
  %v1372 = vld [vmem:[%s3 + $0x38] sm:$0xf]
  %v1373 = vld [vmem:[%s3 + $0x3c] sm:$0xf]
  %v1374 = vld [vmem:[%s3 + $0x40] sm:$0xf]
  %v1375 = vld [vmem:[%s3 + $0x44] sm:$0xf]
  %v1376 = vld [vmem:[%s3 + $0x48] sm:$0xf]
  %v1377 = vld [vmem:[%s3 + $0x4c] sm:$0xf]
  %v1378 = vld [vmem:[%s3 + $0x50] sm:$0xf]
  %v1379 = vld [vmem:[%s3 + $0x54] sm:$0xf]
  %v1380 = vld [vmem:[%s3 + $0x58] sm:$0xf]
  %v1381 = vld [vmem:[%s3 + $0x5c] sm:$0xf]
  %v1382 = vld [vmem:[%s3 + $0x60] sm:$0xf]
  %v1383 = vld [vmem:[%s3 + $0x64] sm:$0xf]
  %v1384 = vld [vmem:[%s3 + $0x68] sm:$0xf]
  %v1385 = vld [vmem:[%s3 + $0x6c] sm:$0xf]
  %v1386 = vld [vmem:[%s3 + $0x70] sm:$0xf]
  %v1387 = vld [vmem:[%s3 + $0x74] sm:$0xf]
  %v1388 = vld [vmem:[%s3 + $0x78] sm:$0xf]
  %v1389 = vld [vmem:[%s3 + $0x7c] sm:$0xf]
  %v1390 = vld [vmem:[%s3 + $0x80] sm:$0xf]
  %v1391 = vld [vmem:[%s3 + $0x84] sm:$0xf]
  %v1392 = vld [vmem:[%s3 + $0x88] sm:$0xf]
  %v1393 = vld [vmem:[%s3 + $0x8c] sm:$0xf]
  %v1394 = vld [vmem:[%s3 + $0x90] sm:$0xf]
  %v1395 = vld [vmem:[%s3 + $0x94] sm:$0xf]
  %v1396 = vld [vmem:[%s3 + $0x98] sm:$0xf]
  %v1397 = vld [vmem:[%s3 + $0x9c] sm:$0xf]
  %v1398 = vld [vmem:[%s3 + $0xa0] sm:$0xf]
  %v1399 = vld [vmem:[%s3 + $0xa4] sm:$0xf]
  %v1400 = vld [vmem:[%s3 + $0xa8] sm:$0xf]
  %v1401 = vld [vmem:[%s3 + $0xac] sm:$0xf]
  %v1402 = vld [vmem:[%s3 + $0xb0] sm:$0xf]
  %v1403 = vld [vmem:[%s3 + $0xb4] sm:$0xf]
  %v1404 = vld [vmem:[%s3 + $0xb8] sm:$0xf]
  %v1405 = vld [vmem:[%s3 + $0xbc] sm:$0xf]
  %v1406 = vld [vmem:[%s3 + $0xc0] sm:$0xf]
  %v1407 = vld [vmem:[%s3 + $0xc4] sm:$0xf]
  %v1408 = vld [vmem:[%s3 + $0xc8] sm:$0xf]
  %v1409 = vld [vmem:[%s3 + $0xcc] sm:$0xf]
  %v1410 = vld [vmem:[%s3 + $0xd0] sm:$0xf]
  %v1411 = vld [vmem:[%s3 + $0xd4] sm:$0xf]
  %v1412 = vld [vmem:[%s3 + $0xd8] sm:$0xf]
  %v1413 = vld [vmem:[%s3 + $0xdc] sm:$0xf]
  %v1414 = vld [vmem:[%s3 + $0xe0] sm:$0xf]
  %v1415 = vld [vmem:[%s3 + $0xe4] sm:$0xf]
  %v1416 = vld [vmem:[%s3 + $0xe8] sm:$0xf]
  %v1417 = vld [vmem:[%s3 + $0xec] sm:$0xf]
  %v1418 = vld [vmem:[%s3 + $0xf0] sm:$0xf]
  %v1419 = vld [vmem:[%s3 + $0xf4] sm:$0xf]
  %v1420 = vld [vmem:[%s3 + $0xf8] sm:$0xf]
  %v1421 = vld [vmem:[%s3 + $0xfc] sm:$0xf]
  %v1423 = vperm.slane %v27, 0
  %v1489 = vunpack.c.l.b16 %v1358
  %v1490 = vunpack.c.l.b16 %v1359
  %v1491 = vunpack.c.l.b16 %v1360
  %v1492 = vunpack.c.l.b16 %v1361
  %v1493 = vunpack.c.l.b16 %v1362
  %v1494 = vunpack.c.l.b16 %v1363
  %v1495 = vunpack.c.l.b16 %v1364
  %v1496 = vunpack.c.l.b16 %v1365
  %v1497 = vunpack.c.l.b16 %v1366
  %v1498 = vunpack.c.l.b16 %v1367
  %v1499 = vunpack.c.l.b16 %v1368
  %v1500 = vunpack.c.l.b16 %v1369
  %v1501 = vunpack.c.l.b16 %v1370
  %v1502 = vunpack.c.l.b16 %v1371
  %v1503 = vunpack.c.l.b16 %v1372
  %v1504 = vunpack.c.l.b16 %v1373
  %v1505 = vunpack.c.l.b16 %v1374
  %v1506 = vunpack.c.l.b16 %v1375
  %v1507 = vunpack.c.l.b16 %v1376
  %v1508 = vunpack.c.l.b16 %v1377
  %v1509 = vunpack.c.l.b16 %v1378
  %v1510 = vunpack.c.l.b16 %v1379
  %v1511 = vunpack.c.l.b16 %v1380
  %v1512 = vunpack.c.l.b16 %v1381
  %v1513 = vunpack.c.l.b16 %v1382
  %v1514 = vunpack.c.l.b16 %v1383
  %v1515 = vunpack.c.l.b16 %v1384
  %v1516 = vunpack.c.l.b16 %v1385
  %v1517 = vunpack.c.l.b16 %v1386
  %v1518 = vunpack.c.l.b16 %v1387
  %v1519 = vunpack.c.l.b16 %v1388
  %v1520 = vunpack.c.l.b16 %v1389
  %v1521 = vunpack.c.l.b16 %v1390
  %v1522 = vunpack.c.l.b16 %v1391
  %v1523 = vunpack.c.l.b16 %v1392
  %v1524 = vunpack.c.l.b16 %v1393
  %v1525 = vunpack.c.l.b16 %v1394
  %v1526 = vunpack.c.l.b16 %v1395
  %v1527 = vunpack.c.l.b16 %v1396
  %v1528 = vunpack.c.l.b16 %v1397
  %v1529 = vunpack.c.l.b16 %v1398
  %v1530 = vunpack.c.l.b16 %v1399
  %v1531 = vunpack.c.l.b16 %v1400
  %v1532 = vunpack.c.l.b16 %v1401
  %v1533 = vunpack.c.l.b16 %v1402
  %v1534 = vunpack.c.l.b16 %v1403
  %v1535 = vunpack.c.l.b16 %v1404
  %v1536 = vunpack.c.l.b16 %v1405
  %v1537 = vunpack.c.l.b16 %v1406
  %v1538 = vunpack.c.l.b16 %v1407
  %v1539 = vunpack.c.l.b16 %v1408
  %v1540 = vunpack.c.l.b16 %v1409
  %v1541 = vunpack.c.l.b16 %v1410
  %v1542 = vunpack.c.l.b16 %v1411
  %v1543 = vunpack.c.l.b16 %v1412
  %v1544 = vunpack.c.l.b16 %v1413
  %v1545 = vunpack.c.l.b16 %v1414
  %v1546 = vunpack.c.l.b16 %v1415
  %v1547 = vunpack.c.l.b16 %v1416
  %v1548 = vunpack.c.l.b16 %v1417
  %v1549 = vunpack.c.l.b16 %v1418
  %v1550 = vunpack.c.l.b16 %v1419
  %v1551 = vunpack.c.l.b16 %v1420
  %v1552 = vunpack.c.l.b16 %v1421
  %v1553 = vpack.c.b16 %v1490, %v1489
  %v1554 = vpack.c.b16 %v1492, %v1491
  %v1555 = vpack.c.b16 %v1494, %v1493
  %v1556 = vpack.c.b16 %v1496, %v1495
  %v1557 = vpack.c.b16 %v1498, %v1497
  %v1558 = vpack.c.b16 %v1500, %v1499
  %v1559 = vpack.c.b16 %v1502, %v1501
  %v1560 = vpack.c.b16 %v1504, %v1503
  %v1561 = vpack.c.b16 %v1506, %v1505
  %v1562 = vpack.c.b16 %v1508, %v1507
  %v1563 = vpack.c.b16 %v1510, %v1509
  %v1564 = vpack.c.b16 %v1512, %v1511
  %v1565 = vpack.c.b16 %v1514, %v1513
  %v1566 = vpack.c.b16 %v1516, %v1515
  %v1567 = vpack.c.b16 %v1518, %v1517
  %v1568 = vpack.c.b16 %v1520, %v1519
  %v1569 = vpack.c.b16 %v1522, %v1521
  %v1570 = vpack.c.b16 %v1524, %v1523
  %v1571 = vpack.c.b16 %v1526, %v1525
  %v1572 = vpack.c.b16 %v1528, %v1527
  %v1573 = vpack.c.b16 %v1530, %v1529
  %v1574 = vpack.c.b16 %v1532, %v1531
  %v1575 = vpack.c.b16 %v1534, %v1533
  %v1576 = vpack.c.b16 %v1536, %v1535
  %v1577 = vpack.c.b16 %v1538, %v1537
  %v1578 = vpack.c.b16 %v1540, %v1539
  %v1579 = vpack.c.b16 %v1542, %v1541
  %v1580 = vpack.c.b16 %v1544, %v1543
  %v1581 = vpack.c.b16 %v1546, %v1545
  %v1582 = vpack.c.b16 %v1548, %v1547
  %v1583 = vpack.c.b16 %v1550, %v1549
  %v1584 = vpack.c.b16 %v1552, %v1551
  %1617 = vmatpush.bf16.msra.mxu0 %v1560
  %1618 = vmatpush.bf16.msra.mxu0 %v1559
  %1619 = vmatpush.bf16.msra.mxu0 %v1558
  %1620 = vmatpush.bf16.msra.mxu0 %v1557
  %1621 = vmatpush.bf16.msra.mxu0 %v1556
  %1622 = vmatpush.bf16.msra.mxu0 %v1555
  %1623 = vmatpush.bf16.msra.mxu0 %v1554
  %1624 = vmatpush.bf16.msra.mxu0 %v1553
  %1625 = vmatmul.bf16.gmra.mxu0 %v1155
  %v1626 = vpop.f32.mrf.mxu0
  %v1627 = vadd.f32 %v1423, %v1626
  %v1628 = vpop.f32.mrf.mxu0
  %v1629 = vadd.f32 %v1423, %v1628
  %1630 = vmatmul.bf16.gmra.mxu0 %v1156
  %v1631 = vpop.f32.mrf.mxu0
  %v1632 = vadd.f32 %v1423, %v1631
  %v1633 = vpop.f32.mrf.mxu0
  %v1634 = vadd.f32 %v1423, %v1633
  %1635 = vmatmul.bf16.gmra.mxu0 %v1157
  %v1636 = vpop.f32.mrf.mxu0
  %v1637 = vadd.f32 %v1423, %v1636
  %v1638 = vpop.f32.mrf.mxu0
  %v1639 = vadd.f32 %v1423, %v1638
  %1640 = vmatmul.bf16.gmra.mxu0 %v1158
  %v1641 = vpop.f32.mrf.mxu0
  %v1642 = vadd.f32 %v1423, %v1641
  %v1643 = vpop.f32.mrf.mxu0
  %v1644 = vadd.f32 %v1423, %v1643
  %1645 = vmatmul.bf16.gmra.mxu0 %v1159
  %v1646 = vpop.f32.mrf.mxu0
  %v1647 = vadd.f32 %v1423, %v1646
  %v1648 = vpop.f32.mrf.mxu0
  %v1649 = vadd.f32 %v1423, %v1648
  %1650 = vmatmul.bf16.gmra.mxu0 %v1160
  %v1651 = vpop.f32.mrf.mxu0
  %v1652 = vadd.f32 %v1423, %v1651
  %v1653 = vpop.f32.mrf.mxu0
  %v1654 = vadd.f32 %v1423, %v1653
  %1655 = vmatmul.bf16.gmra.mxu0 %v1161
  %v1656 = vpop.f32.mrf.mxu0
  %v1657 = vadd.f32 %v1423, %v1656
  %v1658 = vpop.f32.mrf.mxu0
  %1659 = vdwg.mxu0
  %1660 = vmatpush.bf16.msra.mxu0 %v1568
  %1661 = vmatpush.bf16.msra.mxu0 %v1567
  %1662 = vmatpush.bf16.msra.mxu0 %v1566
  %1663 = vmatpush.bf16.msra.mxu0 %v1565
  %1664 = vmatpush.bf16.msra.mxu0 %v1564
  %1665 = vmatpush.bf16.msra.mxu0 %v1563
  %1666 = vmatpush.bf16.msra.mxu0 %v1562
  %1667 = vmatpush.bf16.msra.mxu0 %v1561
  %1668 = vmatmul.bf16.gmra.mxu0 %v1180
  %v1669 = vpop.f32.mrf.mxu0
  %v1670 = vadd.f32 %v1627, %v1669
  %v1671 = vpop.f32.mrf.mxu0
  %v1672 = vadd.f32 %v1629, %v1671
  %1673 = vmatmul.bf16.gmra.mxu0 %v1188
  %v1674 = vpop.f32.mrf.mxu0
  %v1675 = vadd.f32 %v1632, %v1674
  %v1676 = vpop.f32.mrf.mxu0
  %v1677 = vadd.f32 %v1634, %v1676
  %1678 = vmatmul.bf16.gmra.mxu0 %v1196
  %v1679 = vpop.f32.mrf.mxu0
  %v1680 = vadd.f32 %v1637, %v1679
  %v1681 = vpop.f32.mrf.mxu0
  %v1682 = vadd.f32 %v1639, %v1681
  %1683 = vmatmul.bf16.gmra.mxu0 %v1204
  %v1684 = vpop.f32.mrf.mxu0
  %v1685 = vadd.f32 %v1642, %v1684
  %v1686 = vpop.f32.mrf.mxu0
  %v1687 = vadd.f32 %v1644, %v1686
  %1688 = vmatmul.bf16.gmra.mxu0 %v1212
  %v1689 = vpop.f32.mrf.mxu0
  %v1690 = vadd.f32 %v1647, %v1689
  %v1691 = vpop.f32.mrf.mxu0
  %v1692 = vadd.f32 %v1649, %v1691
  %1693 = vmatmul.bf16.gmra.mxu0 %v1220
  %v1694 = vpop.f32.mrf.mxu0
  %v1695 = vadd.f32 %v1652, %v1694
  %v1696 = vpop.f32.mrf.mxu0
  %v1697 = vadd.f32 %v1654, %v1696
  %1698 = vmatmul.bf16.gmra.mxu0 %v1221
  %v1699 = vpop.f32.mrf.mxu0
  %v1700 = vadd.f32 %v1657, %v1699
  %v1701 = vpop.f32.mrf.mxu0
  %1702 = vdwg.mxu0
  %1703 = vmatpush.bf16.msra.mxu0 %v1576
  %1704 = vmatpush.bf16.msra.mxu0 %v1575
  %1705 = vmatpush.bf16.msra.mxu0 %v1574
  %1706 = vmatpush.bf16.msra.mxu0 %v1573
  %1707 = vmatpush.bf16.msra.mxu0 %v1572
  %1708 = vmatpush.bf16.msra.mxu0 %v1571
  %1709 = vmatpush.bf16.msra.mxu0 %v1570
  %1710 = vmatpush.bf16.msra.mxu0 %v1569
  %1711 = vmatmul.bf16.gmra.mxu0 %v1279
  %v1712 = vpop.f32.mrf.mxu0
  %v1713 = vadd.f32 %v1670, %v1712
  %v1714 = vpop.f32.mrf.mxu0
  %v1715 = vadd.f32 %v1672, %v1714
  %1716 = vmatmul.bf16.gmra.mxu0 %v1288
  %v1717 = vpop.f32.mrf.mxu0
  %v1718 = vadd.f32 %v1675, %v1717
  %v1719 = vpop.f32.mrf.mxu0
  %v1720 = vadd.f32 %v1677, %v1719
  %1721 = vmatmul.bf16.gmra.mxu0 %v1297
  %v1722 = vpop.f32.mrf.mxu0
  %v1723 = vadd.f32 %v1680, %v1722
  %v1724 = vpop.f32.mrf.mxu0
  %v1725 = vadd.f32 %v1682, %v1724
  %1726 = vmatmul.bf16.gmra.mxu0 %v1306
  %v1727 = vpop.f32.mrf.mxu0
  %v1728 = vadd.f32 %v1685, %v1727
  %v1729 = vpop.f32.mrf.mxu0
  %v1730 = vadd.f32 %v1687, %v1729
  %1731 = vmatmul.bf16.gmra.mxu0 %v1315
  %v1732 = vpop.f32.mrf.mxu0
  %v1733 = vadd.f32 %v1690, %v1732
  %v1734 = vpop.f32.mrf.mxu0
  %v1735 = vadd.f32 %v1692, %v1734
  %1736 = vmatmul.bf16.gmra.mxu0 %v1324
  %v1737 = vpop.f32.mrf.mxu0
  %v1738 = vadd.f32 %v1695, %v1737
  %v1739 = vpop.f32.mrf.mxu0
  %v1740 = vadd.f32 %v1697, %v1739
  %1741 = vmatmul.bf16.gmra.mxu0 %v1319
  %v1742 = vpop.f32.mrf.mxu0
  %v1743 = vadd.f32 %v1700, %v1742
  %v1744 = vpop.f32.mrf.mxu0
  %1745 = vdwg.mxu0
  %1746 = vmatpush.bf16.msra.mxu0 %v1584
  %1747 = vmatpush.bf16.msra.mxu0 %v1583
  %1748 = vmatpush.bf16.msra.mxu0 %v1582
  %1749 = vmatpush.bf16.msra.mxu0 %v1581
  %1750 = vmatpush.bf16.msra.mxu0 %v1580
  %1751 = vmatpush.bf16.msra.mxu0 %v1579
  %1752 = vmatpush.bf16.msra.mxu0 %v1578
  %1753 = vmatpush.bf16.msra.mxu0 %v1577
  %1754 = vmatmul.bf16.gmra.mxu0 %v1340
  %v1755 = vpop.f32.mrf.mxu0
  %v1756 = vadd.f32 %v1713, %v1755
  %v1757 = vpop.f32.mrf.mxu0
  %v1758 = vadd.f32 %v1715, %v1757
  %1759 = vmatmul.bf16.gmra.mxu0 %v1342
  %v1760 = vpop.f32.mrf.mxu0
  %v1761 = vadd.f32 %v1718, %v1760
  %v1762 = vpop.f32.mrf.mxu0
  %v1763 = vadd.f32 %v1720, %v1762
  %1764 = vmatmul.bf16.gmra.mxu0 %v1344
  %v1765 = vpop.f32.mrf.mxu0
  %v1766 = vadd.f32 %v1723, %v1765
  %v1767 = vpop.f32.mrf.mxu0
  %v1768 = vadd.f32 %v1725, %v1767
  %1769 = vmatmul.bf16.gmra.mxu0 %v1346
  %v1770 = vpop.f32.mrf.mxu0
  %v1771 = vadd.f32 %v1728, %v1770
  %v1772 = vpop.f32.mrf.mxu0
  %v1773 = vadd.f32 %v1730, %v1772
  %1774 = vmatmul.bf16.gmra.mxu0 %v1348
  %v1775 = vpop.f32.mrf.mxu0
  %v1776 = vadd.f32 %v1733, %v1775
  %v1777 = vpop.f32.mrf.mxu0
  %v1778 = vadd.f32 %v1735, %v1777
  %1779 = vmatmul.bf16.gmra.mxu0 %v1350
  %v1780 = vpop.f32.mrf.mxu0
  %v1781 = vadd.f32 %v1738, %v1780
  %v1782 = vpop.f32.mrf.mxu0
  %v1783 = vadd.f32 %v1740, %v1782
  %1784 = vmatmul.bf16.gmra.mxu0 %v1349
  %v1785 = vpop.f32.mrf.mxu0
  %v1786 = vadd.f32 %v1743, %v1785
  %v1787 = vpop.f32.mrf.mxu0
  %1788 = vdwg.mxu0
  %v1789 = vmax.f32 %v1756, 0.0
  %v1790 = vmax.f32 %v1758, 0.0
  %v1791 = vmax.f32 %v1761, 0.0
  %v1792 = vmax.f32 %v1763, 0.0
  %v1793 = vmax.f32 %v1766, 0.0
  %v1794 = vmax.f32 %v1768, 0.0
  %v1795 = vmax.f32 %v1771, 0.0
  %v1796 = vmax.f32 %v1773, 0.0
  %v1797 = vmax.f32 %v1776, 0.0
  %v1798 = vmax.f32 %v1778, 0.0
  %v1799 = vmax.f32 %v1781, 0.0
  %v1800 = vmax.f32 %v1783, 0.0
  %v1801 = vmax.f32 %v1786, 0.0
  %v1802 = vpack.c.bf16 %v1789, %v1789
  %v1803 = vpack.c.bf16 %v1790, %v1790
  %v1804 = vpack.c.bf16 %v1791, %v1791
  %v1805 = vpack.c.bf16 %v1792, %v1792
  %v1806 = vpack.c.bf16 %v1793, %v1793
  %v1807 = vpack.c.bf16 %v1794, %v1794
  %v1808 = vpack.c.bf16 %v1795, %v1795
  %v1809 = vpack.c.bf16 %v1796, %v1796
  %v1810 = vpack.c.bf16 %v1797, %v1797
  %v1811 = vpack.c.bf16 %v1798, %v1798
  %v1812 = vpack.c.bf16 %v1799, %v1799
  %v1813 = vpack.c.bf16 %v1800, %v1800
  %v1814 = vpack.c.bf16 %v1801, %v1801
  %1815 = vst [vmem:[#allocation3] sm:$0xf] %v1802
  %1816 = vst [vmem:[#allocation3 + $0x4] sm:$0xf] %v1803
  %1817 = vst [vmem:[#allocation3 + $0x8] sm:$0xf] %v1804
  %1818 = vst [vmem:[#allocation3 + $0xc] sm:$0xf] %v1805
  %1819 = vst [vmem:[#allocation3 + $0x10] sm:$0xf] %v1806
  %1820 = vst [vmem:[#allocation3 + $0x14] sm:$0xf] %v1807
  %1821 = vst [vmem:[#allocation3 + $0x18] sm:$0xf] %v1808
  %1822 = vst [vmem:[#allocation3 + $0x1c] sm:$0xf] %v1809
  %1823 = vst [vmem:[#allocation3 + $0x20] sm:$0xf] %v1810
  %1824 = vst [vmem:[#allocation3 + $0x24] sm:$0xf] %v1811
  %1825 = vst [vmem:[#allocation3 + $0x28] sm:$0xf] %v1812
  %1826 = vst [vmem:[#allocation3 + $0x2c] sm:$0xf] %v1813
  %vm1827 = vcmask 1040384
  %vm1828 = vsmask.f32 256
  %vm1829 = vmand %vm1827, %vm1828
  %v1830 = vld [vmem:[#allocation3 + $0x30] sm:$0x1]
  %v1831 = vsel %vm1829, %v1814, %v1830
  %1832 = vst [vmem:[#allocation3 + $0x30] sm:$0x1] %v1831
  %v1833 = vld [vmem:[#allocation3] sm:$0xf]
  %v1834 = vld [vmem:[#allocation3 + $0x4] sm:$0xf]
  %v1835 = vld [vmem:[#allocation3 + $0x8] sm:$0xf]
  %v1836 = vld [vmem:[#allocation3 + $0xc] sm:$0xf]
  %v1837 = vld [vmem:[#allocation3 + $0x10] sm:$0xf]
  %v1838 = vld [vmem:[#allocation3 + $0x14] sm:$0xf]
  %v1839 = vld [vmem:[#allocation3 + $0x18] sm:$0xf]
  %v1840 = vld [vmem:[#allocation3 + $0x1c] sm:$0xf]
  %v1841 = vld [vmem:[#allocation3 + $0x20] sm:$0xf]
  %v1842 = vld [vmem:[#allocation3 + $0x24] sm:$0x1]
  %v1843 = vld [vmem:[#allocation3] sm:$0xe]
  %v1844 = vld [vmem:[#allocation3 + $0x24] sm:$0x3]
  %v1845 = vld [vmem:[#allocation3 + $0x4] sm:$0xe]
  %v1846 = vld [vmem:[#allocation3 + $0x24] sm:$0xf]
  %v1847 = vld [vmem:[#allocation3 + $0x28] sm:$0x3]
  %v1848 = vld [vmem:[#allocation3 + $0x4] sm:$0xc]
  %v1849 = vld [vmem:[#allocation3 + $0x28] sm:$0x7]
  %v1850 = vld [vmem:[#allocation3 + $0x8] sm:$0x8]
  %v1851 = vld [vmem:[#allocation3 + $0x28] sm:$0xf]
  %v1852 = vld [vmem:[#allocation3 + $0x2c] sm:$0xf]
  %v1853 = vld [vmem:[#allocation3 + $0xc] sm:$0xf]
  %v1854 = vld [vmem:[#allocation3 + $0x10] sm:$0xf]
  %v1855 = vld [vmem:[#allocation3 + $0x14] sm:$0xf]
  %v1856 = vld [vmem:[#allocation3 + $0x18] sm:$0xf]
  %v1857 = vld [vmem:[#allocation3 + $0x1c] sm:$0xf]
  %v1858 = vld [vmem:[#allocation3 + $0x20] sm:$0xf]
  %v1859 = vld [vmem:[#allocation3 + $0x24] sm:$0xf]
  %v1860 = vld [vmem:[#allocation3 + $0x28] sm:$0xf]
  %v1861 = vld [vmem:[#allocation3 + $0x2c] sm:$0xf]
  %v1862 = vld [vmem:[#allocation3 + $0x30] sm:$0x1]
  %v1873 = vunpack.c.l.b16 %v1833
  %v1874 = vunpack.c.l.b16 %v1834
  %v1875 = vunpack.c.l.b16 %v1835
  %v1876 = vunpack.c.l.b16 %v1836
  %v1877 = vunpack.c.l.b16 %v1837
  %v1878 = vunpack.c.l.b16 %v1838
  %v1879 = vunpack.c.l.b16 %v1839
  %v1880 = vunpack.c.l.b16 %v1840
  %v1881 = vunpack.c.l.b16 %v1841
  %v1882 = vunpack.c.l.b16 %v1842
  %v1883 = vpack.c.b16 %v1874, %v1873
  %v1884 = vpack.c.b16 %v1876, %v1875
  %v1885 = vpack.c.b16 %v1878, %v1877
  %v1886 = vpack.c.b16 %v1880, %v1879
  %v1887 = vpack.c.b16 %v1882, %v1881
  %v1894 = vshrl.u32 %v1883, 16
  %v1896 = vshll.u32 %v1883, 16
  %v1898 = vrot.slane %v1896, 1
  %v1899 = vor.u32 %v1894, %v1898
  %v1901 = vshll.u32 %v1884, 16
  %v1903 = vrot.slane %v1901, 1
  %v1904 = vsel %vm109, %v1899, %v1903
  %v1905 = vshrl.u32 %v1884, 16
  %v1907 = vor.u32 %v1905, %v1903
  %v1909 = vshll.u32 %v1885, 16
  %v1911 = vrot.slane %v1909, 1
  %v1912 = vsel %vm109, %v1907, %v1911
  %v1913 = vshrl.u32 %v1885, 16
  %v1915 = vor.u32 %v1913, %v1911
  %v1917 = vshll.u32 %v1886, 16
  %v1919 = vrot.slane %v1917, 1
  %v1920 = vsel %vm109, %v1915, %v1919
  %v1921 = vshrl.u32 %v1886, 16
  %v1923 = vor.u32 %v1921, %v1919
  %v1925 = vshll.u32 %v1887, 16
  %v1927 = vrot.slane %v1925, 1
  %v1928 = vsel %vm109, %v1923, %v1927
  %v1929 = vshrl.u32 %v1887, 16
  %v1931 = vor.u32 %v1929, %v1927
  %v1939 = vunpack.c.l.b16 %v1843
  %v1940 = vunpack.c.l.b16 %v1844
  %v1941 = vpack.c.b16 %v1874, %v1939
  %v1942 = vpack.c.b16 %v1940, %v1881
  %vm1943 = vcmask 1046528
  %v1944 = vrot.slane %v1941, 1
  %v1945 = vrot.slane %v1884, 1
  %v1946 = vsel %vm1943, %v1944, %v1945
  %v1947 = vrot.slane %v1885, 1
  %v1948 = vsel %vm1943, %v1945, %v1947
  %v1949 = vrot.slane %v1886, 1
  %v1950 = vsel %vm1943, %v1947, %v1949
  %v1951 = vrot.slane %v1942, 1
  %v1952 = vsel %vm1943, %v1949, %v1951
  %v1961 = vunpack.c.l.b16 %v1845
  %v1962 = vunpack.c.l.b16 %v1846
  %v1963 = vunpack.c.l.b16 %v1847
  %v1964 = vpack.c.b16 %v1875, %v1961
  %v1965 = vpack.c.b16 %v1877, %v1876
  %v1966 = vpack.c.b16 %v1879, %v1878
  %v1967 = vpack.c.b16 %v1881, %v1880
  %v1968 = vpack.c.b16 %v1963, %v1962
  %v1970 = vshrl.u32 %v1964, 16
  %v1972 = vrot.slane %v1970, 1
  %v1973 = vshll.u32 %v1964, 16
  %v1975 = vrot.slane %v1973, 2
  %v1976 = vor.u32 %v1972, %v1975
  %v1978 = vshrl.u32 %v1965, 16
  %v1980 = vrot.slane %v1978, 1
  %v1981 = vshll.u32 %v1965, 16
  %v1983 = vrot.slane %v1981, 2
  %v1984 = vor.u32 %v1980, %v1983
  %v1985 = vsel %vm303, %v1976, %v1984
  %v1987 = vshrl.u32 %v1966, 16
  %v1989 = vrot.slane %v1987, 1
  %v1990 = vshll.u32 %v1966, 16
  %v1992 = vrot.slane %v1990, 2
  %v1993 = vor.u32 %v1989, %v1992
  %v1994 = vsel %vm303, %v1984, %v1993
  %v1996 = vshrl.u32 %v1967, 16
  %v1998 = vrot.slane %v1996, 1
  %v1999 = vshll.u32 %v1967, 16
  %v2001 = vrot.slane %v1999, 2
  %v2002 = vor.u32 %v1998, %v2001
  %v2003 = vsel %vm303, %v1993, %v2002
  %v2005 = vshrl.u32 %v1968, 16
  %v2007 = vrot.slane %v2005, 1
  %v2008 = vshll.u32 %v1968, 16
  %v2010 = vrot.slane %v2008, 2
  %v2011 = vor.u32 %v2007, %v2010
  %v2012 = vsel %vm303, %v2002, %v2011
  %v2020 = vunpack.c.l.b16 %v1848
  %v2021 = vunpack.c.l.b16 %v1849
  %v2022 = vpack.c.b16 %v1875, %v2020
  %v2023 = vpack.c.b16 %v2021, %v1962
  %v2024 = vrot.slane %v2022, 2
  %v2025 = vrot.slane %v1965, 2
  %v2026 = vsel %vm385, %v2024, %v2025
  %v2027 = vrot.slane %v1966, 2
  %v2028 = vsel %vm385, %v2025, %v2027
  %v2029 = vrot.slane %v1967, 2
  %v2030 = vsel %vm385, %v2027, %v2029
  %v2031 = vrot.slane %v2023, 2
  %v2032 = vsel %vm385, %v2029, %v2031
  %vm2038 = vsmask.f32 5376
  %v2040 = vshrl.u32 %v2022, 16
  %v2042 = vrot.slane %v2040, 2
  %v2043 = vshll.u32 %v2022, 16
  %v2045 = vrot.slane %v2043, 3
  %v2046 = vor.u32 %v2042, %v2045
  %v2047 = vrot.slane %v1978, 2
  %v2048 = vrot.slane %v1981, 3
  %v2049 = vor.u32 %v2047, %v2048
  %v2050 = vsel %vm2038, %v2046, %v2049
  %v2051 = vrot.slane %v1987, 2
  %v2052 = vrot.slane %v1990, 3
  %v2053 = vor.u32 %v2051, %v2052
  %v2054 = vsel %vm2038, %v2049, %v2053
  %v2055 = vrot.slane %v1996, 2
  %v2056 = vrot.slane %v1999, 3
  %v2057 = vor.u32 %v2055, %v2056
  %v2058 = vsel %vm2038, %v2053, %v2057
  %v2060 = vshrl.u32 %v2023, 16
  %v2062 = vrot.slane %v2060, 2
  %v2063 = vshll.u32 %v2023, 16
  %v2065 = vrot.slane %v2063, 3
  %v2066 = vor.u32 %v2062, %v2065
  %v2067 = vsel %vm2038, %v2057, %v2066
  %v2076 = vunpack.c.l.b16 %v1850
  %v2077 = vunpack.c.l.b16 %v1851
  %v2078 = vunpack.c.l.b16 %v1852
  %v2079 = vpack.c.b16 %v1876, %v2076
  %v2080 = vpack.c.b16 %v1962, %v1881
  %v2081 = vpack.c.b16 %v2078, %v2077
  %vm2082 = vcmask 1044480
  %v2083 = vrot.slane %v2079, 3
  %v2084 = vrot.slane %v1885, 3
  %v2085 = vsel %vm2082, %v2083, %v2084
  %v2086 = vrot.slane %v1886, 3
  %v2087 = vsel %vm2082, %v2084, %v2086
  %v2088 = vrot.slane %v2080, 3
  %v2089 = vsel %vm2082, %v2086, %v2088
  %v2090 = vrot.slane %v2081, 3
  %v2091 = vsel %vm2082, %v2088, %v2090
  %vm2097 = vsmask.f32 4352
  %v2099 = vshrl.u32 %v2079, 16
  %v2101 = vrot.slane %v2099, 3
  %v2102 = vshll.u32 %v2079, 16
  %v2104 = vrot.slane %v2102, 4
  %v2105 = vor.u32 %v2101, %v2104
  %v2106 = vrot.slane %v1913, 3
  %v2107 = vrot.slane %v1909, 4
  %v2108 = vor.u32 %v2106, %v2107
  %v2109 = vsel %vm2097, %v2105, %v2108
  %v2110 = vrot.slane %v1921, 3
  %v2111 = vrot.slane %v1917, 4
  %v2112 = vor.u32 %v2110, %v2111
  %v2113 = vsel %vm2097, %v2108, %v2112
  %v2115 = vshrl.u32 %v2080, 16
  %v2117 = vrot.slane %v2115, 3
  %v2118 = vshll.u32 %v2080, 16
  %v2120 = vrot.slane %v2118, 4
  %v2121 = vor.u32 %v2117, %v2120
  %v2122 = vsel %vm2097, %v2112, %v2121
  %v2124 = vshrl.u32 %v2081, 16
  %v2126 = vrot.slane %v2124, 3
  %v2127 = vshll.u32 %v2081, 16
  %v2129 = vrot.slane %v2127, 4
  %v2130 = vor.u32 %v2126, %v2129
  %v2131 = vsel %vm2097, %v2121, %v2130
  %v2147 = vunpack.c.l.b16 %v1853
  %v2148 = vunpack.c.l.b16 %v1854
  %v2149 = vunpack.c.l.b16 %v1855
  %v2150 = vunpack.c.l.b16 %v1856
  %v2151 = vunpack.c.l.b16 %v1857
  %v2152 = vunpack.c.l.b16 %v1858
  %v2153 = vunpack.c.l.b16 %v1859
  %v2154 = vunpack.c.l.b16 %v1860
  %v2155 = vunpack.c.l.b16 %v1861
  %v2156 = vunpack.c.l.b16 %v1862
  %v2157 = vpack.c.b16 %v2148, %v2147
  %v2158 = vpack.c.b16 %v2150, %v2149
  %v2159 = vpack.c.b16 %v2152, %v2151
  %v2160 = vpack.c.b16 %v2154, %v2153
  %v2161 = vpack.c.b16 %v2156, %v2155
  %v2167 = vld [vmem:[%s5] sm:$0xf]
  %v2168 = vld [vmem:[%s5 + $0x4] sm:$0xf]
  %v2169 = vld [vmem:[%s5 + $0x8] sm:$0xf]
  %v2170 = vld [vmem:[%s5 + $0xc] sm:$0xf]
  %v2171 = vld [vmem:[%s5 + $0x10] sm:$0xf]
  %v2172 = vld [vmem:[%s5 + $0x14] sm:$0xf]
  %v2173 = vld [vmem:[%s5 + $0x18] sm:$0xf]
  %v2174 = vld [vmem:[%s5 + $0x1c] sm:$0xf]
  %v2175 = vld [vmem:[%s5 + $0x20] sm:$0xf]
  %v2176 = vld [vmem:[%s5 + $0x24] sm:$0xf]
  %v2177 = vld [vmem:[%s5 + $0x28] sm:$0xf]
  %v2178 = vld [vmem:[%s5 + $0x2c] sm:$0xf]
  %v2179 = vld [vmem:[%s5 + $0x30] sm:$0xf]
  %v2180 = vld [vmem:[%s5 + $0x34] sm:$0xf]
  %v2181 = vld [vmem:[%s5 + $0x38] sm:$0xf]
  %v2182 = vld [vmem:[%s5 + $0x3c] sm:$0xf]
  %v2183 = vld [vmem:[%s5 + $0x40] sm:$0xf]
  %v2184 = vld [vmem:[%s5 + $0x44] sm:$0xf]
  %v2185 = vld [vmem:[%s5 + $0x48] sm:$0xf]
  %v2186 = vld [vmem:[%s5 + $0x4c] sm:$0xf]
  %v2187 = vld [vmem:[%s5 + $0x50] sm:$0xf]
  %v2188 = vld [vmem:[%s5 + $0x54] sm:$0xf]
  %v2189 = vld [vmem:[%s5 + $0x58] sm:$0xf]
  %v2190 = vld [vmem:[%s5 + $0x5c] sm:$0xf]
  %v2191 = vld [vmem:[%s5 + $0x60] sm:$0xf]
  %v2192 = vld [vmem:[%s5 + $0x64] sm:$0xf]
  %v2193 = vld [vmem:[%s5 + $0x68] sm:$0xf]
  %v2194 = vld [vmem:[%s5 + $0x6c] sm:$0xf]
  %v2195 = vld [vmem:[%s5 + $0x70] sm:$0xf]
  %v2196 = vld [vmem:[%s5 + $0x74] sm:$0xf]
  %v2197 = vld [vmem:[%s5 + $0x78] sm:$0xf]
  %v2198 = vld [vmem:[%s5 + $0x7c] sm:$0xf]
  %v2199 = vld [vmem:[%s5 + $0x80] sm:$0xf]
  %v2200 = vld [vmem:[%s5 + $0x84] sm:$0xf]
  %v2201 = vld [vmem:[%s5 + $0x88] sm:$0xf]
  %v2202 = vld [vmem:[%s5 + $0x8c] sm:$0xf]
  %v2203 = vld [vmem:[%s5 + $0x90] sm:$0xf]
  %v2204 = vld [vmem:[%s5 + $0x94] sm:$0xf]
  %v2205 = vld [vmem:[%s5 + $0x98] sm:$0xf]
  %v2206 = vld [vmem:[%s5 + $0x9c] sm:$0xf]
  %v2207 = vld [vmem:[%s5 + $0xa0] sm:$0xf]
  %v2208 = vld [vmem:[%s5 + $0xa4] sm:$0xf]
  %v2209 = vld [vmem:[%s5 + $0xa8] sm:$0xf]
  %v2210 = vld [vmem:[%s5 + $0xac] sm:$0xf]
  %v2211 = vld [vmem:[%s5 + $0xb0] sm:$0xf]
  %v2212 = vld [vmem:[%s5 + $0xb4] sm:$0xf]
  %v2213 = vld [vmem:[%s5 + $0xb8] sm:$0xf]
  %v2214 = vld [vmem:[%s5 + $0xbc] sm:$0xf]
  %v2215 = vld [vmem:[%s5 + $0xc0] sm:$0xf]
  %v2216 = vld [vmem:[%s5 + $0xc4] sm:$0xf]
  %v2217 = vld [vmem:[%s5 + $0xc8] sm:$0xf]
  %v2218 = vld [vmem:[%s5 + $0xcc] sm:$0xf]
  %v2219 = vld [vmem:[%s5 + $0xd0] sm:$0xf]
  %v2220 = vld [vmem:[%s5 + $0xd4] sm:$0xf]
  %v2221 = vld [vmem:[%s5 + $0xd8] sm:$0xf]
  %v2222 = vld [vmem:[%s5 + $0xdc] sm:$0xf]
  %v2223 = vld [vmem:[%s5 + $0xe0] sm:$0xf]
  %v2224 = vld [vmem:[%s5 + $0xe4] sm:$0xf]
  %v2225 = vld [vmem:[%s5 + $0xe8] sm:$0xf]
  %v2226 = vld [vmem:[%s5 + $0xec] sm:$0xf]
  %v2227 = vld [vmem:[%s5 + $0xf0] sm:$0xf]
  %v2228 = vld [vmem:[%s5 + $0xf4] sm:$0xf]
  %v2229 = vld [vmem:[%s5 + $0xf8] sm:$0xf]
  %v2230 = vld [vmem:[%s5 + $0xfc] sm:$0xf]
  %v2231 = vld [vmem:[%s5 + $0x100] sm:$0xf]
  %v2232 = vld [vmem:[%s5 + $0x104] sm:$0xf]
  %v2233 = vld [vmem:[%s5 + $0x108] sm:$0xf]
  %v2234 = vld [vmem:[%s5 + $0x10c] sm:$0xf]
  %v2235 = vld [vmem:[%s5 + $0x110] sm:$0xf]
  %v2236 = vld [vmem:[%s5 + $0x114] sm:$0xf]
  %v2237 = vld [vmem:[%s5 + $0x118] sm:$0xf]
  %v2238 = vld [vmem:[%s5 + $0x11c] sm:$0xf]
  %v2239 = vld [vmem:[%s5 + $0x120] sm:$0xf]
  %v2240 = vld [vmem:[%s5 + $0x124] sm:$0xf]
  %v2241 = vld [vmem:[%s5 + $0x128] sm:$0xf]
  %v2242 = vld [vmem:[%s5 + $0x12c] sm:$0xf]
  %v2243 = vld [vmem:[%s5 + $0x130] sm:$0xf]
  %v2244 = vld [vmem:[%s5 + $0x134] sm:$0xf]
  %v2245 = vld [vmem:[%s5 + $0x138] sm:$0xf]
  %v2246 = vld [vmem:[%s5 + $0x13c] sm:$0xf]
  %v2247 = vld [vmem:[%s5 + $0x140] sm:$0xf]
  %v2248 = vld [vmem:[%s5 + $0x144] sm:$0xf]
  %v2249 = vld [vmem:[%s5 + $0x148] sm:$0xf]
  %v2250 = vld [vmem:[%s5 + $0x14c] sm:$0xf]
  %v2251 = vld [vmem:[%s5 + $0x150] sm:$0xf]
  %v2252 = vld [vmem:[%s5 + $0x154] sm:$0xf]
  %v2253 = vld [vmem:[%s5 + $0x158] sm:$0xf]
  %v2254 = vld [vmem:[%s5 + $0x15c] sm:$0xf]
  %v2255 = vld [vmem:[%s5 + $0x160] sm:$0xf]
  %v2256 = vld [vmem:[%s5 + $0x164] sm:$0xf]
  %v2257 = vld [vmem:[%s5 + $0x168] sm:$0xf]
  %v2258 = vld [vmem:[%s5 + $0x16c] sm:$0xf]
  %v2259 = vld [vmem:[%s5 + $0x170] sm:$0xf]
  %v2260 = vld [vmem:[%s5 + $0x174] sm:$0xf]
  %v2261 = vld [vmem:[%s5 + $0x178] sm:$0xf]
  %v2262 = vld [vmem:[%s5 + $0x17c] sm:$0xf]
  %v2263 = vld [vmem:[%s5 + $0x180] sm:$0xf]
  %v2264 = vld [vmem:[%s5 + $0x184] sm:$0xf]
  %v2265 = vld [vmem:[%s5 + $0x188] sm:$0xf]
  %v2266 = vld [vmem:[%s5 + $0x18c] sm:$0xf]
  %v2267 = vld [vmem:[%s5 + $0x190] sm:$0xf]
  %v2268 = vld [vmem:[%s5 + $0x194] sm:$0xf]
  %v2269 = vld [vmem:[%s5 + $0x198] sm:$0xf]
  %v2270 = vld [vmem:[%s5 + $0x19c] sm:$0xf]
  %v2271 = vld [vmem:[%s5 + $0x1a0] sm:$0xf]
  %v2272 = vld [vmem:[%s5 + $0x1a4] sm:$0xf]
  %v2273 = vld [vmem:[%s5 + $0x1a8] sm:$0xf]
  %v2274 = vld [vmem:[%s5 + $0x1ac] sm:$0xf]
  %v2275 = vld [vmem:[%s5 + $0x1b0] sm:$0xf]
  %v2276 = vld [vmem:[%s5 + $0x1b4] sm:$0xf]
  %v2277 = vld [vmem:[%s5 + $0x1b8] sm:$0xf]
  %v2278 = vld [vmem:[%s5 + $0x1bc] sm:$0xf]
  %v2279 = vld [vmem:[%s5 + $0x1c0] sm:$0xf]
  %v2280 = vld [vmem:[%s5 + $0x1c4] sm:$0xf]
  %v2281 = vld [vmem:[%s5 + $0x1c8] sm:$0xf]
  %v2282 = vld [vmem:[%s5 + $0x1cc] sm:$0xf]
  %v2283 = vld [vmem:[%s5 + $0x1d0] sm:$0xf]
  %v2284 = vld [vmem:[%s5 + $0x1d4] sm:$0xf]
  %v2285 = vld [vmem:[%s5 + $0x1d8] sm:$0xf]
  %v2286 = vld [vmem:[%s5 + $0x1dc] sm:$0xf]
  %v2287 = vld [vmem:[%s5 + $0x1e0] sm:$0xf]
  %v2288 = vld [vmem:[%s5 + $0x1e4] sm:$0xf]
  %v2289 = vld [vmem:[%s5 + $0x1e8] sm:$0xf]
  %v2290 = vld [vmem:[%s5 + $0x1ec] sm:$0xf]
  %v2291 = vld [vmem:[%s5 + $0x1f0] sm:$0xf]
  %v2292 = vld [vmem:[%s5 + $0x1f4] sm:$0xf]
  %v2293 = vld [vmem:[%s5 + $0x1f8] sm:$0xf]
  %v2294 = vld [vmem:[%s5 + $0x1fc] sm:$0xf]
  %v2295 = vld [vmem:[%s5 + $0x200] sm:$0xf]
  %v2296 = vld [vmem:[%s5 + $0x204] sm:$0xf]
  %v2297 = vld [vmem:[%s5 + $0x208] sm:$0xf]
  %v2298 = vld [vmem:[%s5 + $0x20c] sm:$0xf]
  %v2299 = vld [vmem:[%s5 + $0x210] sm:$0xf]
  %v2300 = vld [vmem:[%s5 + $0x214] sm:$0xf]
  %v2301 = vld [vmem:[%s5 + $0x218] sm:$0xf]
  %v2302 = vld [vmem:[%s5 + $0x21c] sm:$0xf]
  %v2303 = vld [vmem:[%s5 + $0x220] sm:$0xf]
  %v2304 = vld [vmem:[%s5 + $0x224] sm:$0xf]
  %v2305 = vld [vmem:[%s5 + $0x228] sm:$0xf]
  %v2306 = vld [vmem:[%s5 + $0x22c] sm:$0xf]
  %v2307 = vld [vmem:[%s5 + $0x230] sm:$0xf]
  %v2308 = vld [vmem:[%s5 + $0x234] sm:$0xf]
  %v2309 = vld [vmem:[%s5 + $0x238] sm:$0xf]
  %v2310 = vld [vmem:[%s5 + $0x23c] sm:$0xf]
  %v2312 = vperm.slane %v28, 0
  %v2458 = vunpack.c.l.b16 %v2167
  %v2459 = vunpack.c.l.b16 %v2168
  %v2460 = vunpack.c.l.b16 %v2169
  %v2461 = vunpack.c.l.b16 %v2170
  %v2462 = vunpack.c.l.b16 %v2171
  %v2463 = vunpack.c.l.b16 %v2172
  %v2464 = vunpack.c.l.b16 %v2173
  %v2465 = vunpack.c.l.b16 %v2174
  %v2466 = vunpack.c.l.b16 %v2175
  %v2467 = vunpack.c.l.b16 %v2176
  %v2468 = vunpack.c.l.b16 %v2177
  %v2469 = vunpack.c.l.b16 %v2178
  %v2470 = vunpack.c.l.b16 %v2179
  %v2471 = vunpack.c.l.b16 %v2180
  %v2472 = vunpack.c.l.b16 %v2181
  %v2473 = vunpack.c.l.b16 %v2182
  %v2474 = vunpack.c.l.b16 %v2183
  %v2475 = vunpack.c.l.b16 %v2184
  %v2476 = vunpack.c.l.b16 %v2185
  %v2477 = vunpack.c.l.b16 %v2186
  %v2478 = vunpack.c.l.b16 %v2187
  %v2479 = vunpack.c.l.b16 %v2188
  %v2480 = vunpack.c.l.b16 %v2189
  %v2481 = vunpack.c.l.b16 %v2190
  %v2482 = vunpack.c.l.b16 %v2191
  %v2483 = vunpack.c.l.b16 %v2192
  %v2484 = vunpack.c.l.b16 %v2193
  %v2485 = vunpack.c.l.b16 %v2194
  %v2486 = vunpack.c.l.b16 %v2195
  %v2487 = vunpack.c.l.b16 %v2196
  %v2488 = vunpack.c.l.b16 %v2197
  %v2489 = vunpack.c.l.b16 %v2198
  %v2490 = vunpack.c.l.b16 %v2199
  %v2491 = vunpack.c.l.b16 %v2200
  %v2492 = vunpack.c.l.b16 %v2201
  %v2493 = vunpack.c.l.b16 %v2202
  %v2494 = vunpack.c.l.b16 %v2203
  %v2495 = vunpack.c.l.b16 %v2204
  %v2496 = vunpack.c.l.b16 %v2205
  %v2497 = vunpack.c.l.b16 %v2206
  %v2498 = vunpack.c.l.b16 %v2207
  %v2499 = vunpack.c.l.b16 %v2208
  %v2500 = vunpack.c.l.b16 %v2209
  %v2501 = vunpack.c.l.b16 %v2210
  %v2502 = vunpack.c.l.b16 %v2211
  %v2503 = vunpack.c.l.b16 %v2212
  %v2504 = vunpack.c.l.b16 %v2213
  %v2505 = vunpack.c.l.b16 %v2214
  %v2506 = vunpack.c.l.b16 %v2215
  %v2507 = vunpack.c.l.b16 %v2216
  %v2508 = vunpack.c.l.b16 %v2217
  %v2509 = vunpack.c.l.b16 %v2218
  %v2510 = vunpack.c.l.b16 %v2219
  %v2511 = vunpack.c.l.b16 %v2220
  %v2512 = vunpack.c.l.b16 %v2221
  %v2513 = vunpack.c.l.b16 %v2222
  %v2514 = vunpack.c.l.b16 %v2223
  %v2515 = vunpack.c.l.b16 %v2224
  %v2516 = vunpack.c.l.b16 %v2225
  %v2517 = vunpack.c.l.b16 %v2226
  %v2518 = vunpack.c.l.b16 %v2227
  %v2519 = vunpack.c.l.b16 %v2228
  %v2520 = vunpack.c.l.b16 %v2229
  %v2521 = vunpack.c.l.b16 %v2230
  %v2522 = vunpack.c.l.b16 %v2231
  %v2523 = vunpack.c.l.b16 %v2232
  %v2524 = vunpack.c.l.b16 %v2233
  %v2525 = vunpack.c.l.b16 %v2234
  %v2526 = vunpack.c.l.b16 %v2235
  %v2527 = vunpack.c.l.b16 %v2236
  %v2528 = vunpack.c.l.b16 %v2237
  %v2529 = vunpack.c.l.b16 %v2238
  %v2530 = vunpack.c.l.b16 %v2239
  %v2531 = vunpack.c.l.b16 %v2240
  %v2532 = vunpack.c.l.b16 %v2241
  %v2533 = vunpack.c.l.b16 %v2242
  %v2534 = vunpack.c.l.b16 %v2243
  %v2535 = vunpack.c.l.b16 %v2244
  %v2536 = vunpack.c.l.b16 %v2245
  %v2537 = vunpack.c.l.b16 %v2246
  %v2538 = vunpack.c.l.b16 %v2247
  %v2539 = vunpack.c.l.b16 %v2248
  %v2540 = vunpack.c.l.b16 %v2249
  %v2541 = vunpack.c.l.b16 %v2250
  %v2542 = vunpack.c.l.b16 %v2251
  %v2543 = vunpack.c.l.b16 %v2252
  %v2544 = vunpack.c.l.b16 %v2253
  %v2545 = vunpack.c.l.b16 %v2254
  %v2546 = vunpack.c.l.b16 %v2255
  %v2547 = vunpack.c.l.b16 %v2256
  %v2548 = vunpack.c.l.b16 %v2257
  %v2549 = vunpack.c.l.b16 %v2258
  %v2550 = vunpack.c.l.b16 %v2259
  %v2551 = vunpack.c.l.b16 %v2260
  %v2552 = vunpack.c.l.b16 %v2261
  %v2553 = vunpack.c.l.b16 %v2262
  %v2554 = vunpack.c.l.b16 %v2263
  %v2555 = vunpack.c.l.b16 %v2264
  %v2556 = vunpack.c.l.b16 %v2265
  %v2557 = vunpack.c.l.b16 %v2266
  %v2558 = vunpack.c.l.b16 %v2267
  %v2559 = vunpack.c.l.b16 %v2268
  %v2560 = vunpack.c.l.b16 %v2269
  %v2561 = vunpack.c.l.b16 %v2270
  %v2562 = vunpack.c.l.b16 %v2271
  %v2563 = vunpack.c.l.b16 %v2272
  %v2564 = vunpack.c.l.b16 %v2273
  %v2565 = vunpack.c.l.b16 %v2274
  %v2566 = vunpack.c.l.b16 %v2275
  %v2567 = vunpack.c.l.b16 %v2276
  %v2568 = vunpack.c.l.b16 %v2277
  %v2569 = vunpack.c.l.b16 %v2278
  %v2570 = vunpack.c.l.b16 %v2279
  %v2571 = vunpack.c.l.b16 %v2280
  %v2572 = vunpack.c.l.b16 %v2281
  %v2573 = vunpack.c.l.b16 %v2282
  %v2574 = vunpack.c.l.b16 %v2283
  %v2575 = vunpack.c.l.b16 %v2284
  %v2576 = vunpack.c.l.b16 %v2285
  %v2577 = vunpack.c.l.b16 %v2286
  %v2578 = vunpack.c.l.b16 %v2287
  %v2579 = vunpack.c.l.b16 %v2288
  %v2580 = vunpack.c.l.b16 %v2289
  %v2581 = vunpack.c.l.b16 %v2290
  %v2582 = vunpack.c.l.b16 %v2291
  %v2583 = vunpack.c.l.b16 %v2292
  %v2584 = vunpack.c.l.b16 %v2293
  %v2585 = vunpack.c.l.b16 %v2294
  %v2586 = vunpack.c.l.b16 %v2295
  %v2587 = vunpack.c.l.b16 %v2296
  %v2588 = vunpack.c.l.b16 %v2297
  %v2589 = vunpack.c.l.b16 %v2298
  %v2590 = vunpack.c.l.b16 %v2299
  %v2591 = vunpack.c.l.b16 %v2300
  %v2592 = vunpack.c.l.b16 %v2301
  %v2593 = vunpack.c.l.b16 %v2302
  %v2594 = vunpack.c.l.b16 %v2303
  %v2595 = vunpack.c.l.b16 %v2304
  %v2596 = vunpack.c.l.b16 %v2305
  %v2597 = vunpack.c.l.b16 %v2306
  %v2598 = vunpack.c.l.b16 %v2307
  %v2599 = vunpack.c.l.b16 %v2308
  %v2600 = vunpack.c.l.b16 %v2309
  %v2601 = vunpack.c.l.b16 %v2310
  %v2602 = vpack.c.b16 %v2459, %v2458
  %v2603 = vpack.c.b16 %v2461, %v2460
  %v2604 = vpack.c.b16 %v2463, %v2462
  %v2605 = vpack.c.b16 %v2465, %v2464
  %v2606 = vpack.c.b16 %v2467, %v2466
  %v2607 = vpack.c.b16 %v2469, %v2468
  %v2608 = vpack.c.b16 %v2471, %v2470
  %v2609 = vpack.c.b16 %v2473, %v2472
  %v2610 = vpack.c.b16 %v2475, %v2474
  %v2611 = vpack.c.b16 %v2477, %v2476
  %v2612 = vpack.c.b16 %v2479, %v2478
  %v2613 = vpack.c.b16 %v2481, %v2480
  %v2614 = vpack.c.b16 %v2483, %v2482
  %v2615 = vpack.c.b16 %v2485, %v2484
  %v2616 = vpack.c.b16 %v2487, %v2486
  %v2617 = vpack.c.b16 %v2489, %v2488
  %v2618 = vpack.c.b16 %v2491, %v2490
  %v2619 = vpack.c.b16 %v2493, %v2492
  %v2620 = vpack.c.b16 %v2495, %v2494
  %v2621 = vpack.c.b16 %v2497, %v2496
  %v2622 = vpack.c.b16 %v2499, %v2498
  %v2623 = vpack.c.b16 %v2501, %v2500
  %v2624 = vpack.c.b16 %v2503, %v2502
  %v2625 = vpack.c.b16 %v2505, %v2504
  %v2626 = vpack.c.b16 %v2507, %v2506
  %v2627 = vpack.c.b16 %v2509, %v2508
  %v2628 = vpack.c.b16 %v2511, %v2510
  %v2629 = vpack.c.b16 %v2513, %v2512
  %v2630 = vpack.c.b16 %v2515, %v2514
  %v2631 = vpack.c.b16 %v2517, %v2516
  %v2632 = vpack.c.b16 %v2519, %v2518
  %v2633 = vpack.c.b16 %v2521, %v2520
  %v2634 = vpack.c.b16 %v2523, %v2522
  %v2635 = vpack.c.b16 %v2525, %v2524
  %v2636 = vpack.c.b16 %v2527, %v2526
  %v2637 = vpack.c.b16 %v2529, %v2528
  %v2638 = vpack.c.b16 %v2531, %v2530
  %v2639 = vpack.c.b16 %v2533, %v2532
  %v2640 = vpack.c.b16 %v2535, %v2534
  %v2641 = vpack.c.b16 %v2537, %v2536
  %v2642 = vpack.c.b16 %v2539, %v2538
  %v2643 = vpack.c.b16 %v2541, %v2540
  %v2644 = vpack.c.b16 %v2543, %v2542
  %v2645 = vpack.c.b16 %v2545, %v2544
  %v2646 = vpack.c.b16 %v2547, %v2546
  %v2647 = vpack.c.b16 %v2549, %v2548
  %v2648 = vpack.c.b16 %v2551, %v2550
  %v2649 = vpack.c.b16 %v2553, %v2552
  %v2650 = vpack.c.b16 %v2555, %v2554
  %v2651 = vpack.c.b16 %v2557, %v2556
  %v2652 = vpack.c.b16 %v2559, %v2558
  %v2653 = vpack.c.b16 %v2561, %v2560
  %v2654 = vpack.c.b16 %v2563, %v2562
  %v2655 = vpack.c.b16 %v2565, %v2564
  %v2656 = vpack.c.b16 %v2567, %v2566
  %v2657 = vpack.c.b16 %v2569, %v2568
  %v2658 = vpack.c.b16 %v2571, %v2570
  %v2659 = vpack.c.b16 %v2573, %v2572
  %v2660 = vpack.c.b16 %v2575, %v2574
  %v2661 = vpack.c.b16 %v2577, %v2576
  %v2662 = vpack.c.b16 %v2579, %v2578
  %v2663 = vpack.c.b16 %v2581, %v2580
  %v2664 = vpack.c.b16 %v2583, %v2582
  %v2665 = vpack.c.b16 %v2585, %v2584
  %v2666 = vpack.c.b16 %v2587, %v2586
  %v2667 = vpack.c.b16 %v2589, %v2588
  %v2668 = vpack.c.b16 %v2591, %v2590
  %v2669 = vpack.c.b16 %v2593, %v2592
  %v2670 = vpack.c.b16 %v2595, %v2594
  %v2671 = vpack.c.b16 %v2597, %v2596
  %v2672 = vpack.c.b16 %v2599, %v2598
  %v2673 = vpack.c.b16 %v2601, %v2600
  %2746 = vmatpush.bf16.msra.mxu0 %v2609
  %2747 = vmatpush.bf16.msra.mxu0 %v2608
  %2748 = vmatpush.bf16.msra.mxu0 %v2607
  %2749 = vmatpush.bf16.msra.mxu0 %v2606
  %2750 = vmatpush.bf16.msra.mxu0 %v2605
  %2751 = vmatpush.bf16.msra.mxu0 %v2604
  %2752 = vmatpush.bf16.msra.mxu0 %v2603
  %2753 = vmatpush.bf16.msra.mxu0 %v2602
  %2754 = vmatmul.bf16.gmra.mxu0 %v1883
  %v2755 = vpop.f32.mrf.mxu0
  %v2756 = vadd.f32 %v2312, %v2755
  %v2757 = vpop.f32.mrf.mxu0
  %v2758 = vadd.f32 %v2312, %v2757
  %2759 = vmatmul.bf16.gmra.mxu0 %v1884
  %v2760 = vpop.f32.mrf.mxu0
  %v2761 = vadd.f32 %v2312, %v2760
  %v2762 = vpop.f32.mrf.mxu0
  %v2763 = vadd.f32 %v2312, %v2762
  %2764 = vmatmul.bf16.gmra.mxu0 %v1885
  %v2765 = vpop.f32.mrf.mxu0
  %v2766 = vadd.f32 %v2312, %v2765
  %v2767 = vpop.f32.mrf.mxu0
  %v2768 = vadd.f32 %v2312, %v2767
  %2769 = vmatmul.bf16.gmra.mxu0 %v1886
  %v2770 = vpop.f32.mrf.mxu0
  %v2771 = vadd.f32 %v2312, %v2770
  %v2772 = vpop.f32.mrf.mxu0
  %v2773 = vadd.f32 %v2312, %v2772
  %2774 = vmatmul.bf16.gmra.mxu0 %v1887
  %v2775 = vpop.f32.mrf.mxu0
  %v2776 = vadd.f32 %v2312, %v2775
  %v2777 = vpop.f32.mrf.mxu0
  %v2778 = vadd.f32 %v2312, %v2777
  %2779 = vdwg.mxu0
  %2780 = vmatpush.bf16.msra.mxu0 %v2617
  %2781 = vmatpush.bf16.msra.mxu0 %v2616
  %2782 = vmatpush.bf16.msra.mxu0 %v2615
  %2783 = vmatpush.bf16.msra.mxu0 %v2614
  %2784 = vmatpush.bf16.msra.mxu0 %v2613
  %2785 = vmatpush.bf16.msra.mxu0 %v2612
  %2786 = vmatpush.bf16.msra.mxu0 %v2611
  %2787 = vmatpush.bf16.msra.mxu0 %v2610
  %2788 = vmatmul.bf16.gmra.mxu0 %v1904
  %v2789 = vpop.f32.mrf.mxu0
  %v2790 = vadd.f32 %v2756, %v2789
  %v2791 = vpop.f32.mrf.mxu0
  %v2792 = vadd.f32 %v2758, %v2791
  %2793 = vmatmul.bf16.gmra.mxu0 %v1912
  %v2794 = vpop.f32.mrf.mxu0
  %v2795 = vadd.f32 %v2761, %v2794
  %v2796 = vpop.f32.mrf.mxu0
  %v2797 = vadd.f32 %v2763, %v2796
  %2798 = vmatmul.bf16.gmra.mxu0 %v1920
  %v2799 = vpop.f32.mrf.mxu0
  %v2800 = vadd.f32 %v2766, %v2799
  %v2801 = vpop.f32.mrf.mxu0
  %v2802 = vadd.f32 %v2768, %v2801
  %2803 = vmatmul.bf16.gmra.mxu0 %v1928
  %v2804 = vpop.f32.mrf.mxu0
  %v2805 = vadd.f32 %v2771, %v2804
  %v2806 = vpop.f32.mrf.mxu0
  %v2807 = vadd.f32 %v2773, %v2806
  %2808 = vmatmul.bf16.gmra.mxu0 %v1931
  %v2809 = vpop.f32.mrf.mxu0
  %v2810 = vadd.f32 %v2776, %v2809
  %v2811 = vpop.f32.mrf.mxu0
  %v2812 = vadd.f32 %v2778, %v2811
  %2813 = vdwg.mxu0
  %2814 = vmatpush.bf16.msra.mxu0 %v2625
  %2815 = vmatpush.bf16.msra.mxu0 %v2624
  %2816 = vmatpush.bf16.msra.mxu0 %v2623
  %2817 = vmatpush.bf16.msra.mxu0 %v2622
  %2818 = vmatpush.bf16.msra.mxu0 %v2621
  %2819 = vmatpush.bf16.msra.mxu0 %v2620
  %2820 = vmatpush.bf16.msra.mxu0 %v2619
  %2821 = vmatpush.bf16.msra.mxu0 %v2618
  %2822 = vmatmul.bf16.gmra.mxu0 %v1946
  %v2823 = vpop.f32.mrf.mxu0
  %v2824 = vadd.f32 %v2790, %v2823
  %v2825 = vpop.f32.mrf.mxu0
  %v2826 = vadd.f32 %v2792, %v2825
  %2827 = vmatmul.bf16.gmra.mxu0 %v1948
  %v2828 = vpop.f32.mrf.mxu0
  %v2829 = vadd.f32 %v2795, %v2828
  %v2830 = vpop.f32.mrf.mxu0
  %v2831 = vadd.f32 %v2797, %v2830
  %2832 = vmatmul.bf16.gmra.mxu0 %v1950
  %v2833 = vpop.f32.mrf.mxu0
  %v2834 = vadd.f32 %v2800, %v2833
  %v2835 = vpop.f32.mrf.mxu0
  %v2836 = vadd.f32 %v2802, %v2835
  %2837 = vmatmul.bf16.gmra.mxu0 %v1952
  %v2838 = vpop.f32.mrf.mxu0
  %v2839 = vadd.f32 %v2805, %v2838
  %v2840 = vpop.f32.mrf.mxu0
  %v2841 = vadd.f32 %v2807, %v2840
  %2842 = vmatmul.bf16.gmra.mxu0 %v1951
  %v2843 = vpop.f32.mrf.mxu0
  %v2844 = vadd.f32 %v2810, %v2843
  %v2845 = vpop.f32.mrf.mxu0
  %v2846 = vadd.f32 %v2812, %v2845
  %2847 = vdwg.mxu0
  %2848 = vmatpush.bf16.msra.mxu0 %v2633
  %2849 = vmatpush.bf16.msra.mxu0 %v2632
  %2850 = vmatpush.bf16.msra.mxu0 %v2631
  %2851 = vmatpush.bf16.msra.mxu0 %v2630
  %2852 = vmatpush.bf16.msra.mxu0 %v2629
  %2853 = vmatpush.bf16.msra.mxu0 %v2628
  %2854 = vmatpush.bf16.msra.mxu0 %v2627
  %2855 = vmatpush.bf16.msra.mxu0 %v2626
  %2856 = vmatmul.bf16.gmra.mxu0 %v1985
  %v2857 = vpop.f32.mrf.mxu0
  %v2858 = vadd.f32 %v2824, %v2857
  %v2859 = vpop.f32.mrf.mxu0
  %v2860 = vadd.f32 %v2826, %v2859
  %2861 = vmatmul.bf16.gmra.mxu0 %v1994
  %v2862 = vpop.f32.mrf.mxu0
  %v2863 = vadd.f32 %v2829, %v2862
  %v2864 = vpop.f32.mrf.mxu0
  %v2865 = vadd.f32 %v2831, %v2864
  %2866 = vmatmul.bf16.gmra.mxu0 %v2003
  %v2867 = vpop.f32.mrf.mxu0
  %v2868 = vadd.f32 %v2834, %v2867
  %v2869 = vpop.f32.mrf.mxu0
  %v2870 = vadd.f32 %v2836, %v2869
  %2871 = vmatmul.bf16.gmra.mxu0 %v2012
  %v2872 = vpop.f32.mrf.mxu0
  %v2873 = vadd.f32 %v2839, %v2872
  %v2874 = vpop.f32.mrf.mxu0
  %v2875 = vadd.f32 %v2841, %v2874
  %2876 = vmatmul.bf16.gmra.mxu0 %v2011
  %v2877 = vpop.f32.mrf.mxu0
  %v2878 = vadd.f32 %v2844, %v2877
  %v2879 = vpop.f32.mrf.mxu0
  %v2880 = vadd.f32 %v2846, %v2879
  %2881 = vdwg.mxu0
  %2882 = vmatpush.bf16.msra.mxu0 %v2641
  %2883 = vmatpush.bf16.msra.mxu0 %v2640
  %2884 = vmatpush.bf16.msra.mxu0 %v2639
  %2885 = vmatpush.bf16.msra.mxu0 %v2638
  %2886 = vmatpush.bf16.msra.mxu0 %v2637
  %2887 = vmatpush.bf16.msra.mxu0 %v2636
  %2888 = vmatpush.bf16.msra.mxu0 %v2635
  %2889 = vmatpush.bf16.msra.mxu0 %v2634
  %2890 = vmatmul.bf16.gmra.mxu0 %v2026
  %v2891 = vpop.f32.mrf.mxu0
  %v2892 = vadd.f32 %v2858, %v2891
  %v2893 = vpop.f32.mrf.mxu0
  %v2894 = vadd.f32 %v2860, %v2893
  %2895 = vmatmul.bf16.gmra.mxu0 %v2028
  %v2896 = vpop.f32.mrf.mxu0
  %v2897 = vadd.f32 %v2863, %v2896
  %v2898 = vpop.f32.mrf.mxu0
  %v2899 = vadd.f32 %v2865, %v2898
  %2900 = vmatmul.bf16.gmra.mxu0 %v2030
  %v2901 = vpop.f32.mrf.mxu0
  %v2902 = vadd.f32 %v2868, %v2901
  %v2903 = vpop.f32.mrf.mxu0
  %v2904 = vadd.f32 %v2870, %v2903
  %2905 = vmatmul.bf16.gmra.mxu0 %v2032
  %v2906 = vpop.f32.mrf.mxu0
  %v2907 = vadd.f32 %v2873, %v2906
  %v2908 = vpop.f32.mrf.mxu0
  %v2909 = vadd.f32 %v2875, %v2908
  %2910 = vmatmul.bf16.gmra.mxu0 %v2031
  %v2911 = vpop.f32.mrf.mxu0
  %v2912 = vadd.f32 %v2878, %v2911
  %v2913 = vpop.f32.mrf.mxu0
  %v2914 = vadd.f32 %v2880, %v2913
  %2915 = vdwg.mxu0
  %2916 = vmatpush.bf16.msra.mxu0 %v2649
  %2917 = vmatpush.bf16.msra.mxu0 %v2648
  %2918 = vmatpush.bf16.msra.mxu0 %v2647
  %2919 = vmatpush.bf16.msra.mxu0 %v2646
  %2920 = vmatpush.bf16.msra.mxu0 %v2645
  %2921 = vmatpush.bf16.msra.mxu0 %v2644
  %2922 = vmatpush.bf16.msra.mxu0 %v2643
  %2923 = vmatpush.bf16.msra.mxu0 %v2642
  %2924 = vmatmul.bf16.gmra.mxu0 %v2050
  %v2925 = vpop.f32.mrf.mxu0
  %v2926 = vadd.f32 %v2892, %v2925
  %v2927 = vpop.f32.mrf.mxu0
  %v2928 = vadd.f32 %v2894, %v2927
  %2929 = vmatmul.bf16.gmra.mxu0 %v2054
  %v2930 = vpop.f32.mrf.mxu0
  %v2931 = vadd.f32 %v2897, %v2930
  %v2932 = vpop.f32.mrf.mxu0
  %v2933 = vadd.f32 %v2899, %v2932
  %2934 = vmatmul.bf16.gmra.mxu0 %v2058
  %v2935 = vpop.f32.mrf.mxu0
  %v2936 = vadd.f32 %v2902, %v2935
  %v2937 = vpop.f32.mrf.mxu0
  %v2938 = vadd.f32 %v2904, %v2937
  %2939 = vmatmul.bf16.gmra.mxu0 %v2067
  %v2940 = vpop.f32.mrf.mxu0
  %v2941 = vadd.f32 %v2907, %v2940
  %v2942 = vpop.f32.mrf.mxu0
  %v2943 = vadd.f32 %v2909, %v2942
  %2944 = vmatmul.bf16.gmra.mxu0 %v2066
  %v2945 = vpop.f32.mrf.mxu0
  %v2946 = vadd.f32 %v2912, %v2945
  %v2947 = vpop.f32.mrf.mxu0
  %v2948 = vadd.f32 %v2914, %v2947
  %2949 = vdwg.mxu0
  %2950 = vmatpush.bf16.msra.mxu0 %v2657
  %2951 = vmatpush.bf16.msra.mxu0 %v2656
  %2952 = vmatpush.bf16.msra.mxu0 %v2655
  %2953 = vmatpush.bf16.msra.mxu0 %v2654
  %2954 = vmatpush.bf16.msra.mxu0 %v2653
  %2955 = vmatpush.bf16.msra.mxu0 %v2652
  %2956 = vmatpush.bf16.msra.mxu0 %v2651
  %2957 = vmatpush.bf16.msra.mxu0 %v2650
  %2958 = vmatmul.bf16.gmra.mxu0 %v2085
  %v2959 = vpop.f32.mrf.mxu0
  %v2960 = vadd.f32 %v2926, %v2959
  %v2961 = vpop.f32.mrf.mxu0
  %v2962 = vadd.f32 %v2928, %v2961
  %2963 = vmatmul.bf16.gmra.mxu0 %v2087
  %v2964 = vpop.f32.mrf.mxu0
  %v2965 = vadd.f32 %v2931, %v2964
  %v2966 = vpop.f32.mrf.mxu0
  %v2967 = vadd.f32 %v2933, %v2966
  %2968 = vmatmul.bf16.gmra.mxu0 %v2089
  %v2969 = vpop.f32.mrf.mxu0
  %v2970 = vadd.f32 %v2936, %v2969
  %v2971 = vpop.f32.mrf.mxu0
  %v2972 = vadd.f32 %v2938, %v2971
  %2973 = vmatmul.bf16.gmra.mxu0 %v2091
  %v2974 = vpop.f32.mrf.mxu0
  %v2975 = vadd.f32 %v2941, %v2974
  %v2976 = vpop.f32.mrf.mxu0
  %v2977 = vadd.f32 %v2943, %v2976
  %2978 = vmatmul.bf16.gmra.mxu0 %v2090
  %v2979 = vpop.f32.mrf.mxu0
  %v2980 = vadd.f32 %v2946, %v2979
  %v2981 = vpop.f32.mrf.mxu0
  %v2982 = vadd.f32 %v2948, %v2981
  %2983 = vdwg.mxu0
  %2984 = vmatpush.bf16.msra.mxu0 %v2665
  %2985 = vmatpush.bf16.msra.mxu0 %v2664
  %2986 = vmatpush.bf16.msra.mxu0 %v2663
  %2987 = vmatpush.bf16.msra.mxu0 %v2662
  %2988 = vmatpush.bf16.msra.mxu0 %v2661
  %2989 = vmatpush.bf16.msra.mxu0 %v2660
  %2990 = vmatpush.bf16.msra.mxu0 %v2659
  %2991 = vmatpush.bf16.msra.mxu0 %v2658
  %2992 = vmatmul.bf16.gmra.mxu0 %v2109
  %v2993 = vpop.f32.mrf.mxu0
  %v2994 = vadd.f32 %v2960, %v2993
  %v2995 = vpop.f32.mrf.mxu0
  %v2996 = vadd.f32 %v2962, %v2995
  %2997 = vmatmul.bf16.gmra.mxu0 %v2113
  %v2998 = vpop.f32.mrf.mxu0
  %v2999 = vadd.f32 %v2965, %v2998
  %v3000 = vpop.f32.mrf.mxu0
  %v3001 = vadd.f32 %v2967, %v3000
  %3002 = vmatmul.bf16.gmra.mxu0 %v2122
  %v3003 = vpop.f32.mrf.mxu0
  %v3004 = vadd.f32 %v2970, %v3003
  %v3005 = vpop.f32.mrf.mxu0
  %v3006 = vadd.f32 %v2972, %v3005
  %3007 = vmatmul.bf16.gmra.mxu0 %v2131
  %v3008 = vpop.f32.mrf.mxu0
  %v3009 = vadd.f32 %v2975, %v3008
  %v3010 = vpop.f32.mrf.mxu0
  %v3011 = vadd.f32 %v2977, %v3010
  %3012 = vmatmul.bf16.gmra.mxu0 %v2130
  %v3013 = vpop.f32.mrf.mxu0
  %v3014 = vadd.f32 %v2980, %v3013
  %v3015 = vpop.f32.mrf.mxu0
  %v3016 = vadd.f32 %v2982, %v3015
  %3017 = vdwg.mxu0
  %3018 = vmatpush.bf16.msra.mxu0 %v2673
  %3019 = vmatpush.bf16.msra.mxu0 %v2672
  %3020 = vmatpush.bf16.msra.mxu0 %v2671
  %3021 = vmatpush.bf16.msra.mxu0 %v2670
  %3022 = vmatpush.bf16.msra.mxu0 %v2669
  %3023 = vmatpush.bf16.msra.mxu0 %v2668
  %3024 = vmatpush.bf16.msra.mxu0 %v2667
  %3025 = vmatpush.bf16.msra.mxu0 %v2666
  %3026 = vmatmul.bf16.gmra.mxu0 %v2157
  %v3027 = vpop.f32.mrf.mxu0
  %v3028 = vadd.f32 %v2994, %v3027
  %v3029 = vpop.f32.mrf.mxu0
  %v3030 = vadd.f32 %v2996, %v3029
  %3031 = vmatmul.bf16.gmra.mxu0 %v2158
  %v3032 = vpop.f32.mrf.mxu0
  %v3033 = vadd.f32 %v2999, %v3032
  %v3034 = vpop.f32.mrf.mxu0
  %v3035 = vadd.f32 %v3001, %v3034
  %3036 = vmatmul.bf16.gmra.mxu0 %v2159
  %v3037 = vpop.f32.mrf.mxu0
  %v3038 = vadd.f32 %v3004, %v3037
  %v3039 = vpop.f32.mrf.mxu0
  %v3040 = vadd.f32 %v3006, %v3039
  %3041 = vmatmul.bf16.gmra.mxu0 %v2160
  %v3042 = vpop.f32.mrf.mxu0
  %v3043 = vadd.f32 %v3009, %v3042
  %v3044 = vpop.f32.mrf.mxu0
  %v3045 = vadd.f32 %v3011, %v3044
  %3046 = vmatmul.bf16.gmra.mxu0 %v2161
  %v3047 = vpop.f32.mrf.mxu0
  %v3048 = vadd.f32 %v3014, %v3047
  %v3049 = vpop.f32.mrf.mxu0
  %v3050 = vadd.f32 %v3016, %v3049
  %3051 = vdwg.mxu0
  %v3052 = vmax.f32 %v3028, 0.0
  %v3053 = vmax.f32 %v3030, 0.0
  %v3054 = vmax.f32 %v3033, 0.0
  %v3055 = vmax.f32 %v3035, 0.0
  %v3056 = vmax.f32 %v3038, 0.0
  %v3057 = vmax.f32 %v3040, 0.0
  %v3058 = vmax.f32 %v3043, 0.0
  %v3059 = vmax.f32 %v3045, 0.0
  %v3060 = vmax.f32 %v3048, 0.0
  %v3061 = vmax.f32 %v3050, 0.0
  %v3062 = vpack.c.bf16 %v3052, %v3052
  %v3063 = vpack.c.bf16 %v3053, %v3053
  %v3064 = vpack.c.bf16 %v3054, %v3054
  %v3065 = vpack.c.bf16 %v3055, %v3055
  %v3066 = vpack.c.bf16 %v3056, %v3056
  %v3067 = vpack.c.bf16 %v3057, %v3057
  %v3068 = vpack.c.bf16 %v3058, %v3058
  %v3069 = vpack.c.bf16 %v3059, %v3059
  %v3070 = vpack.c.bf16 %v3060, %v3060
  %v3071 = vpack.c.bf16 %v3061, %v3061
  %vm3072 = vcmask 519168
  %3073 = vst.msk [vmem:[#allocation4] sm:$0xf] %vm3072, %v3062
  %3074 = vst.msk [vmem:[#allocation4 + $0x4] sm:$0xf] %vm3072, %v3063
  %3075 = vst.msk [vmem:[#allocation4 + $0x8] sm:$0xf] %vm3072, %v3064
  %3076 = vst.msk [vmem:[#allocation4 + $0xc] sm:$0xf] %vm3072, %v3065
  %3077 = vst.msk [vmem:[#allocation4 + $0x10] sm:$0xf] %vm3072, %v3066
  %3078 = vst.msk [vmem:[#allocation4 + $0x14] sm:$0xf] %vm3072, %v3067
  %3079 = vst.msk [vmem:[#allocation4 + $0x18] sm:$0xf] %vm3072, %v3068
  %3080 = vst.msk [vmem:[#allocation4 + $0x1c] sm:$0xf] %vm3072, %v3069
  %3081 = vst.msk [vmem:[#allocation4 + $0x20] sm:$0xf] %vm3072, %v3070
  %vm3082 = vcmask 516096
  %vm3083 = vmand %vm3082, %vm1828
  %v3084 = vld [vmem:[#allocation4 + $0x24] sm:$0x1]
  %v3085 = vsel %vm3083, %v3071, %v3084
  %3086 = vst [vmem:[#allocation4 + $0x24] sm:$0x1] %v3085
  %v3087 = vld [vmem:[#allocation4] sm:$0xf]
  %vm3088 = vcmask 519168
  %vm3089 = vsmask.f32 3328
  %vm3090 = vmand %vm3088, %vm3089
  %v3091 = vld [vmem:[%s7] sm:$0xf]
  %v3092 = vsel %vm3090, %v3087, %v3091
  %3093 = vst [vmem:[%s7] sm:$0xf] %v3092
  %v3094 = vld [vmem:[#allocation4 + $0x4] sm:$0xe]
  %v3095 = vld [vmem:[#allocation4 + $0x8] sm:$0x1]
  %vm3098 = vcmask 1041408
  %vm3099 = vcmask 1045508
  %vm3100 = vmor %vm3098, %vm3099
  %v3101 = vrot.slane %v3094, 6
  %v3102 = vrot.slane %v3101, 4
  %v3103 = vrot.slane %v3095, 6
  %v3104 = vsel %vm3100, %v3102, %v3103
  %vm3107 = vcmask 519171
  %vm3108 = vsmask.f32 7950
  %vm3109 = vmand %vm3107, %vm3108
  %v3110 = vld [vmem:[%s7] sm:$0x8]
  %v3111 = vsel %vm3109, %v3101, %v3110
  %3112 = vst [vmem:[%s7] sm:$0x8] %v3111
  %vm3113 = vcmask 518144
  %3114 = vst.msk [vmem:[%s7 + $0x4] sm:$0x7] %vm3113, %v3104
  %v3115 = vld [vmem:[#allocation4 + $0x8] sm:$0x8]
  %v3116 = vld [vmem:[#allocation4 + $0xc] sm:$0x7]
  %vm3117 = vcmask 519171
  %3118 = vst.msk [vmem:[%s7 + $0x4] sm:$0x8] %vm3117, %v3115
  %vm3119 = vcmask 518144
  %vm3120 = vsmask.f32 2304
  %vm3121 = vmand %vm3119, %vm3120
  %v3122 = vld [vmem:[%s7 + $0x8] sm:$0x7]
  %v3123 = vsel %vm3121, %v3116, %v3122
  %3124 = vst [vmem:[%s7 + $0x8] sm:$0x7] %v3123
  %v3125 = vld [vmem:[#allocation4 + $0x10] sm:$0xf]
  %v3127 = vrot.slane %v3125, 6
  %v3128 = vrot.slane %v3127, 4
  %vm3131 = vcmask 519170
  %vm3132 = vsmask.f32 7946
  %vm3133 = vmand %vm3131, %vm3132
  %v3134 = vld [vmem:[%s7 + $0x8] sm:$0xc]
  %v3135 = vsel %vm3133, %v3127, %v3134
  %3136 = vst [vmem:[%s7 + $0x8] sm:$0xc] %v3135
  %vm3137 = vcmask 517120
  %3138 = vst.msk [vmem:[%s7 + $0xc] sm:$0x3] %vm3137, %v3128
  %v3139 = vld [vmem:[#allocation4 + $0x14] sm:$0xc]
  %v3140 = vld [vmem:[#allocation4 + $0x18] sm:$0x3]
  %vm3141 = vcmask 519170
  %3142 = vst.msk [vmem:[%s7 + $0xc] sm:$0xc] %vm3141, %v3139
  %vm3143 = vcmask 517120
  %vm3144 = vsmask.f32 1280
  %vm3145 = vmand %vm3143, %vm3144
  %v3146 = vld [vmem:[%s7 + $0x10] sm:$0x3]
  %v3147 = vsel %vm3145, %v3140, %v3146
  %3148 = vst [vmem:[%s7 + $0x10] sm:$0x3] %v3147
  %v3149 = vld [vmem:[#allocation4 + $0x18] sm:$0x8]
  %v3150 = vld [vmem:[#allocation4 + $0x1c] sm:$0x7]
  %v3153 = vrot.slane %v3149, 6
  %v3154 = vrot.slane %v3153, 4
  %v3155 = vrot.slane %v3150, 6
  %v3156 = vsel %vm3100, %v3154, %v3155
  %v3157 = vrot.slane %v3155, 4
  %vm3160 = vcmask 519169
  %vm3161 = vsmask.f32 7942
  %vm3162 = vmand %vm3160, %vm3161
  %v3163 = vld [vmem:[%s7 + $0x10] sm:$0xe]
  %v3164 = vsel %vm3162, %v3156, %v3163
  %3165 = vst [vmem:[%s7 + $0x10] sm:$0xe] %v3164
  %vm3166 = vcmask 516096
  %3167 = vst.msk [vmem:[%s7 + $0x14] sm:$0x1] %vm3166, %v3157
  %v3168 = vld [vmem:[#allocation4 + $0x20] sm:$0xe]
  %v3169 = vld [vmem:[#allocation4 + $0x24] sm:$0x1]
  %vm3170 = vcmask 519169
  %3171 = vst.msk [vmem:[%s7 + $0x14] sm:$0xe] %vm3170, %v3168
  %v3172 = vld [vmem:[%s7 + $0x18] sm:$0x1]
  %v3173 = vsel %vm3083, %v3169, %v3172
  %3174 = vst [vmem:[%s7 + $0x18] sm:$0x1] %v3173
  %s3175 = scalar_lea.vmem %s0, 128
  %v3176 = vld [vmem:[%s3175] sm:$0xf]
  %v3177 = vld [vmem:[%s3175 + $0x4] sm:$0xf]
  %v3178 = vld [vmem:[%s3175 + $0x8] sm:$0xf]
  %v3179 = vld [vmem:[%s3175 + $0xc] sm:$0xf]
  %v3180 = vld [vmem:[%s3175 + $0x10] sm:$0xf]
  %v3181 = vld [vmem:[%s3175 + $0x14] sm:$0xf]
  %v3182 = vld [vmem:[%s3175 + $0x18] sm:$0xf]
  %v3183 = vld [vmem:[%s3175 + $0x1c] sm:$0xf]
  %v3184 = vld [vmem:[%s3175 + $0x20] sm:$0xf]
  %v3185 = vld [vmem:[%s3175 + $0x24] sm:$0xf]
  %v3186 = vld [vmem:[%s3175 + $0x28] sm:$0xf]
  %v3187 = vld [vmem:[%s3175 + $0x2c] sm:$0xf]
  %v3188 = vld [vmem:[%s3175 + $0x30] sm:$0xf]
  %v3189 = vld [vmem:[%s3175 + $0x34] sm:$0xf]
  %v3190 = vld [vmem:[%s3175 + $0x38] sm:$0x1]
  %s3191 = scalar_lea.vmem %s0, 192
  %v3192 = vld [vmem:[%s3191] sm:$0xf]
  %v3193 = vld [vmem:[%s3191 + $0x4] sm:$0xf]
  %v3194 = vld [vmem:[%s3191 + $0x8] sm:$0xf]
  %v3195 = vld [vmem:[%s3191 + $0xc] sm:$0xf]
  %v3196 = vld [vmem:[%s3191 + $0x10] sm:$0xf]
  %v3197 = vld [vmem:[%s3191 + $0x14] sm:$0xf]
  %v3198 = vld [vmem:[%s3191 + $0x18] sm:$0xf]
  %v3199 = vld [vmem:[%s3191 + $0x1c] sm:$0xf]
  %v3200 = vld [vmem:[%s3191 + $0x20] sm:$0xf]
  %v3201 = vld [vmem:[%s3191 + $0x24] sm:$0xf]
  %v3202 = vld [vmem:[%s3191 + $0x28] sm:$0xf]
  %v3203 = vld [vmem:[%s3191 + $0x2c] sm:$0xf]
  %v3204 = vld [vmem:[%s3191 + $0x30] sm:$0xf]
  %v3205 = vld [vmem:[%s3191 + $0x34] sm:$0xf]
  %v3206 = vld [vmem:[%s3191 + $0x38] sm:$0x1]
  %v3207 = vld [vmem:[%s3175 + $0x4] sm:$0xe]
  %v3208 = vld [vmem:[%s3175 + $0x38] sm:$0xf]
  %v3209 = vld [vmem:[%s3175 + $0x3c] sm:$0x3]
  %v3210 = vld [vmem:[%s3175 + $0x4] sm:$0xc]
  %v3225 = vunpack.c.l.b16 %v3176
  %v3226 = vunpack.c.l.b16 %v3177
  %v3227 = vunpack.c.l.b16 %v3178
  %v3228 = vunpack.c.l.b16 %v3179
  %v3229 = vunpack.c.l.b16 %v3180
  %v3230 = vunpack.c.l.b16 %v3181
  %v3231 = vunpack.c.l.b16 %v3182
  %v3232 = vunpack.c.l.b16 %v3183
  %v3233 = vunpack.c.l.b16 %v3184
  %v3234 = vunpack.c.l.b16 %v3185
  %v3235 = vunpack.c.l.b16 %v3186
  %v3236 = vunpack.c.l.b16 %v3187
  %v3237 = vunpack.c.l.b16 %v3188
  %v3238 = vunpack.c.l.b16 %v3189
  %v3239 = vpack.c.b16 %v3226, %v3225
  %v3240 = vpack.c.b16 %v3228, %v3227
  %v3241 = vpack.c.b16 %v3230, %v3229
  %v3242 = vpack.c.b16 %v3232, %v3231
  %v3243 = vpack.c.b16 %v3234, %v3233
  %v3244 = vpack.c.b16 %v3236, %v3235
  %v3245 = vpack.c.b16 %v3238, %v3237
  %v3254 = vunpack.c.l.b16 %v3190
  %v3255 = vpack.c.b16 %v3254, %v3254
  %v3257 = vshrl.u32 %v3239, 16
  %v3259 = vshll.u32 %v3239, 16
  %v3261 = vrot.slane %v3259, 1
  %v3262 = vor.u32 %v3257, %v3261
  %v3264 = vshll.u32 %v3240, 16
  %v3266 = vrot.slane %v3264, 1
  %v3267 = vsel %vm109, %v3262, %v3266
  %v3268 = vshrl.u32 %v3240, 16
  %v3270 = vor.u32 %v3268, %v3266
  %v3272 = vshll.u32 %v3241, 16
  %v3274 = vrot.slane %v3272, 1
  %v3275 = vsel %vm109, %v3270, %v3274
  %v3276 = vshrl.u32 %v3241, 16
  %v3278 = vor.u32 %v3276, %v3274
  %v3280 = vshll.u32 %v3242, 16
  %v3282 = vrot.slane %v3280, 1
  %v3283 = vsel %vm109, %v3278, %v3282
  %v3284 = vshrl.u32 %v3242, 16
  %v3286 = vor.u32 %v3284, %v3282
  %v3288 = vshll.u32 %v3243, 16
  %v3290 = vrot.slane %v3288, 1
  %v3291 = vsel %vm109, %v3286, %v3290
  %v3292 = vshrl.u32 %v3243, 16
  %v3294 = vor.u32 %v3292, %v3290
  %v3296 = vshll.u32 %v3244, 16
  %v3298 = vrot.slane %v3296, 1
  %v3299 = vsel %vm109, %v3294, %v3298
  %v3300 = vshrl.u32 %v3244, 16
  %v3302 = vor.u32 %v3300, %v3298
  %v3304 = vshll.u32 %v3245, 16
  %v3306 = vrot.slane %v3304, 1
  %v3307 = vsel %vm109, %v3302, %v3306
  %v3308 = vshrl.u32 %v3245, 16
  %v3310 = vor.u32 %v3308, %v3306
  %v3312 = vshll.u32 %v3255, 16
  %v3314 = vrot.slane %v3312, 1
  %v3315 = vsel %vm109, %v3310, %v3314
  %v3337 = vunpack.c.l.b16 %v3192
  %v3338 = vunpack.c.l.b16 %v3193
  %v3339 = vunpack.c.l.b16 %v3194
  %v3340 = vunpack.c.l.b16 %v3195
  %v3341 = vunpack.c.l.b16 %v3196
  %v3342 = vunpack.c.l.b16 %v3197
  %v3343 = vunpack.c.l.b16 %v3198
  %v3344 = vunpack.c.l.b16 %v3199
  %v3345 = vunpack.c.l.b16 %v3200
  %v3346 = vunpack.c.l.b16 %v3201
  %v3347 = vunpack.c.l.b16 %v3202
  %v3348 = vunpack.c.l.b16 %v3203
  %v3349 = vunpack.c.l.b16 %v3204
  %v3350 = vunpack.c.l.b16 %v3205
  %v3351 = vpack.c.b16 %v3338, %v3337
  %v3352 = vpack.c.b16 %v3340, %v3339
  %v3353 = vpack.c.b16 %v3342, %v3341
  %v3354 = vpack.c.b16 %v3344, %v3343
  %v3355 = vpack.c.b16 %v3346, %v3345
  %v3356 = vpack.c.b16 %v3348, %v3347
  %v3357 = vpack.c.b16 %v3350, %v3349
  %v3366 = vunpack.c.l.b16 %v3206
  %v3367 = vpack.c.b16 %v3366, %v3366
  %v3369 = vshrl.u32 %v3351, 16
  %v3371 = vshll.u32 %v3351, 16
  %v3373 = vrot.slane %v3371, 1
  %v3374 = vor.u32 %v3369, %v3373
  %v3376 = vshll.u32 %v3352, 16
  %v3378 = vrot.slane %v3376, 1
  %v3379 = vsel %vm109, %v3374, %v3378
  %v3380 = vshrl.u32 %v3352, 16
  %v3382 = vor.u32 %v3380, %v3378
  %v3384 = vshll.u32 %v3353, 16
  %v3386 = vrot.slane %v3384, 1
  %v3387 = vsel %vm109, %v3382, %v3386
  %v3388 = vshrl.u32 %v3353, 16
  %v3390 = vor.u32 %v3388, %v3386
  %v3392 = vshll.u32 %v3354, 16
  %v3394 = vrot.slane %v3392, 1
  %v3395 = vsel %vm109, %v3390, %v3394
  %v3396 = vshrl.u32 %v3354, 16
  %v3398 = vor.u32 %v3396, %v3394
  %v3400 = vshll.u32 %v3355, 16
  %v3402 = vrot.slane %v3400, 1
  %v3403 = vsel %vm109, %v3398, %v3402
  %v3404 = vshrl.u32 %v3355, 16
  %v3406 = vor.u32 %v3404, %v3402
  %v3408 = vshll.u32 %v3356, 16
  %v3410 = vrot.slane %v3408, 1
  %v3411 = vsel %vm109, %v3406, %v3410
  %v3412 = vshrl.u32 %v3356, 16
  %v3414 = vor.u32 %v3412, %v3410
  %v3416 = vshll.u32 %v3357, 16
  %v3418 = vrot.slane %v3416, 1
  %v3419 = vsel %vm109, %v3414, %v3418
  %v3420 = vshrl.u32 %v3357, 16
  %v3422 = vor.u32 %v3420, %v3418
  %v3424 = vshll.u32 %v3367, 16
  %v3426 = vrot.slane %v3424, 1
  %v3427 = vsel %vm109, %v3422, %v3426
  %v3438 = vunpack.c.l.b16 %v3207
  %v3439 = vunpack.c.l.b16 %v3208
  %v3440 = vunpack.c.l.b16 %v3209
  %v3441 = vpack.c.b16 %v3227, %v3438
  %v3442 = vpack.c.b16 %v3229, %v3228
  %v3443 = vpack.c.b16 %v3231, %v3230
  %v3444 = vpack.c.b16 %v3233, %v3232
  %v3445 = vpack.c.b16 %v3235, %v3234
  %v3446 = vpack.c.b16 %v3237, %v3236
  %v3447 = vpack.c.b16 %v3439, %v3238
  %v3448 = vpack.c.b16 %v3440, %v3440
  %v3450 = vshrl.u32 %v3441, 16
  %v3452 = vrot.slane %v3450, 1
  %v3453 = vshll.u32 %v3441, 16
  %v3455 = vrot.slane %v3453, 2
  %v3456 = vor.u32 %v3452, %v3455
  %v3458 = vshrl.u32 %v3442, 16
  %v3460 = vrot.slane %v3458, 1
  %v3461 = vshll.u32 %v3442, 16
  %v3463 = vrot.slane %v3461, 2
  %v3464 = vor.u32 %v3460, %v3463
  %v3465 = vsel %vm303, %v3456, %v3464
  %v3467 = vshrl.u32 %v3443, 16
  %v3469 = vrot.slane %v3467, 1
  %v3470 = vshll.u32 %v3443, 16
  %v3472 = vrot.slane %v3470, 2
  %v3473 = vor.u32 %v3469, %v3472
  %v3474 = vsel %vm303, %v3464, %v3473
  %v3476 = vshrl.u32 %v3444, 16
  %v3478 = vrot.slane %v3476, 1
  %v3479 = vshll.u32 %v3444, 16
  %v3481 = vrot.slane %v3479, 2
  %v3482 = vor.u32 %v3478, %v3481
  %v3483 = vsel %vm303, %v3473, %v3482
  %v3485 = vshrl.u32 %v3445, 16
  %v3487 = vrot.slane %v3485, 1
  %v3488 = vshll.u32 %v3445, 16
  %v3490 = vrot.slane %v3488, 2
  %v3491 = vor.u32 %v3487, %v3490
  %v3492 = vsel %vm303, %v3482, %v3491
  %v3494 = vshrl.u32 %v3446, 16
  %v3496 = vrot.slane %v3494, 1
  %v3497 = vshll.u32 %v3446, 16
  %v3499 = vrot.slane %v3497, 2
  %v3500 = vor.u32 %v3496, %v3499
  %v3501 = vsel %vm303, %v3491, %v3500
  %v3503 = vshrl.u32 %v3447, 16
  %v3505 = vrot.slane %v3503, 1
  %v3506 = vshll.u32 %v3447, 16
  %v3508 = vrot.slane %v3506, 2
  %v3509 = vor.u32 %v3505, %v3508
  %v3510 = vsel %vm303, %v3500, %v3509
  %v3512 = vshrl.u32 %v3448, 16
  %v3514 = vrot.slane %v3512, 1
  %v3515 = vshll.u32 %v3448, 16
  %v3517 = vrot.slane %v3515, 2
  %v3518 = vor.u32 %v3514, %v3517
  %v3519 = vsel %vm303, %v3509, %v3518
  %v3528 = vunpack.c.l.b16 %v3210
  %v3529 = vpack.c.b16 %v3227, %v3528
  %v3530 = vrot.slane %v3529, 2
  %v3531 = vrot.slane %v3442, 2
  %v3532 = vsel %vm385, %v3530, %v3531
  %v3533 = vrot.slane %v3443, 2
  %v3534 = vsel %vm385, %v3531, %v3533
  %v3535 = vrot.slane %v3444, 2
  %v3536 = vsel %vm385, %v3533, %v3535
  %v3537 = vrot.slane %v3445, 2
  %v3538 = vsel %vm385, %v3535, %v3537
  %v3539 = vrot.slane %v3446, 2
  %v3540 = vsel %vm385, %v3537, %v3539
  %v3541 = vrot.slane %v3447, 2
  %v3542 = vsel %vm385, %v3539, %v3541
  %v3543 = vrot.slane %v3448, 2
  %v3544 = vsel %vm385, %v3541, %v3543
  %v3552 = vld [vmem:[%s1] sm:$0xf]
  %v3553 = vld [vmem:[%s1 + $0x4] sm:$0xf]
  %v3554 = vld [vmem:[%s1 + $0x8] sm:$0xf]
  %v3555 = vld [vmem:[%s1 + $0xc] sm:$0xf]
  %v3556 = vld [vmem:[%s1 + $0x10] sm:$0xf]
  %v3557 = vld [vmem:[%s1 + $0x14] sm:$0xf]
  %v3558 = vld [vmem:[%s1 + $0x18] sm:$0xf]
  %v3559 = vld [vmem:[%s1 + $0x1c] sm:$0xf]
  %v3560 = vld [vmem:[%s1 + $0x20] sm:$0xf]
  %v3561 = vld [vmem:[%s1 + $0x24] sm:$0xf]
  %v3562 = vld [vmem:[%s1 + $0x28] sm:$0xf]
  %v3563 = vld [vmem:[%s1 + $0x2c] sm:$0xf]
  %v3564 = vld [vmem:[%s1 + $0x30] sm:$0xf]
  %v3565 = vld [vmem:[%s1 + $0x34] sm:$0xf]
  %v3566 = vld [vmem:[%s1 + $0x38] sm:$0xf]
  %v3567 = vld [vmem:[%s1 + $0x3c] sm:$0xf]
  %v3568 = vld [vmem:[%s1 + $0x40] sm:$0xf]
  %v3569 = vld [vmem:[%s1 + $0x44] sm:$0xf]
  %v3570 = vld [vmem:[%s1 + $0x48] sm:$0xf]
  %v3571 = vld [vmem:[%s1 + $0x4c] sm:$0xf]
  %v3572 = vld [vmem:[%s1 + $0x50] sm:$0xf]
  %v3573 = vld [vmem:[%s1 + $0x54] sm:$0xf]
  %v3574 = vld [vmem:[%s1 + $0x58] sm:$0xf]
  %v3575 = vld [vmem:[%s1 + $0x5c] sm:$0xf]
  %v3576 = vld [vmem:[%s1 + $0x60] sm:$0xf]
  %v3577 = vld [vmem:[%s1 + $0x64] sm:$0xf]
  %v3578 = vld [vmem:[%s1 + $0x68] sm:$0xf]
  %v3579 = vld [vmem:[%s1 + $0x6c] sm:$0xf]
  %v3580 = vld [vmem:[%s1 + $0x70] sm:$0xf]
  %v3581 = vld [vmem:[%s1 + $0x74] sm:$0xf]
  %v3582 = vld [vmem:[%s1 + $0x78] sm:$0xf]
  %v3583 = vld [vmem:[%s1 + $0x7c] sm:$0xf]
  %v3584 = vld [vmem:[%s1 + $0x80] sm:$0xf]
  %v3585 = vld [vmem:[%s1 + $0x84] sm:$0xf]
  %v3586 = vld [vmem:[%s1 + $0x88] sm:$0xf]
  %v3587 = vld [vmem:[%s1 + $0x8c] sm:$0xf]
  %v3588 = vld [vmem:[%s1 + $0x90] sm:$0xf]
  %v3589 = vld [vmem:[%s1 + $0x94] sm:$0xf]
  %v3590 = vld [vmem:[%s1 + $0x98] sm:$0xf]
  %v3591 = vld [vmem:[%s1 + $0x9c] sm:$0xf]
  %v3592 = vld [vmem:[%s1 + $0xa0] sm:$0xf]
  %v3593 = vld [vmem:[%s1 + $0xa4] sm:$0xf]
  %v3594 = vld [vmem:[%s1 + $0xa8] sm:$0xf]
  %v3595 = vld [vmem:[%s1 + $0xac] sm:$0xf]
  %v3596 = vld [vmem:[%s1 + $0xb0] sm:$0xf]
  %v3597 = vld [vmem:[%s1 + $0xb4] sm:$0xf]
  %v3598 = vld [vmem:[%s1 + $0xb8] sm:$0xf]
  %v3599 = vld [vmem:[%s1 + $0xbc] sm:$0xf]
  %v3600 = vld [vmem:[%s1 + $0xc0] sm:$0xf]
  %v3601 = vld [vmem:[%s1 + $0xc4] sm:$0xf]
  %v3602 = vld [vmem:[%s1 + $0xc8] sm:$0xf]
  %v3603 = vld [vmem:[%s1 + $0xcc] sm:$0xf]
  %v3604 = vld [vmem:[%s1 + $0xd0] sm:$0xf]
  %v3605 = vld [vmem:[%s1 + $0xd4] sm:$0xf]
  %v3606 = vld [vmem:[%s1 + $0xd8] sm:$0xf]
  %v3607 = vld [vmem:[%s1 + $0xdc] sm:$0xf]
  %v3608 = vld [vmem:[%s1 + $0xe0] sm:$0xf]
  %v3609 = vld [vmem:[%s1 + $0xe4] sm:$0xf]
  %v3610 = vld [vmem:[%s1 + $0xe8] sm:$0xf]
  %v3611 = vld [vmem:[%s1 + $0xec] sm:$0xf]
  %v3612 = vld [vmem:[%s1 + $0xf0] sm:$0xf]
  %v3613 = vld [vmem:[%s1 + $0xf4] sm:$0xf]
  %v3614 = vld [vmem:[%s1 + $0xf8] sm:$0xf]
  %v3615 = vld [vmem:[%s1 + $0xfc] sm:$0xf]
  %v3616 = vld [vmem:[%s1 + $0x100] sm:$0xf]
  %v3617 = vld [vmem:[%s1 + $0x104] sm:$0xf]
  %v3618 = vld [vmem:[%s1 + $0x108] sm:$0xf]
  %v3619 = vld [vmem:[%s1 + $0x10c] sm:$0xf]
  %v3620 = vld [vmem:[%s1 + $0x110] sm:$0xf]
  %v3621 = vld [vmem:[%s1 + $0x114] sm:$0xf]
  %v3622 = vld [vmem:[%s1 + $0x118] sm:$0xf]
  %v3623 = vld [vmem:[%s1 + $0x11c] sm:$0xf]
  %v3624 = vld [vmem:[%s1 + $0x120] sm:$0xf]
  %v3625 = vld [vmem:[%s1 + $0x124] sm:$0xf]
  %v3626 = vld [vmem:[%s1 + $0x128] sm:$0xf]
  %v3627 = vld [vmem:[%s1 + $0x12c] sm:$0xf]
  %v3628 = vld [vmem:[%s1 + $0x130] sm:$0xf]
  %v3629 = vld [vmem:[%s1 + $0x134] sm:$0xf]
  %v3630 = vld [vmem:[%s1 + $0x138] sm:$0xf]
  %v3631 = vld [vmem:[%s1 + $0x13c] sm:$0xf]
  %v3632 = vld [vmem:[%s1 + $0x140] sm:$0xf]
  %v3633 = vld [vmem:[%s1 + $0x144] sm:$0xf]
  %v3634 = vld [vmem:[%s1 + $0x148] sm:$0xf]
  %v3635 = vld [vmem:[%s1 + $0x14c] sm:$0xf]
  %v3636 = vld [vmem:[%s1 + $0x150] sm:$0xf]
  %v3637 = vld [vmem:[%s1 + $0x154] sm:$0xf]
  %v3638 = vld [vmem:[%s1 + $0x158] sm:$0xf]
  %v3639 = vld [vmem:[%s1 + $0x15c] sm:$0xf]
  %v3640 = vld [vmem:[%s1 + $0x160] sm:$0xf]
  %v3641 = vld [vmem:[%s1 + $0x164] sm:$0xf]
  %v3642 = vld [vmem:[%s1 + $0x168] sm:$0xf]
  %v3643 = vld [vmem:[%s1 + $0x16c] sm:$0xf]
  %v3644 = vld [vmem:[%s1 + $0x170] sm:$0xf]
  %v3645 = vld [vmem:[%s1 + $0x174] sm:$0xf]
  %v3646 = vld [vmem:[%s1 + $0x178] sm:$0xf]
  %v3647 = vld [vmem:[%s1 + $0x17c] sm:$0xf]
  %v3744 = vunpack.c.l.b16 %v3552
  %v3745 = vunpack.c.l.b16 %v3553
  %v3746 = vunpack.c.l.b16 %v3554
  %v3747 = vunpack.c.l.b16 %v3555
  %v3748 = vunpack.c.l.b16 %v3556
  %v3749 = vunpack.c.l.b16 %v3557
  %v3750 = vunpack.c.l.b16 %v3558
  %v3751 = vunpack.c.l.b16 %v3559
  %v3752 = vunpack.c.l.b16 %v3560
  %v3753 = vunpack.c.l.b16 %v3561
  %v3754 = vunpack.c.l.b16 %v3562
  %v3755 = vunpack.c.l.b16 %v3563
  %v3756 = vunpack.c.l.b16 %v3564
  %v3757 = vunpack.c.l.b16 %v3565
  %v3758 = vunpack.c.l.b16 %v3566
  %v3759 = vunpack.c.l.b16 %v3567
  %v3760 = vunpack.c.l.b16 %v3568
  %v3761 = vunpack.c.l.b16 %v3569
  %v3762 = vunpack.c.l.b16 %v3570
  %v3763 = vunpack.c.l.b16 %v3571
  %v3764 = vunpack.c.l.b16 %v3572
  %v3765 = vunpack.c.l.b16 %v3573
  %v3766 = vunpack.c.l.b16 %v3574
  %v3767 = vunpack.c.l.b16 %v3575
  %v3768 = vunpack.c.l.b16 %v3576
  %v3769 = vunpack.c.l.b16 %v3577
  %v3770 = vunpack.c.l.b16 %v3578
  %v3771 = vunpack.c.l.b16 %v3579
  %v3772 = vunpack.c.l.b16 %v3580
  %v3773 = vunpack.c.l.b16 %v3581
  %v3774 = vunpack.c.l.b16 %v3582
  %v3775 = vunpack.c.l.b16 %v3583
  %v3776 = vunpack.c.l.b16 %v3584
  %v3777 = vunpack.c.l.b16 %v3585
  %v3778 = vunpack.c.l.b16 %v3586
  %v3779 = vunpack.c.l.b16 %v3587
  %v3780 = vunpack.c.l.b16 %v3588
  %v3781 = vunpack.c.l.b16 %v3589
  %v3782 = vunpack.c.l.b16 %v3590
  %v3783 = vunpack.c.l.b16 %v3591
  %v3784 = vunpack.c.l.b16 %v3592
  %v3785 = vunpack.c.l.b16 %v3593
  %v3786 = vunpack.c.l.b16 %v3594
  %v3787 = vunpack.c.l.b16 %v3595
  %v3788 = vunpack.c.l.b16 %v3596
  %v3789 = vunpack.c.l.b16 %v3597
  %v3790 = vunpack.c.l.b16 %v3598
  %v3791 = vunpack.c.l.b16 %v3599
  %v3792 = vunpack.c.l.b16 %v3600
  %v3793 = vunpack.c.l.b16 %v3601
  %v3794 = vunpack.c.l.b16 %v3602
  %v3795 = vunpack.c.l.b16 %v3603
  %v3796 = vunpack.c.l.b16 %v3604
  %v3797 = vunpack.c.l.b16 %v3605
  %v3798 = vunpack.c.l.b16 %v3606
  %v3799 = vunpack.c.l.b16 %v3607
  %v3800 = vunpack.c.l.b16 %v3608
  %v3801 = vunpack.c.l.b16 %v3609
  %v3802 = vunpack.c.l.b16 %v3610
  %v3803 = vunpack.c.l.b16 %v3611
  %v3804 = vunpack.c.l.b16 %v3612
  %v3805 = vunpack.c.l.b16 %v3613
  %v3806 = vunpack.c.l.b16 %v3614
  %v3807 = vunpack.c.l.b16 %v3615
  %v3808 = vunpack.c.l.b16 %v3616
  %v3809 = vunpack.c.l.b16 %v3617
  %v3810 = vunpack.c.l.b16 %v3618
  %v3811 = vunpack.c.l.b16 %v3619
  %v3812 = vunpack.c.l.b16 %v3620
  %v3813 = vunpack.c.l.b16 %v3621
  %v3814 = vunpack.c.l.b16 %v3622
  %v3815 = vunpack.c.l.b16 %v3623
  %v3816 = vunpack.c.l.b16 %v3624
  %v3817 = vunpack.c.l.b16 %v3625
  %v3818 = vunpack.c.l.b16 %v3626
  %v3819 = vunpack.c.l.b16 %v3627
  %v3820 = vunpack.c.l.b16 %v3628
  %v3821 = vunpack.c.l.b16 %v3629
  %v3822 = vunpack.c.l.b16 %v3630
  %v3823 = vunpack.c.l.b16 %v3631
  %v3824 = vunpack.c.l.b16 %v3632
  %v3825 = vunpack.c.l.b16 %v3633
  %v3826 = vunpack.c.l.b16 %v3634
  %v3827 = vunpack.c.l.b16 %v3635
  %v3828 = vunpack.c.l.b16 %v3636
  %v3829 = vunpack.c.l.b16 %v3637
  %v3830 = vunpack.c.l.b16 %v3638
  %v3831 = vunpack.c.l.b16 %v3639
  %v3832 = vunpack.c.l.b16 %v3640
  %v3833 = vunpack.c.l.b16 %v3641
  %v3834 = vunpack.c.l.b16 %v3642
  %v3835 = vunpack.c.l.b16 %v3643
  %v3836 = vunpack.c.l.b16 %v3644
  %v3837 = vunpack.c.l.b16 %v3645
  %v3838 = vunpack.c.l.b16 %v3646
  %v3839 = vunpack.c.l.b16 %v3647
  %v3840 = vpack.c.b16 %v3745, %v3744
  %v3841 = vpack.c.b16 %v3747, %v3746
  %v3842 = vpack.c.b16 %v3749, %v3748
  %v3843 = vpack.c.b16 %v3751, %v3750
  %v3844 = vpack.c.b16 %v3753, %v3752
  %v3845 = vpack.c.b16 %v3755, %v3754
  %v3846 = vpack.c.b16 %v3757, %v3756
  %v3847 = vpack.c.b16 %v3759, %v3758
  %v3848 = vpack.c.b16 %v3761, %v3760
  %v3849 = vpack.c.b16 %v3763, %v3762
  %v3850 = vpack.c.b16 %v3765, %v3764
  %v3851 = vpack.c.b16 %v3767, %v3766
  %v3852 = vpack.c.b16 %v3769, %v3768
  %v3853 = vpack.c.b16 %v3771, %v3770
  %v3854 = vpack.c.b16 %v3773, %v3772
  %v3855 = vpack.c.b16 %v3775, %v3774
  %v3856 = vpack.c.b16 %v3777, %v3776
  %v3857 = vpack.c.b16 %v3779, %v3778
  %v3858 = vpack.c.b16 %v3781, %v3780
  %v3859 = vpack.c.b16 %v3783, %v3782
  %v3860 = vpack.c.b16 %v3785, %v3784
  %v3861 = vpack.c.b16 %v3787, %v3786
  %v3862 = vpack.c.b16 %v3789, %v3788
  %v3863 = vpack.c.b16 %v3791, %v3790
  %v3864 = vpack.c.b16 %v3793, %v3792
  %v3865 = vpack.c.b16 %v3795, %v3794
  %v3866 = vpack.c.b16 %v3797, %v3796
  %v3867 = vpack.c.b16 %v3799, %v3798
  %v3868 = vpack.c.b16 %v3801, %v3800
  %v3869 = vpack.c.b16 %v3803, %v3802
  %v3870 = vpack.c.b16 %v3805, %v3804
  %v3871 = vpack.c.b16 %v3807, %v3806
  %v3872 = vpack.c.b16 %v3809, %v3808
  %v3873 = vpack.c.b16 %v3811, %v3810
  %v3874 = vpack.c.b16 %v3813, %v3812
  %v3875 = vpack.c.b16 %v3815, %v3814
  %v3876 = vpack.c.b16 %v3817, %v3816
  %v3877 = vpack.c.b16 %v3819, %v3818
  %v3878 = vpack.c.b16 %v3821, %v3820
  %v3879 = vpack.c.b16 %v3823, %v3822
  %v3880 = vpack.c.b16 %v3825, %v3824
  %v3881 = vpack.c.b16 %v3827, %v3826
  %v3882 = vpack.c.b16 %v3829, %v3828
  %v3883 = vpack.c.b16 %v3831, %v3830
  %v3884 = vpack.c.b16 %v3833, %v3832
  %v3885 = vpack.c.b16 %v3835, %v3834
  %v3886 = vpack.c.b16 %v3837, %v3836
  %v3887 = vpack.c.b16 %v3839, %v3838
  %3936 = vmatpush.bf16.msra.mxu0 %v3847
  %3937 = vmatpush.bf16.msra.mxu0 %v3846
  %3938 = vmatpush.bf16.msra.mxu0 %v3845
  %3939 = vmatpush.bf16.msra.mxu0 %v3844
  %3940 = vmatpush.bf16.msra.mxu0 %v3843
  %3941 = vmatpush.bf16.msra.mxu0 %v3842
  %3942 = vmatpush.bf16.msra.mxu0 %v3841
  %3943 = vmatpush.bf16.msra.mxu0 %v3840
  %3944 = vmatmul.bf16.gmra.mxu0 %v3239
  %v3945 = vpop.f32.mrf.mxu0
  %v3946 = vadd.f32 %v505, %v3945
  %v3947 = vpop.f32.mrf.mxu0
  %v3948 = vadd.f32 %v505, %v3947
  %3949 = vmatmul.bf16.gmra.mxu0 %v3240
  %v3950 = vpop.f32.mrf.mxu0
  %v3951 = vadd.f32 %v505, %v3950
  %v3952 = vpop.f32.mrf.mxu0
  %v3953 = vadd.f32 %v505, %v3952
  %3954 = vmatmul.bf16.gmra.mxu0 %v3241
  %v3955 = vpop.f32.mrf.mxu0
  %v3956 = vadd.f32 %v505, %v3955
  %v3957 = vpop.f32.mrf.mxu0
  %v3958 = vadd.f32 %v505, %v3957
  %3959 = vmatmul.bf16.gmra.mxu0 %v3242
  %v3960 = vpop.f32.mrf.mxu0
  %v3961 = vadd.f32 %v505, %v3960
  %v3962 = vpop.f32.mrf.mxu0
  %v3963 = vadd.f32 %v505, %v3962
  %3964 = vmatmul.bf16.gmra.mxu0 %v3243
  %v3965 = vpop.f32.mrf.mxu0
  %v3966 = vadd.f32 %v505, %v3965
  %v3967 = vpop.f32.mrf.mxu0
  %v3968 = vadd.f32 %v505, %v3967
  %3969 = vmatmul.bf16.gmra.mxu0 %v3244
  %v3970 = vpop.f32.mrf.mxu0
  %v3971 = vadd.f32 %v505, %v3970
  %v3972 = vpop.f32.mrf.mxu0
  %v3973 = vadd.f32 %v505, %v3972
  %3974 = vmatmul.bf16.gmra.mxu0 %v3245
  %v3975 = vpop.f32.mrf.mxu0
  %v3976 = vadd.f32 %v505, %v3975
  %v3977 = vpop.f32.mrf.mxu0
  %v3978 = vadd.f32 %v505, %v3977
  %3979 = vdwg.mxu0
  %3980 = vmatpush.bf16.msra.mxu0 %v3855
  %3981 = vmatpush.bf16.msra.mxu0 %v3854
  %3982 = vmatpush.bf16.msra.mxu0 %v3853
  %3983 = vmatpush.bf16.msra.mxu0 %v3852
  %3984 = vmatpush.bf16.msra.mxu0 %v3851
  %3985 = vmatpush.bf16.msra.mxu0 %v3850
  %3986 = vmatpush.bf16.msra.mxu0 %v3849
  %3987 = vmatpush.bf16.msra.mxu0 %v3848
  %3988 = vmatmul.bf16.gmra.mxu0 %v3267
  %v3989 = vpop.f32.mrf.mxu0
  %v3990 = vadd.f32 %v3946, %v3989
  %v3991 = vpop.f32.mrf.mxu0
  %v3992 = vadd.f32 %v3948, %v3991
  %3993 = vmatmul.bf16.gmra.mxu0 %v3275
  %v3994 = vpop.f32.mrf.mxu0
  %v3995 = vadd.f32 %v3951, %v3994
  %v3996 = vpop.f32.mrf.mxu0
  %v3997 = vadd.f32 %v3953, %v3996
  %3998 = vmatmul.bf16.gmra.mxu0 %v3283
  %v3999 = vpop.f32.mrf.mxu0
  %v4000 = vadd.f32 %v3956, %v3999
  %v4001 = vpop.f32.mrf.mxu0
  %v4002 = vadd.f32 %v3958, %v4001
  %4003 = vmatmul.bf16.gmra.mxu0 %v3291
  %v4004 = vpop.f32.mrf.mxu0
  %v4005 = vadd.f32 %v3961, %v4004
  %v4006 = vpop.f32.mrf.mxu0
  %v4007 = vadd.f32 %v3963, %v4006
  %4008 = vmatmul.bf16.gmra.mxu0 %v3299
  %v4009 = vpop.f32.mrf.mxu0
  %v4010 = vadd.f32 %v3966, %v4009
  %v4011 = vpop.f32.mrf.mxu0
  %v4012 = vadd.f32 %v3968, %v4011
  %4013 = vmatmul.bf16.gmra.mxu0 %v3307
  %v4014 = vpop.f32.mrf.mxu0
  %v4015 = vadd.f32 %v3971, %v4014
  %v4016 = vpop.f32.mrf.mxu0
  %v4017 = vadd.f32 %v3973, %v4016
  %4018 = vmatmul.bf16.gmra.mxu0 %v3315
  %v4019 = vpop.f32.mrf.mxu0
  %v4020 = vadd.f32 %v3976, %v4019
  %v4021 = vpop.f32.mrf.mxu0
  %v4022 = vadd.f32 %v3978, %v4021
  %4023 = vdwg.mxu0
  %4024 = vmatpush.bf16.msra.mxu0 %v3863
  %4025 = vmatpush.bf16.msra.mxu0 %v3862
  %4026 = vmatpush.bf16.msra.mxu0 %v3861
  %4027 = vmatpush.bf16.msra.mxu0 %v3860
  %4028 = vmatpush.bf16.msra.mxu0 %v3859
  %4029 = vmatpush.bf16.msra.mxu0 %v3858
  %4030 = vmatpush.bf16.msra.mxu0 %v3857
  %4031 = vmatpush.bf16.msra.mxu0 %v3856
  %4032 = vmatmul.bf16.gmra.mxu0 %v3351
  %v4033 = vpop.f32.mrf.mxu0
  %v4034 = vadd.f32 %v3990, %v4033
  %v4035 = vpop.f32.mrf.mxu0
  %v4036 = vadd.f32 %v3992, %v4035
  %4037 = vmatmul.bf16.gmra.mxu0 %v3352
  %v4038 = vpop.f32.mrf.mxu0
  %v4039 = vadd.f32 %v3995, %v4038
  %v4040 = vpop.f32.mrf.mxu0
  %v4041 = vadd.f32 %v3997, %v4040
  %4042 = vmatmul.bf16.gmra.mxu0 %v3353
  %v4043 = vpop.f32.mrf.mxu0
  %v4044 = vadd.f32 %v4000, %v4043
  %v4045 = vpop.f32.mrf.mxu0
  %v4046 = vadd.f32 %v4002, %v4045
  %4047 = vmatmul.bf16.gmra.mxu0 %v3354
  %v4048 = vpop.f32.mrf.mxu0
  %v4049 = vadd.f32 %v4005, %v4048
  %v4050 = vpop.f32.mrf.mxu0
  %v4051 = vadd.f32 %v4007, %v4050
  %4052 = vmatmul.bf16.gmra.mxu0 %v3355
  %v4053 = vpop.f32.mrf.mxu0
  %v4054 = vadd.f32 %v4010, %v4053
  %v4055 = vpop.f32.mrf.mxu0
  %v4056 = vadd.f32 %v4012, %v4055
  %4057 = vmatmul.bf16.gmra.mxu0 %v3356
  %v4058 = vpop.f32.mrf.mxu0
  %v4059 = vadd.f32 %v4015, %v4058
  %v4060 = vpop.f32.mrf.mxu0
  %v4061 = vadd.f32 %v4017, %v4060
  %4062 = vmatmul.bf16.gmra.mxu0 %v3357
  %v4063 = vpop.f32.mrf.mxu0
  %v4064 = vadd.f32 %v4020, %v4063
  %v4065 = vpop.f32.mrf.mxu0
  %v4066 = vadd.f32 %v4022, %v4065
  %4067 = vdwg.mxu0
  %4068 = vmatpush.bf16.msra.mxu0 %v3871
  %4069 = vmatpush.bf16.msra.mxu0 %v3870
  %4070 = vmatpush.bf16.msra.mxu0 %v3869
  %4071 = vmatpush.bf16.msra.mxu0 %v3868
  %4072 = vmatpush.bf16.msra.mxu0 %v3867
  %4073 = vmatpush.bf16.msra.mxu0 %v3866
  %4074 = vmatpush.bf16.msra.mxu0 %v3865
  %4075 = vmatpush.bf16.msra.mxu0 %v3864
  %4076 = vmatmul.bf16.gmra.mxu0 %v3379
  %v4077 = vpop.f32.mrf.mxu0
  %v4078 = vadd.f32 %v4034, %v4077
  %v4079 = vpop.f32.mrf.mxu0
  %v4080 = vadd.f32 %v4036, %v4079
  %4081 = vmatmul.bf16.gmra.mxu0 %v3387
  %v4082 = vpop.f32.mrf.mxu0
  %v4083 = vadd.f32 %v4039, %v4082
  %v4084 = vpop.f32.mrf.mxu0
  %v4085 = vadd.f32 %v4041, %v4084
  %4086 = vmatmul.bf16.gmra.mxu0 %v3395
  %v4087 = vpop.f32.mrf.mxu0
  %v4088 = vadd.f32 %v4044, %v4087
  %v4089 = vpop.f32.mrf.mxu0
  %v4090 = vadd.f32 %v4046, %v4089
  %4091 = vmatmul.bf16.gmra.mxu0 %v3403
  %v4092 = vpop.f32.mrf.mxu0
  %v4093 = vadd.f32 %v4049, %v4092
  %v4094 = vpop.f32.mrf.mxu0
  %v4095 = vadd.f32 %v4051, %v4094
  %4096 = vmatmul.bf16.gmra.mxu0 %v3411
  %v4097 = vpop.f32.mrf.mxu0
  %v4098 = vadd.f32 %v4054, %v4097
  %v4099 = vpop.f32.mrf.mxu0
  %v4100 = vadd.f32 %v4056, %v4099
  %4101 = vmatmul.bf16.gmra.mxu0 %v3419
  %v4102 = vpop.f32.mrf.mxu0
  %v4103 = vadd.f32 %v4059, %v4102
  %v4104 = vpop.f32.mrf.mxu0
  %v4105 = vadd.f32 %v4061, %v4104
  %4106 = vmatmul.bf16.gmra.mxu0 %v3427
  %v4107 = vpop.f32.mrf.mxu0
  %v4108 = vadd.f32 %v4064, %v4107
  %v4109 = vpop.f32.mrf.mxu0
  %v4110 = vadd.f32 %v4066, %v4109
  %4111 = vdwg.mxu0
  %4112 = vmatpush.bf16.msra.mxu0 %v3879
  %4113 = vmatpush.bf16.msra.mxu0 %v3878
  %4114 = vmatpush.bf16.msra.mxu0 %v3877
  %4115 = vmatpush.bf16.msra.mxu0 %v3876
  %4116 = vmatpush.bf16.msra.mxu0 %v3875
  %4117 = vmatpush.bf16.msra.mxu0 %v3874
  %4118 = vmatpush.bf16.msra.mxu0 %v3873
  %4119 = vmatpush.bf16.msra.mxu0 %v3872
  %4120 = vmatmul.bf16.gmra.mxu0 %v3465
  %v4121 = vpop.f32.mrf.mxu0
  %v4122 = vadd.f32 %v4078, %v4121
  %v4123 = vpop.f32.mrf.mxu0
  %v4124 = vadd.f32 %v4080, %v4123
  %4125 = vmatmul.bf16.gmra.mxu0 %v3474
  %v4126 = vpop.f32.mrf.mxu0
  %v4127 = vadd.f32 %v4083, %v4126
  %v4128 = vpop.f32.mrf.mxu0
  %v4129 = vadd.f32 %v4085, %v4128
  %4130 = vmatmul.bf16.gmra.mxu0 %v3483
  %v4131 = vpop.f32.mrf.mxu0
  %v4132 = vadd.f32 %v4088, %v4131
  %v4133 = vpop.f32.mrf.mxu0
  %v4134 = vadd.f32 %v4090, %v4133
  %4135 = vmatmul.bf16.gmra.mxu0 %v3492
  %v4136 = vpop.f32.mrf.mxu0
  %v4137 = vadd.f32 %v4093, %v4136
  %v4138 = vpop.f32.mrf.mxu0
  %v4139 = vadd.f32 %v4095, %v4138
  %4140 = vmatmul.bf16.gmra.mxu0 %v3501
  %v4141 = vpop.f32.mrf.mxu0
  %v4142 = vadd.f32 %v4098, %v4141
  %v4143 = vpop.f32.mrf.mxu0
  %v4144 = vadd.f32 %v4100, %v4143
  %4145 = vmatmul.bf16.gmra.mxu0 %v3510
  %v4146 = vpop.f32.mrf.mxu0
  %v4147 = vadd.f32 %v4103, %v4146
  %v4148 = vpop.f32.mrf.mxu0
  %v4149 = vadd.f32 %v4105, %v4148
  %4150 = vmatmul.bf16.gmra.mxu0 %v3519
  %v4151 = vpop.f32.mrf.mxu0
  %v4152 = vadd.f32 %v4108, %v4151
  %v4153 = vpop.f32.mrf.mxu0
  %v4154 = vadd.f32 %v4110, %v4153
  %4155 = vdwg.mxu0
  %4156 = vmatpush.bf16.msra.mxu0 %v3887
  %4157 = vmatpush.bf16.msra.mxu0 %v3886
  %4158 = vmatpush.bf16.msra.mxu0 %v3885
  %4159 = vmatpush.bf16.msra.mxu0 %v3884
  %4160 = vmatpush.bf16.msra.mxu0 %v3883
  %4161 = vmatpush.bf16.msra.mxu0 %v3882
  %4162 = vmatpush.bf16.msra.mxu0 %v3881
  %4163 = vmatpush.bf16.msra.mxu0 %v3880
  %4164 = vmatmul.bf16.gmra.mxu0 %v3532
  %v4165 = vpop.f32.mrf.mxu0
  %v4166 = vadd.f32 %v4122, %v4165
  %v4167 = vpop.f32.mrf.mxu0
  %v4168 = vadd.f32 %v4124, %v4167
  %4169 = vmatmul.bf16.gmra.mxu0 %v3534
  %v4170 = vpop.f32.mrf.mxu0
  %v4171 = vadd.f32 %v4127, %v4170
  %v4172 = vpop.f32.mrf.mxu0
  %v4173 = vadd.f32 %v4129, %v4172
  %4174 = vmatmul.bf16.gmra.mxu0 %v3536
  %v4175 = vpop.f32.mrf.mxu0
  %v4176 = vadd.f32 %v4132, %v4175
  %v4177 = vpop.f32.mrf.mxu0
  %v4178 = vadd.f32 %v4134, %v4177
  %4179 = vmatmul.bf16.gmra.mxu0 %v3538
  %v4180 = vpop.f32.mrf.mxu0
  %v4181 = vadd.f32 %v4137, %v4180
  %v4182 = vpop.f32.mrf.mxu0
  %v4183 = vadd.f32 %v4139, %v4182
  %4184 = vmatmul.bf16.gmra.mxu0 %v3540
  %v4185 = vpop.f32.mrf.mxu0
  %v4186 = vadd.f32 %v4142, %v4185
  %v4187 = vpop.f32.mrf.mxu0
  %v4188 = vadd.f32 %v4144, %v4187
  %4189 = vmatmul.bf16.gmra.mxu0 %v3542
  %v4190 = vpop.f32.mrf.mxu0
  %v4191 = vadd.f32 %v4147, %v4190
  %v4192 = vpop.f32.mrf.mxu0
  %v4193 = vadd.f32 %v4149, %v4192
  %4194 = vmatmul.bf16.gmra.mxu0 %v3544
  %v4195 = vpop.f32.mrf.mxu0
  %v4196 = vadd.f32 %v4152, %v4195
  %v4197 = vpop.f32.mrf.mxu0
  %v4198 = vadd.f32 %v4154, %v4197
  %4199 = vdwg.mxu0
  %v4200 = vmax.f32 %v4166, 0.0
  %v4201 = vmax.f32 %v4168, 0.0
  %v4202 = vmax.f32 %v4171, 0.0
  %v4203 = vmax.f32 %v4173, 0.0
  %v4204 = vmax.f32 %v4176, 0.0
  %v4205 = vmax.f32 %v4178, 0.0
  %v4206 = vmax.f32 %v4181, 0.0
  %v4207 = vmax.f32 %v4183, 0.0
  %v4208 = vmax.f32 %v4186, 0.0
  %v4209 = vmax.f32 %v4188, 0.0
  %v4210 = vmax.f32 %v4191, 0.0
  %v4211 = vmax.f32 %v4193, 0.0
  %v4212 = vmax.f32 %v4196, 0.0
  %v4213 = vmax.f32 %v4198, 0.0
  %v4214 = vpack.c.bf16 %v4200, %v4200
  %v4215 = vpack.c.bf16 %v4201, %v4201
  %v4216 = vpack.c.bf16 %v4202, %v4202
  %v4217 = vpack.c.bf16 %v4203, %v4203
  %v4218 = vpack.c.bf16 %v4204, %v4204
  %v4219 = vpack.c.bf16 %v4205, %v4205
  %v4220 = vpack.c.bf16 %v4206, %v4206
  %v4221 = vpack.c.bf16 %v4207, %v4207
  %v4222 = vpack.c.bf16 %v4208, %v4208
  %v4223 = vpack.c.bf16 %v4209, %v4209
  %v4224 = vpack.c.bf16 %v4210, %v4210
  %v4225 = vpack.c.bf16 %v4211, %v4211
  %v4226 = vpack.c.bf16 %v4212, %v4212
  %v4227 = vpack.c.bf16 %v4213, %v4213
  %4228 = vst [vmem:[#allocation2] sm:$0xf] %v4214
  %4229 = vst [vmem:[#allocation2 + $0x4] sm:$0xf] %v4215
  %4230 = vst [vmem:[#allocation2 + $0x8] sm:$0xf] %v4216
  %4231 = vst [vmem:[#allocation2 + $0xc] sm:$0xf] %v4217
  %4232 = vst [vmem:[#allocation2 + $0x10] sm:$0xf] %v4218
  %4233 = vst [vmem:[#allocation2 + $0x14] sm:$0xf] %v4219
  %4234 = vst [vmem:[#allocation2 + $0x18] sm:$0xf] %v4220
  %4235 = vst [vmem:[#allocation2 + $0x1c] sm:$0xf] %v4221
  %4236 = vst [vmem:[#allocation2 + $0x20] sm:$0xf] %v4222
  %4237 = vst [vmem:[#allocation2 + $0x24] sm:$0xf] %v4223
  %4238 = vst [vmem:[#allocation2 + $0x28] sm:$0xf] %v4224
  %4239 = vst [vmem:[#allocation2 + $0x2c] sm:$0xf] %v4225
  %4240 = vst [vmem:[#allocation2 + $0x30] sm:$0xf] %v4226
  %4241 = vst [vmem:[#allocation2 + $0x34] sm:$0xf] %v4227
  %v4242 = vld [vmem:[#allocation2] sm:$0xf]
  %v4243 = vld [vmem:[#allocation2 + $0x4] sm:$0xf]
  %v4244 = vld [vmem:[#allocation2 + $0x8] sm:$0xf]
  %v4245 = vld [vmem:[#allocation2 + $0xc] sm:$0xf]
  %v4246 = vld [vmem:[#allocation2 + $0x10] sm:$0xf]
  %v4247 = vld [vmem:[#allocation2 + $0x14] sm:$0xf]
  %v4248 = vld [vmem:[#allocation2 + $0x18] sm:$0xf]
  %v4249 = vld [vmem:[#allocation2 + $0x1c] sm:$0xf]
  %v4250 = vld [vmem:[#allocation2 + $0x20] sm:$0xf]
  %v4251 = vld [vmem:[#allocation2 + $0x24] sm:$0xf]
  %v4252 = vld [vmem:[#allocation2 + $0x28] sm:$0xf]
  %v4253 = vld [vmem:[#allocation2 + $0x2c] sm:$0xf]
  %v4254 = vld [vmem:[#allocation2 + $0x30] sm:$0x1]
  %v4255 = vld [vmem:[#allocation2 + $0x4] sm:$0xe]
  %v4256 = vld [vmem:[#allocation2 + $0x8] sm:$0xf]
  %v4257 = vld [vmem:[#allocation2 + $0xc] sm:$0xf]
  %v4258 = vld [vmem:[#allocation2 + $0x10] sm:$0xf]
  %v4259 = vld [vmem:[#allocation2 + $0x14] sm:$0xf]
  %v4260 = vld [vmem:[#allocation2 + $0x18] sm:$0xf]
  %v4261 = vld [vmem:[#allocation2 + $0x1c] sm:$0xf]
  %v4262 = vld [vmem:[#allocation2 + $0x20] sm:$0xf]
  %v4263 = vld [vmem:[#allocation2 + $0x24] sm:$0xf]
  %v4264 = vld [vmem:[#allocation2 + $0x28] sm:$0xf]
  %v4265 = vld [vmem:[#allocation2 + $0x2c] sm:$0xf]
  %v4266 = vld [vmem:[#allocation2 + $0x30] sm:$0xf]
  %v4267 = vld [vmem:[#allocation2 + $0x34] sm:$0x3]
  %v4268 = vld [vmem:[#allocation2 + $0x4] sm:$0xc]
  %v4269 = vld [vmem:[#allocation2 + $0x34] sm:$0x7]
  %v4283 = vunpack.c.l.b16 %v4242
  %v4284 = vunpack.c.l.b16 %v4243
  %v4285 = vunpack.c.l.b16 %v4244
  %v4286 = vunpack.c.l.b16 %v4245
  %v4287 = vunpack.c.l.b16 %v4246
  %v4288 = vunpack.c.l.b16 %v4247
  %v4289 = vunpack.c.l.b16 %v4248
  %v4290 = vunpack.c.l.b16 %v4249
  %v4291 = vunpack.c.l.b16 %v4250
  %v4292 = vunpack.c.l.b16 %v4251
  %v4293 = vunpack.c.l.b16 %v4252
  %v4294 = vunpack.c.l.b16 %v4253
  %v4295 = vunpack.c.l.b16 %v4254
  %v4296 = vpack.c.b16 %v4284, %v4283
  %v4297 = vpack.c.b16 %v4286, %v4285
  %v4298 = vpack.c.b16 %v4288, %v4287
  %v4299 = vpack.c.b16 %v4290, %v4289
  %v4300 = vpack.c.b16 %v4292, %v4291
  %v4301 = vpack.c.b16 %v4294, %v4293
  %v4302 = vpack.c.b16 %v4295, %v4295
  %v4311 = vshrl.u32 %v4296, 16
  %v4313 = vshll.u32 %v4296, 16
  %v4315 = vrot.slane %v4313, 1
  %v4316 = vor.u32 %v4311, %v4315
  %v4318 = vshll.u32 %v4297, 16
  %v4320 = vrot.slane %v4318, 1
  %v4321 = vsel %vm109, %v4316, %v4320
  %v4322 = vshrl.u32 %v4297, 16
  %v4324 = vor.u32 %v4322, %v4320
  %v4326 = vshll.u32 %v4298, 16
  %v4328 = vrot.slane %v4326, 1
  %v4329 = vsel %vm109, %v4324, %v4328
  %v4330 = vshrl.u32 %v4298, 16
  %v4332 = vor.u32 %v4330, %v4328
  %v4334 = vshll.u32 %v4299, 16
  %v4336 = vrot.slane %v4334, 1
  %v4337 = vsel %vm109, %v4332, %v4336
  %v4338 = vshrl.u32 %v4299, 16
  %v4340 = vor.u32 %v4338, %v4336
  %v4342 = vshll.u32 %v4300, 16
  %v4344 = vrot.slane %v4342, 1
  %v4345 = vsel %vm109, %v4340, %v4344
  %v4346 = vshrl.u32 %v4300, 16
  %v4348 = vor.u32 %v4346, %v4344
  %v4350 = vshll.u32 %v4301, 16
  %v4352 = vrot.slane %v4350, 1
  %v4353 = vsel %vm109, %v4348, %v4352
  %v4354 = vshrl.u32 %v4301, 16
  %v4356 = vor.u32 %v4354, %v4352
  %v4358 = vshll.u32 %v4302, 16
  %v4360 = vrot.slane %v4358, 1
  %v4361 = vsel %vm109, %v4356, %v4360
  %v4362 = vshrl.u32 %v4302, 16
  %v4384 = vunpack.c.l.b16 %v4255
  %v4385 = vunpack.c.l.b16 %v4256
  %v4386 = vunpack.c.l.b16 %v4257
  %v4387 = vunpack.c.l.b16 %v4258
  %v4388 = vunpack.c.l.b16 %v4259
  %v4389 = vunpack.c.l.b16 %v4260
  %v4390 = vunpack.c.l.b16 %v4261
  %v4391 = vunpack.c.l.b16 %v4262
  %v4392 = vunpack.c.l.b16 %v4263
  %v4393 = vunpack.c.l.b16 %v4264
  %v4394 = vunpack.c.l.b16 %v4265
  %v4395 = vunpack.c.l.b16 %v4266
  %v4396 = vunpack.c.l.b16 %v4267
  %v4397 = vpack.c.b16 %v4385, %v4384
  %v4398 = vpack.c.b16 %v4387, %v4386
  %v4399 = vpack.c.b16 %v4389, %v4388
  %v4400 = vpack.c.b16 %v4391, %v4390
  %v4401 = vpack.c.b16 %v4393, %v4392
  %v4402 = vpack.c.b16 %v4395, %v4394
  %v4403 = vpack.c.b16 %v4396, %v4396
  %v4405 = vshrl.u32 %v4397, 16
  %v4407 = vrot.slane %v4405, 1
  %v4408 = vshll.u32 %v4397, 16
  %v4410 = vrot.slane %v4408, 2
  %v4411 = vor.u32 %v4407, %v4410
  %v4413 = vshrl.u32 %v4398, 16
  %v4415 = vrot.slane %v4413, 1
  %v4416 = vshll.u32 %v4398, 16
  %v4418 = vrot.slane %v4416, 2
  %v4419 = vor.u32 %v4415, %v4418
  %v4420 = vsel %vm303, %v4411, %v4419
  %v4422 = vshrl.u32 %v4399, 16
  %v4424 = vrot.slane %v4422, 1
  %v4425 = vshll.u32 %v4399, 16
  %v4427 = vrot.slane %v4425, 2
  %v4428 = vor.u32 %v4424, %v4427
  %v4429 = vsel %vm303, %v4419, %v4428
  %v4431 = vshrl.u32 %v4400, 16
  %v4433 = vrot.slane %v4431, 1
  %v4434 = vshll.u32 %v4400, 16
  %v4436 = vrot.slane %v4434, 2
  %v4437 = vor.u32 %v4433, %v4436
  %v4438 = vsel %vm303, %v4428, %v4437
  %v4440 = vshrl.u32 %v4401, 16
  %v4442 = vrot.slane %v4440, 1
  %v4443 = vshll.u32 %v4401, 16
  %v4445 = vrot.slane %v4443, 2
  %v4446 = vor.u32 %v4442, %v4445
  %v4447 = vsel %vm303, %v4437, %v4446
  %v4449 = vshrl.u32 %v4402, 16
  %v4451 = vrot.slane %v4449, 1
  %v4452 = vshll.u32 %v4402, 16
  %v4454 = vrot.slane %v4452, 2
  %v4455 = vor.u32 %v4451, %v4454
  %v4456 = vsel %vm303, %v4446, %v4455
  %v4458 = vshrl.u32 %v4403, 16
  %v4460 = vrot.slane %v4458, 1
  %v4461 = vshll.u32 %v4403, 16
  %v4463 = vrot.slane %v4461, 2
  %v4464 = vor.u32 %v4460, %v4463
  %v4465 = vsel %vm303, %v4455, %v4464
  %v4475 = vunpack.c.l.b16 %v4268
  %v4476 = vunpack.c.l.b16 %v4269
  %v4477 = vpack.c.b16 %v4385, %v4475
  %v4478 = vpack.c.b16 %v4476, %v4476
  %v4479 = vrot.slane %v4477, 2
  %v4480 = vrot.slane %v4398, 2
  %v4481 = vsel %vm385, %v4479, %v4480
  %v4482 = vrot.slane %v4399, 2
  %v4483 = vsel %vm385, %v4480, %v4482
  %v4484 = vrot.slane %v4400, 2
  %v4485 = vsel %vm385, %v4482, %v4484
  %v4486 = vrot.slane %v4401, 2
  %v4487 = vsel %vm385, %v4484, %v4486
  %v4488 = vrot.slane %v4402, 2
  %v4489 = vsel %vm385, %v4486, %v4488
  %v4490 = vrot.slane %v4478, 2
  %v4491 = vsel %vm385, %v4488, %v4490
  %v4499 = vld [vmem:[%s3] sm:$0xf]
  %v4500 = vld [vmem:[%s3 + $0x4] sm:$0xf]
  %v4501 = vld [vmem:[%s3 + $0x8] sm:$0xf]
  %v4502 = vld [vmem:[%s3 + $0xc] sm:$0xf]
  %v4503 = vld [vmem:[%s3 + $0x10] sm:$0xf]
  %v4504 = vld [vmem:[%s3 + $0x14] sm:$0xf]
  %v4505 = vld [vmem:[%s3 + $0x18] sm:$0xf]
  %v4506 = vld [vmem:[%s3 + $0x1c] sm:$0xf]
  %v4507 = vld [vmem:[%s3 + $0x20] sm:$0xf]
  %v4508 = vld [vmem:[%s3 + $0x24] sm:$0xf]
  %v4509 = vld [vmem:[%s3 + $0x28] sm:$0xf]
  %v4510 = vld [vmem:[%s3 + $0x2c] sm:$0xf]
  %v4511 = vld [vmem:[%s3 + $0x30] sm:$0xf]
  %v4512 = vld [vmem:[%s3 + $0x34] sm:$0xf]
  %v4513 = vld [vmem:[%s3 + $0x38] sm:$0xf]
  %v4514 = vld [vmem:[%s3 + $0x3c] sm:$0xf]
  %v4515 = vld [vmem:[%s3 + $0x40] sm:$0xf]
  %v4516 = vld [vmem:[%s3 + $0x44] sm:$0xf]
  %v4517 = vld [vmem:[%s3 + $0x48] sm:$0xf]
  %v4518 = vld [vmem:[%s3 + $0x4c] sm:$0xf]
  %v4519 = vld [vmem:[%s3 + $0x50] sm:$0xf]
  %v4520 = vld [vmem:[%s3 + $0x54] sm:$0xf]
  %v4521 = vld [vmem:[%s3 + $0x58] sm:$0xf]
  %v4522 = vld [vmem:[%s3 + $0x5c] sm:$0xf]
  %v4523 = vld [vmem:[%s3 + $0x60] sm:$0xf]
  %v4524 = vld [vmem:[%s3 + $0x64] sm:$0xf]
  %v4525 = vld [vmem:[%s3 + $0x68] sm:$0xf]
  %v4526 = vld [vmem:[%s3 + $0x6c] sm:$0xf]
  %v4527 = vld [vmem:[%s3 + $0x70] sm:$0xf]
  %v4528 = vld [vmem:[%s3 + $0x74] sm:$0xf]
  %v4529 = vld [vmem:[%s3 + $0x78] sm:$0xf]
  %v4530 = vld [vmem:[%s3 + $0x7c] sm:$0xf]
  %v4531 = vld [vmem:[%s3 + $0x80] sm:$0xf]
  %v4532 = vld [vmem:[%s3 + $0x84] sm:$0xf]
  %v4533 = vld [vmem:[%s3 + $0x88] sm:$0xf]
  %v4534 = vld [vmem:[%s3 + $0x8c] sm:$0xf]
  %v4535 = vld [vmem:[%s3 + $0x90] sm:$0xf]
  %v4536 = vld [vmem:[%s3 + $0x94] sm:$0xf]
  %v4537 = vld [vmem:[%s3 + $0x98] sm:$0xf]
  %v4538 = vld [vmem:[%s3 + $0x9c] sm:$0xf]
  %v4539 = vld [vmem:[%s3 + $0xa0] sm:$0xf]
  %v4540 = vld [vmem:[%s3 + $0xa4] sm:$0xf]
  %v4541 = vld [vmem:[%s3 + $0xa8] sm:$0xf]
  %v4542 = vld [vmem:[%s3 + $0xac] sm:$0xf]
  %v4543 = vld [vmem:[%s3 + $0xb0] sm:$0xf]
  %v4544 = vld [vmem:[%s3 + $0xb4] sm:$0xf]
  %v4545 = vld [vmem:[%s3 + $0xb8] sm:$0xf]
  %v4546 = vld [vmem:[%s3 + $0xbc] sm:$0xf]
  %v4547 = vld [vmem:[%s3 + $0xc0] sm:$0xf]
  %v4548 = vld [vmem:[%s3 + $0xc4] sm:$0xf]
  %v4549 = vld [vmem:[%s3 + $0xc8] sm:$0xf]
  %v4550 = vld [vmem:[%s3 + $0xcc] sm:$0xf]
  %v4551 = vld [vmem:[%s3 + $0xd0] sm:$0xf]
  %v4552 = vld [vmem:[%s3 + $0xd4] sm:$0xf]
  %v4553 = vld [vmem:[%s3 + $0xd8] sm:$0xf]
  %v4554 = vld [vmem:[%s3 + $0xdc] sm:$0xf]
  %v4555 = vld [vmem:[%s3 + $0xe0] sm:$0xf]
  %v4556 = vld [vmem:[%s3 + $0xe4] sm:$0xf]
  %v4557 = vld [vmem:[%s3 + $0xe8] sm:$0xf]
  %v4558 = vld [vmem:[%s3 + $0xec] sm:$0xf]
  %v4559 = vld [vmem:[%s3 + $0xf0] sm:$0xf]
  %v4560 = vld [vmem:[%s3 + $0xf4] sm:$0xf]
  %v4561 = vld [vmem:[%s3 + $0xf8] sm:$0xf]
  %v4562 = vld [vmem:[%s3 + $0xfc] sm:$0xf]
  %v4627 = vunpack.c.l.b16 %v4499
  %v4628 = vunpack.c.l.b16 %v4500
  %v4629 = vunpack.c.l.b16 %v4501
  %v4630 = vunpack.c.l.b16 %v4502
  %v4631 = vunpack.c.l.b16 %v4503
  %v4632 = vunpack.c.l.b16 %v4504
  %v4633 = vunpack.c.l.b16 %v4505
  %v4634 = vunpack.c.l.b16 %v4506
  %v4635 = vunpack.c.l.b16 %v4507
  %v4636 = vunpack.c.l.b16 %v4508
  %v4637 = vunpack.c.l.b16 %v4509
  %v4638 = vunpack.c.l.b16 %v4510
  %v4639 = vunpack.c.l.b16 %v4511
  %v4640 = vunpack.c.l.b16 %v4512
  %v4641 = vunpack.c.l.b16 %v4513
  %v4642 = vunpack.c.l.b16 %v4514
  %v4643 = vunpack.c.l.b16 %v4515
  %v4644 = vunpack.c.l.b16 %v4516
  %v4645 = vunpack.c.l.b16 %v4517
  %v4646 = vunpack.c.l.b16 %v4518
  %v4647 = vunpack.c.l.b16 %v4519
  %v4648 = vunpack.c.l.b16 %v4520
  %v4649 = vunpack.c.l.b16 %v4521
  %v4650 = vunpack.c.l.b16 %v4522
  %v4651 = vunpack.c.l.b16 %v4523
  %v4652 = vunpack.c.l.b16 %v4524
  %v4653 = vunpack.c.l.b16 %v4525
  %v4654 = vunpack.c.l.b16 %v4526
  %v4655 = vunpack.c.l.b16 %v4527
  %v4656 = vunpack.c.l.b16 %v4528
  %v4657 = vunpack.c.l.b16 %v4529
  %v4658 = vunpack.c.l.b16 %v4530
  %v4659 = vunpack.c.l.b16 %v4531
  %v4660 = vunpack.c.l.b16 %v4532
  %v4661 = vunpack.c.l.b16 %v4533
  %v4662 = vunpack.c.l.b16 %v4534
  %v4663 = vunpack.c.l.b16 %v4535
  %v4664 = vunpack.c.l.b16 %v4536
  %v4665 = vunpack.c.l.b16 %v4537
  %v4666 = vunpack.c.l.b16 %v4538
  %v4667 = vunpack.c.l.b16 %v4539
  %v4668 = vunpack.c.l.b16 %v4540
  %v4669 = vunpack.c.l.b16 %v4541
  %v4670 = vunpack.c.l.b16 %v4542
  %v4671 = vunpack.c.l.b16 %v4543
  %v4672 = vunpack.c.l.b16 %v4544
  %v4673 = vunpack.c.l.b16 %v4545
  %v4674 = vunpack.c.l.b16 %v4546
  %v4675 = vunpack.c.l.b16 %v4547
  %v4676 = vunpack.c.l.b16 %v4548
  %v4677 = vunpack.c.l.b16 %v4549
  %v4678 = vunpack.c.l.b16 %v4550
  %v4679 = vunpack.c.l.b16 %v4551
  %v4680 = vunpack.c.l.b16 %v4552
  %v4681 = vunpack.c.l.b16 %v4553
  %v4682 = vunpack.c.l.b16 %v4554
  %v4683 = vunpack.c.l.b16 %v4555
  %v4684 = vunpack.c.l.b16 %v4556
  %v4685 = vunpack.c.l.b16 %v4557
  %v4686 = vunpack.c.l.b16 %v4558
  %v4687 = vunpack.c.l.b16 %v4559
  %v4688 = vunpack.c.l.b16 %v4560
  %v4689 = vunpack.c.l.b16 %v4561
  %v4690 = vunpack.c.l.b16 %v4562
  %v4691 = vpack.c.b16 %v4628, %v4627
  %v4692 = vpack.c.b16 %v4630, %v4629
  %v4693 = vpack.c.b16 %v4632, %v4631
  %v4694 = vpack.c.b16 %v4634, %v4633
  %v4695 = vpack.c.b16 %v4636, %v4635
  %v4696 = vpack.c.b16 %v4638, %v4637
  %v4697 = vpack.c.b16 %v4640, %v4639
  %v4698 = vpack.c.b16 %v4642, %v4641
  %v4699 = vpack.c.b16 %v4644, %v4643
  %v4700 = vpack.c.b16 %v4646, %v4645
  %v4701 = vpack.c.b16 %v4648, %v4647
  %v4702 = vpack.c.b16 %v4650, %v4649
  %v4703 = vpack.c.b16 %v4652, %v4651
  %v4704 = vpack.c.b16 %v4654, %v4653
  %v4705 = vpack.c.b16 %v4656, %v4655
  %v4706 = vpack.c.b16 %v4658, %v4657
  %v4707 = vpack.c.b16 %v4660, %v4659
  %v4708 = vpack.c.b16 %v4662, %v4661
  %v4709 = vpack.c.b16 %v4664, %v4663
  %v4710 = vpack.c.b16 %v4666, %v4665
  %v4711 = vpack.c.b16 %v4668, %v4667
  %v4712 = vpack.c.b16 %v4670, %v4669
  %v4713 = vpack.c.b16 %v4672, %v4671
  %v4714 = vpack.c.b16 %v4674, %v4673
  %v4715 = vpack.c.b16 %v4676, %v4675
  %v4716 = vpack.c.b16 %v4678, %v4677
  %v4717 = vpack.c.b16 %v4680, %v4679
  %v4718 = vpack.c.b16 %v4682, %v4681
  %v4719 = vpack.c.b16 %v4684, %v4683
  %v4720 = vpack.c.b16 %v4686, %v4685
  %v4721 = vpack.c.b16 %v4688, %v4687
  %v4722 = vpack.c.b16 %v4690, %v4689
  %4755 = vmatpush.bf16.msra.mxu0 %v4698
  %4756 = vmatpush.bf16.msra.mxu0 %v4697
  %4757 = vmatpush.bf16.msra.mxu0 %v4696
  %4758 = vmatpush.bf16.msra.mxu0 %v4695
  %4759 = vmatpush.bf16.msra.mxu0 %v4694
  %4760 = vmatpush.bf16.msra.mxu0 %v4693
  %4761 = vmatpush.bf16.msra.mxu0 %v4692
  %4762 = vmatpush.bf16.msra.mxu0 %v4691
  %4763 = vmatmul.bf16.gmra.mxu0 %v4296
  %v4764 = vpop.f32.mrf.mxu0
  %v4765 = vadd.f32 %v1423, %v4764
  %v4766 = vpop.f32.mrf.mxu0
  %v4767 = vadd.f32 %v1423, %v4766
  %4768 = vmatmul.bf16.gmra.mxu0 %v4297
  %v4769 = vpop.f32.mrf.mxu0
  %v4770 = vadd.f32 %v1423, %v4769
  %v4771 = vpop.f32.mrf.mxu0
  %v4772 = vadd.f32 %v1423, %v4771
  %4773 = vmatmul.bf16.gmra.mxu0 %v4298
  %v4774 = vpop.f32.mrf.mxu0
  %v4775 = vadd.f32 %v1423, %v4774
  %v4776 = vpop.f32.mrf.mxu0
  %v4777 = vadd.f32 %v1423, %v4776
  %4778 = vmatmul.bf16.gmra.mxu0 %v4299
  %v4779 = vpop.f32.mrf.mxu0
  %v4780 = vadd.f32 %v1423, %v4779
  %v4781 = vpop.f32.mrf.mxu0
  %v4782 = vadd.f32 %v1423, %v4781
  %4783 = vmatmul.bf16.gmra.mxu0 %v4300
  %v4784 = vpop.f32.mrf.mxu0
  %v4785 = vadd.f32 %v1423, %v4784
  %v4786 = vpop.f32.mrf.mxu0
  %v4787 = vadd.f32 %v1423, %v4786
  %4788 = vmatmul.bf16.gmra.mxu0 %v4301
  %v4789 = vpop.f32.mrf.mxu0
  %v4790 = vadd.f32 %v1423, %v4789
  %v4791 = vpop.f32.mrf.mxu0
  %v4792 = vadd.f32 %v1423, %v4791
  %4793 = vmatmul.bf16.gmra.mxu0 %v4302
  %v4794 = vpop.f32.mrf.mxu0
  %v4795 = vadd.f32 %v1423, %v4794
  %v4796 = vpop.f32.mrf.mxu0
  %4797 = vdwg.mxu0
  %4798 = vmatpush.bf16.msra.mxu0 %v4706
  %4799 = vmatpush.bf16.msra.mxu0 %v4705
  %4800 = vmatpush.bf16.msra.mxu0 %v4704
  %4801 = vmatpush.bf16.msra.mxu0 %v4703
  %4802 = vmatpush.bf16.msra.mxu0 %v4702
  %4803 = vmatpush.bf16.msra.mxu0 %v4701
  %4804 = vmatpush.bf16.msra.mxu0 %v4700
  %4805 = vmatpush.bf16.msra.mxu0 %v4699
  %4806 = vmatmul.bf16.gmra.mxu0 %v4321
  %v4807 = vpop.f32.mrf.mxu0
  %v4808 = vadd.f32 %v4765, %v4807
  %v4809 = vpop.f32.mrf.mxu0
  %v4810 = vadd.f32 %v4767, %v4809
  %4811 = vmatmul.bf16.gmra.mxu0 %v4329
  %v4812 = vpop.f32.mrf.mxu0
  %v4813 = vadd.f32 %v4770, %v4812
  %v4814 = vpop.f32.mrf.mxu0
  %v4815 = vadd.f32 %v4772, %v4814
  %4816 = vmatmul.bf16.gmra.mxu0 %v4337
  %v4817 = vpop.f32.mrf.mxu0
  %v4818 = vadd.f32 %v4775, %v4817
  %v4819 = vpop.f32.mrf.mxu0
  %v4820 = vadd.f32 %v4777, %v4819
  %4821 = vmatmul.bf16.gmra.mxu0 %v4345
  %v4822 = vpop.f32.mrf.mxu0
  %v4823 = vadd.f32 %v4780, %v4822
  %v4824 = vpop.f32.mrf.mxu0
  %v4825 = vadd.f32 %v4782, %v4824
  %4826 = vmatmul.bf16.gmra.mxu0 %v4353
  %v4827 = vpop.f32.mrf.mxu0
  %v4828 = vadd.f32 %v4785, %v4827
  %v4829 = vpop.f32.mrf.mxu0
  %v4830 = vadd.f32 %v4787, %v4829
  %4831 = vmatmul.bf16.gmra.mxu0 %v4361
  %v4832 = vpop.f32.mrf.mxu0
  %v4833 = vadd.f32 %v4790, %v4832
  %v4834 = vpop.f32.mrf.mxu0
  %v4835 = vadd.f32 %v4792, %v4834
  %4836 = vmatmul.bf16.gmra.mxu0 %v4362
  %v4837 = vpop.f32.mrf.mxu0
  %v4838 = vadd.f32 %v4795, %v4837
  %v4839 = vpop.f32.mrf.mxu0
  %4840 = vdwg.mxu0
  %4841 = vmatpush.bf16.msra.mxu0 %v4714
  %4842 = vmatpush.bf16.msra.mxu0 %v4713
  %4843 = vmatpush.bf16.msra.mxu0 %v4712
  %4844 = vmatpush.bf16.msra.mxu0 %v4711
  %4845 = vmatpush.bf16.msra.mxu0 %v4710
  %4846 = vmatpush.bf16.msra.mxu0 %v4709
  %4847 = vmatpush.bf16.msra.mxu0 %v4708
  %4848 = vmatpush.bf16.msra.mxu0 %v4707
  %4849 = vmatmul.bf16.gmra.mxu0 %v4420
  %v4850 = vpop.f32.mrf.mxu0
  %v4851 = vadd.f32 %v4808, %v4850
  %v4852 = vpop.f32.mrf.mxu0
  %v4853 = vadd.f32 %v4810, %v4852
  %4854 = vmatmul.bf16.gmra.mxu0 %v4429
  %v4855 = vpop.f32.mrf.mxu0
  %v4856 = vadd.f32 %v4813, %v4855
  %v4857 = vpop.f32.mrf.mxu0
  %v4858 = vadd.f32 %v4815, %v4857
  %4859 = vmatmul.bf16.gmra.mxu0 %v4438
  %v4860 = vpop.f32.mrf.mxu0
  %v4861 = vadd.f32 %v4818, %v4860
  %v4862 = vpop.f32.mrf.mxu0
  %v4863 = vadd.f32 %v4820, %v4862
  %4864 = vmatmul.bf16.gmra.mxu0 %v4447
  %v4865 = vpop.f32.mrf.mxu0
  %v4866 = vadd.f32 %v4823, %v4865
  %v4867 = vpop.f32.mrf.mxu0
  %v4868 = vadd.f32 %v4825, %v4867
  %4869 = vmatmul.bf16.gmra.mxu0 %v4456
  %v4870 = vpop.f32.mrf.mxu0
  %v4871 = vadd.f32 %v4828, %v4870
  %v4872 = vpop.f32.mrf.mxu0
  %v4873 = vadd.f32 %v4830, %v4872
  %4874 = vmatmul.bf16.gmra.mxu0 %v4465
  %v4875 = vpop.f32.mrf.mxu0
  %v4876 = vadd.f32 %v4833, %v4875
  %v4877 = vpop.f32.mrf.mxu0
  %v4878 = vadd.f32 %v4835, %v4877
  %4879 = vmatmul.bf16.gmra.mxu0 %v4460
  %v4880 = vpop.f32.mrf.mxu0
  %v4881 = vadd.f32 %v4838, %v4880
  %v4882 = vpop.f32.mrf.mxu0
  %4883 = vdwg.mxu0
  %4884 = vmatpush.bf16.msra.mxu0 %v4722
  %4885 = vmatpush.bf16.msra.mxu0 %v4721
  %4886 = vmatpush.bf16.msra.mxu0 %v4720
  %4887 = vmatpush.bf16.msra.mxu0 %v4719
  %4888 = vmatpush.bf16.msra.mxu0 %v4718
  %4889 = vmatpush.bf16.msra.mxu0 %v4717
  %4890 = vmatpush.bf16.msra.mxu0 %v4716
  %4891 = vmatpush.bf16.msra.mxu0 %v4715
  %4892 = vmatmul.bf16.gmra.mxu0 %v4481
  %v4893 = vpop.f32.mrf.mxu0
  %v4894 = vadd.f32 %v4851, %v4893
  %v4895 = vpop.f32.mrf.mxu0
  %v4896 = vadd.f32 %v4853, %v4895
  %4897 = vmatmul.bf16.gmra.mxu0 %v4483
  %v4898 = vpop.f32.mrf.mxu0
  %v4899 = vadd.f32 %v4856, %v4898
  %v4900 = vpop.f32.mrf.mxu0
  %v4901 = vadd.f32 %v4858, %v4900
  %4902 = vmatmul.bf16.gmra.mxu0 %v4485
  %v4903 = vpop.f32.mrf.mxu0
  %v4904 = vadd.f32 %v4861, %v4903
  %v4905 = vpop.f32.mrf.mxu0
  %v4906 = vadd.f32 %v4863, %v4905
  %4907 = vmatmul.bf16.gmra.mxu0 %v4487
  %v4908 = vpop.f32.mrf.mxu0
  %v4909 = vadd.f32 %v4866, %v4908
  %v4910 = vpop.f32.mrf.mxu0
  %v4911 = vadd.f32 %v4868, %v4910
  %4912 = vmatmul.bf16.gmra.mxu0 %v4489
  %v4913 = vpop.f32.mrf.mxu0
  %v4914 = vadd.f32 %v4871, %v4913
  %v4915 = vpop.f32.mrf.mxu0
  %v4916 = vadd.f32 %v4873, %v4915
  %4917 = vmatmul.bf16.gmra.mxu0 %v4491
  %v4918 = vpop.f32.mrf.mxu0
  %v4919 = vadd.f32 %v4876, %v4918
  %v4920 = vpop.f32.mrf.mxu0
  %v4921 = vadd.f32 %v4878, %v4920
  %4922 = vmatmul.bf16.gmra.mxu0 %v4490
  %v4923 = vpop.f32.mrf.mxu0
  %v4924 = vadd.f32 %v4881, %v4923
  %v4925 = vpop.f32.mrf.mxu0
  %4926 = vdwg.mxu0
  %v4927 = vmax.f32 %v4894, 0.0
  %v4928 = vmax.f32 %v4896, 0.0
  %v4929 = vmax.f32 %v4899, 0.0
  %v4930 = vmax.f32 %v4901, 0.0
  %v4931 = vmax.f32 %v4904, 0.0
  %v4932 = vmax.f32 %v4906, 0.0
  %v4933 = vmax.f32 %v4909, 0.0
  %v4934 = vmax.f32 %v4911, 0.0
  %v4935 = vmax.f32 %v4914, 0.0
  %v4936 = vmax.f32 %v4916, 0.0
  %v4937 = vmax.f32 %v4919, 0.0
  %v4938 = vmax.f32 %v4921, 0.0
  %v4939 = vmax.f32 %v4924, 0.0
  %v4940 = vpack.c.bf16 %v4927, %v4927
  %v4941 = vpack.c.bf16 %v4928, %v4928
  %v4942 = vpack.c.bf16 %v4929, %v4929
  %v4943 = vpack.c.bf16 %v4930, %v4930
  %v4944 = vpack.c.bf16 %v4931, %v4931
  %v4945 = vpack.c.bf16 %v4932, %v4932
  %v4946 = vpack.c.bf16 %v4933, %v4933
  %v4947 = vpack.c.bf16 %v4934, %v4934
  %v4948 = vpack.c.bf16 %v4935, %v4935
  %v4949 = vpack.c.bf16 %v4936, %v4936
  %v4950 = vpack.c.bf16 %v4937, %v4937
  %v4951 = vpack.c.bf16 %v4938, %v4938
  %v4952 = vpack.c.bf16 %v4939, %v4939
  %4953 = vst [vmem:[#allocation3] sm:$0xf] %v4940
  %4954 = vst [vmem:[#allocation3 + $0x4] sm:$0xf] %v4941
  %4955 = vst [vmem:[#allocation3 + $0x8] sm:$0xf] %v4942
  %4956 = vst [vmem:[#allocation3 + $0xc] sm:$0xf] %v4943
  %4957 = vst [vmem:[#allocation3 + $0x10] sm:$0xf] %v4944
  %4958 = vst [vmem:[#allocation3 + $0x14] sm:$0xf] %v4945
  %4959 = vst [vmem:[#allocation3 + $0x18] sm:$0xf] %v4946
  %4960 = vst [vmem:[#allocation3 + $0x1c] sm:$0xf] %v4947
  %4961 = vst [vmem:[#allocation3 + $0x20] sm:$0xf] %v4948
  %4962 = vst [vmem:[#allocation3 + $0x24] sm:$0xf] %v4949
  %4963 = vst [vmem:[#allocation3 + $0x28] sm:$0xf] %v4950
  %4964 = vst [vmem:[#allocation3 + $0x2c] sm:$0xf] %v4951
  %v4965 = vld [vmem:[#allocation3 + $0x30] sm:$0x1]
  %v4966 = vsel %vm1829, %v4952, %v4965
  %4967 = vst [vmem:[#allocation3 + $0x30] sm:$0x1] %v4966
  %v4968 = vld [vmem:[#allocation3] sm:$0xf]
  %v4969 = vld [vmem:[#allocation3 + $0x4] sm:$0xf]
  %v4970 = vld [vmem:[#allocation3 + $0x8] sm:$0xf]
  %v4971 = vld [vmem:[#allocation3 + $0xc] sm:$0xf]
  %v4972 = vld [vmem:[#allocation3 + $0x10] sm:$0xf]
  %v4973 = vld [vmem:[#allocation3 + $0x14] sm:$0xf]
  %v4974 = vld [vmem:[#allocation3 + $0x18] sm:$0xf]
  %v4975 = vld [vmem:[#allocation3 + $0x1c] sm:$0xf]
  %v4976 = vld [vmem:[#allocation3 + $0x20] sm:$0xf]
  %v4977 = vld [vmem:[#allocation3 + $0x24] sm:$0x1]
  %v4978 = vld [vmem:[#allocation3] sm:$0xe]
  %v4979 = vld [vmem:[#allocation3 + $0x24] sm:$0x3]
  %v4980 = vld [vmem:[#allocation3 + $0x4] sm:$0xe]
  %v4981 = vld [vmem:[#allocation3 + $0x24] sm:$0xf]
  %v4982 = vld [vmem:[#allocation3 + $0x28] sm:$0x3]
  %v4983 = vld [vmem:[#allocation3 + $0x4] sm:$0xc]
  %v4984 = vld [vmem:[#allocation3 + $0x28] sm:$0x7]
  %v4985 = vld [vmem:[#allocation3 + $0x8] sm:$0x8]
  %v4986 = vld [vmem:[#allocation3 + $0x28] sm:$0xf]
  %v4987 = vld [vmem:[#allocation3 + $0x2c] sm:$0xf]
  %v4988 = vld [vmem:[#allocation3 + $0xc] sm:$0xf]
  %v4989 = vld [vmem:[#allocation3 + $0x10] sm:$0xf]
  %v4990 = vld [vmem:[#allocation3 + $0x14] sm:$0xf]
  %v4991 = vld [vmem:[#allocation3 + $0x18] sm:$0xf]
  %v4992 = vld [vmem:[#allocation3 + $0x1c] sm:$0xf]
  %v4993 = vld [vmem:[#allocation3 + $0x20] sm:$0xf]
  %v4994 = vld [vmem:[#allocation3 + $0x24] sm:$0xf]
  %v4995 = vld [vmem:[#allocation3 + $0x28] sm:$0xf]
  %v4996 = vld [vmem:[#allocation3 + $0x2c] sm:$0xf]
  %v4997 = vld [vmem:[#allocation3 + $0x30] sm:$0x1]
  %v5008 = vunpack.c.l.b16 %v4968
  %v5009 = vunpack.c.l.b16 %v4969
  %v5010 = vunpack.c.l.b16 %v4970
  %v5011 = vunpack.c.l.b16 %v4971
  %v5012 = vunpack.c.l.b16 %v4972
  %v5013 = vunpack.c.l.b16 %v4973
  %v5014 = vunpack.c.l.b16 %v4974
  %v5015 = vunpack.c.l.b16 %v4975
  %v5016 = vunpack.c.l.b16 %v4976
  %v5017 = vunpack.c.l.b16 %v4977
  %v5018 = vpack.c.b16 %v5009, %v5008
  %v5019 = vpack.c.b16 %v5011, %v5010
  %v5020 = vpack.c.b16 %v5013, %v5012
  %v5021 = vpack.c.b16 %v5015, %v5014
  %v5022 = vpack.c.b16 %v5017, %v5016
  %v5029 = vshrl.u32 %v5018, 16
  %v5031 = vshll.u32 %v5018, 16
  %v5033 = vrot.slane %v5031, 1
  %v5034 = vor.u32 %v5029, %v5033
  %v5036 = vshll.u32 %v5019, 16
  %v5038 = vrot.slane %v5036, 1
  %v5039 = vsel %vm109, %v5034, %v5038
  %v5040 = vshrl.u32 %v5019, 16
  %v5042 = vor.u32 %v5040, %v5038
  %v5044 = vshll.u32 %v5020, 16
  %v5046 = vrot.slane %v5044, 1
  %v5047 = vsel %vm109, %v5042, %v5046
  %v5048 = vshrl.u32 %v5020, 16
  %v5050 = vor.u32 %v5048, %v5046
  %v5052 = vshll.u32 %v5021, 16
  %v5054 = vrot.slane %v5052, 1
  %v5055 = vsel %vm109, %v5050, %v5054
  %v5056 = vshrl.u32 %v5021, 16
  %v5058 = vor.u32 %v5056, %v5054
  %v5060 = vshll.u32 %v5022, 16
  %v5062 = vrot.slane %v5060, 1
  %v5063 = vsel %vm109, %v5058, %v5062
  %v5064 = vshrl.u32 %v5022, 16
  %v5066 = vor.u32 %v5064, %v5062
  %v5074 = vunpack.c.l.b16 %v4978
  %v5075 = vunpack.c.l.b16 %v4979
  %v5076 = vpack.c.b16 %v5009, %v5074
  %v5077 = vpack.c.b16 %v5075, %v5016
  %v5078 = vrot.slane %v5076, 1
  %v5079 = vrot.slane %v5019, 1
  %v5080 = vsel %vm1943, %v5078, %v5079
  %v5081 = vrot.slane %v5020, 1
  %v5082 = vsel %vm1943, %v5079, %v5081
  %v5083 = vrot.slane %v5021, 1
  %v5084 = vsel %vm1943, %v5081, %v5083
  %v5085 = vrot.slane %v5077, 1
  %v5086 = vsel %vm1943, %v5083, %v5085
  %v5095 = vunpack.c.l.b16 %v4980
  %v5096 = vunpack.c.l.b16 %v4981
  %v5097 = vunpack.c.l.b16 %v4982
  %v5098 = vpack.c.b16 %v5010, %v5095
  %v5099 = vpack.c.b16 %v5012, %v5011
  %v5100 = vpack.c.b16 %v5014, %v5013
  %v5101 = vpack.c.b16 %v5016, %v5015
  %v5102 = vpack.c.b16 %v5097, %v5096
  %v5104 = vshrl.u32 %v5098, 16
  %v5106 = vrot.slane %v5104, 1
  %v5107 = vshll.u32 %v5098, 16
  %v5109 = vrot.slane %v5107, 2
  %v5110 = vor.u32 %v5106, %v5109
  %v5112 = vshrl.u32 %v5099, 16
  %v5114 = vrot.slane %v5112, 1
  %v5115 = vshll.u32 %v5099, 16
  %v5117 = vrot.slane %v5115, 2
  %v5118 = vor.u32 %v5114, %v5117
  %v5119 = vsel %vm303, %v5110, %v5118
  %v5121 = vshrl.u32 %v5100, 16
  %v5123 = vrot.slane %v5121, 1
  %v5124 = vshll.u32 %v5100, 16
  %v5126 = vrot.slane %v5124, 2
  %v5127 = vor.u32 %v5123, %v5126
  %v5128 = vsel %vm303, %v5118, %v5127
  %v5130 = vshrl.u32 %v5101, 16
  %v5132 = vrot.slane %v5130, 1
  %v5133 = vshll.u32 %v5101, 16
  %v5135 = vrot.slane %v5133, 2
  %v5136 = vor.u32 %v5132, %v5135
  %v5137 = vsel %vm303, %v5127, %v5136
  %v5139 = vshrl.u32 %v5102, 16
  %v5141 = vrot.slane %v5139, 1
  %v5142 = vshll.u32 %v5102, 16
  %v5144 = vrot.slane %v5142, 2
  %v5145 = vor.u32 %v5141, %v5144
  %v5146 = vsel %vm303, %v5136, %v5145
  %v5154 = vunpack.c.l.b16 %v4983
  %v5155 = vunpack.c.l.b16 %v4984
  %v5156 = vpack.c.b16 %v5010, %v5154
  %v5157 = vpack.c.b16 %v5155, %v5096
  %v5158 = vrot.slane %v5156, 2
  %v5159 = vrot.slane %v5099, 2
  %v5160 = vsel %vm385, %v5158, %v5159
  %v5161 = vrot.slane %v5100, 2
  %v5162 = vsel %vm385, %v5159, %v5161
  %v5163 = vrot.slane %v5101, 2
  %v5164 = vsel %vm385, %v5161, %v5163
  %v5165 = vrot.slane %v5157, 2
  %v5166 = vsel %vm385, %v5163, %v5165
  %v5173 = vshrl.u32 %v5156, 16
  %v5175 = vrot.slane %v5173, 2
  %v5176 = vshll.u32 %v5156, 16
  %v5178 = vrot.slane %v5176, 3
  %v5179 = vor.u32 %v5175, %v5178
  %v5180 = vrot.slane %v5112, 2
  %v5181 = vrot.slane %v5115, 3
  %v5182 = vor.u32 %v5180, %v5181
  %v5183 = vsel %vm2038, %v5179, %v5182
  %v5184 = vrot.slane %v5121, 2
  %v5185 = vrot.slane %v5124, 3
  %v5186 = vor.u32 %v5184, %v5185
  %v5187 = vsel %vm2038, %v5182, %v5186
  %v5188 = vrot.slane %v5130, 2
  %v5189 = vrot.slane %v5133, 3
  %v5190 = vor.u32 %v5188, %v5189
  %v5191 = vsel %vm2038, %v5186, %v5190
  %v5193 = vshrl.u32 %v5157, 16
  %v5195 = vrot.slane %v5193, 2
  %v5196 = vshll.u32 %v5157, 16
  %v5198 = vrot.slane %v5196, 3
  %v5199 = vor.u32 %v5195, %v5198
  %v5200 = vsel %vm2038, %v5190, %v5199
  %v5209 = vunpack.c.l.b16 %v4985
  %v5210 = vunpack.c.l.b16 %v4986
  %v5211 = vunpack.c.l.b16 %v4987
  %v5212 = vpack.c.b16 %v5011, %v5209
  %v5213 = vpack.c.b16 %v5096, %v5016
  %v5214 = vpack.c.b16 %v5211, %v5210
  %v5215 = vrot.slane %v5212, 3
  %v5216 = vrot.slane %v5020, 3
  %v5217 = vsel %vm2082, %v5215, %v5216
  %v5218 = vrot.slane %v5021, 3
  %v5219 = vsel %vm2082, %v5216, %v5218
  %v5220 = vrot.slane %v5213, 3
  %v5221 = vsel %vm2082, %v5218, %v5220
  %v5222 = vrot.slane %v5214, 3
  %v5223 = vsel %vm2082, %v5220, %v5222
  %v5230 = vshrl.u32 %v5212, 16
  %v5232 = vrot.slane %v5230, 3
  %v5233 = vshll.u32 %v5212, 16
  %v5235 = vrot.slane %v5233, 4
  %v5236 = vor.u32 %v5232, %v5235
  %v5237 = vrot.slane %v5048, 3
  %v5238 = vrot.slane %v5044, 4
  %v5239 = vor.u32 %v5237, %v5238
  %v5240 = vsel %vm2097, %v5236, %v5239
  %v5241 = vrot.slane %v5056, 3
  %v5242 = vrot.slane %v5052, 4
  %v5243 = vor.u32 %v5241, %v5242
  %v5244 = vsel %vm2097, %v5239, %v5243
  %v5246 = vshrl.u32 %v5213, 16
  %v5248 = vrot.slane %v5246, 3
  %v5249 = vshll.u32 %v5213, 16
  %v5251 = vrot.slane %v5249, 4
  %v5252 = vor.u32 %v5248, %v5251
  %v5253 = vsel %vm2097, %v5243, %v5252
  %v5255 = vshrl.u32 %v5214, 16
  %v5257 = vrot.slane %v5255, 3
  %v5258 = vshll.u32 %v5214, 16
  %v5260 = vrot.slane %v5258, 4
  %v5261 = vor.u32 %v5257, %v5260
  %v5262 = vsel %vm2097, %v5252, %v5261
  %v5278 = vunpack.c.l.b16 %v4988
  %v5279 = vunpack.c.l.b16 %v4989
  %v5280 = vunpack.c.l.b16 %v4990
  %v5281 = vunpack.c.l.b16 %v4991
  %v5282 = vunpack.c.l.b16 %v4992
  %v5283 = vunpack.c.l.b16 %v4993
  %v5284 = vunpack.c.l.b16 %v4994
  %v5285 = vunpack.c.l.b16 %v4995
  %v5286 = vunpack.c.l.b16 %v4996
  %v5287 = vunpack.c.l.b16 %v4997
  %v5288 = vpack.c.b16 %v5279, %v5278
  %v5289 = vpack.c.b16 %v5281, %v5280
  %v5290 = vpack.c.b16 %v5283, %v5282
  %v5291 = vpack.c.b16 %v5285, %v5284
  %v5292 = vpack.c.b16 %v5287, %v5286
  %v5298 = vld [vmem:[%s5] sm:$0xf]
  %v5299 = vld [vmem:[%s5 + $0x4] sm:$0xf]
  %v5300 = vld [vmem:[%s5 + $0x8] sm:$0xf]
  %v5301 = vld [vmem:[%s5 + $0xc] sm:$0xf]
  %v5302 = vld [vmem:[%s5 + $0x10] sm:$0xf]
  %v5303 = vld [vmem:[%s5 + $0x14] sm:$0xf]
  %v5304 = vld [vmem:[%s5 + $0x18] sm:$0xf]
  %v5305 = vld [vmem:[%s5 + $0x1c] sm:$0xf]
  %v5306 = vld [vmem:[%s5 + $0x20] sm:$0xf]
  %v5307 = vld [vmem:[%s5 + $0x24] sm:$0xf]
  %v5308 = vld [vmem:[%s5 + $0x28] sm:$0xf]
  %v5309 = vld [vmem:[%s5 + $0x2c] sm:$0xf]
  %v5310 = vld [vmem:[%s5 + $0x30] sm:$0xf]
  %v5311 = vld [vmem:[%s5 + $0x34] sm:$0xf]
  %v5312 = vld [vmem:[%s5 + $0x38] sm:$0xf]
  %v5313 = vld [vmem:[%s5 + $0x3c] sm:$0xf]
  %v5314 = vld [vmem:[%s5 + $0x40] sm:$0xf]
  %v5315 = vld [vmem:[%s5 + $0x44] sm:$0xf]
  %v5316 = vld [vmem:[%s5 + $0x48] sm:$0xf]
  %v5317 = vld [vmem:[%s5 + $0x4c] sm:$0xf]
  %v5318 = vld [vmem:[%s5 + $0x50] sm:$0xf]
  %v5319 = vld [vmem:[%s5 + $0x54] sm:$0xf]
  %v5320 = vld [vmem:[%s5 + $0x58] sm:$0xf]
  %v5321 = vld [vmem:[%s5 + $0x5c] sm:$0xf]
  %v5322 = vld [vmem:[%s5 + $0x60] sm:$0xf]
  %v5323 = vld [vmem:[%s5 + $0x64] sm:$0xf]
  %v5324 = vld [vmem:[%s5 + $0x68] sm:$0xf]
  %v5325 = vld [vmem:[%s5 + $0x6c] sm:$0xf]
  %v5326 = vld [vmem:[%s5 + $0x70] sm:$0xf]
  %v5327 = vld [vmem:[%s5 + $0x74] sm:$0xf]
  %v5328 = vld [vmem:[%s5 + $0x78] sm:$0xf]
  %v5329 = vld [vmem:[%s5 + $0x7c] sm:$0xf]
  %v5330 = vld [vmem:[%s5 + $0x80] sm:$0xf]
  %v5331 = vld [vmem:[%s5 + $0x84] sm:$0xf]
  %v5332 = vld [vmem:[%s5 + $0x88] sm:$0xf]
  %v5333 = vld [vmem:[%s5 + $0x8c] sm:$0xf]
  %v5334 = vld [vmem:[%s5 + $0x90] sm:$0xf]
  %v5335 = vld [vmem:[%s5 + $0x94] sm:$0xf]
  %v5336 = vld [vmem:[%s5 + $0x98] sm:$0xf]
  %v5337 = vld [vmem:[%s5 + $0x9c] sm:$0xf]
  %v5338 = vld [vmem:[%s5 + $0xa0] sm:$0xf]
  %v5339 = vld [vmem:[%s5 + $0xa4] sm:$0xf]
  %v5340 = vld [vmem:[%s5 + $0xa8] sm:$0xf]
  %v5341 = vld [vmem:[%s5 + $0xac] sm:$0xf]
  %v5342 = vld [vmem:[%s5 + $0xb0] sm:$0xf]
  %v5343 = vld [vmem:[%s5 + $0xb4] sm:$0xf]
  %v5344 = vld [vmem:[%s5 + $0xb8] sm:$0xf]
  %v5345 = vld [vmem:[%s5 + $0xbc] sm:$0xf]
  %v5346 = vld [vmem:[%s5 + $0xc0] sm:$0xf]
  %v5347 = vld [vmem:[%s5 + $0xc4] sm:$0xf]
  %v5348 = vld [vmem:[%s5 + $0xc8] sm:$0xf]
  %v5349 = vld [vmem:[%s5 + $0xcc] sm:$0xf]
  %v5350 = vld [vmem:[%s5 + $0xd0] sm:$0xf]
  %v5351 = vld [vmem:[%s5 + $0xd4] sm:$0xf]
  %v5352 = vld [vmem:[%s5 + $0xd8] sm:$0xf]
  %v5353 = vld [vmem:[%s5 + $0xdc] sm:$0xf]
  %v5354 = vld [vmem:[%s5 + $0xe0] sm:$0xf]
  %v5355 = vld [vmem:[%s5 + $0xe4] sm:$0xf]
  %v5356 = vld [vmem:[%s5 + $0xe8] sm:$0xf]
  %v5357 = vld [vmem:[%s5 + $0xec] sm:$0xf]
  %v5358 = vld [vmem:[%s5 + $0xf0] sm:$0xf]
  %v5359 = vld [vmem:[%s5 + $0xf4] sm:$0xf]
  %v5360 = vld [vmem:[%s5 + $0xf8] sm:$0xf]
  %v5361 = vld [vmem:[%s5 + $0xfc] sm:$0xf]
  %v5362 = vld [vmem:[%s5 + $0x100] sm:$0xf]
  %v5363 = vld [vmem:[%s5 + $0x104] sm:$0xf]
  %v5364 = vld [vmem:[%s5 + $0x108] sm:$0xf]
  %v5365 = vld [vmem:[%s5 + $0x10c] sm:$0xf]
  %v5366 = vld [vmem:[%s5 + $0x110] sm:$0xf]
  %v5367 = vld [vmem:[%s5 + $0x114] sm:$0xf]
  %v5368 = vld [vmem:[%s5 + $0x118] sm:$0xf]
  %v5369 = vld [vmem:[%s5 + $0x11c] sm:$0xf]
  %v5370 = vld [vmem:[%s5 + $0x120] sm:$0xf]
  %v5371 = vld [vmem:[%s5 + $0x124] sm:$0xf]
  %v5372 = vld [vmem:[%s5 + $0x128] sm:$0xf]
  %v5373 = vld [vmem:[%s5 + $0x12c] sm:$0xf]
  %v5374 = vld [vmem:[%s5 + $0x130] sm:$0xf]
  %v5375 = vld [vmem:[%s5 + $0x134] sm:$0xf]
  %v5376 = vld [vmem:[%s5 + $0x138] sm:$0xf]
  %v5377 = vld [vmem:[%s5 + $0x13c] sm:$0xf]
  %v5378 = vld [vmem:[%s5 + $0x140] sm:$0xf]
  %v5379 = vld [vmem:[%s5 + $0x144] sm:$0xf]
  %v5380 = vld [vmem:[%s5 + $0x148] sm:$0xf]
  %v5381 = vld [vmem:[%s5 + $0x14c] sm:$0xf]
  %v5382 = vld [vmem:[%s5 + $0x150] sm:$0xf]
  %v5383 = vld [vmem:[%s5 + $0x154] sm:$0xf]
  %v5384 = vld [vmem:[%s5 + $0x158] sm:$0xf]
  %v5385 = vld [vmem:[%s5 + $0x15c] sm:$0xf]
  %v5386 = vld [vmem:[%s5 + $0x160] sm:$0xf]
  %v5387 = vld [vmem:[%s5 + $0x164] sm:$0xf]
  %v5388 = vld [vmem:[%s5 + $0x168] sm:$0xf]
  %v5389 = vld [vmem:[%s5 + $0x16c] sm:$0xf]
  %v5390 = vld [vmem:[%s5 + $0x170] sm:$0xf]
  %v5391 = vld [vmem:[%s5 + $0x174] sm:$0xf]
  %v5392 = vld [vmem:[%s5 + $0x178] sm:$0xf]
  %v5393 = vld [vmem:[%s5 + $0x17c] sm:$0xf]
  %v5394 = vld [vmem:[%s5 + $0x180] sm:$0xf]
  %v5395 = vld [vmem:[%s5 + $0x184] sm:$0xf]
  %v5396 = vld [vmem:[%s5 + $0x188] sm:$0xf]
  %v5397 = vld [vmem:[%s5 + $0x18c] sm:$0xf]
  %v5398 = vld [vmem:[%s5 + $0x190] sm:$0xf]
  %v5399 = vld [vmem:[%s5 + $0x194] sm:$0xf]
  %v5400 = vld [vmem:[%s5 + $0x198] sm:$0xf]
  %v5401 = vld [vmem:[%s5 + $0x19c] sm:$0xf]
  %v5402 = vld [vmem:[%s5 + $0x1a0] sm:$0xf]
  %v5403 = vld [vmem:[%s5 + $0x1a4] sm:$0xf]
  %v5404 = vld [vmem:[%s5 + $0x1a8] sm:$0xf]
  %v5405 = vld [vmem:[%s5 + $0x1ac] sm:$0xf]
  %v5406 = vld [vmem:[%s5 + $0x1b0] sm:$0xf]
  %v5407 = vld [vmem:[%s5 + $0x1b4] sm:$0xf]
  %v5408 = vld [vmem:[%s5 + $0x1b8] sm:$0xf]
  %v5409 = vld [vmem:[%s5 + $0x1bc] sm:$0xf]
  %v5410 = vld [vmem:[%s5 + $0x1c0] sm:$0xf]
  %v5411 = vld [vmem:[%s5 + $0x1c4] sm:$0xf]
  %v5412 = vld [vmem:[%s5 + $0x1c8] sm:$0xf]
  %v5413 = vld [vmem:[%s5 + $0x1cc] sm:$0xf]
  %v5414 = vld [vmem:[%s5 + $0x1d0] sm:$0xf]
  %v5415 = vld [vmem:[%s5 + $0x1d4] sm:$0xf]
  %v5416 = vld [vmem:[%s5 + $0x1d8] sm:$0xf]
  %v5417 = vld [vmem:[%s5 + $0x1dc] sm:$0xf]
  %v5418 = vld [vmem:[%s5 + $0x1e0] sm:$0xf]
  %v5419 = vld [vmem:[%s5 + $0x1e4] sm:$0xf]
  %v5420 = vld [vmem:[%s5 + $0x1e8] sm:$0xf]
  %v5421 = vld [vmem:[%s5 + $0x1ec] sm:$0xf]
  %v5422 = vld [vmem:[%s5 + $0x1f0] sm:$0xf]
  %v5423 = vld [vmem:[%s5 + $0x1f4] sm:$0xf]
  %v5424 = vld [vmem:[%s5 + $0x1f8] sm:$0xf]
  %v5425 = vld [vmem:[%s5 + $0x1fc] sm:$0xf]
  %v5426 = vld [vmem:[%s5 + $0x200] sm:$0xf]
  %v5427 = vld [vmem:[%s5 + $0x204] sm:$0xf]
  %v5428 = vld [vmem:[%s5 + $0x208] sm:$0xf]
  %v5429 = vld [vmem:[%s5 + $0x20c] sm:$0xf]
  %v5430 = vld [vmem:[%s5 + $0x210] sm:$0xf]
  %v5431 = vld [vmem:[%s5 + $0x214] sm:$0xf]
  %v5432 = vld [vmem:[%s5 + $0x218] sm:$0xf]
  %v5433 = vld [vmem:[%s5 + $0x21c] sm:$0xf]
  %v5434 = vld [vmem:[%s5 + $0x220] sm:$0xf]
  %v5435 = vld [vmem:[%s5 + $0x224] sm:$0xf]
  %v5436 = vld [vmem:[%s5 + $0x228] sm:$0xf]
  %v5437 = vld [vmem:[%s5 + $0x22c] sm:$0xf]
  %v5438 = vld [vmem:[%s5 + $0x230] sm:$0xf]
  %v5439 = vld [vmem:[%s5 + $0x234] sm:$0xf]
  %v5440 = vld [vmem:[%s5 + $0x238] sm:$0xf]
  %v5441 = vld [vmem:[%s5 + $0x23c] sm:$0xf]
  %v5586 = vunpack.c.l.b16 %v5298
  %v5587 = vunpack.c.l.b16 %v5299
  %v5588 = vunpack.c.l.b16 %v5300
  %v5589 = vunpack.c.l.b16 %v5301
  %v5590 = vunpack.c.l.b16 %v5302
  %v5591 = vunpack.c.l.b16 %v5303
  %v5592 = vunpack.c.l.b16 %v5304
  %v5593 = vunpack.c.l.b16 %v5305
  %v5594 = vunpack.c.l.b16 %v5306
  %v5595 = vunpack.c.l.b16 %v5307
  %v5596 = vunpack.c.l.b16 %v5308
  %v5597 = vunpack.c.l.b16 %v5309
  %v5598 = vunpack.c.l.b16 %v5310
  %v5599 = vunpack.c.l.b16 %v5311
  %v5600 = vunpack.c.l.b16 %v5312
  %v5601 = vunpack.c.l.b16 %v5313
  %v5602 = vunpack.c.l.b16 %v5314
  %v5603 = vunpack.c.l.b16 %v5315
  %v5604 = vunpack.c.l.b16 %v5316
  %v5605 = vunpack.c.l.b16 %v5317
  %v5606 = vunpack.c.l.b16 %v5318
  %v5607 = vunpack.c.l.b16 %v5319
  %v5608 = vunpack.c.l.b16 %v5320
  %v5609 = vunpack.c.l.b16 %v5321
  %v5610 = vunpack.c.l.b16 %v5322
  %v5611 = vunpack.c.l.b16 %v5323
  %v5612 = vunpack.c.l.b16 %v5324
  %v5613 = vunpack.c.l.b16 %v5325
  %v5614 = vunpack.c.l.b16 %v5326
  %v5615 = vunpack.c.l.b16 %v5327
  %v5616 = vunpack.c.l.b16 %v5328
  %v5617 = vunpack.c.l.b16 %v5329
  %v5618 = vunpack.c.l.b16 %v5330
  %v5619 = vunpack.c.l.b16 %v5331
  %v5620 = vunpack.c.l.b16 %v5332
  %v5621 = vunpack.c.l.b16 %v5333
  %v5622 = vunpack.c.l.b16 %v5334
  %v5623 = vunpack.c.l.b16 %v5335
  %v5624 = vunpack.c.l.b16 %v5336
  %v5625 = vunpack.c.l.b16 %v5337
  %v5626 = vunpack.c.l.b16 %v5338
  %v5627 = vunpack.c.l.b16 %v5339
  %v5628 = vunpack.c.l.b16 %v5340
  %v5629 = vunpack.c.l.b16 %v5341
  %v5630 = vunpack.c.l.b16 %v5342
  %v5631 = vunpack.c.l.b16 %v5343
  %v5632 = vunpack.c.l.b16 %v5344
  %v5633 = vunpack.c.l.b16 %v5345
  %v5634 = vunpack.c.l.b16 %v5346
  %v5635 = vunpack.c.l.b16 %v5347
  %v5636 = vunpack.c.l.b16 %v5348
  %v5637 = vunpack.c.l.b16 %v5349
  %v5638 = vunpack.c.l.b16 %v5350
  %v5639 = vunpack.c.l.b16 %v5351
  %v5640 = vunpack.c.l.b16 %v5352
  %v5641 = vunpack.c.l.b16 %v5353
  %v5642 = vunpack.c.l.b16 %v5354
  %v5643 = vunpack.c.l.b16 %v5355
  %v5644 = vunpack.c.l.b16 %v5356
  %v5645 = vunpack.c.l.b16 %v5357
  %v5646 = vunpack.c.l.b16 %v5358
  %v5647 = vunpack.c.l.b16 %v5359
  %v5648 = vunpack.c.l.b16 %v5360
  %v5649 = vunpack.c.l.b16 %v5361
  %v5650 = vunpack.c.l.b16 %v5362
  %v5651 = vunpack.c.l.b16 %v5363
  %v5652 = vunpack.c.l.b16 %v5364
  %v5653 = vunpack.c.l.b16 %v5365
  %v5654 = vunpack.c.l.b16 %v5366
  %v5655 = vunpack.c.l.b16 %v5367
  %v5656 = vunpack.c.l.b16 %v5368
  %v5657 = vunpack.c.l.b16 %v5369
  %v5658 = vunpack.c.l.b16 %v5370
  %v5659 = vunpack.c.l.b16 %v5371
  %v5660 = vunpack.c.l.b16 %v5372
  %v5661 = vunpack.c.l.b16 %v5373
  %v5662 = vunpack.c.l.b16 %v5374
  %v5663 = vunpack.c.l.b16 %v5375
  %v5664 = vunpack.c.l.b16 %v5376
  %v5665 = vunpack.c.l.b16 %v5377
  %v5666 = vunpack.c.l.b16 %v5378
  %v5667 = vunpack.c.l.b16 %v5379
  %v5668 = vunpack.c.l.b16 %v5380
  %v5669 = vunpack.c.l.b16 %v5381
  %v5670 = vunpack.c.l.b16 %v5382
  %v5671 = vunpack.c.l.b16 %v5383
  %v5672 = vunpack.c.l.b16 %v5384
  %v5673 = vunpack.c.l.b16 %v5385
  %v5674 = vunpack.c.l.b16 %v5386
  %v5675 = vunpack.c.l.b16 %v5387
  %v5676 = vunpack.c.l.b16 %v5388
  %v5677 = vunpack.c.l.b16 %v5389
  %v5678 = vunpack.c.l.b16 %v5390
  %v5679 = vunpack.c.l.b16 %v5391
  %v5680 = vunpack.c.l.b16 %v5392
  %v5681 = vunpack.c.l.b16 %v5393
  %v5682 = vunpack.c.l.b16 %v5394
  %v5683 = vunpack.c.l.b16 %v5395
  %v5684 = vunpack.c.l.b16 %v5396
  %v5685 = vunpack.c.l.b16 %v5397
  %v5686 = vunpack.c.l.b16 %v5398
  %v5687 = vunpack.c.l.b16 %v5399
  %v5688 = vunpack.c.l.b16 %v5400
  %v5689 = vunpack.c.l.b16 %v5401
  %v5690 = vunpack.c.l.b16 %v5402
  %v5691 = vunpack.c.l.b16 %v5403
  %v5692 = vunpack.c.l.b16 %v5404
  %v5693 = vunpack.c.l.b16 %v5405
  %v5694 = vunpack.c.l.b16 %v5406
  %v5695 = vunpack.c.l.b16 %v5407
  %v5696 = vunpack.c.l.b16 %v5408
  %v5697 = vunpack.c.l.b16 %v5409
  %v5698 = vunpack.c.l.b16 %v5410
  %v5699 = vunpack.c.l.b16 %v5411
  %v5700 = vunpack.c.l.b16 %v5412
  %v5701 = vunpack.c.l.b16 %v5413
  %v5702 = vunpack.c.l.b16 %v5414
  %v5703 = vunpack.c.l.b16 %v5415
  %v5704 = vunpack.c.l.b16 %v5416
  %v5705 = vunpack.c.l.b16 %v5417
  %v5706 = vunpack.c.l.b16 %v5418
  %v5707 = vunpack.c.l.b16 %v5419
  %v5708 = vunpack.c.l.b16 %v5420
  %v5709 = vunpack.c.l.b16 %v5421
  %v5710 = vunpack.c.l.b16 %v5422
  %v5711 = vunpack.c.l.b16 %v5423
  %v5712 = vunpack.c.l.b16 %v5424
  %v5713 = vunpack.c.l.b16 %v5425
  %v5714 = vunpack.c.l.b16 %v5426
  %v5715 = vunpack.c.l.b16 %v5427
  %v5716 = vunpack.c.l.b16 %v5428
  %v5717 = vunpack.c.l.b16 %v5429
  %v5718 = vunpack.c.l.b16 %v5430
  %v5719 = vunpack.c.l.b16 %v5431
  %v5720 = vunpack.c.l.b16 %v5432
  %v5721 = vunpack.c.l.b16 %v5433
  %v5722 = vunpack.c.l.b16 %v5434
  %v5723 = vunpack.c.l.b16 %v5435
  %v5724 = vunpack.c.l.b16 %v5436
  %v5725 = vunpack.c.l.b16 %v5437
  %v5726 = vunpack.c.l.b16 %v5438
  %v5727 = vunpack.c.l.b16 %v5439
  %v5728 = vunpack.c.l.b16 %v5440
  %v5729 = vunpack.c.l.b16 %v5441
  %v5730 = vpack.c.b16 %v5587, %v5586
  %v5731 = vpack.c.b16 %v5589, %v5588
  %v5732 = vpack.c.b16 %v5591, %v5590
  %v5733 = vpack.c.b16 %v5593, %v5592
  %v5734 = vpack.c.b16 %v5595, %v5594
  %v5735 = vpack.c.b16 %v5597, %v5596
  %v5736 = vpack.c.b16 %v5599, %v5598
  %v5737 = vpack.c.b16 %v5601, %v5600
  %v5738 = vpack.c.b16 %v5603, %v5602
  %v5739 = vpack.c.b16 %v5605, %v5604
  %v5740 = vpack.c.b16 %v5607, %v5606
  %v5741 = vpack.c.b16 %v5609, %v5608
  %v5742 = vpack.c.b16 %v5611, %v5610
  %v5743 = vpack.c.b16 %v5613, %v5612
  %v5744 = vpack.c.b16 %v5615, %v5614
  %v5745 = vpack.c.b16 %v5617, %v5616
  %v5746 = vpack.c.b16 %v5619, %v5618
  %v5747 = vpack.c.b16 %v5621, %v5620
  %v5748 = vpack.c.b16 %v5623, %v5622
  %v5749 = vpack.c.b16 %v5625, %v5624
  %v5750 = vpack.c.b16 %v5627, %v5626
  %v5751 = vpack.c.b16 %v5629, %v5628
  %v5752 = vpack.c.b16 %v5631, %v5630
  %v5753 = vpack.c.b16 %v5633, %v5632
  %v5754 = vpack.c.b16 %v5635, %v5634
  %v5755 = vpack.c.b16 %v5637, %v5636
  %v5756 = vpack.c.b16 %v5639, %v5638
  %v5757 = vpack.c.b16 %v5641, %v5640
  %v5758 = vpack.c.b16 %v5643, %v5642
  %v5759 = vpack.c.b16 %v5645, %v5644
  %v5760 = vpack.c.b16 %v5647, %v5646
  %v5761 = vpack.c.b16 %v5649, %v5648
  %v5762 = vpack.c.b16 %v5651, %v5650
  %v5763 = vpack.c.b16 %v5653, %v5652
  %v5764 = vpack.c.b16 %v5655, %v5654
  %v5765 = vpack.c.b16 %v5657, %v5656
  %v5766 = vpack.c.b16 %v5659, %v5658
  %v5767 = vpack.c.b16 %v5661, %v5660
  %v5768 = vpack.c.b16 %v5663, %v5662
  %v5769 = vpack.c.b16 %v5665, %v5664
  %v5770 = vpack.c.b16 %v5667, %v5666
  %v5771 = vpack.c.b16 %v5669, %v5668
  %v5772 = vpack.c.b16 %v5671, %v5670
  %v5773 = vpack.c.b16 %v5673, %v5672
  %v5774 = vpack.c.b16 %v5675, %v5674
  %v5775 = vpack.c.b16 %v5677, %v5676
  %v5776 = vpack.c.b16 %v5679, %v5678
  %v5777 = vpack.c.b16 %v5681, %v5680
  %v5778 = vpack.c.b16 %v5683, %v5682
  %v5779 = vpack.c.b16 %v5685, %v5684
  %v5780 = vpack.c.b16 %v5687, %v5686
  %v5781 = vpack.c.b16 %v5689, %v5688
  %v5782 = vpack.c.b16 %v5691, %v5690
  %v5783 = vpack.c.b16 %v5693, %v5692
  %v5784 = vpack.c.b16 %v5695, %v5694
  %v5785 = vpack.c.b16 %v5697, %v5696
  %v5786 = vpack.c.b16 %v5699, %v5698
  %v5787 = vpack.c.b16 %v5701, %v5700
  %v5788 = vpack.c.b16 %v5703, %v5702
  %v5789 = vpack.c.b16 %v5705, %v5704
  %v5790 = vpack.c.b16 %v5707, %v5706
  %v5791 = vpack.c.b16 %v5709, %v5708
  %v5792 = vpack.c.b16 %v5711, %v5710
  %v5793 = vpack.c.b16 %v5713, %v5712
  %v5794 = vpack.c.b16 %v5715, %v5714
  %v5795 = vpack.c.b16 %v5717, %v5716
  %v5796 = vpack.c.b16 %v5719, %v5718
  %v5797 = vpack.c.b16 %v5721, %v5720
  %v5798 = vpack.c.b16 %v5723, %v5722
  %v5799 = vpack.c.b16 %v5725, %v5724
  %v5800 = vpack.c.b16 %v5727, %v5726
  %v5801 = vpack.c.b16 %v5729, %v5728
  %5874 = vmatpush.bf16.msra.mxu0 %v5737
  %5875 = vmatpush.bf16.msra.mxu0 %v5736
  %5876 = vmatpush.bf16.msra.mxu0 %v5735
  %5877 = vmatpush.bf16.msra.mxu0 %v5734
  %5878 = vmatpush.bf16.msra.mxu0 %v5733
  %5879 = vmatpush.bf16.msra.mxu0 %v5732
  %5880 = vmatpush.bf16.msra.mxu0 %v5731
  %5881 = vmatpush.bf16.msra.mxu0 %v5730
  %5882 = vmatmul.bf16.gmra.mxu0 %v5018
  %v5883 = vpop.f32.mrf.mxu0
  %v5884 = vadd.f32 %v2312, %v5883
  %v5885 = vpop.f32.mrf.mxu0
  %v5886 = vadd.f32 %v2312, %v5885
  %5887 = vmatmul.bf16.gmra.mxu0 %v5019
  %v5888 = vpop.f32.mrf.mxu0
  %v5889 = vadd.f32 %v2312, %v5888
  %v5890 = vpop.f32.mrf.mxu0
  %v5891 = vadd.f32 %v2312, %v5890
  %5892 = vmatmul.bf16.gmra.mxu0 %v5020
  %v5893 = vpop.f32.mrf.mxu0
  %v5894 = vadd.f32 %v2312, %v5893
  %v5895 = vpop.f32.mrf.mxu0
  %v5896 = vadd.f32 %v2312, %v5895
  %5897 = vmatmul.bf16.gmra.mxu0 %v5021
  %v5898 = vpop.f32.mrf.mxu0
  %v5899 = vadd.f32 %v2312, %v5898
  %v5900 = vpop.f32.mrf.mxu0
  %v5901 = vadd.f32 %v2312, %v5900
  %5902 = vmatmul.bf16.gmra.mxu0 %v5022
  %v5903 = vpop.f32.mrf.mxu0
  %v5904 = vadd.f32 %v2312, %v5903
  %v5905 = vpop.f32.mrf.mxu0
  %v5906 = vadd.f32 %v2312, %v5905
  %5907 = vdwg.mxu0
  %5908 = vmatpush.bf16.msra.mxu0 %v5745
  %5909 = vmatpush.bf16.msra.mxu0 %v5744
  %5910 = vmatpush.bf16.msra.mxu0 %v5743
  %5911 = vmatpush.bf16.msra.mxu0 %v5742
  %5912 = vmatpush.bf16.msra.mxu0 %v5741
  %5913 = vmatpush.bf16.msra.mxu0 %v5740
  %5914 = vmatpush.bf16.msra.mxu0 %v5739
  %5915 = vmatpush.bf16.msra.mxu0 %v5738
  %5916 = vmatmul.bf16.gmra.mxu0 %v5039
  %v5917 = vpop.f32.mrf.mxu0
  %v5918 = vadd.f32 %v5884, %v5917
  %v5919 = vpop.f32.mrf.mxu0
  %v5920 = vadd.f32 %v5886, %v5919
  %5921 = vmatmul.bf16.gmra.mxu0 %v5047
  %v5922 = vpop.f32.mrf.mxu0
  %v5923 = vadd.f32 %v5889, %v5922
  %v5924 = vpop.f32.mrf.mxu0
  %v5925 = vadd.f32 %v5891, %v5924
  %5926 = vmatmul.bf16.gmra.mxu0 %v5055
  %v5927 = vpop.f32.mrf.mxu0
  %v5928 = vadd.f32 %v5894, %v5927
  %v5929 = vpop.f32.mrf.mxu0
  %v5930 = vadd.f32 %v5896, %v5929
  %5931 = vmatmul.bf16.gmra.mxu0 %v5063
  %v5932 = vpop.f32.mrf.mxu0
  %v5933 = vadd.f32 %v5899, %v5932
  %v5934 = vpop.f32.mrf.mxu0
  %v5935 = vadd.f32 %v5901, %v5934
  %5936 = vmatmul.bf16.gmra.mxu0 %v5066
  %v5937 = vpop.f32.mrf.mxu0
  %v5938 = vadd.f32 %v5904, %v5937
  %v5939 = vpop.f32.mrf.mxu0
  %v5940 = vadd.f32 %v5906, %v5939
  %5941 = vdwg.mxu0
  %5942 = vmatpush.bf16.msra.mxu0 %v5753
  %5943 = vmatpush.bf16.msra.mxu0 %v5752
  %5944 = vmatpush.bf16.msra.mxu0 %v5751
  %5945 = vmatpush.bf16.msra.mxu0 %v5750
  %5946 = vmatpush.bf16.msra.mxu0 %v5749
  %5947 = vmatpush.bf16.msra.mxu0 %v5748
  %5948 = vmatpush.bf16.msra.mxu0 %v5747
  %5949 = vmatpush.bf16.msra.mxu0 %v5746
  %5950 = vmatmul.bf16.gmra.mxu0 %v5080
  %v5951 = vpop.f32.mrf.mxu0
  %v5952 = vadd.f32 %v5918, %v5951
  %v5953 = vpop.f32.mrf.mxu0
  %v5954 = vadd.f32 %v5920, %v5953
  %5955 = vmatmul.bf16.gmra.mxu0 %v5082
  %v5956 = vpop.f32.mrf.mxu0
  %v5957 = vadd.f32 %v5923, %v5956
  %v5958 = vpop.f32.mrf.mxu0
  %v5959 = vadd.f32 %v5925, %v5958
  %5960 = vmatmul.bf16.gmra.mxu0 %v5084
  %v5961 = vpop.f32.mrf.mxu0
  %v5962 = vadd.f32 %v5928, %v5961
  %v5963 = vpop.f32.mrf.mxu0
  %v5964 = vadd.f32 %v5930, %v5963
  %5965 = vmatmul.bf16.gmra.mxu0 %v5086
  %v5966 = vpop.f32.mrf.mxu0
  %v5967 = vadd.f32 %v5933, %v5966
  %v5968 = vpop.f32.mrf.mxu0
  %v5969 = vadd.f32 %v5935, %v5968
  %5970 = vmatmul.bf16.gmra.mxu0 %v5085
  %v5971 = vpop.f32.mrf.mxu0
  %v5972 = vadd.f32 %v5938, %v5971
  %v5973 = vpop.f32.mrf.mxu0
  %v5974 = vadd.f32 %v5940, %v5973
  %5975 = vdwg.mxu0
  %5976 = vmatpush.bf16.msra.mxu0 %v5761
  %5977 = vmatpush.bf16.msra.mxu0 %v5760
  %5978 = vmatpush.bf16.msra.mxu0 %v5759
  %5979 = vmatpush.bf16.msra.mxu0 %v5758
  %5980 = vmatpush.bf16.msra.mxu0 %v5757
  %5981 = vmatpush.bf16.msra.mxu0 %v5756
  %5982 = vmatpush.bf16.msra.mxu0 %v5755
  %5983 = vmatpush.bf16.msra.mxu0 %v5754
  %5984 = vmatmul.bf16.gmra.mxu0 %v5119
  %v5985 = vpop.f32.mrf.mxu0
  %v5986 = vadd.f32 %v5952, %v5985
  %v5987 = vpop.f32.mrf.mxu0
  %v5988 = vadd.f32 %v5954, %v5987
  %5989 = vmatmul.bf16.gmra.mxu0 %v5128
  %v5990 = vpop.f32.mrf.mxu0
  %v5991 = vadd.f32 %v5957, %v5990
  %v5992 = vpop.f32.mrf.mxu0
  %v5993 = vadd.f32 %v5959, %v5992
  %5994 = vmatmul.bf16.gmra.mxu0 %v5137
  %v5995 = vpop.f32.mrf.mxu0
  %v5996 = vadd.f32 %v5962, %v5995
  %v5997 = vpop.f32.mrf.mxu0
  %v5998 = vadd.f32 %v5964, %v5997
  %5999 = vmatmul.bf16.gmra.mxu0 %v5146
  %v6000 = vpop.f32.mrf.mxu0
  %v6001 = vadd.f32 %v5967, %v6000
  %v6002 = vpop.f32.mrf.mxu0
  %v6003 = vadd.f32 %v5969, %v6002
  %6004 = vmatmul.bf16.gmra.mxu0 %v5145
  %v6005 = vpop.f32.mrf.mxu0
  %v6006 = vadd.f32 %v5972, %v6005
  %v6007 = vpop.f32.mrf.mxu0
  %v6008 = vadd.f32 %v5974, %v6007
  %6009 = vdwg.mxu0
  %6010 = vmatpush.bf16.msra.mxu0 %v5769
  %6011 = vmatpush.bf16.msra.mxu0 %v5768
  %6012 = vmatpush.bf16.msra.mxu0 %v5767
  %6013 = vmatpush.bf16.msra.mxu0 %v5766
  %6014 = vmatpush.bf16.msra.mxu0 %v5765
  %6015 = vmatpush.bf16.msra.mxu0 %v5764
  %6016 = vmatpush.bf16.msra.mxu0 %v5763
  %6017 = vmatpush.bf16.msra.mxu0 %v5762
  %6018 = vmatmul.bf16.gmra.mxu0 %v5160
  %v6019 = vpop.f32.mrf.mxu0
  %v6020 = vadd.f32 %v5986, %v6019
  %v6021 = vpop.f32.mrf.mxu0
  %v6022 = vadd.f32 %v5988, %v6021
  %6023 = vmatmul.bf16.gmra.mxu0 %v5162
  %v6024 = vpop.f32.mrf.mxu0
  %v6025 = vadd.f32 %v5991, %v6024
  %v6026 = vpop.f32.mrf.mxu0
  %v6027 = vadd.f32 %v5993, %v6026
  %6028 = vmatmul.bf16.gmra.mxu0 %v5164
  %v6029 = vpop.f32.mrf.mxu0
  %v6030 = vadd.f32 %v5996, %v6029
  %v6031 = vpop.f32.mrf.mxu0
  %v6032 = vadd.f32 %v5998, %v6031
  %6033 = vmatmul.bf16.gmra.mxu0 %v5166
  %v6034 = vpop.f32.mrf.mxu0
  %v6035 = vadd.f32 %v6001, %v6034
  %v6036 = vpop.f32.mrf.mxu0
  %v6037 = vadd.f32 %v6003, %v6036
  %6038 = vmatmul.bf16.gmra.mxu0 %v5165
  %v6039 = vpop.f32.mrf.mxu0
  %v6040 = vadd.f32 %v6006, %v6039
  %v6041 = vpop.f32.mrf.mxu0
  %v6042 = vadd.f32 %v6008, %v6041
  %6043 = vdwg.mxu0
  %6044 = vmatpush.bf16.msra.mxu0 %v5777
  %6045 = vmatpush.bf16.msra.mxu0 %v5776
  %6046 = vmatpush.bf16.msra.mxu0 %v5775
  %6047 = vmatpush.bf16.msra.mxu0 %v5774
  %6048 = vmatpush.bf16.msra.mxu0 %v5773
  %6049 = vmatpush.bf16.msra.mxu0 %v5772
  %6050 = vmatpush.bf16.msra.mxu0 %v5771
  %6051 = vmatpush.bf16.msra.mxu0 %v5770
  %6052 = vmatmul.bf16.gmra.mxu0 %v5183
  %v6053 = vpop.f32.mrf.mxu0
  %v6054 = vadd.f32 %v6020, %v6053
  %v6055 = vpop.f32.mrf.mxu0
  %v6056 = vadd.f32 %v6022, %v6055
  %6057 = vmatmul.bf16.gmra.mxu0 %v5187
  %v6058 = vpop.f32.mrf.mxu0
  %v6059 = vadd.f32 %v6025, %v6058
  %v6060 = vpop.f32.mrf.mxu0
  %v6061 = vadd.f32 %v6027, %v6060
  %6062 = vmatmul.bf16.gmra.mxu0 %v5191
  %v6063 = vpop.f32.mrf.mxu0
  %v6064 = vadd.f32 %v6030, %v6063
  %v6065 = vpop.f32.mrf.mxu0
  %v6066 = vadd.f32 %v6032, %v6065
  %6067 = vmatmul.bf16.gmra.mxu0 %v5200
  %v6068 = vpop.f32.mrf.mxu0
  %v6069 = vadd.f32 %v6035, %v6068
  %v6070 = vpop.f32.mrf.mxu0
  %v6071 = vadd.f32 %v6037, %v6070
  %6072 = vmatmul.bf16.gmra.mxu0 %v5199
  %v6073 = vpop.f32.mrf.mxu0
  %v6074 = vadd.f32 %v6040, %v6073
  %v6075 = vpop.f32.mrf.mxu0
  %v6076 = vadd.f32 %v6042, %v6075
  %6077 = vdwg.mxu0
  %6078 = vmatpush.bf16.msra.mxu0 %v5785
  %6079 = vmatpush.bf16.msra.mxu0 %v5784
  %6080 = vmatpush.bf16.msra.mxu0 %v5783
  %6081 = vmatpush.bf16.msra.mxu0 %v5782
  %6082 = vmatpush.bf16.msra.mxu0 %v5781
  %6083 = vmatpush.bf16.msra.mxu0 %v5780
  %6084 = vmatpush.bf16.msra.mxu0 %v5779
  %6085 = vmatpush.bf16.msra.mxu0 %v5778
  %6086 = vmatmul.bf16.gmra.mxu0 %v5217
  %v6087 = vpop.f32.mrf.mxu0
  %v6088 = vadd.f32 %v6054, %v6087
  %v6089 = vpop.f32.mrf.mxu0
  %v6090 = vadd.f32 %v6056, %v6089
  %6091 = vmatmul.bf16.gmra.mxu0 %v5219
  %v6092 = vpop.f32.mrf.mxu0
  %v6093 = vadd.f32 %v6059, %v6092
  %v6094 = vpop.f32.mrf.mxu0
  %v6095 = vadd.f32 %v6061, %v6094
  %6096 = vmatmul.bf16.gmra.mxu0 %v5221
  %v6097 = vpop.f32.mrf.mxu0
  %v6098 = vadd.f32 %v6064, %v6097
  %v6099 = vpop.f32.mrf.mxu0
  %v6100 = vadd.f32 %v6066, %v6099
  %6101 = vmatmul.bf16.gmra.mxu0 %v5223
  %v6102 = vpop.f32.mrf.mxu0
  %v6103 = vadd.f32 %v6069, %v6102
  %v6104 = vpop.f32.mrf.mxu0
  %v6105 = vadd.f32 %v6071, %v6104
  %6106 = vmatmul.bf16.gmra.mxu0 %v5222
  %v6107 = vpop.f32.mrf.mxu0
  %v6108 = vadd.f32 %v6074, %v6107
  %v6109 = vpop.f32.mrf.mxu0
  %v6110 = vadd.f32 %v6076, %v6109
  %6111 = vdwg.mxu0
  %6112 = vmatpush.bf16.msra.mxu0 %v5793
  %6113 = vmatpush.bf16.msra.mxu0 %v5792
  %6114 = vmatpush.bf16.msra.mxu0 %v5791
  %6115 = vmatpush.bf16.msra.mxu0 %v5790
  %6116 = vmatpush.bf16.msra.mxu0 %v5789
  %6117 = vmatpush.bf16.msra.mxu0 %v5788
  %6118 = vmatpush.bf16.msra.mxu0 %v5787
  %6119 = vmatpush.bf16.msra.mxu0 %v5786
  %6120 = vmatmul.bf16.gmra.mxu0 %v5240
  %v6121 = vpop.f32.mrf.mxu0
  %v6122 = vadd.f32 %v6088, %v6121
  %v6123 = vpop.f32.mrf.mxu0
  %v6124 = vadd.f32 %v6090, %v6123
  %6125 = vmatmul.bf16.gmra.mxu0 %v5244
  %v6126 = vpop.f32.mrf.mxu0
  %v6127 = vadd.f32 %v6093, %v6126
  %v6128 = vpop.f32.mrf.mxu0
  %v6129 = vadd.f32 %v6095, %v6128
  %6130 = vmatmul.bf16.gmra.mxu0 %v5253
  %v6131 = vpop.f32.mrf.mxu0
  %v6132 = vadd.f32 %v6098, %v6131
  %v6133 = vpop.f32.mrf.mxu0
  %v6134 = vadd.f32 %v6100, %v6133
  %6135 = vmatmul.bf16.gmra.mxu0 %v5262
  %v6136 = vpop.f32.mrf.mxu0
  %v6137 = vadd.f32 %v6103, %v6136
  %v6138 = vpop.f32.mrf.mxu0
  %v6139 = vadd.f32 %v6105, %v6138
  %6140 = vmatmul.bf16.gmra.mxu0 %v5261
  %v6141 = vpop.f32.mrf.mxu0
  %v6142 = vadd.f32 %v6108, %v6141
  %v6143 = vpop.f32.mrf.mxu0
  %v6144 = vadd.f32 %v6110, %v6143
  %6145 = vdwg.mxu0
  %6146 = vmatpush.bf16.msra.mxu0 %v5801
  %6147 = vmatpush.bf16.msra.mxu0 %v5800
  %6148 = vmatpush.bf16.msra.mxu0 %v5799
  %6149 = vmatpush.bf16.msra.mxu0 %v5798
  %6150 = vmatpush.bf16.msra.mxu0 %v5797
  %6151 = vmatpush.bf16.msra.mxu0 %v5796
  %6152 = vmatpush.bf16.msra.mxu0 %v5795
  %6153 = vmatpush.bf16.msra.mxu0 %v5794
  %6154 = vmatmul.bf16.gmra.mxu0 %v5288
  %v6155 = vpop.f32.mrf.mxu0
  %v6156 = vadd.f32 %v6122, %v6155
  %v6157 = vpop.f32.mrf.mxu0
  %v6158 = vadd.f32 %v6124, %v6157
  %6159 = vmatmul.bf16.gmra.mxu0 %v5289
  %v6160 = vpop.f32.mrf.mxu0
  %v6161 = vadd.f32 %v6127, %v6160
  %v6162 = vpop.f32.mrf.mxu0
  %v6163 = vadd.f32 %v6129, %v6162
  %6164 = vmatmul.bf16.gmra.mxu0 %v5290
  %v6165 = vpop.f32.mrf.mxu0
  %v6166 = vadd.f32 %v6132, %v6165
  %v6167 = vpop.f32.mrf.mxu0
  %v6168 = vadd.f32 %v6134, %v6167
  %6169 = vmatmul.bf16.gmra.mxu0 %v5291
  %v6170 = vpop.f32.mrf.mxu0
  %v6171 = vadd.f32 %v6137, %v6170
  %v6172 = vpop.f32.mrf.mxu0
  %v6173 = vadd.f32 %v6139, %v6172
  %6174 = vmatmul.bf16.gmra.mxu0 %v5292
  %v6175 = vpop.f32.mrf.mxu0
  %v6176 = vadd.f32 %v6142, %v6175
  %v6177 = vpop.f32.mrf.mxu0
  %v6178 = vadd.f32 %v6144, %v6177
  %6179 = vdwg.mxu0
  %v6180 = vmax.f32 %v6156, 0.0
  %v6181 = vmax.f32 %v6158, 0.0
  %v6182 = vmax.f32 %v6161, 0.0
  %v6183 = vmax.f32 %v6163, 0.0
  %v6184 = vmax.f32 %v6166, 0.0
  %v6185 = vmax.f32 %v6168, 0.0
  %v6186 = vmax.f32 %v6171, 0.0
  %v6187 = vmax.f32 %v6173, 0.0
  %v6188 = vmax.f32 %v6176, 0.0
  %v6189 = vmax.f32 %v6178, 0.0
  %v6190 = vpack.c.bf16 %v6180, %v6180
  %v6191 = vpack.c.bf16 %v6181, %v6181
  %v6192 = vpack.c.bf16 %v6182, %v6182
  %v6193 = vpack.c.bf16 %v6183, %v6183
  %v6194 = vpack.c.bf16 %v6184, %v6184
  %v6195 = vpack.c.bf16 %v6185, %v6185
  %v6196 = vpack.c.bf16 %v6186, %v6186
  %v6197 = vpack.c.bf16 %v6187, %v6187
  %v6198 = vpack.c.bf16 %v6188, %v6188
  %v6199 = vpack.c.bf16 %v6189, %v6189
  %6200 = vst.msk [vmem:[#allocation4] sm:$0xf] %vm3072, %v6190
  %6201 = vst.msk [vmem:[#allocation4 + $0x4] sm:$0xf] %vm3072, %v6191
  %6202 = vst.msk [vmem:[#allocation4 + $0x8] sm:$0xf] %vm3072, %v6192
  %6203 = vst.msk [vmem:[#allocation4 + $0xc] sm:$0xf] %vm3072, %v6193
  %6204 = vst.msk [vmem:[#allocation4 + $0x10] sm:$0xf] %vm3072, %v6194
  %6205 = vst.msk [vmem:[#allocation4 + $0x14] sm:$0xf] %vm3072, %v6195
  %6206 = vst.msk [vmem:[#allocation4 + $0x18] sm:$0xf] %vm3072, %v6196
  %6207 = vst.msk [vmem:[#allocation4 + $0x1c] sm:$0xf] %vm3072, %v6197
  %6208 = vst.msk [vmem:[#allocation4 + $0x20] sm:$0xf] %vm3072, %v6198
  %v6209 = vld [vmem:[#allocation4 + $0x24] sm:$0x1]
  %v6210 = vsel %vm3083, %v6199, %v6209
  %6211 = vst [vmem:[#allocation4 + $0x24] sm:$0x1] %v6210
  %v6212 = vld [vmem:[#allocation4] sm:$0xf]
  %s6213 = scalar_lea.vmem %s7, 28
  %v6214 = vld [vmem:[%s6213] sm:$0xf]
  %v6215 = vsel %vm3090, %v6212, %v6214
  %6216 = vst [vmem:[%s6213] sm:$0xf] %v6215
  %v6217 = vld [vmem:[#allocation4 + $0x4] sm:$0xe]
  %v6218 = vld [vmem:[#allocation4 + $0x8] sm:$0x1]
  %v6221 = vrot.slane %v6217, 6
  %v6222 = vrot.slane %v6221, 4
  %v6223 = vrot.slane %v6218, 6
  %v6224 = vsel %vm3100, %v6222, %v6223
  %v6227 = vld [vmem:[%s6213] sm:$0x8]
  %v6228 = vsel %vm3109, %v6221, %v6227
  %6229 = vst [vmem:[%s6213] sm:$0x8] %v6228
  %6230 = vst.msk [vmem:[%s6213 + $0x4] sm:$0x7] %vm3113, %v6224
  %v6231 = vld [vmem:[#allocation4 + $0x8] sm:$0x8]
  %v6232 = vld [vmem:[#allocation4 + $0xc] sm:$0x7]
  %6233 = vst.msk [vmem:[%s6213 + $0x4] sm:$0x8] %vm3117, %v6231
  %v6234 = vld [vmem:[%s6213 + $0x8] sm:$0x7]
  %v6235 = vsel %vm3121, %v6232, %v6234
  %6236 = vst [vmem:[%s6213 + $0x8] sm:$0x7] %v6235
  %v6237 = vld [vmem:[#allocation4 + $0x10] sm:$0xf]
  %v6239 = vrot.slane %v6237, 6
  %v6240 = vrot.slane %v6239, 4
  %v6243 = vld [vmem:[%s6213 + $0x8] sm:$0xc]
  %v6244 = vsel %vm3133, %v6239, %v6243
  %6245 = vst [vmem:[%s6213 + $0x8] sm:$0xc] %v6244
  %6246 = vst.msk [vmem:[%s6213 + $0xc] sm:$0x3] %vm3137, %v6240
  %v6247 = vld [vmem:[#allocation4 + $0x14] sm:$0xc]
  %v6248 = vld [vmem:[#allocation4 + $0x18] sm:$0x3]
  %6249 = vst.msk [vmem:[%s6213 + $0xc] sm:$0xc] %vm3141, %v6247
  %v6250 = vld [vmem:[%s6213 + $0x10] sm:$0x3]
  %v6251 = vsel %vm3145, %v6248, %v6250
  %6252 = vst [vmem:[%s6213 + $0x10] sm:$0x3] %v6251
  %v6253 = vld [vmem:[#allocation4 + $0x18] sm:$0x8]
  %v6254 = vld [vmem:[#allocation4 + $0x1c] sm:$0x7]
  %v6257 = vrot.slane %v6253, 6
  %v6258 = vrot.slane %v6257, 4
  %v6259 = vrot.slane %v6254, 6
  %v6260 = vsel %vm3100, %v6258, %v6259
  %v6261 = vrot.slane %v6259, 4
  %v6264 = vld [vmem:[%s6213 + $0x10] sm:$0xe]
  %v6265 = vsel %vm3162, %v6260, %v6264
  %6266 = vst [vmem:[%s6213 + $0x10] sm:$0xe] %v6265
  %6267 = vst.msk [vmem:[%s6213 + $0x14] sm:$0x1] %vm3166, %v6261
  %v6268 = vld [vmem:[#allocation4 + $0x20] sm:$0xe]
  %v6269 = vld [vmem:[#allocation4 + $0x24] sm:$0x1]
  %6270 = vst.msk [vmem:[%s6213 + $0x14] sm:$0xe] %vm3170, %v6268
  %v6271 = vld [vmem:[%s6213 + $0x18] sm:$0x1]
  %v6272 = vsel %vm3083, %v6269, %v6271
  %6273 = vst [vmem:[%s6213 + $0x18] sm:$0x1] %v6272
  // Predicated region
  $region30: #{network_forward.2} parent=0 // pred_check
    _
  $region31: #{network_forward.2} parent=0 // pred_check_branch
    %6275 = sbr.rel (0) target = $region33
  $region32: #{network_forward.2} parent=0 // pred_region
    _
  $region33: #{network_forward.2} parent=0 // pred_fallthru
    _
  // Predicated region
  $region34: #{network_forward.2} parent=0 // pred_check
    _
  $region35: #{network_forward.2} parent=0 // pred_check_branch
    %6277 = sbr.rel (0) target = $region37
  $region36: #{network_forward.2} parent=0 // pred_region
    _
  $region37: #{network_forward.2} parent=0 // pred_fallthru
    _

</llo_original>
